<compile_context>
chip_gen: v6e
topology: v6e:2x2x1
jax: 0.10.0
libtpu: 0.0.40
codegen_flags: <defaults>
</compile_context>

<pallas_src>
import math
import jax
import jax.numpy as jnp
from jax.experimental import pallas as pl
from jax.experimental.pallas import tpu as pltpu

# ----------------------- small synthetic config -----------------------------
B, S = 2, 8                  # batch, sequence length
H = 256                      # hidden size (768 in the real model)
NUM_HEADS = 2                # 12 in the real model
HEAD_DIM = H // NUM_HEADS    # 128 -> head slices are full-vreg lane-aligned
FF = 1024                    # intermediate size (3072 in the real model)
LAYERS = 2                   # 12 in the real model
VOCAB = 1000
MAX_POS = 64
TYPE_VOCAB = 2
NUM_LABELS = 23
LOGIT_PAD = 128              # lane-dense classifier output width (slice to 23 outside)
LN_EPS = 1e-12
ATTN_SCALE = 1.0 / math.sqrt(HEAD_DIM)


# ----------------------------- kernel helpers --------------------------------
def _layernorm(x, g, b):
    # f32 math; eps=1e-12 underflows bf16, so LN always stays in f32.
    mu = jnp.mean(x, axis=-1, keepdims=True)
    var = jnp.mean((x - mu) ** 2, axis=-1, keepdims=True)
    return (x - mu) * jax.lax.rsqrt(var + LN_EPS) * g + b


def _gelu(x):
    # TODO(synk): HF BERT uses the exact erf-based GELU; tanh approximation used here.
    return 0.5 * x * (1.0 + jnp.tanh(0.7978845608028654 * (x + 0.044715 * x * x * x)))


# ------------------------------ fused kernel ----------------------------------
def fused_forward_kernel(x_ref, mask_ref, embg_ref, embb_ref,
                         wqkv_ref, bqkv_ref, wo_ref, bo_ref, ln1g_ref, ln1b_ref,
                         wi_ref, bi_ref, wf_ref, bf_ref, ln2g_ref, ln2b_ref,
                         wp_ref, bp_ref, wc_ref, bc_ref,
                         logits_ref):
    # Embedding LayerNorm over the whole (B*S, H) batch.
    x = x_ref[...].reshape(B * S, H)                                    # f32
    x = _layernorm(x, embg_ref[...], embb_ref[...])

    add_mask = mask_ref[...]                                            # (B, 1, S) f32

    # Python loop over layers: all layer weights resident in VMEM (toy size only;
    # see scaling NOTE at the top for the layer-streamed production structure).
    for l in range(LAYERS):
        x_bf = x.astype(jnp.bfloat16)

        # Fused QKV projection: one (B*S, H) x (H, 3H) MXU matmul, f32 accumulation.
        # 1/sqrt(head_dim) is pre-folded into the Q columns of wqkv at init time.
        qkv = (jnp.dot(x_bf, wqkv_ref[l], preferred_element_type=jnp.float32)
               + bqkv_ref[l]).reshape(B, S, 3 * H)

        wo_l = wo_ref[l]                                                # (H, H) bf16

        # Attention: per-head loop over lane-aligned 128-wide slices, batched over B.
        # Output projection folded into the loop -> no concatenate copy materialized.
        attn = jnp.zeros((B * S, H), jnp.float32)
        for h in range(NUM_HEADS):
            qs = slice(h * HEAD_DIM, (h + 1) * HEAD_DIM)
            ks = slice(H + h * HEAD_DIM, H + (h + 1) * HEAD_DIM)
            vs = slice(2 * H + h * HEAD_DIM, 2 * H + (h + 1) * HEAD_DIM)
            q_h = qkv[:, :, qs].astype(jnp.bfloat16)                    # (B, S, 128)
            k_h = qkv[:, :, ks].astype(jnp.bfloat16)
            v_h = qkv[:, :, vs].astype(jnp.bfloat16)

            scores = jnp.einsum('bqd,bkd->bqk', q_h, k_h,
                                preferred_element_type=jnp.float32) + add_mask
            scores = scores - jnp.max(scores, axis=-1, keepdims=True)
            p = jnp.exp(scores)
            p = p * pl.reciprocal(jnp.sum(p, axis=-1, keepdims=True), approx=True)
            ctx = jnp.einsum('bqk,bkd->bqd', p.astype(jnp.bfloat16), v_h,
                             preferred_element_type=jnp.float32)        # (B, S, 128)

            attn = attn + jnp.dot(
                ctx.reshape(B * S, HEAD_DIM).astype(jnp.bfloat16),
                wo_l[qs, :], preferred_element_type=jnp.float32)

        h1 = _layernorm(x + attn + bo_ref[l], ln1g_ref[l], ln1b_ref[l])  # residual f32

        ff = jnp.dot(h1.astype(jnp.bfloat16), wi_ref[l],
                     preferred_element_type=jnp.float32) + bi_ref[l]
        ff = _gelu(ff)
        ff = jnp.dot(ff.astype(jnp.bfloat16), wf_ref[l],
                     preferred_element_type=jnp.float32) + bf_ref[l]
        x = _layernorm(h1 + ff, ln2g_ref[l], ln2b_ref[l])

    # BERT pooler + classifier on the resident [CLS] rows (token 0 of each sequence).
    cls = x.reshape(B, S, H)[:, 0, :]                                    # (B, H)
    pooled = jnp.tanh(jnp.dot(cls.astype(jnp.bfloat16), wp_ref[...],
                              preferred_element_type=jnp.float32) + bp_ref[...])
    # torch.nn.Dropout(0.3) is an identity in eval mode (no scaling / masking).
    logits = jnp.dot(pooled.astype(jnp.bfloat16), wc_ref[...],
                     preferred_element_type=jnp.float32) + bc_ref[...]   # (B, 128)
    logits_ref[...] = logits.astype(logits_ref.dtype)


# ------------------------------ kernel wrapper --------------------------------
def fused_encoder_pooler_classifier(x_emb, add_mask, params):
    stk = params["stacked"]
    args = [x_emb, add_mask, params["emb_ln_g"], params["emb_ln_b"],
            stk["wqkv"], stk["bqkv"], stk["wo"], stk["bo"],
            stk["ln1_g"], stk["ln1_b"],
            stk["wi"], stk["bi"], stk["wf"], stk["bf"],
            stk["ln2_g"], stk["ln2_b"],
            params["wp"], params["bp"], params["wc_pad"], params["bc_pad"]]

    # Whole-array VMEM residency, no grid -> no pipelining machinery, no
    # double-buffered weight copies, no grid-step overhead.
    in_specs = [pl.BlockSpec(memory_space=pltpu.MemorySpace.VMEM) for _ in args]
    out_spec = pl.BlockSpec(memory_space=pltpu.MemorySpace.VMEM)

    # Advisory cost estimate so XLA schedules surrounding ops around the fused call.
    matmul_flops = 2 * B * S * LAYERS * (H * 3 * H + H * H + 2 * H * FF)
    attn_flops = 2 * LAYERS * B * NUM_HEADS * S * S * HEAD_DIM * 2
    head_flops = 2 * B * (H * H + H * LOGIT_PAD)
    transcendentals = (LAYERS * B * NUM_HEADS * S * S   # softmax exp
                       + LAYERS * B * S * FF            # GELU tanh
                       + B * H)                         # pooler tanh
    bytes_accessed = (sum(int(a.size) * a.dtype.itemsize for a in args)
                      + B * LOGIT_PAD * 4)

    logits_pad = pl.pallas_call(
        fused_forward_kernel,
        out_shape=jax.ShapeDtypeStruct((B, LOGIT_PAD), jnp.float32),
        in_specs=in_specs,
        out_specs=out_spec,
        cost_estimate=pl.CostEstimate(
            flops=int(matmul_flops + attn_flops + head_flops),
            transcendentals=int(transcendentals),
            bytes_accessed=int(bytes_accessed)),
    )(*args)
    return logits_pad


# ------------------------------ forward pass ----------------------------------
def mbert_slavic_forward(ids, mask, token_type_ids, params):
    # Embedding lookups (table gathers) kept as plain-JAX glue at toy size; at real
    # scale the ids would be scalar-prefetched and the gather fused into the kernel.
    x = (params["word_emb"][ids]
         + params["pos_emb"][:S][None, :, :]
         + params["type_emb"][token_type_ids]).astype(jnp.float32)

    # HF-style extended attention mask: 0 for keep, -10000 for pad, shape (B, 1, S).
    add_mask = ((1.0 - mask.astype(jnp.float32)) * -10000.0)[:, None, :]

    logits_pad = fused_encoder_pooler_classifier(x, add_mask, params)
    return logits_pad[:, :NUM_LABELS]


# --------------------------- deterministic params ------------------------------
def init_params(key):
    def dense_f32(k, fi, fo):
        return jax.random.normal(k, (fi, fo), jnp.float32) * 0.02

    keys = iter(jax.random.split(key, 5 + 6 * LAYERS))
    p = {
        "word_emb": jax.random.normal(next(keys), (VOCAB, H), jnp.float32) * 0.02,
        "pos_emb": jax.random.normal(next(keys), (MAX_POS, H), jnp.float32) * 0.02,
        "type_emb": jax.random.normal(next(keys), (TYPE_VOCAB, H), jnp.float32) * 0.02,
        "emb_ln_g": jnp.ones((1, H), jnp.float32),
        "emb_ln_b": jnp.zeros((1, H), jnp.float32),
        "wp": dense_f32(next(keys), H, H).astype(jnp.bfloat16),
        "bp": jnp.zeros((1, H), jnp.float32),
    }
    # Classifier padded to 128 output lanes (zero-padded columns), sliced outside.
    wc = dense_f32(next(keys), H, NUM_LABELS)
    p["wc_pad"] = (jnp.zeros((H, LOGIT_PAD), jnp.float32)
                   .at[:, :NUM_LABELS].set(wc).astype(jnp.bfloat16))
    p["bc_pad"] = jnp.zeros((1, LOGIT_PAD), jnp.float32)

    # Per-layer weights stacked along a leading layer axis; wq|wk|wv fused into wqkv.
    names = ["wqkv", "bqkv", "wo", "bo", "ln1_g", "ln1_b",
             "wi", "bi", "wf", "bf", "ln2_g", "ln2_b"]
    acc = {n: [] for n in names}
    for _ in range(LAYERS):
        wq, wk, wv = (dense_f32(next(keys), H, H) for _ in range(3))
        # Fold the 1/sqrt(head_dim) attention scale into the Q columns (and the Q bias,
        # which is zero here) once at init -- zero per-layer kernel cost.
        wq = wq * ATTN_SCALE
        acc["wqkv"].append(jnp.concatenate([wq, wk, wv], axis=1).astype(jnp.bfloat16))
        acc["bqkv"].append(jnp.zeros((1, 3 * H), jnp.float32))
        acc["wo"].append(dense_f32(next(keys), H, H).astype(jnp.bfloat16))
        acc["bo"].append(jnp.zeros((1, H), jnp.float32))
        acc["ln1_g"].append(jnp.ones((1, H), jnp.float32))
        acc["ln1_b"].append(jnp.zeros((1, H), jnp.float32))
        acc["wi"].append(dense_f32(next(keys), H, FF).astype(jnp.bfloat16))
        acc["bi"].append(jnp.zeros((1, FF), jnp.float32))
        acc["wf"].append(dense_f32(next(keys), FF, H).astype(jnp.bfloat16))
        acc["bf"].append(jnp.zeros((1, H), jnp.float32))
        acc["ln2_g"].append(jnp.ones((1, H), jnp.float32))
        acc["ln2_b"].append(jnp.zeros((1, H), jnp.float32))
    p["stacked"] = {n: jnp.stack(v, axis=0) for n, v in acc.items()}
    return p


if __name__ == "__main__":
    root = jax.random.PRNGKey(0)
    kp, kid = jax.random.split(root, 2)

    params = init_params(kp)
    ids = jax.random.randint(kid, (B, S), 0, VOCAB, dtype=jnp.int32)
    # second sequence has 2 padded positions to exercise the attention mask
    mask = jnp.array([[1] * S, [1] * (S - 2) + [0] * 2], dtype=jnp.int32)
    token_type_ids = jnp.zeros((B, S), dtype=jnp.int32)

    logits = mbert_slavic_forward(ids, mask, token_type_ids, params)
    logits = jax.block_until_ready(logits)

    assert logits.shape == (B, NUM_LABELS), logits.shape
    assert bool(jnp.all(jnp.isfinite(logits)))
    print("KERNEL_OK")
</pallas_src>

<mosaic_0001>
module attributes {stable_mosaic.version = 11 : i64} {
  func.func @fused_forward_kernel(%arg0: memref<2x8x256xf32, #tpu.memory_space<vmem>>, %arg1: memref<2x1x8xf32, #tpu.memory_space<vmem>>, %arg2: memref<1x256xf32, #tpu.memory_space<vmem>>, %arg3: memref<1x256xf32, #tpu.memory_space<vmem>>, %arg4: memref<2x256x768xbf16, #tpu.memory_space<vmem>>, %arg5: memref<2x1x768xf32, #tpu.memory_space<vmem>>, %arg6: memref<2x256x256xbf16, #tpu.memory_space<vmem>>, %arg7: memref<2x1x256xf32, #tpu.memory_space<vmem>>, %arg8: memref<2x1x256xf32, #tpu.memory_space<vmem>>, %arg9: memref<2x1x256xf32, #tpu.memory_space<vmem>>, %arg10: memref<2x256x1024xbf16, #tpu.memory_space<vmem>>, %arg11: memref<2x1x1024xf32, #tpu.memory_space<vmem>>, %arg12: memref<2x1024x256xbf16, #tpu.memory_space<vmem>>, %arg13: memref<2x1x256xf32, #tpu.memory_space<vmem>>, %arg14: memref<2x1x256xf32, #tpu.memory_space<vmem>>, %arg15: memref<2x1x256xf32, #tpu.memory_space<vmem>>, %arg16: memref<256x256xbf16, #tpu.memory_space<vmem>>, %arg17: memref<1x256xf32, #tpu.memory_space<vmem>>, %arg18: memref<256x128xbf16, #tpu.memory_space<vmem>>, %arg19: memref<1x128xf32, #tpu.memory_space<vmem>>, %arg20: memref<2x128xf32, #tpu.memory_space<vmem>>) attributes {dimension_semantics = [], scalar_prefetch = 0 : i64, scratch_operands = 0 : i64, tpu.core_type = #tpu.core_type<tc>} {
    %c0 = arith.constant 0 : index
    %c0_0 = arith.constant 0 : index
    %c0_1 = arith.constant 0 : index
    %0 = vector.load %arg0[%c0, %c0_0, %c0_1] : memref<2x8x256xf32, #tpu.memory_space<vmem>>, vector<2x8x256xf32>
    %1 = vector.shape_cast %0 : vector<2x8x256xf32> to vector<16x256xf32>
    %c0_2 = arith.constant 0 : index
    %c0_3 = arith.constant 0 : index
    %2 = vector.load %arg2[%c0_2, %c0_3] : memref<1x256xf32, #tpu.memory_space<vmem>>, vector<1x256xf32>
    %c0_4 = arith.constant 0 : index
    %c0_5 = arith.constant 0 : index
    %3 = vector.load %arg3[%c0_4, %c0_5] : memref<1x256xf32, #tpu.memory_space<vmem>>, vector<1x256xf32>
    %cst = arith.constant dense<0.000000e+00> : vector<16xf32>
    %4 = vector.multi_reduction <add>, %1, %cst [1] : vector<16x256xf32> to vector<16xf32>
    %5 = vector.shape_cast %4 : vector<16xf32> to vector<16x1xf32>
    %cst_6 = arith.constant 2.560000e+02 : f32
    %6 = vector.broadcast %cst_6 : f32 to vector<16x1xf32>
    %7 = arith.divf %5, %6 : vector<16x1xf32>
    %8 = vector.broadcast %7 : vector<16x1xf32> to vector<16x256xf32>
    %9 = arith.subf %1, %8 : vector<16x256xf32>
    %10 = arith.mulf %9, %9 : vector<16x256xf32>
    %cst_7 = arith.constant dense<0.000000e+00> : vector<16xf32>
    %11 = vector.multi_reduction <add>, %10, %cst_7 [1] : vector<16x256xf32> to vector<16xf32>
    %12 = vector.shape_cast %11 : vector<16xf32> to vector<16x1xf32>
    %cst_8 = arith.constant 2.560000e+02 : f32
    %13 = vector.broadcast %cst_8 : f32 to vector<16x1xf32>
    %14 = arith.divf %12, %13 : vector<16x1xf32>
    %15 = vector.broadcast %7 : vector<16x1xf32> to vector<16x256xf32>
    %16 = arith.subf %1, %15 : vector<16x256xf32>
    %cst_9 = arith.constant 9.99999996E-13 : f32
    %17 = vector.broadcast %cst_9 : f32 to vector<16x1xf32>
    %18 = arith.addf %14, %17 : vector<16x1xf32>
    %19 = math.rsqrt %18 : vector<16x1xf32>
    %20 = vector.broadcast %19 : vector<16x1xf32> to vector<16x256xf32>
    %21 = arith.mulf %16, %20 : vector<16x256xf32>
    %22 = vector.broadcast %2 : vector<1x256xf32> to vector<16x256xf32>
    %23 = arith.mulf %21, %22 : vector<16x256xf32>
    %24 = vector.broadcast %3 : vector<1x256xf32> to vector<16x256xf32>
    %25 = arith.addf %23, %24 : vector<16x256xf32>
    %c0_10 = arith.constant 0 : index
    %c0_11 = arith.constant 0 : index
    %c0_12 = arith.constant 0 : index
    %26 = vector.load %arg1[%c0_10, %c0_11, %c0_12] : memref<2x1x8xf32, #tpu.memory_space<vmem>>, vector<2x1x8xf32>
    %27 = arith.truncf %25 : vector<16x256xf32> to vector<16x256xbf16>
    %c0_13 = arith.constant 0 : index
    %c0_14 = arith.constant 0 : index
    %c0_15 = arith.constant 0 : index
    %28 = vector.load %arg4[%c0_13, %c0_14, %c0_15] : memref<2x256x768xbf16, #tpu.memory_space<vmem>>, vector<1x256x768xbf16>
    %29 = vector.shape_cast %28 : vector<1x256x768xbf16> to vector<256x768xbf16>
    %cst_16 = arith.constant dense<0.000000e+00> : vector<16x768xf32>
    %30 = tpu.matmul %27, %29, %cst_16 {dimension_numbers = #tpu.dot_dimension_numbers<[1], [0], [0], [1], [0, 0, 1, 1], [], []>} : vector<16x256xbf16>, vector<256x768xbf16>, vector<16x768xf32> -> vector<16x768xf32>
    %c0_17 = arith.constant 0 : index
    %c0_18 = arith.constant 0 : index
    %c0_19 = arith.constant 0 : index
    %31 = vector.load %arg5[%c0_17, %c0_18, %c0_19] : memref<2x1x768xf32, #tpu.memory_space<vmem>>, vector<1x1x768xf32>
    %32 = vector.shape_cast %31 : vector<1x1x768xf32> to vector<1x768xf32>
    %33 = vector.broadcast %32 : vector<1x768xf32> to vector<16x768xf32>
    %34 = arith.addf %30, %33 : vector<16x768xf32>
    %35 = vector.shape_cast %34 : vector<16x768xf32> to vector<2x8x768xf32>
    %c0_20 = arith.constant 0 : index
    %c0_21 = arith.constant 0 : index
    %c0_22 = arith.constant 0 : index
    %36 = vector.load %arg6[%c0_20, %c0_21, %c0_22] : memref<2x256x256xbf16, #tpu.memory_space<vmem>>, vector<1x256x256xbf16>
    %37 = vector.shape_cast %36 : vector<1x256x256xbf16> to vector<256x256xbf16>
    %cst_23 = arith.constant 0.000000e+00 : f32
    %38 = vector.broadcast %cst_23 : f32 to vector<16x256xf32>
    %39 = vector.extract_strided_slice %35 {offsets = [0, 0, 0], sizes = [2, 8, 128], strides = [1, 1, 1]} : vector<2x8x768xf32> to vector<2x8x128xf32>
    %40 = arith.truncf %39 : vector<2x8x128xf32> to vector<2x8x128xbf16>
    %41 = vector.extract_strided_slice %35 {offsets = [0, 0, 256], sizes = [2, 8, 128], strides = [1, 1, 1]} : vector<2x8x768xf32> to vector<2x8x128xf32>
    %42 = arith.truncf %41 : vector<2x8x128xf32> to vector<2x8x128xbf16>
    %43 = vector.extract_strided_slice %35 {offsets = [0, 0, 512], sizes = [2, 8, 128], strides = [1, 1, 1]} : vector<2x8x768xf32> to vector<2x8x128xf32>
    %44 = arith.truncf %43 : vector<2x8x128xf32> to vector<2x8x128xbf16>
    "tpu.trace_start"() <{level = 10 : i32, message = "bqd,bkd->bqk"}> : () -> ()
    %cst_24 = arith.constant dense<0.000000e+00> : vector<2x8x8xf32>
    %45 = tpu.matmul %40, %42, %cst_24 {dimension_numbers = #tpu.dot_dimension_numbers<[2], [2], [1], [1], [0, 0, 0, 1, 1, 1], [0], [0]>} : vector<2x8x128xbf16>, vector<2x8x128xbf16>, vector<2x8x8xf32> -> vector<2x8x8xf32>
    "tpu.trace_stop"() : () -> ()
    %46 = vector.broadcast %26 : vector<2x1x8xf32> to vector<2x8x8xf32>
    %47 = arith.addf %45, %46 : vector<2x8x8xf32>
    %cst_25 = arith.constant dense<0xFF800000> : vector<2x8xf32>
    %48 = vector.multi_reduction <maximumf>, %47, %cst_25 [2] : vector<2x8x8xf32> to vector<2x8xf32>
    %49 = vector.shape_cast %48 : vector<2x8xf32> to vector<2x8x1xf32>
    %50 = vector.broadcast %49 : vector<2x8x1xf32> to vector<2x8x8xf32>
    %51 = arith.subf %47, %50 : vector<2x8x8xf32>
    %52 = math.exp %51 : vector<2x8x8xf32>
    %cst_26 = arith.constant dense<0.000000e+00> : vector<2x8xf32>
    %53 = vector.multi_reduction <add>, %52, %cst_26 [2] : vector<2x8x8xf32> to vector<2x8xf32>
    %54 = vector.shape_cast %53 : vector<2x8xf32> to vector<2x8x1xf32>
    %55 = tpu.reciprocal %54 {approx = true} : vector<2x8x1xf32> -> vector<2x8x1xf32>
    %56 = vector.broadcast %55 : vector<2x8x1xf32> to vector<2x8x8xf32>
    %57 = arith.mulf %52, %56 : vector<2x8x8xf32>
    %58 = arith.truncf %57 : vector<2x8x8xf32> to vector<2x8x8xbf16>
    "tpu.trace_start"() <{level = 10 : i32, message = "bqk,bkd->bqd"}> : () -> ()
    %cst_27 = arith.constant dense<0.000000e+00> : vector<2x8x128xf32>
    %59 = tpu.matmul %58, %44, %cst_27 {dimension_numbers = #tpu.dot_dimension_numbers<[2], [1], [1], [2], [0, 0, 0, 1, 1, 2], [0], [0]>} : vector<2x8x8xbf16>, vector<2x8x128xbf16>, vector<2x8x128xf32> -> vector<2x8x128xf32>
    "tpu.trace_stop"() : () -> ()
    %60 = vector.shape_cast %59 : vector<2x8x128xf32> to vector<16x128xf32>
    %61 = arith.truncf %60 : vector<16x128xf32> to vector<16x128xbf16>
    %62 = vector.extract_strided_slice %37 {offsets = [0, 0], sizes = [128, 256], strides = [1, 1]} : vector<256x256xbf16> to vector<128x256xbf16>
    %cst_28 = arith.constant dense<0.000000e+00> : vector<16x256xf32>
    %63 = tpu.matmul %61, %62, %cst_28 {dimension_numbers = #tpu.dot_dimension_numbers<[1], [0], [0], [1], [0, 0, 1, 1], [], []>} : vector<16x128xbf16>, vector<128x256xbf16>, vector<16x256xf32> -> vector<16x256xf32>
    %64 = arith.addf %38, %63 : vector<16x256xf32>
    %65 = vector.extract_strided_slice %35 {offsets = [0, 0, 128], sizes = [2, 8, 128], strides = [1, 1, 1]} : vector<2x8x768xf32> to vector<2x8x128xf32>
    %66 = arith.truncf %65 : vector<2x8x128xf32> to vector<2x8x128xbf16>
    %67 = vector.extract_strided_slice %35 {offsets = [0, 0, 384], sizes = [2, 8, 128], strides = [1, 1, 1]} : vector<2x8x768xf32> to vector<2x8x128xf32>
    %68 = arith.truncf %67 : vector<2x8x128xf32> to vector<2x8x128xbf16>
    %69 = vector.extract_strided_slice %35 {offsets = [0, 0, 640], sizes = [2, 8, 128], strides = [1, 1, 1]} : vector<2x8x768xf32> to vector<2x8x128xf32>
    %70 = arith.truncf %69 : vector<2x8x128xf32> to vector<2x8x128xbf16>
    "tpu.trace_start"() <{level = 10 : i32, message = "bqd,bkd->bqk"}> : () -> ()
    %cst_29 = arith.constant dense<0.000000e+00> : vector<2x8x8xf32>
    %71 = tpu.matmul %66, %68, %cst_29 {dimension_numbers = #tpu.dot_dimension_numbers<[2], [2], [1], [1], [0, 0, 0, 1, 1, 1], [0], [0]>} : vector<2x8x128xbf16>, vector<2x8x128xbf16>, vector<2x8x8xf32> -> vector<2x8x8xf32>
    "tpu.trace_stop"() : () -> ()
    %72 = vector.broadcast %26 : vector<2x1x8xf32> to vector<2x8x8xf32>
    %73 = arith.addf %71, %72 : vector<2x8x8xf32>
    %cst_30 = arith.constant dense<0xFF800000> : vector<2x8xf32>
    %74 = vector.multi_reduction <maximumf>, %73, %cst_30 [2] : vector<2x8x8xf32> to vector<2x8xf32>
    %75 = vector.shape_cast %74 : vector<2x8xf32> to vector<2x8x1xf32>
    %76 = vector.broadcast %75 : vector<2x8x1xf32> to vector<2x8x8xf32>
    %77 = arith.subf %73, %76 : vector<2x8x8xf32>
    %78 = math.exp %77 : vector<2x8x8xf32>
    %cst_31 = arith.constant dense<0.000000e+00> : vector<2x8xf32>
    %79 = vector.multi_reduction <add>, %78, %cst_31 [2] : vector<2x8x8xf32> to vector<2x8xf32>
    %80 = vector.shape_cast %79 : vector<2x8xf32> to vector<2x8x1xf32>
    %81 = tpu.reciprocal %80 {approx = true} : vector<2x8x1xf32> -> vector<2x8x1xf32>
    %82 = vector.broadcast %81 : vector<2x8x1xf32> to vector<2x8x8xf32>
    %83 = arith.mulf %78, %82 : vector<2x8x8xf32>
    %84 = arith.truncf %83 : vector<2x8x8xf32> to vector<2x8x8xbf16>
    "tpu.trace_start"() <{level = 10 : i32, message = "bqk,bkd->bqd"}> : () -> ()
    %cst_32 = arith.constant dense<0.000000e+00> : vector<2x8x128xf32>
    %85 = tpu.matmul %84, %70, %cst_32 {dimension_numbers = #tpu.dot_dimension_numbers<[2], [1], [1], [2], [0, 0, 0, 1, 1, 2], [0], [0]>} : vector<2x8x8xbf16>, vector<2x8x128xbf16>, vector<2x8x128xf32> -> vector<2x8x128xf32>
    "tpu.trace_stop"() : () -> ()
    %86 = vector.shape_cast %85 : vector<2x8x128xf32> to vector<16x128xf32>
    %87 = arith.truncf %86 : vector<16x128xf32> to vector<16x128xbf16>
    %88 = vector.extract_strided_slice %37 {offsets = [128, 0], sizes = [128, 256], strides = [1, 1]} : vector<256x256xbf16> to vector<128x256xbf16>
    %cst_33 = arith.constant dense<0.000000e+00> : vector<16x256xf32>
    %89 = tpu.matmul %87, %88, %cst_33 {dimension_numbers = #tpu.dot_dimension_numbers<[1], [0], [0], [1], [0, 0, 1, 1], [], []>} : vector<16x128xbf16>, vector<128x256xbf16>, vector<16x256xf32> -> vector<16x256xf32>
    %90 = arith.addf %64, %89 : vector<16x256xf32>
    %91 = arith.addf %25, %90 : vector<16x256xf32>
    %c0_34 = arith.constant 0 : index
    %c0_35 = arith.constant 0 : index
    %c0_36 = arith.constant 0 : index
    %92 = vector.load %arg7[%c0_34, %c0_35, %c0_36] : memref<2x1x256xf32, #tpu.memory_space<vmem>>, vector<1x1x256xf32>
    %93 = vector.shape_cast %92 : vector<1x1x256xf32> to vector<1x256xf32>
    %94 = vector.broadcast %93 : vector<1x256xf32> to vector<16x256xf32>
    %95 = arith.addf %91, %94 : vector<16x256xf32>
    %c0_37 = arith.constant 0 : index
    %c0_38 = arith.constant 0 : index
    %c0_39 = arith.constant 0 : index
    %96 = vector.load %arg8[%c0_37, %c0_38, %c0_39] : memref<2x1x256xf32, #tpu.memory_space<vmem>>, vector<1x1x256xf32>
    %97 = vector.shape_cast %96 : vector<1x1x256xf32> to vector<1x256xf32>
    %c0_40 = arith.constant 0 : index
    %c0_41 = arith.constant 0 : index
    %c0_42 = arith.constant 0 : index
    %98 = vector.load %arg9[%c0_40, %c0_41, %c0_42] : memref<2x1x256xf32, #tpu.memory_space<vmem>>, vector<1x1x256xf32>
    %99 = vector.shape_cast %98 : vector<1x1x256xf32> to vector<1x256xf32>
    %cst_43 = arith.constant dense<0.000000e+00> : vector<16xf32>
    %100 = vector.multi_reduction <add>, %95, %cst_43 [1] : vector<16x256xf32> to vector<16xf32>
    %101 = vector.shape_cast %100 : vector<16xf32> to vector<16x1xf32>
    %cst_44 = arith.constant 2.560000e+02 : f32
    %102 = vector.broadcast %cst_44 : f32 to vector<16x1xf32>
    %103 = arith.divf %101, %102 : vector<16x1xf32>
    %104 = vector.broadcast %103 : vector<16x1xf32> to vector<16x256xf32>
    %105 = arith.subf %95, %104 : vector<16x256xf32>
    %106 = arith.mulf %105, %105 : vector<16x256xf32>
    %cst_45 = arith.constant dense<0.000000e+00> : vector<16xf32>
    %107 = vector.multi_reduction <add>, %106, %cst_45 [1] : vector<16x256xf32> to vector<16xf32>
    %108 = vector.shape_cast %107 : vector<16xf32> to vector<16x1xf32>
    %cst_46 = arith.constant 2.560000e+02 : f32
    %109 = vector.broadcast %cst_46 : f32 to vector<16x1xf32>
    %110 = arith.divf %108, %109 : vector<16x1xf32>
    %111 = vector.broadcast %103 : vector<16x1xf32> to vector<16x256xf32>
    %112 = arith.subf %95, %111 : vector<16x256xf32>
    %cst_47 = arith.constant 9.99999996E-13 : f32
    %113 = vector.broadcast %cst_47 : f32 to vector<16x1xf32>
    %114 = arith.addf %110, %113 : vector<16x1xf32>
    %115 = math.rsqrt %114 : vector<16x1xf32>
    %116 = vector.broadcast %115 : vector<16x1xf32> to vector<16x256xf32>
    %117 = arith.mulf %112, %116 : vector<16x256xf32>
    %118 = vector.broadcast %97 : vector<1x256xf32> to vector<16x256xf32>
    %119 = arith.mulf %117, %118 : vector<16x256xf32>
    %120 = vector.broadcast %99 : vector<1x256xf32> to vector<16x256xf32>
    %121 = arith.addf %119, %120 : vector<16x256xf32>
    %122 = arith.truncf %121 : vector<16x256xf32> to vector<16x256xbf16>
    %c0_48 = arith.constant 0 : index
    %c0_49 = arith.constant 0 : index
    %c0_50 = arith.constant 0 : index
    %123 = vector.load %arg10[%c0_48, %c0_49, %c0_50] : memref<2x256x1024xbf16, #tpu.memory_space<vmem>>, vector<1x256x1024xbf16>
    %124 = vector.shape_cast %123 : vector<1x256x1024xbf16> to vector<256x1024xbf16>
    %cst_51 = arith.constant dense<0.000000e+00> : vector<16x1024xf32>
    %125 = tpu.matmul %122, %124, %cst_51 {dimension_numbers = #tpu.dot_dimension_numbers<[1], [0], [0], [1], [0, 0, 1, 1], [], []>} : vector<16x256xbf16>, vector<256x1024xbf16>, vector<16x1024xf32> -> vector<16x1024xf32>
    %c0_52 = arith.constant 0 : index
    %c0_53 = arith.constant 0 : index
    %c0_54 = arith.constant 0 : index
    %126 = vector.load %arg11[%c0_52, %c0_53, %c0_54] : memref<2x1x1024xf32, #tpu.memory_space<vmem>>, vector<1x1x1024xf32>
    %127 = vector.shape_cast %126 : vector<1x1x1024xf32> to vector<1x1024xf32>
    %128 = vector.broadcast %127 : vector<1x1024xf32> to vector<16x1024xf32>
    %129 = arith.addf %125, %128 : vector<16x1024xf32>
    %cst_55 = arith.constant 5.000000e-01 : f32
    %130 = vector.broadcast %cst_55 : f32 to vector<16x1024xf32>
    %131 = arith.mulf %130, %129 : vector<16x1024xf32>
    %cst_56 = arith.constant 4.471500e-02 : f32
    %132 = vector.broadcast %cst_56 : f32 to vector<16x1024xf32>
    %133 = arith.mulf %132, %129 : vector<16x1024xf32>
    %134 = arith.mulf %133, %129 : vector<16x1024xf32>
    %135 = arith.mulf %134, %129 : vector<16x1024xf32>
    %136 = arith.addf %129, %135 : vector<16x1024xf32>
    %cst_57 = arith.constant 0.797884583 : f32
    %137 = vector.broadcast %cst_57 : f32 to vector<16x1024xf32>
    %138 = arith.mulf %137, %136 : vector<16x1024xf32>
    %139 = math.tanh %138 : vector<16x1024xf32>
    %cst_58 = arith.constant 1.000000e+00 : f32
    %140 = vector.broadcast %cst_58 : f32 to vector<16x1024xf32>
    %141 = arith.addf %140, %139 : vector<16x1024xf32>
    %142 = arith.mulf %131, %141 : vector<16x1024xf32>
    %143 = arith.truncf %142 : vector<16x1024xf32> to vector<16x1024xbf16>
    %c0_59 = arith.constant 0 : index
    %c0_60 = arith.constant 0 : index
    %c0_61 = arith.constant 0 : index
    %144 = vector.load %arg12[%c0_59, %c0_60, %c0_61] : memref<2x1024x256xbf16, #tpu.memory_space<vmem>>, vector<1x1024x256xbf16>
    %145 = vector.shape_cast %144 : vector<1x1024x256xbf16> to vector<1024x256xbf16>
    %cst_62 = arith.constant dense<0.000000e+00> : vector<16x256xf32>
    %146 = tpu.matmul %143, %145, %cst_62 {dimension_numbers = #tpu.dot_dimension_numbers<[1], [0], [0], [1], [0, 0, 1, 1], [], []>} : vector<16x1024xbf16>, vector<1024x256xbf16>, vector<16x256xf32> -> vector<16x256xf32>
    %c0_63 = arith.constant 0 : index
    %c0_64 = arith.constant 0 : index
    %c0_65 = arith.constant 0 : index
    %147 = vector.load %arg13[%c0_63, %c0_64, %c0_65] : memref<2x1x256xf32, #tpu.memory_space<vmem>>, vector<1x1x256xf32>
    %148 = vector.shape_cast %147 : vector<1x1x256xf32> to vector<1x256xf32>
    %149 = vector.broadcast %148 : vector<1x256xf32> to vector<16x256xf32>
    %150 = arith.addf %146, %149 : vector<16x256xf32>
    %151 = arith.addf %121, %150 : vector<16x256xf32>
    %c0_66 = arith.constant 0 : index
    %c0_67 = arith.constant 0 : index
    %c0_68 = arith.constant 0 : index
    %152 = vector.load %arg14[%c0_66, %c0_67, %c0_68] : memref<2x1x256xf32, #tpu.memory_space<vmem>>, vector<1x1x256xf32>
    %153 = vector.shape_cast %152 : vector<1x1x256xf32> to vector<1x256xf32>
    %c0_69 = arith.constant 0 : index
    %c0_70 = arith.constant 0 : index
    %c0_71 = arith.constant 0 : index
    %154 = vector.load %arg15[%c0_69, %c0_70, %c0_71] : memref<2x1x256xf32, #tpu.memory_space<vmem>>, vector<1x1x256xf32>
    %155 = vector.shape_cast %154 : vector<1x1x256xf32> to vector<1x256xf32>
    %cst_72 = arith.constant dense<0.000000e+00> : vector<16xf32>
    %156 = vector.multi_reduction <add>, %151, %cst_72 [1] : vector<16x256xf32> to vector<16xf32>
    %157 = vector.shape_cast %156 : vector<16xf32> to vector<16x1xf32>
    %cst_73 = arith.constant 2.560000e+02 : f32
    %158 = vector.broadcast %cst_73 : f32 to vector<16x1xf32>
    %159 = arith.divf %157, %158 : vector<16x1xf32>
    %160 = vector.broadcast %159 : vector<16x1xf32> to vector<16x256xf32>
    %161 = arith.subf %151, %160 : vector<16x256xf32>
    %162 = arith.mulf %161, %161 : vector<16x256xf32>
    %cst_74 = arith.constant dense<0.000000e+00> : vector<16xf32>
    %163 = vector.multi_reduction <add>, %162, %cst_74 [1] : vector<16x256xf32> to vector<16xf32>
    %164 = vector.shape_cast %163 : vector<16xf32> to vector<16x1xf32>
    %cst_75 = arith.constant 2.560000e+02 : f32
    %165 = vector.broadcast %cst_75 : f32 to vector<16x1xf32>
    %166 = arith.divf %164, %165 : vector<16x1xf32>
    %167 = vector.broadcast %159 : vector<16x1xf32> to vector<16x256xf32>
    %168 = arith.subf %151, %167 : vector<16x256xf32>
    %cst_76 = arith.constant 9.99999996E-13 : f32
    %169 = vector.broadcast %cst_76 : f32 to vector<16x1xf32>
    %170 = arith.addf %166, %169 : vector<16x1xf32>
    %171 = math.rsqrt %170 : vector<16x1xf32>
    %172 = vector.broadcast %171 : vector<16x1xf32> to vector<16x256xf32>
    %173 = arith.mulf %168, %172 : vector<16x256xf32>
    %174 = vector.broadcast %153 : vector<1x256xf32> to vector<16x256xf32>
    %175 = arith.mulf %173, %174 : vector<16x256xf32>
    %176 = vector.broadcast %155 : vector<1x256xf32> to vector<16x256xf32>
    %177 = arith.addf %175, %176 : vector<16x256xf32>
    %178 = arith.truncf %177 : vector<16x256xf32> to vector<16x256xbf16>
    %c1 = arith.constant 1 : index
    %c0_77 = arith.constant 0 : index
    %c0_78 = arith.constant 0 : index
    %179 = vector.load %arg4[%c1, %c0_77, %c0_78] : memref<2x256x768xbf16, #tpu.memory_space<vmem>>, vector<1x256x768xbf16>
    %180 = vector.shape_cast %179 : vector<1x256x768xbf16> to vector<256x768xbf16>
    %cst_79 = arith.constant dense<0.000000e+00> : vector<16x768xf32>
    %181 = tpu.matmul %178, %180, %cst_79 {dimension_numbers = #tpu.dot_dimension_numbers<[1], [0], [0], [1], [0, 0, 1, 1], [], []>} : vector<16x256xbf16>, vector<256x768xbf16>, vector<16x768xf32> -> vector<16x768xf32>
    %c1_80 = arith.constant 1 : index
    %c0_81 = arith.constant 0 : index
    %c0_82 = arith.constant 0 : index
    %182 = vector.load %arg5[%c1_80, %c0_81, %c0_82] : memref<2x1x768xf32, #tpu.memory_space<vmem>>, vector<1x1x768xf32>
    %183 = vector.shape_cast %182 : vector<1x1x768xf32> to vector<1x768xf32>
    %184 = vector.broadcast %183 : vector<1x768xf32> to vector<16x768xf32>
    %185 = arith.addf %181, %184 : vector<16x768xf32>
    %186 = vector.shape_cast %185 : vector<16x768xf32> to vector<2x8x768xf32>
    %c1_83 = arith.constant 1 : index
    %c0_84 = arith.constant 0 : index
    %c0_85 = arith.constant 0 : index
    %187 = vector.load %arg6[%c1_83, %c0_84, %c0_85] : memref<2x256x256xbf16, #tpu.memory_space<vmem>>, vector<1x256x256xbf16>
    %188 = vector.shape_cast %187 : vector<1x256x256xbf16> to vector<256x256xbf16>
    %cst_86 = arith.constant 0.000000e+00 : f32
    %189 = vector.broadcast %cst_86 : f32 to vector<16x256xf32>
    %190 = vector.extract_strided_slice %186 {offsets = [0, 0, 0], sizes = [2, 8, 128], strides = [1, 1, 1]} : vector<2x8x768xf32> to vector<2x8x128xf32>
    %191 = arith.truncf %190 : vector<2x8x128xf32> to vector<2x8x128xbf16>
    %192 = vector.extract_strided_slice %186 {offsets = [0, 0, 256], sizes = [2, 8, 128], strides = [1, 1, 1]} : vector<2x8x768xf32> to vector<2x8x128xf32>
    %193 = arith.truncf %192 : vector<2x8x128xf32> to vector<2x8x128xbf16>
    %194 = vector.extract_strided_slice %186 {offsets = [0, 0, 512], sizes = [2, 8, 128], strides = [1, 1, 1]} : vector<2x8x768xf32> to vector<2x8x128xf32>
    %195 = arith.truncf %194 : vector<2x8x128xf32> to vector<2x8x128xbf16>
    "tpu.trace_start"() <{level = 10 : i32, message = "bqd,bkd->bqk"}> : () -> ()
    %cst_87 = arith.constant dense<0.000000e+00> : vector<2x8x8xf32>
    %196 = tpu.matmul %191, %193, %cst_87 {dimension_numbers = #tpu.dot_dimension_numbers<[2], [2], [1], [1], [0, 0, 0, 1, 1, 1], [0], [0]>} : vector<2x8x128xbf16>, vector<2x8x128xbf16>, vector<2x8x8xf32> -> vector<2x8x8xf32>
    "tpu.trace_stop"() : () -> ()
    %197 = vector.broadcast %26 : vector<2x1x8xf32> to vector<2x8x8xf32>
    %198 = arith.addf %196, %197 : vector<2x8x8xf32>
    %cst_88 = arith.constant dense<0xFF800000> : vector<2x8xf32>
    %199 = vector.multi_reduction <maximumf>, %198, %cst_88 [2] : vector<2x8x8xf32> to vector<2x8xf32>
    %200 = vector.shape_cast %199 : vector<2x8xf32> to vector<2x8x1xf32>
    %201 = vector.broadcast %200 : vector<2x8x1xf32> to vector<2x8x8xf32>
    %202 = arith.subf %198, %201 : vector<2x8x8xf32>
    %203 = math.exp %202 : vector<2x8x8xf32>
    %cst_89 = arith.constant dense<0.000000e+00> : vector<2x8xf32>
    %204 = vector.multi_reduction <add>, %203, %cst_89 [2] : vector<2x8x8xf32> to vector<2x8xf32>
    %205 = vector.shape_cast %204 : vector<2x8xf32> to vector<2x8x1xf32>
    %206 = tpu.reciprocal %205 {approx = true} : vector<2x8x1xf32> -> vector<2x8x1xf32>
    %207 = vector.broadcast %206 : vector<2x8x1xf32> to vector<2x8x8xf32>
    %208 = arith.mulf %203, %207 : vector<2x8x8xf32>
    %209 = arith.truncf %208 : vector<2x8x8xf32> to vector<2x8x8xbf16>
    "tpu.trace_start"() <{level = 10 : i32, message = "bqk,bkd->bqd"}> : () -> ()
    %cst_90 = arith.constant dense<0.000000e+00> : vector<2x8x128xf32>
    %210 = tpu.matmul %209, %195, %cst_90 {dimension_numbers = #tpu.dot_dimension_numbers<[2], [1], [1], [2], [0, 0, 0, 1, 1, 2], [0], [0]>} : vector<2x8x8xbf16>, vector<2x8x128xbf16>, vector<2x8x128xf32> -> vector<2x8x128xf32>
    "tpu.trace_stop"() : () -> ()
    %211 = vector.shape_cast %210 : vector<2x8x128xf32> to vector<16x128xf32>
    %212 = arith.truncf %211 : vector<16x128xf32> to vector<16x128xbf16>
    %213 = vector.extract_strided_slice %188 {offsets = [0, 0], sizes = [128, 256], strides = [1, 1]} : vector<256x256xbf16> to vector<128x256xbf16>
    %cst_91 = arith.constant dense<0.000000e+00> : vector<16x256xf32>
    %214 = tpu.matmul %212, %213, %cst_91 {dimension_numbers = #tpu.dot_dimension_numbers<[1], [0], [0], [1], [0, 0, 1, 1], [], []>} : vector<16x128xbf16>, vector<128x256xbf16>, vector<16x256xf32> -> vector<16x256xf32>
    %215 = arith.addf %189, %214 : vector<16x256xf32>
    %216 = vector.extract_strided_slice %186 {offsets = [0, 0, 128], sizes = [2, 8, 128], strides = [1, 1, 1]} : vector<2x8x768xf32> to vector<2x8x128xf32>
    %217 = arith.truncf %216 : vector<2x8x128xf32> to vector<2x8x128xbf16>
    %218 = vector.extract_strided_slice %186 {offsets = [0, 0, 384], sizes = [2, 8, 128], strides = [1, 1, 1]} : vector<2x8x768xf32> to vector<2x8x128xf32>
    %219 = arith.truncf %218 : vector<2x8x128xf32> to vector<2x8x128xbf16>
    %220 = vector.extract_strided_slice %186 {offsets = [0, 0, 640], sizes = [2, 8, 128], strides = [1, 1, 1]} : vector<2x8x768xf32> to vector<2x8x128xf32>
    %221 = arith.truncf %220 : vector<2x8x128xf32> to vector<2x8x128xbf16>
    "tpu.trace_start"() <{level = 10 : i32, message = "bqd,bkd->bqk"}> : () -> ()
    %cst_92 = arith.constant dense<0.000000e+00> : vector<2x8x8xf32>
    %222 = tpu.matmul %217, %219, %cst_92 {dimension_numbers = #tpu.dot_dimension_numbers<[2], [2], [1], [1], [0, 0, 0, 1, 1, 1], [0], [0]>} : vector<2x8x128xbf16>, vector<2x8x128xbf16>, vector<2x8x8xf32> -> vector<2x8x8xf32>
    "tpu.trace_stop"() : () -> ()
    %223 = vector.broadcast %26 : vector<2x1x8xf32> to vector<2x8x8xf32>
    %224 = arith.addf %222, %223 : vector<2x8x8xf32>
    %cst_93 = arith.constant dense<0xFF800000> : vector<2x8xf32>
    %225 = vector.multi_reduction <maximumf>, %224, %cst_93 [2] : vector<2x8x8xf32> to vector<2x8xf32>
    %226 = vector.shape_cast %225 : vector<2x8xf32> to vector<2x8x1xf32>
    %227 = vector.broadcast %226 : vector<2x8x1xf32> to vector<2x8x8xf32>
    %228 = arith.subf %224, %227 : vector<2x8x8xf32>
    %229 = math.exp %228 : vector<2x8x8xf32>
    %cst_94 = arith.constant dense<0.000000e+00> : vector<2x8xf32>
    %230 = vector.multi_reduction <add>, %229, %cst_94 [2] : vector<2x8x8xf32> to vector<2x8xf32>
    %231 = vector.shape_cast %230 : vector<2x8xf32> to vector<2x8x1xf32>
    %232 = tpu.reciprocal %231 {approx = true} : vector<2x8x1xf32> -> vector<2x8x1xf32>
    %233 = vector.broadcast %232 : vector<2x8x1xf32> to vector<2x8x8xf32>
    %234 = arith.mulf %229, %233 : vector<2x8x8xf32>
    %235 = arith.truncf %234 : vector<2x8x8xf32> to vector<2x8x8xbf16>
    "tpu.trace_start"() <{level = 10 : i32, message = "bqk,bkd->bqd"}> : () -> ()
    %cst_95 = arith.constant dense<0.000000e+00> : vector<2x8x128xf32>
    %236 = tpu.matmul %235, %221, %cst_95 {dimension_numbers = #tpu.dot_dimension_numbers<[2], [1], [1], [2], [0, 0, 0, 1, 1, 2], [0], [0]>} : vector<2x8x8xbf16>, vector<2x8x128xbf16>, vector<2x8x128xf32> -> vector<2x8x128xf32>
    "tpu.trace_stop"() : () -> ()
    %237 = vector.shape_cast %236 : vector<2x8x128xf32> to vector<16x128xf32>
    %238 = arith.truncf %237 : vector<16x128xf32> to vector<16x128xbf16>
    %239 = vector.extract_strided_slice %188 {offsets = [128, 0], sizes = [128, 256], strides = [1, 1]} : vector<256x256xbf16> to vector<128x256xbf16>
    %cst_96 = arith.constant dense<0.000000e+00> : vector<16x256xf32>
    %240 = tpu.matmul %238, %239, %cst_96 {dimension_numbers = #tpu.dot_dimension_numbers<[1], [0], [0], [1], [0, 0, 1, 1], [], []>} : vector<16x128xbf16>, vector<128x256xbf16>, vector<16x256xf32> -> vector<16x256xf32>
    %241 = arith.addf %215, %240 : vector<16x256xf32>
    %242 = arith.addf %177, %241 : vector<16x256xf32>
    %c1_97 = arith.constant 1 : index
    %c0_98 = arith.constant 0 : index
    %c0_99 = arith.constant 0 : index
    %243 = vector.load %arg7[%c1_97, %c0_98, %c0_99] : memref<2x1x256xf32, #tpu.memory_space<vmem>>, vector<1x1x256xf32>
    %244 = vector.shape_cast %243 : vector<1x1x256xf32> to vector<1x256xf32>
    %245 = vector.broadcast %244 : vector<1x256xf32> to vector<16x256xf32>
    %246 = arith.addf %242, %245 : vector<16x256xf32>
    %c1_100 = arith.constant 1 : index
    %c0_101 = arith.constant 0 : index
    %c0_102 = arith.constant 0 : index
    %247 = vector.load %arg8[%c1_100, %c0_101, %c0_102] : memref<2x1x256xf32, #tpu.memory_space<vmem>>, vector<1x1x256xf32>
    %248 = vector.shape_cast %247 : vector<1x1x256xf32> to vector<1x256xf32>
    %c1_103 = arith.constant 1 : index
    %c0_104 = arith.constant 0 : index
    %c0_105 = arith.constant 0 : index
    %249 = vector.load %arg9[%c1_103, %c0_104, %c0_105] : memref<2x1x256xf32, #tpu.memory_space<vmem>>, vector<1x1x256xf32>
    %250 = vector.shape_cast %249 : vector<1x1x256xf32> to vector<1x256xf32>
    %cst_106 = arith.constant dense<0.000000e+00> : vector<16xf32>
    %251 = vector.multi_reduction <add>, %246, %cst_106 [1] : vector<16x256xf32> to vector<16xf32>
    %252 = vector.shape_cast %251 : vector<16xf32> to vector<16x1xf32>
    %cst_107 = arith.constant 2.560000e+02 : f32
    %253 = vector.broadcast %cst_107 : f32 to vector<16x1xf32>
    %254 = arith.divf %252, %253 : vector<16x1xf32>
    %255 = vector.broadcast %254 : vector<16x1xf32> to vector<16x256xf32>
    %256 = arith.subf %246, %255 : vector<16x256xf32>
    %257 = arith.mulf %256, %256 : vector<16x256xf32>
    %cst_108 = arith.constant dense<0.000000e+00> : vector<16xf32>
    %258 = vector.multi_reduction <add>, %257, %cst_108 [1] : vector<16x256xf32> to vector<16xf32>
    %259 = vector.shape_cast %258 : vector<16xf32> to vector<16x1xf32>
    %cst_109 = arith.constant 2.560000e+02 : f32
    %260 = vector.broadcast %cst_109 : f32 to vector<16x1xf32>
    %261 = arith.divf %259, %260 : vector<16x1xf32>
    %262 = vector.broadcast %254 : vector<16x1xf32> to vector<16x256xf32>
    %263 = arith.subf %246, %262 : vector<16x256xf32>
    %cst_110 = arith.constant 9.99999996E-13 : f32
    %264 = vector.broadcast %cst_110 : f32 to vector<16x1xf32>
    %265 = arith.addf %261, %264 : vector<16x1xf32>
    %266 = math.rsqrt %265 : vector<16x1xf32>
    %267 = vector.broadcast %266 : vector<16x1xf32> to vector<16x256xf32>
    %268 = arith.mulf %263, %267 : vector<16x256xf32>
    %269 = vector.broadcast %248 : vector<1x256xf32> to vector<16x256xf32>
    %270 = arith.mulf %268, %269 : vector<16x256xf32>
    %271 = vector.broadcast %250 : vector<1x256xf32> to vector<16x256xf32>
    %272 = arith.addf %270, %271 : vector<16x256xf32>
    %273 = arith.truncf %272 : vector<16x256xf32> to vector<16x256xbf16>
    %c1_111 = arith.constant 1 : index
    %c0_112 = arith.constant 0 : index
    %c0_113 = arith.constant 0 : index
    %274 = vector.load %arg10[%c1_111, %c0_112, %c0_113] : memref<2x256x1024xbf16, #tpu.memory_space<vmem>>, vector<1x256x1024xbf16>
    %275 = vector.shape_cast %274 : vector<1x256x1024xbf16> to vector<256x1024xbf16>
    %cst_114 = arith.constant dense<0.000000e+00> : vector<16x1024xf32>
    %276 = tpu.matmul %273, %275, %cst_114 {dimension_numbers = #tpu.dot_dimension_numbers<[1], [0], [0], [1], [0, 0, 1, 1], [], []>} : vector<16x256xbf16>, vector<256x1024xbf16>, vector<16x1024xf32> -> vector<16x1024xf32>
    %c1_115 = arith.constant 1 : index
    %c0_116 = arith.constant 0 : index
    %c0_117 = arith.constant 0 : index
    %277 = vector.load %arg11[%c1_115, %c0_116, %c0_117] : memref<2x1x1024xf32, #tpu.memory_space<vmem>>, vector<1x1x1024xf32>
    %278 = vector.shape_cast %277 : vector<1x1x1024xf32> to vector<1x1024xf32>
    %279 = vector.broadcast %278 : vector<1x1024xf32> to vector<16x1024xf32>
    %280 = arith.addf %276, %279 : vector<16x1024xf32>
    %cst_118 = arith.constant 5.000000e-01 : f32
    %281 = vector.broadcast %cst_118 : f32 to vector<16x1024xf32>
    %282 = arith.mulf %281, %280 : vector<16x1024xf32>
    %cst_119 = arith.constant 4.471500e-02 : f32
    %283 = vector.broadcast %cst_119 : f32 to vector<16x1024xf32>
    %284 = arith.mulf %283, %280 : vector<16x1024xf32>
    %285 = arith.mulf %284, %280 : vector<16x1024xf32>
    %286 = arith.mulf %285, %280 : vector<16x1024xf32>
    %287 = arith.addf %280, %286 : vector<16x1024xf32>
    %cst_120 = arith.constant 0.797884583 : f32
    %288 = vector.broadcast %cst_120 : f32 to vector<16x1024xf32>
    %289 = arith.mulf %288, %287 : vector<16x1024xf32>
    %290 = math.tanh %289 : vector<16x1024xf32>
    %cst_121 = arith.constant 1.000000e+00 : f32
    %291 = vector.broadcast %cst_121 : f32 to vector<16x1024xf32>
    %292 = arith.addf %291, %290 : vector<16x1024xf32>
    %293 = arith.mulf %282, %292 : vector<16x1024xf32>
    %294 = arith.truncf %293 : vector<16x1024xf32> to vector<16x1024xbf16>
    %c1_122 = arith.constant 1 : index
    %c0_123 = arith.constant 0 : index
    %c0_124 = arith.constant 0 : index
    %295 = vector.load %arg12[%c1_122, %c0_123, %c0_124] : memref<2x1024x256xbf16, #tpu.memory_space<vmem>>, vector<1x1024x256xbf16>
    %296 = vector.shape_cast %295 : vector<1x1024x256xbf16> to vector<1024x256xbf16>
    %cst_125 = arith.constant dense<0.000000e+00> : vector<16x256xf32>
    %297 = tpu.matmul %294, %296, %cst_125 {dimension_numbers = #tpu.dot_dimension_numbers<[1], [0], [0], [1], [0, 0, 1, 1], [], []>} : vector<16x1024xbf16>, vector<1024x256xbf16>, vector<16x256xf32> -> vector<16x256xf32>
    %c1_126 = arith.constant 1 : index
    %c0_127 = arith.constant 0 : index
    %c0_128 = arith.constant 0 : index
    %298 = vector.load %arg13[%c1_126, %c0_127, %c0_128] : memref<2x1x256xf32, #tpu.memory_space<vmem>>, vector<1x1x256xf32>
    %299 = vector.shape_cast %298 : vector<1x1x256xf32> to vector<1x256xf32>
    %300 = vector.broadcast %299 : vector<1x256xf32> to vector<16x256xf32>
    %301 = arith.addf %297, %300 : vector<16x256xf32>
    %302 = arith.addf %272, %301 : vector<16x256xf32>
    %c1_129 = arith.constant 1 : index
    %c0_130 = arith.constant 0 : index
    %c0_131 = arith.constant 0 : index
    %303 = vector.load %arg14[%c1_129, %c0_130, %c0_131] : memref<2x1x256xf32, #tpu.memory_space<vmem>>, vector<1x1x256xf32>
    %304 = vector.shape_cast %303 : vector<1x1x256xf32> to vector<1x256xf32>
    %c1_132 = arith.constant 1 : index
    %c0_133 = arith.constant 0 : index
    %c0_134 = arith.constant 0 : index
    %305 = vector.load %arg15[%c1_132, %c0_133, %c0_134] : memref<2x1x256xf32, #tpu.memory_space<vmem>>, vector<1x1x256xf32>
    %306 = vector.shape_cast %305 : vector<1x1x256xf32> to vector<1x256xf32>
    %cst_135 = arith.constant dense<0.000000e+00> : vector<16xf32>
    %307 = vector.multi_reduction <add>, %302, %cst_135 [1] : vector<16x256xf32> to vector<16xf32>
    %308 = vector.shape_cast %307 : vector<16xf32> to vector<16x1xf32>
    %cst_136 = arith.constant 2.560000e+02 : f32
    %309 = vector.broadcast %cst_136 : f32 to vector<16x1xf32>
    %310 = arith.divf %308, %309 : vector<16x1xf32>
    %311 = vector.broadcast %310 : vector<16x1xf32> to vector<16x256xf32>
    %312 = arith.subf %302, %311 : vector<16x256xf32>
    %313 = arith.mulf %312, %312 : vector<16x256xf32>
    %cst_137 = arith.constant dense<0.000000e+00> : vector<16xf32>
    %314 = vector.multi_reduction <add>, %313, %cst_137 [1] : vector<16x256xf32> to vector<16xf32>
    %315 = vector.shape_cast %314 : vector<16xf32> to vector<16x1xf32>
    %cst_138 = arith.constant 2.560000e+02 : f32
    %316 = vector.broadcast %cst_138 : f32 to vector<16x1xf32>
    %317 = arith.divf %315, %316 : vector<16x1xf32>
    %318 = vector.broadcast %310 : vector<16x1xf32> to vector<16x256xf32>
    %319 = arith.subf %302, %318 : vector<16x256xf32>
    %cst_139 = arith.constant 9.99999996E-13 : f32
    %320 = vector.broadcast %cst_139 : f32 to vector<16x1xf32>
    %321 = arith.addf %317, %320 : vector<16x1xf32>
    %322 = math.rsqrt %321 : vector<16x1xf32>
    %323 = vector.broadcast %322 : vector<16x1xf32> to vector<16x256xf32>
    %324 = arith.mulf %319, %323 : vector<16x256xf32>
    %325 = vector.broadcast %304 : vector<1x256xf32> to vector<16x256xf32>
    %326 = arith.mulf %324, %325 : vector<16x256xf32>
    %327 = vector.broadcast %306 : vector<1x256xf32> to vector<16x256xf32>
    %328 = arith.addf %326, %327 : vector<16x256xf32>
    %329 = vector.shape_cast %328 : vector<16x256xf32> to vector<2x8x256xf32>
    %330 = vector.extract_strided_slice %329 {offsets = [0, 0, 0], sizes = [2, 1, 256], strides = [1, 1, 1]} : vector<2x8x256xf32> to vector<2x1x256xf32>
    %331 = vector.shape_cast %330 : vector<2x1x256xf32> to vector<2x256xf32>
    %332 = arith.truncf %331 : vector<2x256xf32> to vector<2x256xbf16>
    %c0_140 = arith.constant 0 : index
    %c0_141 = arith.constant 0 : index
    %333 = vector.load %arg16[%c0_140, %c0_141] : memref<256x256xbf16, #tpu.memory_space<vmem>>, vector<256x256xbf16>
    %cst_142 = arith.constant dense<0.000000e+00> : vector<2x256xf32>
    %334 = tpu.matmul %332, %333, %cst_142 {dimension_numbers = #tpu.dot_dimension_numbers<[1], [0], [0], [1], [0, 0, 1, 1], [], []>} : vector<2x256xbf16>, vector<256x256xbf16>, vector<2x256xf32> -> vector<2x256xf32>
    %c0_143 = arith.constant 0 : index
    %c0_144 = arith.constant 0 : index
    %335 = vector.load %arg17[%c0_143, %c0_144] : memref<1x256xf32, #tpu.memory_space<vmem>>, vector<1x256xf32>
    %336 = vector.broadcast %335 : vector<1x256xf32> to vector<2x256xf32>
    %337 = arith.addf %334, %336 : vector<2x256xf32>
    %338 = math.tanh %337 : vector<2x256xf32>
    %339 = arith.truncf %338 : vector<2x256xf32> to vector<2x256xbf16>
    %c0_145 = arith.constant 0 : index
    %c0_146 = arith.constant 0 : index
    %340 = vector.load %arg18[%c0_145, %c0_146] : memref<256x128xbf16, #tpu.memory_space<vmem>>, vector<256x128xbf16>
    %cst_147 = arith.constant dense<0.000000e+00> : vector<2x128xf32>
    %341 = tpu.matmul %339, %340, %cst_147 {dimension_numbers = #tpu.dot_dimension_numbers<[1], [0], [0], [1], [0, 0, 1, 1], [], []>} : vector<2x256xbf16>, vector<256x128xbf16>, vector<2x128xf32> -> vector<2x128xf32>
    %c0_148 = arith.constant 0 : index
    %c0_149 = arith.constant 0 : index
    %342 = vector.load %arg19[%c0_148, %c0_149] : memref<1x128xf32, #tpu.memory_space<vmem>>, vector<1x128xf32>
    %343 = vector.broadcast %342 : vector<1x128xf32> to vector<2x128xf32>
    %344 = arith.addf %341, %343 : vector<2x128xf32>
    %c0_150 = arith.constant 0 : index
    %c0_151 = arith.constant 0 : index
    %345 = vector.load %arg20[%c0_150, %c0_151] : memref<2x128xf32, #tpu.memory_space<vmem>>, vector<2x128xf32>
    tpu.vector_store %arg20[%c0_150, %c0_151], %344 {strides = array<i32>} : memref<2x128xf32, #tpu.memory_space<vmem>>, vector<2x128xf32>,
    return
  }
}

</mosaic_0001>

<llo_original>
// kernel: tpu_custom_call.1
$region0: #{tpu_custom_call.1}
  #allocation0 [shape = 'u32[]', space=smem, size = 0x4, offset = 0x4, fixed_abs, tag = 'smem constant byte address 0x4 - core index']
  #allocation1 [shape = 'u32[144,128]{1,0:T(1,128)}', space=vmem, size = 0x12000, scoped, tag = 'internal scratch']
  %s0 = inlined_call_operand.hbm [shape: f32[2,8,256], index: 0, kind: input, shape index: {}]
  %s1 = inlined_call_operand.hbm [shape: f32[2,1,8], index: 1, kind: input, shape index: {}]
  %s2 = inlined_call_operand.hbm [shape: f32[1,256], index: 2, kind: input, shape index: {}]
  %s3 = inlined_call_operand.hbm [shape: f32[1,256], index: 3, kind: input, shape index: {}]
  %s4 = inlined_call_operand.hbm [shape: bf16[2,256,768], index: 4, kind: input, shape index: {}]
  %s5 = inlined_call_operand.hbm [shape: f32[2,1,768], index: 5, kind: input, shape index: {}]
  %s6 = inlined_call_operand.hbm [shape: bf16[2,256,256], index: 6, kind: input, shape index: {}]
  %s7 = inlined_call_operand.vmem [shape: f32[2,1,256], index: 7, kind: input, shape index: {}]
  %s8 = inlined_call_operand.hbm [shape: f32[2,1,256], index: 8, kind: input, shape index: {}]
  %s9 = inlined_call_operand.hbm [shape: f32[2,1,256], index: 9, kind: input, shape index: {}]
  %s10 = inlined_call_operand.hbm [shape: bf16[2,256,1024], index: 10, kind: input, shape index: {}]
  %s11 = inlined_call_operand.vmem [shape: f32[2,1,1024], index: 11, kind: input, shape index: {}]
  %s12 = inlined_call_operand.hbm [shape: bf16[2,1024,256], index: 12, kind: input, shape index: {}]
  %s13 = inlined_call_operand.hbm [shape: f32[2,1,256], index: 13, kind: input, shape index: {}]
  %s14 = inlined_call_operand.vmem [shape: f32[2,1,256], index: 14, kind: input, shape index: {}]
  %s15 = inlined_call_operand.hbm [shape: f32[2,1,256], index: 15, kind: input, shape index: {}]
  %s16 = inlined_call_operand.hbm [shape: bf16[256,256], index: 16, kind: input, shape index: {}]
  %s17 = inlined_call_operand.vmem [shape: f32[1,256], index: 17, kind: input, shape index: {}]
  %s18 = inlined_call_operand.hbm [shape: bf16[256,128], index: 18, kind: input, shape index: {}]
  %s19 = inlined_call_operand.vmem [shape: f32[1,128], index: 19, kind: input, shape index: {}]
  %s20 = inlined_call_operand.hbm [shape: f32[2,128], index: 20, kind: output, shape index: {}]
  %s21 = sld [smem:[#allocation0]]
  $region150: #{tpu_custom_call.1} parent=0
    _
  %s23 = ssub.s32 1, %s21
  %s24 = scalar_select 0, %s23, %s21
  $region1: #{tpu_custom_call.1} parent=0
    #allocation2 [shape = 'u8[16384]{0}', space=vmem, size = 0x4000, scoped, tag = 'input window, operand 0, single buffered']
    #allocation3 [shape = 's32[1]{0}', space=sflag, size = 0x4, scoped, tag = 'scoped memory for tpu_custom_call.1']
    #allocation4 [shape = 's32[1]{0}', space=sflag, size = 0x4, scoped, tag = 'scoped memory for tpu_custom_call.1']
    #allocation5 [shape = 'u8[1024]{0}', space=vmem, size = 0x400, scoped, tag = 'input window, operand 1, single buffered']
    #allocation6 [shape = 's32[1]{0}', space=sflag, size = 0x4, scoped, tag = 'scoped memory for tpu_custom_call.1']
    #allocation7 [shape = 'u8[1024]{0}', space=vmem, size = 0x400, scoped, tag = 'input window, operand 2, single buffered']
    #allocation8 [shape = 'u8[1024]{0}', space=vmem, size = 0x400, scoped, tag = 'input window, operand 3, single buffered']
    #allocation9 [shape = 's32[1]{0}', space=sflag, size = 0x4, scoped, tag = 'scoped memory for tpu_custom_call.1']
    #allocation10 [shape = 'u8[786432]{0}', space=vmem, size = 0xc0000, scoped, tag = 'input window, operand 4, single buffered']
    #allocation11 [shape = 'u8[6144]{0}', space=vmem, size = 0x1800, scoped, tag = 'input window, operand 5, single buffered']
    #allocation12 [shape = 's32[1]{0}', space=sflag, size = 0x4, scoped, tag = 'scoped memory for tpu_custom_call.1']
    #allocation13 [shape = 'u8[262144]{0}', space=vmem, size = 0x40000, scoped, tag = 'input window, operand 6, single buffered']
    #allocation14 [shape = 'u8[2048]{0}', space=vmem, size = 0x800, scoped, tag = 'input window, operand 8, single buffered']
    #allocation15 [shape = 's32[1]{0}', space=sflag, size = 0x4, scoped, tag = 'scoped memory for tpu_custom_call.1']
    #allocation16 [shape = 'u8[2048]{0}', space=vmem, size = 0x800, scoped, tag = 'input window, operand 9, single buffered']
    #allocation17 [shape = 'u8[1048576]{0}', space=vmem, size = 0x100000, scoped, tag = 'input window, operand 10, single buffered']
    #allocation18 [shape = 's32[1]{0}', space=sflag, size = 0x4, scoped, tag = 'scoped memory for tpu_custom_call.1']
    #allocation19 [shape = 'u8[1048576]{0}', space=vmem, size = 0x100000, scoped, tag = 'input window, operand 12, single buffered']
    #allocation20 [shape = 'u8[2048]{0}', space=vmem, size = 0x800, scoped, tag = 'input window, operand 13, single buffered']
    #allocation21 [shape = 's32[1]{0}', space=sflag, size = 0x4, scoped, tag = 'scoped memory for tpu_custom_call.1']
    #allocation22 [shape = 'u8[2048]{0}', space=vmem, size = 0x800, scoped, tag = 'input window, operand 15, single buffered']
    #allocation23 [shape = 'u8[131072]{0}', space=vmem, size = 0x20000, scoped, tag = 'input window, operand 16, single buffered']
    #allocation24 [shape = 's32[1]{0}', space=sflag, size = 0x4, scoped, tag = 'scoped memory for tpu_custom_call.1']
    #allocation25 [shape = 'u8[65536]{0}', space=vmem, size = 0x10000, scoped, tag = 'input window, operand 18, single buffered']
    #allocation26 [shape = 'u8[1024]{0}', space=vmem, size = 0x400, scoped, tag = 'output window, operand 0, single buffered']
    %25 = vsyncpa [#allocation3], 0
    %26 = vsyncpa [#allocation6], 0
    %27 = vsyncpa [#allocation9], 0
    %28 = vsyncpa [#allocation12], 0
    %29 = vsyncpa [#allocation15], 0
    %30 = vsyncpa [#allocation18], 0
    %31 = vsyncpa [#allocation21], 0
    %32 = vsyncpa [#allocation24], 0
    %33 = vsyncpa [#allocation4], 0
    // Predicated region
    $region2: #{tpu_custom_call.1} parent=1 // pred_check
      _
    $region3: #{tpu_custom_call.1} parent=1 // pred_check_branch
      %35 = sbr.rel (0) target = $region5
    $region4: #{tpu_custom_call.1} parent=1 // pred_region
      %s37 = ssub.s32 512, 512
      %38 = vsyncadd [#allocation3], %s37
      %s39 = sshll.u32 [#allocation2], 4
      %s40 = int_to_ptr.vmem [resolvable:$true] %s39
      %45 = dma.hbm_to_vmem [thread:$0]  %s0, 512, %s40, [#allocation3], 256, 256, 16
    $region5: #{tpu_custom_call.1} parent=1 // pred_fallthru
      _
    // Predicated region
    $region6: #{tpu_custom_call.1} parent=1 // pred_check
      _
    $region7: #{tpu_custom_call.1} parent=1 // pred_check_branch
      %47 = sbr.rel (0) target = $region9
    $region8: #{tpu_custom_call.1} parent=1 // pred_region
      %s49 = ssub.s32 32, 32
      %50 = vsyncadd [#allocation6], %s49
      %s51 = sshll.u32 [#allocation5], 4
      %s52 = int_to_ptr.vmem [resolvable:$true] %s51
      %57 = dma.hbm_to_vmem [thread:$0]  %s1, 32, %s52, [#allocation6], 16, 16, 1
    $region9: #{tpu_custom_call.1} parent=1 // pred_fallthru
      _
    // Predicated region
    $region10: #{tpu_custom_call.1} parent=1 // pred_check
      _
    $region11: #{tpu_custom_call.1} parent=1 // pred_check_branch
      %59 = sbr.rel (0) target = $region13
    $region12: #{tpu_custom_call.1} parent=1 // pred_region
      %s61 = ssub.s32 32, 32
      %62 = vsyncadd [#allocation6], %s61
      %s64 = sshll.u32 [#allocation7], 4
      %s65 = int_to_ptr.vmem [resolvable:$true] %s64
      %67 = dma.hbm_to_vmem [thread:$0]  %s2, 32, %s65, [#allocation6]
    $region13: #{tpu_custom_call.1} parent=1 // pred_fallthru
      _
    // Predicated region
    $region14: #{tpu_custom_call.1} parent=1 // pred_check
      _
    $region15: #{tpu_custom_call.1} parent=1 // pred_check_branch
      %69 = sbr.rel (0) target = $region17
    $region16: #{tpu_custom_call.1} parent=1 // pred_region
      %s71 = ssub.s32 32, 32
      %72 = vsyncadd [#allocation9], %s71
      %s74 = sshll.u32 [#allocation8], 4
      %s75 = int_to_ptr.vmem [resolvable:$true] %s74
      %77 = dma.hbm_to_vmem [thread:$0]  %s3, 32, %s75, [#allocation9]
    $region17: #{tpu_custom_call.1} parent=1 // pred_fallthru
      _
    // Predicated region
    $region18: #{tpu_custom_call.1} parent=1 // pred_check
      _
    $region19: #{tpu_custom_call.1} parent=1 // pred_check_branch
      %79 = sbr.rel (0) target = $region21
    $region20: #{tpu_custom_call.1} parent=1 // pred_region
      %s81 = ssub.s32 24576, 24576
      %82 = vsyncadd [#allocation9], %s81
      %s83 = sshll.u32 [#allocation10], 4
      %s84 = int_to_ptr.vmem [resolvable:$true] %s83
      %89 = dma.hbm_to_vmem [thread:$0]  %s4, 24576, %s84, [#allocation9], 384, 384, 24
    $region21: #{tpu_custom_call.1} parent=1 // pred_fallthru
      _
    // Predicated region
    $region22: #{tpu_custom_call.1} parent=1 // pred_check
      _
    $region23: #{tpu_custom_call.1} parent=1 // pred_check_branch
      %91 = sbr.rel (0) target = $region25
    $region24: #{tpu_custom_call.1} parent=1 // pred_region
      %s93 = ssub.s32 192, 192
      %94 = vsyncadd [#allocation12], %s93
      %s95 = sshll.u32 [#allocation11], 4
      %s96 = int_to_ptr.vmem [resolvable:$true] %s95
      %101 = dma.hbm_to_vmem [thread:$0]  %s5, 192, %s96, [#allocation12], 96, 96, 6
    $region25: #{tpu_custom_call.1} parent=1 // pred_fallthru
      _
    // Predicated region
    $region26: #{tpu_custom_call.1} parent=1 // pred_check
      _
    $region27: #{tpu_custom_call.1} parent=1 // pred_check_branch
      %103 = sbr.rel (0) target = $region29
    $region28: #{tpu_custom_call.1} parent=1 // pred_region
      %s105 = ssub.s32 8192, 8192
      %106 = vsyncadd [#allocation12], %s105
      %s107 = sshll.u32 [#allocation13], 4
      %s108 = int_to_ptr.vmem [resolvable:$true] %s107
      %113 = dma.hbm_to_vmem [thread:$0]  %s6, 8192, %s108, [#allocation12], 128, 128, 8
    $region29: #{tpu_custom_call.1} parent=1 // pred_fallthru
      _
    // Predicated region
    $region30: #{tpu_custom_call.1} parent=1 // pred_check
      _
    $region31: #{tpu_custom_call.1} parent=1 // pred_check_branch
      %115 = sbr.rel (0) target = $region33
    $region32: #{tpu_custom_call.1} parent=1 // pred_region
      _
    $region33: #{tpu_custom_call.1} parent=1 // pred_fallthru
      _
    // Predicated region
    $region34: #{tpu_custom_call.1} parent=1 // pred_check
      _
    $region35: #{tpu_custom_call.1} parent=1 // pred_check_branch
      %117 = sbr.rel (0) target = $region37
    $region36: #{tpu_custom_call.1} parent=1 // pred_region
      %s119 = ssub.s32 64, 64
      %120 = vsyncadd [#allocation15], %s119
      %s121 = sshll.u32 [#allocation14], 4
      %s122 = int_to_ptr.vmem [resolvable:$true] %s121
      %127 = dma.hbm_to_vmem [thread:$0]  %s8, 64, %s122, [#allocation15], 32, 32, 2
    $region37: #{tpu_custom_call.1} parent=1 // pred_fallthru
      _
    // Predicated region
    $region38: #{tpu_custom_call.1} parent=1 // pred_check
      _
    $region39: #{tpu_custom_call.1} parent=1 // pred_check_branch
      %129 = sbr.rel (0) target = $region41
    $region40: #{tpu_custom_call.1} parent=1 // pred_region
      %s131 = ssub.s32 64, 64
      %132 = vsyncadd [#allocation15], %s131
      %s133 = sshll.u32 [#allocation16], 4
      %s134 = int_to_ptr.vmem [resolvable:$true] %s133
      %139 = dma.hbm_to_vmem [thread:$0]  %s9, 64, %s134, [#allocation15], 32, 32, 2
    $region41: #{tpu_custom_call.1} parent=1 // pred_fallthru
      _
    // Predicated region
    $region42: #{tpu_custom_call.1} parent=1 // pred_check
      _
    $region43: #{tpu_custom_call.1} parent=1 // pred_check_branch
      %141 = sbr.rel (0) target = $region45
    $region44: #{tpu_custom_call.1} parent=1 // pred_region
      %s143 = ssub.s32 32768, 32768
      %144 = vsyncadd [#allocation18], %s143
      %s145 = sshll.u32 [#allocation17], 4
      %s146 = int_to_ptr.vmem [resolvable:$true] %s145
      %151 = dma.hbm_to_vmem [thread:$0]  %s10, 32768, %s146, [#allocation18], 512, 512, 32
    $region45: #{tpu_custom_call.1} parent=1 // pred_fallthru
      _
    // Predicated region
    $region46: #{tpu_custom_call.1} parent=1 // pred_check
      _
    $region47: #{tpu_custom_call.1} parent=1 // pred_check_branch
      %153 = sbr.rel (0) target = $region49
    $region48: #{tpu_custom_call.1} parent=1 // pred_region
      _
    $region49: #{tpu_custom_call.1} parent=1 // pred_fallthru
      _
    // Predicated region
    $region50: #{tpu_custom_call.1} parent=1 // pred_check
      _
    $region51: #{tpu_custom_call.1} parent=1 // pred_check_branch
      %155 = sbr.rel (0) target = $region53
    $region52: #{tpu_custom_call.1} parent=1 // pred_region
      %s157 = ssub.s32 32768, 32768
      %158 = vsyncadd [#allocation18], %s157
      %s159 = sshll.u32 [#allocation19], 4
      %s160 = int_to_ptr.vmem [resolvable:$true] %s159
      %165 = dma.hbm_to_vmem [thread:$0]  %s12, 32768, %s160, [#allocation18], 128, 128, 8
    $region53: #{tpu_custom_call.1} parent=1 // pred_fallthru
      _
    // Predicated region
    $region54: #{tpu_custom_call.1} parent=1 // pred_check
      _
    $region55: #{tpu_custom_call.1} parent=1 // pred_check_branch
      %167 = sbr.rel (0) target = $region57
    $region56: #{tpu_custom_call.1} parent=1 // pred_region
      %s169 = ssub.s32 64, 64
      %170 = vsyncadd [#allocation21], %s169
      %s171 = sshll.u32 [#allocation20], 4
      %s172 = int_to_ptr.vmem [resolvable:$true] %s171
      %177 = dma.hbm_to_vmem [thread:$0]  %s13, 64, %s172, [#allocation21], 32, 32, 2
    $region57: #{tpu_custom_call.1} parent=1 // pred_fallthru
      _
    // Predicated region
    $region58: #{tpu_custom_call.1} parent=1 // pred_check
      _
    $region59: #{tpu_custom_call.1} parent=1 // pred_check_branch
      %179 = sbr.rel (0) target = $region61
    $region60: #{tpu_custom_call.1} parent=1 // pred_region
      _
    $region61: #{tpu_custom_call.1} parent=1 // pred_fallthru
      _
    // Predicated region
    $region62: #{tpu_custom_call.1} parent=1 // pred_check
      _
    $region63: #{tpu_custom_call.1} parent=1 // pred_check_branch
      %181 = sbr.rel (0) target = $region65
    $region64: #{tpu_custom_call.1} parent=1 // pred_region
      %s183 = ssub.s32 64, 64
      %184 = vsyncadd [#allocation21], %s183
      %s185 = sshll.u32 [#allocation22], 4
      %s186 = int_to_ptr.vmem [resolvable:$true] %s185
      %191 = dma.hbm_to_vmem [thread:$0]  %s15, 64, %s186, [#allocation21], 32, 32, 2
    $region65: #{tpu_custom_call.1} parent=1 // pred_fallthru
      _
    // Predicated region
    $region66: #{tpu_custom_call.1} parent=1 // pred_check
      _
    $region67: #{tpu_custom_call.1} parent=1 // pred_check_branch
      %193 = sbr.rel (0) target = $region69
    $region68: #{tpu_custom_call.1} parent=1 // pred_region
      %s195 = ssub.s32 4096, 4096
      %196 = vsyncadd [#allocation24], %s195
      %s197 = sshll.u32 [#allocation23], 4
      %s198 = int_to_ptr.vmem [resolvable:$true] %s197
      %203 = dma.hbm_to_vmem [thread:$0]  %s16, 4096, %s198, [#allocation24], 128, 128, 8
    $region69: #{tpu_custom_call.1} parent=1 // pred_fallthru
      _
    // Predicated region
    $region70: #{tpu_custom_call.1} parent=1 // pred_check
      _
    $region71: #{tpu_custom_call.1} parent=1 // pred_check_branch
      %205 = sbr.rel (0) target = $region73
    $region72: #{tpu_custom_call.1} parent=1 // pred_region
      _
    $region73: #{tpu_custom_call.1} parent=1 // pred_fallthru
      _
    // Predicated region
    $region74: #{tpu_custom_call.1} parent=1 // pred_check
      _
    $region75: #{tpu_custom_call.1} parent=1 // pred_check_branch
      %207 = sbr.rel (0) target = $region77
    $region76: #{tpu_custom_call.1} parent=1 // pred_region
      %s209 = ssub.s32 2048, 2048
      %210 = vsyncadd [#allocation24], %s209
      %s211 = sshll.u32 [#allocation25], 4
      %s212 = int_to_ptr.vmem [resolvable:$true] %s211
      %217 = dma.hbm_to_vmem [thread:$0]  %s18, 2048, %s212, [#allocation24], 64, 64, 4
    $region77: #{tpu_custom_call.1} parent=1 // pred_fallthru
      _
    // Predicated region
    $region78: #{tpu_custom_call.1} parent=1 // pred_check
      _
    $region79: #{tpu_custom_call.1} parent=1 // pred_check_branch
      %219 = sbr.rel (0) target = $region81
    $region80: #{tpu_custom_call.1} parent=1 // pred_region
      _
    $region81: #{tpu_custom_call.1} parent=1 // pred_fallthru
      _
    // Predicated region
    $region82: #{tpu_custom_call.1} parent=1 // pred_check
      _
    $region83: #{tpu_custom_call.1} parent=1 // pred_check_branch
      %221 = sbr.rel (0) target = $region85
    $region84: #{tpu_custom_call.1} parent=1 // pred_region
      %222 = dma.done [#allocation3], 512
    $region85: #{tpu_custom_call.1} parent=1 // pred_fallthru
      _
    // Predicated region
    $region86: #{tpu_custom_call.1} parent=1 // pred_check
      _
    $region87: #{tpu_custom_call.1} parent=1 // pred_check_branch
      %224 = sbr.rel (0) target = $region89
    $region88: #{tpu_custom_call.1} parent=1 // pred_region
      %225 = dma.done [#allocation6], 32
    $region89: #{tpu_custom_call.1} parent=1 // pred_fallthru
      _
    // Predicated region
    $region90: #{tpu_custom_call.1} parent=1 // pred_check
      _
    $region91: #{tpu_custom_call.1} parent=1 // pred_check_branch
      %227 = sbr.rel (0) target = $region93
    $region92: #{tpu_custom_call.1} parent=1 // pred_region
      %228 = dma.done [#allocation6], 32
    $region93: #{tpu_custom_call.1} parent=1 // pred_fallthru
      _
    // Predicated region
    $region94: #{tpu_custom_call.1} parent=1 // pred_check
      _
    $region95: #{tpu_custom_call.1} parent=1 // pred_check_branch
      %230 = sbr.rel (0) target = $region97
    $region96: #{tpu_custom_call.1} parent=1 // pred_region
      %231 = dma.done [#allocation9], 32
    $region97: #{tpu_custom_call.1} parent=1 // pred_fallthru
      _
    // Predicated region
    $region98: #{tpu_custom_call.1} parent=1 // pred_check
      _
    $region99: #{tpu_custom_call.1} parent=1 // pred_check_branch
      %233 = sbr.rel (0) target = $region101
    $region100: #{tpu_custom_call.1} parent=1 // pred_region
      %234 = dma.done [#allocation9], 24576
    $region101: #{tpu_custom_call.1} parent=1 // pred_fallthru
      _
    // Predicated region
    $region102: #{tpu_custom_call.1} parent=1 // pred_check
      _
    $region103: #{tpu_custom_call.1} parent=1 // pred_check_branch
      %236 = sbr.rel (0) target = $region105
    $region104: #{tpu_custom_call.1} parent=1 // pred_region
      %237 = dma.done [#allocation12], 192
    $region105: #{tpu_custom_call.1} parent=1 // pred_fallthru
      _
    // Predicated region
    $region106: #{tpu_custom_call.1} parent=1 // pred_check
      _
    $region107: #{tpu_custom_call.1} parent=1 // pred_check_branch
      %239 = sbr.rel (0) target = $region109
    $region108: #{tpu_custom_call.1} parent=1 // pred_region
      %240 = dma.done [#allocation12], 8192
    $region109: #{tpu_custom_call.1} parent=1 // pred_fallthru
      _
    // Predicated region
    $region110: #{tpu_custom_call.1} parent=1 // pred_check
      _
    $region111: #{tpu_custom_call.1} parent=1 // pred_check_branch
      %242 = sbr.rel (0) target = $region113
    $region112: #{tpu_custom_call.1} parent=1 // pred_region
      %243 = dma.done [#allocation15], 64
    $region113: #{tpu_custom_call.1} parent=1 // pred_fallthru
      _
    // Predicated region
    $region114: #{tpu_custom_call.1} parent=1 // pred_check
      _
    $region115: #{tpu_custom_call.1} parent=1 // pred_check_branch
      %245 = sbr.rel (0) target = $region117
    $region116: #{tpu_custom_call.1} parent=1 // pred_region
      %246 = dma.done [#allocation15], 64
    $region117: #{tpu_custom_call.1} parent=1 // pred_fallthru
      _
    // Predicated region
    $region118: #{tpu_custom_call.1} parent=1 // pred_check
      _
    $region119: #{tpu_custom_call.1} parent=1 // pred_check_branch
      %248 = sbr.rel (0) target = $region121
    $region120: #{tpu_custom_call.1} parent=1 // pred_region
      %249 = dma.done [#allocation18], 32768
    $region121: #{tpu_custom_call.1} parent=1 // pred_fallthru
      _
    // Predicated region
    $region122: #{tpu_custom_call.1} parent=1 // pred_check
      _
    $region123: #{tpu_custom_call.1} parent=1 // pred_check_branch
      %251 = sbr.rel (0) target = $region125
    $region124: #{tpu_custom_call.1} parent=1 // pred_region
      %252 = dma.done [#allocation18], 32768
    $region125: #{tpu_custom_call.1} parent=1 // pred_fallthru
      _
    // Predicated region
    $region126: #{tpu_custom_call.1} parent=1 // pred_check
      _
    $region127: #{tpu_custom_call.1} parent=1 // pred_check_branch
      %254 = sbr.rel (0) target = $region129
    $region128: #{tpu_custom_call.1} parent=1 // pred_region
      %255 = dma.done [#allocation21], 64
    $region129: #{tpu_custom_call.1} parent=1 // pred_fallthru
      _
    // Predicated region
    $region130: #{tpu_custom_call.1} parent=1 // pred_check
      _
    $region131: #{tpu_custom_call.1} parent=1 // pred_check_branch
      %257 = sbr.rel (0) target = $region133
    $region132: #{tpu_custom_call.1} parent=1 // pred_region
      %258 = dma.done [#allocation21], 64
    $region133: #{tpu_custom_call.1} parent=1 // pred_fallthru
      _
    // Predicated region
    $region134: #{tpu_custom_call.1} parent=1 // pred_check
      _
    $region135: #{tpu_custom_call.1} parent=1 // pred_check_branch
      %260 = sbr.rel (0) target = $region137
    $region136: #{tpu_custom_call.1} parent=1 // pred_region
      %261 = dma.done [#allocation24], 4096
    $region137: #{tpu_custom_call.1} parent=1 // pred_fallthru
      _
    // Predicated region
    $region138: #{tpu_custom_call.1} parent=1 // pred_check
      _
    $region139: #{tpu_custom_call.1} parent=1 // pred_check_branch
      %263 = sbr.rel (0) target = $region141
    $region140: #{tpu_custom_call.1} parent=1 // pred_region
      %264 = dma.done [#allocation24], 2048
    $region141: #{tpu_custom_call.1} parent=1 // pred_fallthru
      _
    %v266 = vld [vmem:[#allocation2] sm:$0xff]
    %v267 = vld [vmem:[#allocation2 + $0x8] sm:$0xff]
    %v268 = vld [vmem:[#allocation2 + $0x10] sm:$0xff]
    %v269 = vld [vmem:[#allocation2 + $0x18] sm:$0xff]
    %v270 = vld [vmem:[#allocation7] sm:$0x3]
    %v271 = vld [vmem:[#allocation8] sm:$0x3]
    %v272 = vadd.f32 %v266, %v267
    %273 = vadd.xlane.f32.xlu0 %v272
    %v274 = vpop.xlane.xlu0 %273
    %v275 = vadd.f32 %v268, %v269
    %276 = vadd.xlane.f32.xlu0 %v275
    %v277 = vpop.xlane.xlu0 %276
    %v278 = vrcp.pop 256.0
    %v279 = vmul.f32 %v274, %v278
    %v280 = vmul.f32 %v277, %v278
    %v281 = vsub.f32 %v266, %v279
    %v282 = vsub.f32 %v267, %v279
    %v283 = vsub.f32 %v268, %v280
    %v284 = vsub.f32 %v269, %v280
    %v285 = vmul.f32 %v281, %v281
    %v286 = vmul.f32 %v282, %v282
    %v287 = vmul.f32 %v283, %v283
    %v288 = vmul.f32 %v284, %v284
    %v289 = vadd.f32 %v285, %v286
    %290 = vadd.xlane.f32.xlu0 %v289
    %v291 = vpop.xlane.xlu0 %290
    %v292 = vadd.f32 %v287, %v288
    %293 = vadd.xlane.f32.xlu0 %v292
    %v294 = vpop.xlane.xlu0 %293
    %v295 = vmul.f32 %v291, %v278
    %v296 = vmul.f32 %v294, %v278
    %v297 = vadd.f32 %v295, 1e-12
    %v298 = vadd.f32 %v296, 1e-12
    %v299 = vrsqrt.pop %v297
    %v300 = vrsqrt.pop %v298
    %v301 = vmul.f32 %v281, %v299
    %v302 = vmul.f32 %v282, %v299
    %v303 = vmul.f32 %v283, %v300
    %v304 = vmul.f32 %v284, %v300
    %v306 = vlaneseq
    %v307 = vshrl.u32 %v306, 7
    %v308 = vsub.s32 0, %v307
    %v309 = vrot.slane %v270, %v308
    %v310 = vlaneseq
    %v311 = vshrl.u32 %v310, 7
    %v312 = vsub.s32 1, %v311
    %v313 = vrot.slane %v270, %v312
    %v316 = vmul.f32 %v301, %v309
    %v317 = vmul.f32 %v302, %v313
    %v318 = vmul.f32 %v303, %v309
    %v319 = vmul.f32 %v304, %v313
    %v321 = vlaneseq
    %v322 = vshrl.u32 %v321, 7
    %v323 = vsub.s32 0, %v322
    %v324 = vrot.slane %v271, %v323
    %v325 = vlaneseq
    %v326 = vshrl.u32 %v325, 7
    %v327 = vsub.s32 1, %v326
    %v328 = vrot.slane %v271, %v327
    %v331 = vadd.f32 %v316, %v324
    %v332 = vadd.f32 %v317, %v328
    %v333 = vadd.f32 %v318, %v324
    %v334 = vadd.f32 %v319, %v328
    %v335 = vld [vmem:[#allocation5] sm:$0x1]
    %v336 = vld [vmem:[#allocation5 + $0x1] sm:$0x1]
    %v337 = vpack.c.bf16 %v333, %v331
    %v338 = vpack.c.bf16 %v334, %v332
    %v339 = vld [vmem:[#allocation10] sm:$0xff]
    %v340 = vld [vmem:[#allocation10 + $0x8] sm:$0xff]
    %v341 = vld [vmem:[#allocation10 + $0x10] sm:$0xff]
    %v342 = vld [vmem:[#allocation10 + $0x18] sm:$0xff]
    %v343 = vld [vmem:[#allocation10 + $0x20] sm:$0xff]
    %v344 = vld [vmem:[#allocation10 + $0x28] sm:$0xff]
    %v345 = vld [vmem:[#allocation10 + $0x30] sm:$0xff]
    %v346 = vld [vmem:[#allocation10 + $0x38] sm:$0xff]
    %v347 = vld [vmem:[#allocation10 + $0x40] sm:$0xff]
    %v348 = vld [vmem:[#allocation10 + $0x48] sm:$0xff]
    %v349 = vld [vmem:[#allocation10 + $0x50] sm:$0xff]
    %v350 = vld [vmem:[#allocation10 + $0x58] sm:$0xff]
    %v351 = vld [vmem:[#allocation10 + $0x60] sm:$0xff]
    %v352 = vld [vmem:[#allocation10 + $0x68] sm:$0xff]
    %v353 = vld [vmem:[#allocation10 + $0x70] sm:$0xff]
    %v354 = vld [vmem:[#allocation10 + $0x78] sm:$0xff]
    %v355 = vld [vmem:[#allocation10 + $0x80] sm:$0xff]
    %v356 = vld [vmem:[#allocation10 + $0x88] sm:$0xff]
    %v357 = vld [vmem:[#allocation10 + $0x90] sm:$0xff]
    %v358 = vld [vmem:[#allocation10 + $0x98] sm:$0xff]
    %v359 = vld [vmem:[#allocation10 + $0xa0] sm:$0xff]
    %v360 = vld [vmem:[#allocation10 + $0xa8] sm:$0xff]
    %v361 = vld [vmem:[#allocation10 + $0xb0] sm:$0xff]
    %v362 = vld [vmem:[#allocation10 + $0xb8] sm:$0xff]
    %v363 = vld [vmem:[#allocation10 + $0xc0] sm:$0xff]
    %v364 = vld [vmem:[#allocation10 + $0xc8] sm:$0xff]
    %v365 = vld [vmem:[#allocation10 + $0xd0] sm:$0xff]
    %v366 = vld [vmem:[#allocation10 + $0xd8] sm:$0xff]
    %v367 = vld [vmem:[#allocation10 + $0xe0] sm:$0xff]
    %v368 = vld [vmem:[#allocation10 + $0xe8] sm:$0xff]
    %v369 = vld [vmem:[#allocation10 + $0xf0] sm:$0xff]
    %v370 = vld [vmem:[#allocation10 + $0xf8] sm:$0xff]
    %v371 = vld [vmem:[#allocation10 + $0x100] sm:$0xff]
    %v372 = vld [vmem:[#allocation10 + $0x108] sm:$0xff]
    %v373 = vld [vmem:[#allocation10 + $0x110] sm:$0xff]
    %v374 = vld [vmem:[#allocation10 + $0x118] sm:$0xff]
    %v375 = vld [vmem:[#allocation10 + $0x120] sm:$0xff]
    %v376 = vld [vmem:[#allocation10 + $0x128] sm:$0xff]
    %v377 = vld [vmem:[#allocation10 + $0x130] sm:$0xff]
    %v378 = vld [vmem:[#allocation10 + $0x138] sm:$0xff]
    %v379 = vld [vmem:[#allocation10 + $0x140] sm:$0xff]
    %v380 = vld [vmem:[#allocation10 + $0x148] sm:$0xff]
    %v381 = vld [vmem:[#allocation10 + $0x150] sm:$0xff]
    %v382 = vld [vmem:[#allocation10 + $0x158] sm:$0xff]
    %v383 = vld [vmem:[#allocation10 + $0x160] sm:$0xff]
    %v384 = vld [vmem:[#allocation10 + $0x168] sm:$0xff]
    %v385 = vld [vmem:[#allocation10 + $0x170] sm:$0xff]
    %v386 = vld [vmem:[#allocation10 + $0x178] sm:$0xff]
    %v387 = vld [vmem:[#allocation10 + $0x180] sm:$0xff]
    %v388 = vld [vmem:[#allocation10 + $0x188] sm:$0xff]
    %v389 = vld [vmem:[#allocation10 + $0x190] sm:$0xff]
    %v390 = vld [vmem:[#allocation10 + $0x198] sm:$0xff]
    %v391 = vld [vmem:[#allocation10 + $0x1a0] sm:$0xff]
    %v392 = vld [vmem:[#allocation10 + $0x1a8] sm:$0xff]
    %v393 = vld [vmem:[#allocation10 + $0x1b0] sm:$0xff]
    %v394 = vld [vmem:[#allocation10 + $0x1b8] sm:$0xff]
    %v395 = vld [vmem:[#allocation10 + $0x1c0] sm:$0xff]
    %v396 = vld [vmem:[#allocation10 + $0x1c8] sm:$0xff]
    %v397 = vld [vmem:[#allocation10 + $0x1d0] sm:$0xff]
    %v398 = vld [vmem:[#allocation10 + $0x1d8] sm:$0xff]
    %v399 = vld [vmem:[#allocation10 + $0x1e0] sm:$0xff]
    %v400 = vld [vmem:[#allocation10 + $0x1e8] sm:$0xff]
    %v401 = vld [vmem:[#allocation10 + $0x1f0] sm:$0xff]
    %v402 = vld [vmem:[#allocation10 + $0x1f8] sm:$0xff]
    %v403 = vld [vmem:[#allocation10 + $0x200] sm:$0xff]
    %v404 = vld [vmem:[#allocation10 + $0x208] sm:$0xff]
    %v405 = vld [vmem:[#allocation10 + $0x210] sm:$0xff]
    %v406 = vld [vmem:[#allocation10 + $0x218] sm:$0xff]
    %v407 = vld [vmem:[#allocation10 + $0x220] sm:$0xff]
    %v408 = vld [vmem:[#allocation10 + $0x228] sm:$0xff]
    %v409 = vld [vmem:[#allocation10 + $0x230] sm:$0xff]
    %v410 = vld [vmem:[#allocation10 + $0x238] sm:$0xff]
    %v411 = vld [vmem:[#allocation10 + $0x240] sm:$0xff]
    %v412 = vld [vmem:[#allocation10 + $0x248] sm:$0xff]
    %v413 = vld [vmem:[#allocation10 + $0x250] sm:$0xff]
    %v414 = vld [vmem:[#allocation10 + $0x258] sm:$0xff]
    %v415 = vld [vmem:[#allocation10 + $0x260] sm:$0xff]
    %v416 = vld [vmem:[#allocation10 + $0x268] sm:$0xff]
    %v417 = vld [vmem:[#allocation10 + $0x270] sm:$0xff]
    %v418 = vld [vmem:[#allocation10 + $0x278] sm:$0xff]
    %v419 = vld [vmem:[#allocation10 + $0x280] sm:$0xff]
    %v420 = vld [vmem:[#allocation10 + $0x288] sm:$0xff]
    %v421 = vld [vmem:[#allocation10 + $0x290] sm:$0xff]
    %v422 = vld [vmem:[#allocation10 + $0x298] sm:$0xff]
    %v423 = vld [vmem:[#allocation10 + $0x2a0] sm:$0xff]
    %v424 = vld [vmem:[#allocation10 + $0x2a8] sm:$0xff]
    %v425 = vld [vmem:[#allocation10 + $0x2b0] sm:$0xff]
    %v426 = vld [vmem:[#allocation10 + $0x2b8] sm:$0xff]
    %v427 = vld [vmem:[#allocation10 + $0x2c0] sm:$0xff]
    %v428 = vld [vmem:[#allocation10 + $0x2c8] sm:$0xff]
    %v429 = vld [vmem:[#allocation10 + $0x2d0] sm:$0xff]
    %v430 = vld [vmem:[#allocation10 + $0x2d8] sm:$0xff]
    %v431 = vld [vmem:[#allocation10 + $0x2e0] sm:$0xff]
    %v432 = vld [vmem:[#allocation10 + $0x2e8] sm:$0xff]
    %v433 = vld [vmem:[#allocation10 + $0x2f0] sm:$0xff]
    %v434 = vld [vmem:[#allocation10 + $0x2f8] sm:$0xff]
    %v435 = vld [vmem:[#allocation11] sm:$0x3f]
    %v437 = vlaneseq
    %v438 = vshrl.u32 %v437, 7
    %v439 = vsub.s32 0, %v438
    %v440 = vrot.slane %v435, %v439
    %v441 = vlaneseq
    %v442 = vshrl.u32 %v441, 7
    %v443 = vsub.s32 1, %v442
    %v444 = vrot.slane %v435, %v443
    %v445 = vlaneseq
    %v446 = vshrl.u32 %v445, 7
    %v447 = vsub.s32 2, %v446
    %v448 = vrot.slane %v435, %v447
    %v449 = vlaneseq
    %v450 = vshrl.u32 %v449, 7
    %v451 = vsub.s32 3, %v450
    %v452 = vrot.slane %v435, %v451
    %v453 = vlaneseq
    %v454 = vshrl.u32 %v453, 7
    %v455 = vsub.s32 4, %v454
    %v456 = vrot.slane %v435, %v455
    %v457 = vlaneseq
    %v458 = vshrl.u32 %v457, 7
    %v459 = vsub.s32 5, %v458
    %v460 = vrot.slane %v435, %v459
    %v563 = vunpack.c.l.b16 %v339
    %v564 = vunpack.c.h.b16 %v339
    %v565 = vunpack.c.l.b16 %v340
    %v566 = vunpack.c.h.b16 %v340
    %v567 = vunpack.c.l.b16 %v341
    %v568 = vunpack.c.h.b16 %v341
    %v569 = vunpack.c.l.b16 %v342
    %v570 = vunpack.c.h.b16 %v342
    %v571 = vunpack.c.l.b16 %v343
    %v572 = vunpack.c.h.b16 %v343
    %v573 = vunpack.c.l.b16 %v344
    %v574 = vunpack.c.h.b16 %v344
    %v575 = vunpack.c.l.b16 %v345
    %v576 = vunpack.c.h.b16 %v345
    %v577 = vunpack.c.l.b16 %v346
    %v578 = vunpack.c.h.b16 %v346
    %v579 = vunpack.c.l.b16 %v347
    %v580 = vunpack.c.h.b16 %v347
    %v581 = vunpack.c.l.b16 %v348
    %v582 = vunpack.c.h.b16 %v348
    %v583 = vunpack.c.l.b16 %v349
    %v584 = vunpack.c.h.b16 %v349
    %v585 = vunpack.c.l.b16 %v350
    %v586 = vunpack.c.h.b16 %v350
    %v587 = vunpack.c.l.b16 %v351
    %v588 = vunpack.c.h.b16 %v351
    %v589 = vunpack.c.l.b16 %v352
    %v590 = vunpack.c.h.b16 %v352
    %v591 = vunpack.c.l.b16 %v353
    %v592 = vunpack.c.h.b16 %v353
    %v593 = vunpack.c.l.b16 %v354
    %v594 = vunpack.c.h.b16 %v354
    %v595 = vunpack.c.l.b16 %v355
    %v596 = vunpack.c.h.b16 %v355
    %v597 = vunpack.c.l.b16 %v356
    %v598 = vunpack.c.h.b16 %v356
    %v599 = vunpack.c.l.b16 %v357
    %v600 = vunpack.c.h.b16 %v357
    %v601 = vunpack.c.l.b16 %v358
    %v602 = vunpack.c.h.b16 %v358
    %v603 = vunpack.c.l.b16 %v359
    %v604 = vunpack.c.h.b16 %v359
    %v605 = vunpack.c.l.b16 %v360
    %v606 = vunpack.c.h.b16 %v360
    %v607 = vunpack.c.l.b16 %v361
    %v608 = vunpack.c.h.b16 %v361
    %v609 = vunpack.c.l.b16 %v362
    %v610 = vunpack.c.h.b16 %v362
    %v611 = vunpack.c.l.b16 %v363
    %v612 = vunpack.c.h.b16 %v363
    %v613 = vunpack.c.l.b16 %v364
    %v614 = vunpack.c.h.b16 %v364
    %v615 = vunpack.c.l.b16 %v365
    %v616 = vunpack.c.h.b16 %v365
    %v617 = vunpack.c.l.b16 %v366
    %v618 = vunpack.c.h.b16 %v366
    %v619 = vunpack.c.l.b16 %v367
    %v620 = vunpack.c.h.b16 %v367
    %v621 = vunpack.c.l.b16 %v368
    %v622 = vunpack.c.h.b16 %v368
    %v623 = vunpack.c.l.b16 %v369
    %v624 = vunpack.c.h.b16 %v369
    %v625 = vunpack.c.l.b16 %v370
    %v626 = vunpack.c.h.b16 %v370
    %v627 = vunpack.c.l.b16 %v371
    %v628 = vunpack.c.h.b16 %v371
    %v629 = vunpack.c.l.b16 %v372
    %v630 = vunpack.c.h.b16 %v372
    %v631 = vunpack.c.l.b16 %v373
    %v632 = vunpack.c.h.b16 %v373
    %v633 = vunpack.c.l.b16 %v374
    %v634 = vunpack.c.h.b16 %v374
    %v635 = vunpack.c.l.b16 %v375
    %v636 = vunpack.c.h.b16 %v375
    %v637 = vunpack.c.l.b16 %v376
    %v638 = vunpack.c.h.b16 %v376
    %v639 = vunpack.c.l.b16 %v377
    %v640 = vunpack.c.h.b16 %v377
    %v641 = vunpack.c.l.b16 %v378
    %v642 = vunpack.c.h.b16 %v378
    %v643 = vunpack.c.l.b16 %v379
    %v644 = vunpack.c.h.b16 %v379
    %v645 = vunpack.c.l.b16 %v380
    %v646 = vunpack.c.h.b16 %v380
    %v647 = vunpack.c.l.b16 %v381
    %v648 = vunpack.c.h.b16 %v381
    %v649 = vunpack.c.l.b16 %v382
    %v650 = vunpack.c.h.b16 %v382
    %v651 = vunpack.c.l.b16 %v383
    %v652 = vunpack.c.h.b16 %v383
    %v653 = vunpack.c.l.b16 %v384
    %v654 = vunpack.c.h.b16 %v384
    %v655 = vunpack.c.l.b16 %v385
    %v656 = vunpack.c.h.b16 %v385
    %v657 = vunpack.c.l.b16 %v386
    %v658 = vunpack.c.h.b16 %v386
    %v659 = vunpack.c.l.b16 %v387
    %v660 = vunpack.c.h.b16 %v387
    %v661 = vunpack.c.l.b16 %v388
    %v662 = vunpack.c.h.b16 %v388
    %v663 = vunpack.c.l.b16 %v389
    %v664 = vunpack.c.h.b16 %v389
    %v665 = vunpack.c.l.b16 %v390
    %v666 = vunpack.c.h.b16 %v390
    %v667 = vunpack.c.l.b16 %v391
    %v668 = vunpack.c.h.b16 %v391
    %v669 = vunpack.c.l.b16 %v392
    %v670 = vunpack.c.h.b16 %v392
    %v671 = vunpack.c.l.b16 %v393
    %v672 = vunpack.c.h.b16 %v393
    %v673 = vunpack.c.l.b16 %v394
    %v674 = vunpack.c.h.b16 %v394
    %v675 = vunpack.c.l.b16 %v395
    %v676 = vunpack.c.h.b16 %v395
    %v677 = vunpack.c.l.b16 %v396
    %v678 = vunpack.c.h.b16 %v396
    %v679 = vunpack.c.l.b16 %v397
    %v680 = vunpack.c.h.b16 %v397
    %v681 = vunpack.c.l.b16 %v398
    %v682 = vunpack.c.h.b16 %v398
    %v683 = vunpack.c.l.b16 %v399
    %v684 = vunpack.c.h.b16 %v399
    %v685 = vunpack.c.l.b16 %v400
    %v686 = vunpack.c.h.b16 %v400
    %v687 = vunpack.c.l.b16 %v401
    %v688 = vunpack.c.h.b16 %v401
    %v689 = vunpack.c.l.b16 %v402
    %v690 = vunpack.c.h.b16 %v402
    %v691 = vunpack.c.l.b16 %v403
    %v692 = vunpack.c.h.b16 %v403
    %v693 = vunpack.c.l.b16 %v404
    %v694 = vunpack.c.h.b16 %v404
    %v695 = vunpack.c.l.b16 %v405
    %v696 = vunpack.c.h.b16 %v405
    %v697 = vunpack.c.l.b16 %v406
    %v698 = vunpack.c.h.b16 %v406
    %v699 = vunpack.c.l.b16 %v407
    %v700 = vunpack.c.h.b16 %v407
    %v701 = vunpack.c.l.b16 %v408
    %v702 = vunpack.c.h.b16 %v408
    %v703 = vunpack.c.l.b16 %v409
    %v704 = vunpack.c.h.b16 %v409
    %v705 = vunpack.c.l.b16 %v410
    %v706 = vunpack.c.h.b16 %v410
    %v707 = vunpack.c.l.b16 %v411
    %v708 = vunpack.c.h.b16 %v411
    %v709 = vunpack.c.l.b16 %v412
    %v710 = vunpack.c.h.b16 %v412
    %v711 = vunpack.c.l.b16 %v413
    %v712 = vunpack.c.h.b16 %v413
    %v713 = vunpack.c.l.b16 %v414
    %v714 = vunpack.c.h.b16 %v414
    %v715 = vunpack.c.l.b16 %v415
    %v716 = vunpack.c.h.b16 %v415
    %v717 = vunpack.c.l.b16 %v416
    %v718 = vunpack.c.h.b16 %v416
    %v719 = vunpack.c.l.b16 %v417
    %v720 = vunpack.c.h.b16 %v417
    %v721 = vunpack.c.l.b16 %v418
    %v722 = vunpack.c.h.b16 %v418
    %v723 = vunpack.c.l.b16 %v419
    %v724 = vunpack.c.h.b16 %v419
    %v725 = vunpack.c.l.b16 %v420
    %v726 = vunpack.c.h.b16 %v420
    %v727 = vunpack.c.l.b16 %v421
    %v728 = vunpack.c.h.b16 %v421
    %v729 = vunpack.c.l.b16 %v422
    %v730 = vunpack.c.h.b16 %v422
    %v731 = vunpack.c.l.b16 %v423
    %v732 = vunpack.c.h.b16 %v423
    %v733 = vunpack.c.l.b16 %v424
    %v734 = vunpack.c.h.b16 %v424
    %v735 = vunpack.c.l.b16 %v425
    %v736 = vunpack.c.h.b16 %v425
    %v737 = vunpack.c.l.b16 %v426
    %v738 = vunpack.c.h.b16 %v426
    %v739 = vunpack.c.l.b16 %v427
    %v740 = vunpack.c.h.b16 %v427
    %v741 = vunpack.c.l.b16 %v428
    %v742 = vunpack.c.h.b16 %v428
    %v743 = vunpack.c.l.b16 %v429
    %v744 = vunpack.c.h.b16 %v429
    %v745 = vunpack.c.l.b16 %v430
    %v746 = vunpack.c.h.b16 %v430
    %v747 = vunpack.c.l.b16 %v431
    %v748 = vunpack.c.h.b16 %v431
    %v749 = vunpack.c.l.b16 %v432
    %v750 = vunpack.c.h.b16 %v432
    %v751 = vunpack.c.l.b16 %v433
    %v752 = vunpack.c.h.b16 %v433
    %v753 = vunpack.c.l.b16 %v434
    %v754 = vunpack.c.h.b16 %v434
    %v755 = vpack.c.b16 %v569, %v563
    %v756 = vpack.c.b16 %v570, %v564
    %v757 = vpack.c.b16 %v571, %v565
    %v758 = vpack.c.b16 %v572, %v566
    %v759 = vpack.c.b16 %v573, %v567
    %v760 = vpack.c.b16 %v574, %v568
    %v761 = vpack.c.b16 %v581, %v575
    %v762 = vpack.c.b16 %v582, %v576
    %v763 = vpack.c.b16 %v583, %v577
    %v764 = vpack.c.b16 %v584, %v578
    %v765 = vpack.c.b16 %v585, %v579
    %v766 = vpack.c.b16 %v586, %v580
    %v767 = vpack.c.b16 %v593, %v587
    %v768 = vpack.c.b16 %v594, %v588
    %v769 = vpack.c.b16 %v595, %v589
    %v770 = vpack.c.b16 %v596, %v590
    %v771 = vpack.c.b16 %v597, %v591
    %v772 = vpack.c.b16 %v598, %v592
    %v773 = vpack.c.b16 %v605, %v599
    %v774 = vpack.c.b16 %v606, %v600
    %v775 = vpack.c.b16 %v607, %v601
    %v776 = vpack.c.b16 %v608, %v602
    %v777 = vpack.c.b16 %v609, %v603
    %v778 = vpack.c.b16 %v610, %v604
    %v779 = vpack.c.b16 %v617, %v611
    %v780 = vpack.c.b16 %v618, %v612
    %v781 = vpack.c.b16 %v619, %v613
    %v782 = vpack.c.b16 %v620, %v614
    %v783 = vpack.c.b16 %v621, %v615
    %v784 = vpack.c.b16 %v622, %v616
    %v785 = vpack.c.b16 %v629, %v623
    %v786 = vpack.c.b16 %v630, %v624
    %v787 = vpack.c.b16 %v631, %v625
    %v788 = vpack.c.b16 %v632, %v626
    %v789 = vpack.c.b16 %v633, %v627
    %v790 = vpack.c.b16 %v634, %v628
    %v791 = vpack.c.b16 %v641, %v635
    %v792 = vpack.c.b16 %v642, %v636
    %v793 = vpack.c.b16 %v643, %v637
    %v794 = vpack.c.b16 %v644, %v638
    %v795 = vpack.c.b16 %v645, %v639
    %v796 = vpack.c.b16 %v646, %v640
    %v797 = vpack.c.b16 %v653, %v647
    %v798 = vpack.c.b16 %v654, %v648
    %v799 = vpack.c.b16 %v655, %v649
    %v800 = vpack.c.b16 %v656, %v650
    %v801 = vpack.c.b16 %v657, %v651
    %v802 = vpack.c.b16 %v658, %v652
    %v803 = vpack.c.b16 %v665, %v659
    %v804 = vpack.c.b16 %v666, %v660
    %v805 = vpack.c.b16 %v667, %v661
    %v806 = vpack.c.b16 %v668, %v662
    %v807 = vpack.c.b16 %v669, %v663
    %v808 = vpack.c.b16 %v670, %v664
    %v809 = vpack.c.b16 %v677, %v671
    %v810 = vpack.c.b16 %v678, %v672
    %v811 = vpack.c.b16 %v679, %v673
    %v812 = vpack.c.b16 %v680, %v674
    %v813 = vpack.c.b16 %v681, %v675
    %v814 = vpack.c.b16 %v682, %v676
    %v815 = vpack.c.b16 %v689, %v683
    %v816 = vpack.c.b16 %v690, %v684
    %v817 = vpack.c.b16 %v691, %v685
    %v818 = vpack.c.b16 %v692, %v686
    %v819 = vpack.c.b16 %v693, %v687
    %v820 = vpack.c.b16 %v694, %v688
    %v821 = vpack.c.b16 %v701, %v695
    %v822 = vpack.c.b16 %v702, %v696
    %v823 = vpack.c.b16 %v703, %v697
    %v824 = vpack.c.b16 %v704, %v698
    %v825 = vpack.c.b16 %v705, %v699
    %v826 = vpack.c.b16 %v706, %v700
    %v827 = vpack.c.b16 %v713, %v707
    %v828 = vpack.c.b16 %v714, %v708
    %v829 = vpack.c.b16 %v715, %v709
    %v830 = vpack.c.b16 %v716, %v710
    %v831 = vpack.c.b16 %v717, %v711
    %v832 = vpack.c.b16 %v718, %v712
    %v833 = vpack.c.b16 %v725, %v719
    %v834 = vpack.c.b16 %v726, %v720
    %v835 = vpack.c.b16 %v727, %v721
    %v836 = vpack.c.b16 %v728, %v722
    %v837 = vpack.c.b16 %v729, %v723
    %v838 = vpack.c.b16 %v730, %v724
    %v839 = vpack.c.b16 %v737, %v731
    %v840 = vpack.c.b16 %v738, %v732
    %v841 = vpack.c.b16 %v739, %v733
    %v842 = vpack.c.b16 %v740, %v734
    %v843 = vpack.c.b16 %v741, %v735
    %v844 = vpack.c.b16 %v742, %v736
    %v845 = vpack.c.b16 %v749, %v743
    %v846 = vpack.c.b16 %v750, %v744
    %v847 = vpack.c.b16 %v751, %v745
    %v848 = vpack.c.b16 %v752, %v746
    %v849 = vpack.c.b16 %v753, %v747
    %v850 = vpack.c.b16 %v754, %v748
    %947 = vmatprep.subr.bf16.mxu0 %v798
    %948 = vmatpush1.bf16.msra.mxu0 %v797
    %949 = vmatprep.subr.bf16.mxu0 %v792
    %950 = vmatpush1.bf16.msra.mxu0 %v791
    %951 = vmatprep.subr.bf16.mxu0 %v786
    %952 = vmatpush1.bf16.msra.mxu0 %v785
    %953 = vmatprep.subr.bf16.mxu0 %v780
    %954 = vmatpush1.bf16.msra.mxu0 %v779
    %955 = vmatprep.subr.bf16.mxu0 %v774
    %956 = vmatpush1.bf16.msra.mxu0 %v773
    %957 = vmatprep.subr.bf16.mxu0 %v768
    %958 = vmatpush1.bf16.msra.mxu0 %v767
    %959 = vmatprep.subr.bf16.mxu0 %v762
    %960 = vmatpush1.bf16.msra.mxu0 %v761
    %961 = vmatprep.subr.bf16.mxu0 %v756
    %962 = vmatpush1.bf16.msra.mxu0 %v755
    %963 = vmatprep.subr.bf16.mxu0 %v846
    %964 = vmatpush2.bf16.msra.mxu0 %v845
    %965 = vmatprep.subr.bf16.mxu0 %v840
    %966 = vmatpush2.bf16.msra.mxu0 %v839
    %967 = vmatprep.subr.bf16.mxu0 %v834
    %968 = vmatpush2.bf16.msra.mxu0 %v833
    %969 = vmatprep.subr.bf16.mxu0 %v828
    %970 = vmatpush2.bf16.msra.mxu0 %v827
    %971 = vmatprep.subr.bf16.mxu0 %v822
    %972 = vmatpush2.bf16.msra.mxu0 %v821
    %973 = vmatprep.subr.bf16.mxu0 %v816
    %974 = vmatpush2.bf16.msra.mxu0 %v815
    %975 = vmatprep.subr.bf16.mxu0 %v810
    %976 = vmatpush2.bf16.msra.mxu0 %v809
    %977 = vmatprep.subr.bf16.mxu0 %v804
    %978 = vmatpush2.bf16.msra.mxu0 %v803
    %979 = vmatprep.mubr.bf16.mxu0 %v338
    %980 = vmatmul.mubr.bf16.gmra.mxu0 %v337
    %v981 = vpop.f32.mrf.mxu0
    %v982 = vadd.f32 %v440, %v981
    %v983 = vpop.f32.mrf.mxu0
    %v984 = vadd.f32 %v444, %v983
    %v985 = vpop.f32.mrf.mxu0
    %v986 = vadd.f32 %v440, %v985
    %v987 = vpop.f32.mrf.mxu0
    %v988 = vadd.f32 %v444, %v987
    %989 = vdwg.mxu0
    %990 = vmatprep.subr.bf16.mxu0 %v800
    %991 = vmatpush1.bf16.msra.mxu0 %v799
    %992 = vmatprep.subr.bf16.mxu0 %v794
    %993 = vmatpush1.bf16.msra.mxu0 %v793
    %994 = vmatprep.subr.bf16.mxu0 %v788
    %995 = vmatpush1.bf16.msra.mxu0 %v787
    %996 = vmatprep.subr.bf16.mxu0 %v782
    %997 = vmatpush1.bf16.msra.mxu0 %v781
    %998 = vmatprep.subr.bf16.mxu0 %v776
    %999 = vmatpush1.bf16.msra.mxu0 %v775
    %1000 = vmatprep.subr.bf16.mxu0 %v770
    %1001 = vmatpush1.bf16.msra.mxu0 %v769
    %1002 = vmatprep.subr.bf16.mxu0 %v764
    %1003 = vmatpush1.bf16.msra.mxu0 %v763
    %1004 = vmatprep.subr.bf16.mxu0 %v758
    %1005 = vmatpush1.bf16.msra.mxu0 %v757
    %1006 = vmatprep.subr.bf16.mxu0 %v848
    %1007 = vmatpush2.bf16.msra.mxu0 %v847
    %1008 = vmatprep.subr.bf16.mxu0 %v842
    %1009 = vmatpush2.bf16.msra.mxu0 %v841
    %1010 = vmatprep.subr.bf16.mxu0 %v836
    %1011 = vmatpush2.bf16.msra.mxu0 %v835
    %1012 = vmatprep.subr.bf16.mxu0 %v830
    %1013 = vmatpush2.bf16.msra.mxu0 %v829
    %1014 = vmatprep.subr.bf16.mxu0 %v824
    %1015 = vmatpush2.bf16.msra.mxu0 %v823
    %1016 = vmatprep.subr.bf16.mxu0 %v818
    %1017 = vmatpush2.bf16.msra.mxu0 %v817
    %1018 = vmatprep.subr.bf16.mxu0 %v812
    %1019 = vmatpush2.bf16.msra.mxu0 %v811
    %1020 = vmatprep.subr.bf16.mxu0 %v806
    %1021 = vmatpush2.bf16.msra.mxu0 %v805
    %1022 = vmatprep.mubr.bf16.mxu0 %v338
    %1023 = vmatmul.mubr.bf16.gmra.mxu0 %v337
    %v1024 = vpop.f32.mrf.mxu0
    %v1025 = vadd.f32 %v448, %v1024
    %v1026 = vpop.f32.mrf.mxu0
    %v1027 = vadd.f32 %v452, %v1026
    %v1028 = vpop.f32.mrf.mxu0
    %v1029 = vadd.f32 %v448, %v1028
    %v1030 = vpop.f32.mrf.mxu0
    %v1031 = vadd.f32 %v452, %v1030
    %1032 = vdwg.mxu0
    %1033 = vmatprep.subr.bf16.mxu0 %v802
    %1034 = vmatpush1.bf16.msra.mxu0 %v801
    %1035 = vmatprep.subr.bf16.mxu0 %v796
    %1036 = vmatpush1.bf16.msra.mxu0 %v795
    %1037 = vmatprep.subr.bf16.mxu0 %v790
    %1038 = vmatpush1.bf16.msra.mxu0 %v789
    %1039 = vmatprep.subr.bf16.mxu0 %v784
    %1040 = vmatpush1.bf16.msra.mxu0 %v783
    %1041 = vmatprep.subr.bf16.mxu0 %v778
    %1042 = vmatpush1.bf16.msra.mxu0 %v777
    %1043 = vmatprep.subr.bf16.mxu0 %v772
    %1044 = vmatpush1.bf16.msra.mxu0 %v771
    %1045 = vmatprep.subr.bf16.mxu0 %v766
    %1046 = vmatpush1.bf16.msra.mxu0 %v765
    %1047 = vmatprep.subr.bf16.mxu0 %v760
    %1048 = vmatpush1.bf16.msra.mxu0 %v759
    %1049 = vmatprep.subr.bf16.mxu0 %v850
    %1050 = vmatpush2.bf16.msra.mxu0 %v849
    %1051 = vmatprep.subr.bf16.mxu0 %v844
    %1052 = vmatpush2.bf16.msra.mxu0 %v843
    %1053 = vmatprep.subr.bf16.mxu0 %v838
    %1054 = vmatpush2.bf16.msra.mxu0 %v837
    %1055 = vmatprep.subr.bf16.mxu0 %v832
    %1056 = vmatpush2.bf16.msra.mxu0 %v831
    %1057 = vmatprep.subr.bf16.mxu0 %v826
    %1058 = vmatpush2.bf16.msra.mxu0 %v825
    %1059 = vmatprep.subr.bf16.mxu0 %v820
    %1060 = vmatpush2.bf16.msra.mxu0 %v819
    %1061 = vmatprep.subr.bf16.mxu0 %v814
    %1062 = vmatpush2.bf16.msra.mxu0 %v813
    %1063 = vmatprep.subr.bf16.mxu0 %v808
    %1064 = vmatpush2.bf16.msra.mxu0 %v807
    %1065 = vmatprep.mubr.bf16.mxu0 %v338
    %1066 = vmatmul.mubr.bf16.gmra.mxu0 %v337
    %v1067 = vpop.f32.mrf.mxu0
    %v1068 = vadd.f32 %v456, %v1067
    %v1069 = vpop.f32.mrf.mxu0
    %v1070 = vadd.f32 %v460, %v1069
    %v1071 = vpop.f32.mrf.mxu0
    %v1072 = vadd.f32 %v456, %v1071
    %v1073 = vpop.f32.mrf.mxu0
    %v1074 = vadd.f32 %v460, %v1073
    %1075 = vdwg.mxu0
    %v1076 = vld [vmem:[#allocation13] sm:$0xff]
    %v1077 = vld [vmem:[#allocation13 + $0x8] sm:$0xff]
    %v1078 = vld [vmem:[#allocation13 + $0x10] sm:$0xff]
    %v1079 = vld [vmem:[#allocation13 + $0x18] sm:$0xff]
    %v1080 = vld [vmem:[#allocation13 + $0x20] sm:$0xff]
    %v1081 = vld [vmem:[#allocation13 + $0x28] sm:$0xff]
    %v1082 = vld [vmem:[#allocation13 + $0x30] sm:$0xff]
    %v1083 = vld [vmem:[#allocation13 + $0x38] sm:$0xff]
    %v1084 = vld [vmem:[#allocation13 + $0x40] sm:$0xff]
    %v1085 = vld [vmem:[#allocation13 + $0x48] sm:$0xff]
    %v1086 = vld [vmem:[#allocation13 + $0x50] sm:$0xff]
    %v1087 = vld [vmem:[#allocation13 + $0x58] sm:$0xff]
    %v1088 = vld [vmem:[#allocation13 + $0x60] sm:$0xff]
    %v1089 = vld [vmem:[#allocation13 + $0x68] sm:$0xff]
    %v1090 = vld [vmem:[#allocation13 + $0x70] sm:$0xff]
    %v1091 = vld [vmem:[#allocation13 + $0x78] sm:$0xff]
    %v1092 = vld [vmem:[#allocation13 + $0x80] sm:$0xff]
    %v1093 = vld [vmem:[#allocation13 + $0x88] sm:$0xff]
    %v1094 = vld [vmem:[#allocation13 + $0x90] sm:$0xff]
    %v1095 = vld [vmem:[#allocation13 + $0x98] sm:$0xff]
    %v1096 = vld [vmem:[#allocation13 + $0xa0] sm:$0xff]
    %v1097 = vld [vmem:[#allocation13 + $0xa8] sm:$0xff]
    %v1098 = vld [vmem:[#allocation13 + $0xb0] sm:$0xff]
    %v1099 = vld [vmem:[#allocation13 + $0xb8] sm:$0xff]
    %v1100 = vld [vmem:[#allocation13 + $0xc0] sm:$0xff]
    %v1101 = vld [vmem:[#allocation13 + $0xc8] sm:$0xff]
    %v1102 = vld [vmem:[#allocation13 + $0xd0] sm:$0xff]
    %v1103 = vld [vmem:[#allocation13 + $0xd8] sm:$0xff]
    %v1104 = vld [vmem:[#allocation13 + $0xe0] sm:$0xff]
    %v1105 = vld [vmem:[#allocation13 + $0xe8] sm:$0xff]
    %v1106 = vld [vmem:[#allocation13 + $0xf0] sm:$0xff]
    %v1107 = vld [vmem:[#allocation13 + $0xf8] sm:$0xff]
    %v1108 = vpack.c.bf16 %v982, %v982
    %v1109 = vpack.c.bf16 %v986, %v986
    %v1110 = vpack.c.bf16 %v1025, %v1025
    %v1111 = vpack.c.bf16 %v1029, %v1029
    %v1112 = vpack.c.bf16 %v1068, %v1068
    %v1113 = vpack.c.bf16 %v1072, %v1072
    %v1116 = vlaneseq
    %v1117 = vshrl.u32 %v1116, 7
    %v1118 = vsub.s32 0, %v1117
    %v1119 = vrot.slane %v335, %v1118
    %v1120 = vlaneseq
    %v1121 = vshrl.u32 %v1120, 7
    %v1122 = vsub.s32 0, %v1121
    %v1123 = vrot.slane %v336, %v1122
    %1126 = vmatprep.subr.bf16.mxu0 0
    %1127 = vmatpush1.bf16.xpose.msra.mxu0 0
    %1128 = vmatprep.subr.bf16.mxu0 0
    %1129 = vmatpush1.bf16.xpose.msra.mxu0 0
    %1130 = vmatprep.subr.bf16.mxu0 0
    %1131 = vmatpush1.bf16.xpose.msra.mxu0 0
    %1132 = vmatprep.subr.bf16.mxu0 0
    %1133 = vmatpush1.bf16.xpose.msra.mxu0 0
    %1134 = vmatprep.subr.bf16.mxu0 0
    %1135 = vmatpush1.bf16.xpose.msra.mxu0 0
    %1136 = vmatprep.subr.bf16.mxu0 0
    %1137 = vmatpush1.bf16.xpose.msra.mxu0 0
    %1138 = vmatprep.subr.bf16.mxu0 0
    %1139 = vmatpush1.bf16.xpose.msra.mxu0 0
    %1140 = vmatprep.subr.bf16.mxu0 0
    %1141 = vmatpush1.bf16.xpose.msra.mxu0 %v1110
    %1142 = vmatprep.subr.bf16.mxu0 0
    %1143 = vmatpush2.bf16.xpose.msra.mxu0 0
    %1144 = vmatprep.subr.bf16.mxu0 0
    %1145 = vmatpush2.bf16.xpose.msra.mxu0 0
    %1146 = vmatprep.subr.bf16.mxu0 0
    %1147 = vmatpush2.bf16.xpose.msra.mxu0 0
    %1148 = vmatprep.subr.bf16.mxu0 0
    %1149 = vmatpush2.bf16.xpose.msra.mxu0 0
    %1150 = vmatprep.subr.bf16.mxu0 0
    %1151 = vmatpush2.bf16.xpose.msra.mxu0 0
    %1152 = vmatprep.subr.bf16.mxu0 0
    %1153 = vmatpush2.bf16.xpose.msra.mxu0 0
    %1154 = vmatprep.subr.bf16.mxu0 0
    %1155 = vmatpush2.bf16.xpose.msra.mxu0 0
    %1156 = vmatprep.subr.bf16.mxu0 0
    %1157 = vmatpush2.bf16.xpose.msra.mxu0 0
    %1158 = vmatprep.mubr.bf16.mxu0 0
    %1159 = vmatmul.mubr.bf16.gmra.mxu0 %v1108
    %v1160 = vpop.f32.mrf.mxu0
    %v1161 = vadd.f32 %v1119, %v1160
    %v1162 = vpop.f32.mrf.mxu0
    %v1163 = vpop.f32.mrf.mxu0
    %v1164 = vpop.f32.mrf.mxu0
    %1165 = vdwg.mxu0
    %1166 = vmatprep.subr.bf16.mxu0 0
    %1167 = vmatpush1.bf16.xpose.msra.mxu0 0
    %1168 = vmatprep.subr.bf16.mxu0 0
    %1169 = vmatpush1.bf16.xpose.msra.mxu0 0
    %1170 = vmatprep.subr.bf16.mxu0 0
    %1171 = vmatpush1.bf16.xpose.msra.mxu0 0
    %1172 = vmatprep.subr.bf16.mxu0 0
    %1173 = vmatpush1.bf16.xpose.msra.mxu0 0
    %1174 = vmatprep.subr.bf16.mxu0 0
    %1175 = vmatpush1.bf16.xpose.msra.mxu0 0
    %1176 = vmatprep.subr.bf16.mxu0 0
    %1177 = vmatpush1.bf16.xpose.msra.mxu0 0
    %1178 = vmatprep.subr.bf16.mxu0 0
    %1179 = vmatpush1.bf16.xpose.msra.mxu0 0
    %1180 = vmatprep.subr.bf16.mxu0 0
    %1181 = vmatpush1.bf16.xpose.msra.mxu0 %v1111
    %1182 = vmatprep.subr.bf16.mxu0 0
    %1183 = vmatpush2.bf16.xpose.msra.mxu0 0
    %1184 = vmatprep.subr.bf16.mxu0 0
    %1185 = vmatpush2.bf16.xpose.msra.mxu0 0
    %1186 = vmatprep.subr.bf16.mxu0 0
    %1187 = vmatpush2.bf16.xpose.msra.mxu0 0
    %1188 = vmatprep.subr.bf16.mxu0 0
    %1189 = vmatpush2.bf16.xpose.msra.mxu0 0
    %1190 = vmatprep.subr.bf16.mxu0 0
    %1191 = vmatpush2.bf16.xpose.msra.mxu0 0
    %1192 = vmatprep.subr.bf16.mxu0 0
    %1193 = vmatpush2.bf16.xpose.msra.mxu0 0
    %1194 = vmatprep.subr.bf16.mxu0 0
    %1195 = vmatpush2.bf16.xpose.msra.mxu0 0
    %1196 = vmatprep.subr.bf16.mxu0 0
    %1197 = vmatpush2.bf16.xpose.msra.mxu0 0
    %1198 = vmatprep.mubr.bf16.mxu0 0
    %1199 = vmatmul.mubr.bf16.gmra.mxu0 %v1109
    %v1200 = vpop.f32.mrf.mxu0
    %v1201 = vadd.f32 %v1123, %v1200
    %v1202 = vpop.f32.mrf.mxu0
    %v1203 = vpop.f32.mrf.mxu0
    %v1204 = vpop.f32.mrf.mxu0
    %1205 = vdwg.mxu0
    %vm1206 = vcmask 64512
    %v1207 = vsel %vm1206, %v1161, -inf
    %1208 = vmax.xlane.f32.xlu0 %v1207
    %v1209 = vpop.xlane.xlu0 %1208
    %v1210 = vsel %vm1206, %v1201, -inf
    %1211 = vmax.xlane.f32.xlu0 %v1210
    %v1212 = vpop.xlane.xlu0 %1211
    %v1213 = vsub.f32 %v1161, %v1209
    %v1214 = vsub.f32 %v1201, %v1212
    %v1215 = vmul.f32 %v1213, 1.442695
    %v1216 = vpow.pop %v1215
    %v1217 = vmul.f32 %v1214, 1.442695
    %v1218 = vpow.pop %v1217
    %v1219 = vsel %vm1206, %v1216, 0.0
    %1220 = vadd.xlane.f32.xlu0 %v1219
    %v1221 = vpop.xlane.xlu0 %1220
    %v1222 = vsel %vm1206, %v1218, 0.0
    %1223 = vadd.xlane.f32.xlu0 %v1222
    %v1224 = vpop.xlane.xlu0 %1223
    %v1225 = vrcp.pop %v1221
    %v1226 = vrcp.pop %v1224
    %v1227 = vmul.f32 %v1216, %v1225
    %v1228 = vmul.f32 %v1218, %v1226
    %v1229 = vpack.c.bf16 %v1227, %v1227
    %v1230 = vpack.c.bf16 %v1228, %v1228
    %v1232 = vsel %vm1206, %v1229, 0
    %vm1234 = vcmask 1043456
    %v1236 = vsel %vm1234, %v1112, 0
    %1238 = vmatprep.subr.bf16.mxu0 0
    %1239 = vmatpush1.bf16.msra.mxu0 0
    %1240 = vmatprep.subr.bf16.mxu0 0
    %1241 = vmatpush1.bf16.msra.mxu0 0
    %1242 = vmatprep.subr.bf16.mxu0 0
    %1243 = vmatpush1.bf16.msra.mxu0 0
    %1244 = vmatprep.subr.bf16.mxu0 0
    %1245 = vmatpush1.bf16.msra.mxu0 0
    %1246 = vmatprep.subr.bf16.mxu0 0
    %1247 = vmatpush1.bf16.msra.mxu0 0
    %1248 = vmatprep.subr.bf16.mxu0 0
    %1249 = vmatpush1.bf16.msra.mxu0 0
    %1250 = vmatprep.subr.bf16.mxu0 0
    %1251 = vmatpush1.bf16.msra.mxu0 0
    %1252 = vmatprep.subr.bf16.mxu0 0
    %1253 = vmatpush1.bf16.msra.mxu0 %v1236
    %1254 = vmatprep.subr.bf16.mxu0 0
    %1255 = vmatpush2.bf16.msra.mxu0 0
    %1256 = vmatprep.subr.bf16.mxu0 0
    %1257 = vmatpush2.bf16.msra.mxu0 0
    %1258 = vmatprep.subr.bf16.mxu0 0
    %1259 = vmatpush2.bf16.msra.mxu0 0
    %1260 = vmatprep.subr.bf16.mxu0 0
    %1261 = vmatpush2.bf16.msra.mxu0 0
    %1262 = vmatprep.subr.bf16.mxu0 0
    %1263 = vmatpush2.bf16.msra.mxu0 0
    %1264 = vmatprep.subr.bf16.mxu0 0
    %1265 = vmatpush2.bf16.msra.mxu0 0
    %1266 = vmatprep.subr.bf16.mxu0 0
    %1267 = vmatpush2.bf16.msra.mxu0 0
    %1268 = vmatprep.subr.bf16.mxu0 0
    %1269 = vmatpush2.bf16.msra.mxu0 0
    %1270 = vmatprep.mubr.bf16.mxu0 0
    %1271 = vmatmul.mubr.bf16.gmra.mxu0 %v1232
    %v1272 = vpop.f32.mrf.mxu0
    %v1273 = vadd.f32 0.0, %v1272
    %v1274 = vpop.f32.mrf.mxu0
    %v1275 = vpop.f32.mrf.mxu0
    %v1276 = vpop.f32.mrf.mxu0
    %1277 = vdwg.mxu0
    %v1279 = vsel %vm1206, %v1230, 0
    %v1282 = vsel %vm1234, %v1113, 0
    %1284 = vmatprep.subr.bf16.mxu0 0
    %1285 = vmatpush1.bf16.msra.mxu0 0
    %1286 = vmatprep.subr.bf16.mxu0 0
    %1287 = vmatpush1.bf16.msra.mxu0 0
    %1288 = vmatprep.subr.bf16.mxu0 0
    %1289 = vmatpush1.bf16.msra.mxu0 0
    %1290 = vmatprep.subr.bf16.mxu0 0
    %1291 = vmatpush1.bf16.msra.mxu0 0
    %1292 = vmatprep.subr.bf16.mxu0 0
    %1293 = vmatpush1.bf16.msra.mxu0 0
    %1294 = vmatprep.subr.bf16.mxu0 0
    %1295 = vmatpush1.bf16.msra.mxu0 0
    %1296 = vmatprep.subr.bf16.mxu0 0
    %1297 = vmatpush1.bf16.msra.mxu0 0
    %1298 = vmatprep.subr.bf16.mxu0 0
    %1299 = vmatpush1.bf16.msra.mxu0 %v1282
    %1300 = vmatprep.subr.bf16.mxu0 0
    %1301 = vmatpush2.bf16.msra.mxu0 0
    %1302 = vmatprep.subr.bf16.mxu0 0
    %1303 = vmatpush2.bf16.msra.mxu0 0
    %1304 = vmatprep.subr.bf16.mxu0 0
    %1305 = vmatpush2.bf16.msra.mxu0 0
    %1306 = vmatprep.subr.bf16.mxu0 0
    %1307 = vmatpush2.bf16.msra.mxu0 0
    %1308 = vmatprep.subr.bf16.mxu0 0
    %1309 = vmatpush2.bf16.msra.mxu0 0
    %1310 = vmatprep.subr.bf16.mxu0 0
    %1311 = vmatpush2.bf16.msra.mxu0 0
    %1312 = vmatprep.subr.bf16.mxu0 0
    %1313 = vmatpush2.bf16.msra.mxu0 0
    %1314 = vmatprep.subr.bf16.mxu0 0
    %1315 = vmatpush2.bf16.msra.mxu0 0
    %1316 = vmatprep.mubr.bf16.mxu0 0
    %1317 = vmatmul.mubr.bf16.gmra.mxu0 %v1279
    %v1318 = vpop.f32.mrf.mxu0
    %v1319 = vadd.f32 0.0, %v1318
    %v1320 = vpop.f32.mrf.mxu0
    %v1321 = vpop.f32.mrf.mxu0
    %v1322 = vpop.f32.mrf.mxu0
    %1323 = vdwg.mxu0
    %v1324 = vpack.c.bf16 %v1319, %v1273
    %v1325 = vpack.c.bf16 %v984, %v984
    %v1326 = vpack.c.bf16 %v988, %v988
    %v1327 = vpack.c.bf16 %v1027, %v1027
    %v1328 = vpack.c.bf16 %v1031, %v1031
    %v1329 = vpack.c.bf16 %v1070, %v1070
    %v1330 = vpack.c.bf16 %v1074, %v1074
    %1331 = vmatprep.subr.bf16.mxu0 0
    %1332 = vmatpush1.bf16.xpose.msra.mxu0 0
    %1333 = vmatprep.subr.bf16.mxu0 0
    %1334 = vmatpush1.bf16.xpose.msra.mxu0 0
    %1335 = vmatprep.subr.bf16.mxu0 0
    %1336 = vmatpush1.bf16.xpose.msra.mxu0 0
    %1337 = vmatprep.subr.bf16.mxu0 0
    %1338 = vmatpush1.bf16.xpose.msra.mxu0 0
    %1339 = vmatprep.subr.bf16.mxu0 0
    %1340 = vmatpush1.bf16.xpose.msra.mxu0 0
    %1341 = vmatprep.subr.bf16.mxu0 0
    %1342 = vmatpush1.bf16.xpose.msra.mxu0 0
    %1343 = vmatprep.subr.bf16.mxu0 0
    %1344 = vmatpush1.bf16.xpose.msra.mxu0 0
    %1345 = vmatprep.subr.bf16.mxu0 0
    %1346 = vmatpush1.bf16.xpose.msra.mxu0 %v1327
    %1347 = vmatprep.subr.bf16.mxu0 0
    %1348 = vmatpush2.bf16.xpose.msra.mxu0 0
    %1349 = vmatprep.subr.bf16.mxu0 0
    %1350 = vmatpush2.bf16.xpose.msra.mxu0 0
    %1351 = vmatprep.subr.bf16.mxu0 0
    %1352 = vmatpush2.bf16.xpose.msra.mxu0 0
    %1353 = vmatprep.subr.bf16.mxu0 0
    %1354 = vmatpush2.bf16.xpose.msra.mxu0 0
    %1355 = vmatprep.subr.bf16.mxu0 0
    %1356 = vmatpush2.bf16.xpose.msra.mxu0 0
    %1357 = vmatprep.subr.bf16.mxu0 0
    %1358 = vmatpush2.bf16.xpose.msra.mxu0 0
    %1359 = vmatprep.subr.bf16.mxu0 0
    %1360 = vmatpush2.bf16.xpose.msra.mxu0 0
    %1361 = vmatprep.subr.bf16.mxu0 0
    %1362 = vmatpush2.bf16.xpose.msra.mxu0 0
    %1363 = vmatprep.mubr.bf16.mxu0 0
    %1364 = vmatmul.mubr.bf16.gmra.mxu0 %v1325
    %v1365 = vpop.f32.mrf.mxu0
    %v1366 = vadd.f32 %v1119, %v1365
    %v1367 = vpop.f32.mrf.mxu0
    %v1368 = vpop.f32.mrf.mxu0
    %v1369 = vpop.f32.mrf.mxu0
    %1370 = vdwg.mxu0
    %1371 = vmatprep.subr.bf16.mxu0 0
    %1372 = vmatpush1.bf16.xpose.msra.mxu0 0
    %1373 = vmatprep.subr.bf16.mxu0 0
    %1374 = vmatpush1.bf16.xpose.msra.mxu0 0
    %1375 = vmatprep.subr.bf16.mxu0 0
    %1376 = vmatpush1.bf16.xpose.msra.mxu0 0
    %1377 = vmatprep.subr.bf16.mxu0 0
    %1378 = vmatpush1.bf16.xpose.msra.mxu0 0
    %1379 = vmatprep.subr.bf16.mxu0 0
    %1380 = vmatpush1.bf16.xpose.msra.mxu0 0
    %1381 = vmatprep.subr.bf16.mxu0 0
    %1382 = vmatpush1.bf16.xpose.msra.mxu0 0
    %1383 = vmatprep.subr.bf16.mxu0 0
    %1384 = vmatpush1.bf16.xpose.msra.mxu0 0
    %1385 = vmatprep.subr.bf16.mxu0 0
    %1386 = vmatpush1.bf16.xpose.msra.mxu0 %v1328
    %1387 = vmatprep.subr.bf16.mxu0 0
    %1388 = vmatpush2.bf16.xpose.msra.mxu0 0
    %1389 = vmatprep.subr.bf16.mxu0 0
    %1390 = vmatpush2.bf16.xpose.msra.mxu0 0
    %1391 = vmatprep.subr.bf16.mxu0 0
    %1392 = vmatpush2.bf16.xpose.msra.mxu0 0
    %1393 = vmatprep.subr.bf16.mxu0 0
    %1394 = vmatpush2.bf16.xpose.msra.mxu0 0
    %1395 = vmatprep.subr.bf16.mxu0 0
    %1396 = vmatpush2.bf16.xpose.msra.mxu0 0
    %1397 = vmatprep.subr.bf16.mxu0 0
    %1398 = vmatpush2.bf16.xpose.msra.mxu0 0
    %1399 = vmatprep.subr.bf16.mxu0 0
    %1400 = vmatpush2.bf16.xpose.msra.mxu0 0
    %1401 = vmatprep.subr.bf16.mxu0 0
    %1402 = vmatpush2.bf16.xpose.msra.mxu0 0
    %1403 = vmatprep.mubr.bf16.mxu0 0
    %1404 = vmatmul.mubr.bf16.gmra.mxu0 %v1326
    %v1405 = vpop.f32.mrf.mxu0
    %v1406 = vadd.f32 %v1123, %v1405
    %v1407 = vpop.f32.mrf.mxu0
    %v1408 = vpop.f32.mrf.mxu0
    %v1409 = vpop.f32.mrf.mxu0
    %1410 = vdwg.mxu0
    %v1411 = vsel %vm1206, %v1366, -inf
    %1412 = vmax.xlane.f32.xlu0 %v1411
    %v1413 = vpop.xlane.xlu0 %1412
    %v1414 = vsel %vm1206, %v1406, -inf
    %1415 = vmax.xlane.f32.xlu0 %v1414
    %v1416 = vpop.xlane.xlu0 %1415
    %v1417 = vsub.f32 %v1366, %v1413
    %v1418 = vsub.f32 %v1406, %v1416
    %v1419 = vmul.f32 %v1417, 1.442695
    %v1420 = vpow.pop %v1419
    %v1421 = vmul.f32 %v1418, 1.442695
    %v1422 = vpow.pop %v1421
    %v1423 = vsel %vm1206, %v1420, 0.0
    %1424 = vadd.xlane.f32.xlu0 %v1423
    %v1425 = vpop.xlane.xlu0 %1424
    %v1426 = vsel %vm1206, %v1422, 0.0
    %1427 = vadd.xlane.f32.xlu0 %v1426
    %v1428 = vpop.xlane.xlu0 %1427
    %v1429 = vrcp.pop %v1425
    %v1430 = vrcp.pop %v1428
    %v1431 = vmul.f32 %v1420, %v1429
    %v1432 = vmul.f32 %v1422, %v1430
    %v1433 = vpack.c.bf16 %v1431, %v1431
    %v1434 = vpack.c.bf16 %v1432, %v1432
    %v1436 = vsel %vm1206, %v1433, 0
    %v1439 = vsel %vm1234, %v1329, 0
    %1441 = vmatprep.subr.bf16.mxu0 0
    %1442 = vmatpush1.bf16.msra.mxu0 0
    %1443 = vmatprep.subr.bf16.mxu0 0
    %1444 = vmatpush1.bf16.msra.mxu0 0
    %1445 = vmatprep.subr.bf16.mxu0 0
    %1446 = vmatpush1.bf16.msra.mxu0 0
    %1447 = vmatprep.subr.bf16.mxu0 0
    %1448 = vmatpush1.bf16.msra.mxu0 0
    %1449 = vmatprep.subr.bf16.mxu0 0
    %1450 = vmatpush1.bf16.msra.mxu0 0
    %1451 = vmatprep.subr.bf16.mxu0 0
    %1452 = vmatpush1.bf16.msra.mxu0 0
    %1453 = vmatprep.subr.bf16.mxu0 0
    %1454 = vmatpush1.bf16.msra.mxu0 0
    %1455 = vmatprep.subr.bf16.mxu0 0
    %1456 = vmatpush1.bf16.msra.mxu0 %v1439
    %1457 = vmatprep.subr.bf16.mxu0 0
    %1458 = vmatpush2.bf16.msra.mxu0 0
    %1459 = vmatprep.subr.bf16.mxu0 0
    %1460 = vmatpush2.bf16.msra.mxu0 0
    %1461 = vmatprep.subr.bf16.mxu0 0
    %1462 = vmatpush2.bf16.msra.mxu0 0
    %1463 = vmatprep.subr.bf16.mxu0 0
    %1464 = vmatpush2.bf16.msra.mxu0 0
    %1465 = vmatprep.subr.bf16.mxu0 0
    %1466 = vmatpush2.bf16.msra.mxu0 0
    %1467 = vmatprep.subr.bf16.mxu0 0
    %1468 = vmatpush2.bf16.msra.mxu0 0
    %1469 = vmatprep.subr.bf16.mxu0 0
    %1470 = vmatpush2.bf16.msra.mxu0 0
    %1471 = vmatprep.subr.bf16.mxu0 0
    %1472 = vmatpush2.bf16.msra.mxu0 0
    %1473 = vmatprep.mubr.bf16.mxu0 0
    %1474 = vmatmul.mubr.bf16.gmra.mxu0 %v1436
    %v1475 = vpop.f32.mrf.mxu0
    %v1476 = vadd.f32 0.0, %v1475
    %v1477 = vpop.f32.mrf.mxu0
    %v1478 = vpop.f32.mrf.mxu0
    %v1479 = vpop.f32.mrf.mxu0
    %1480 = vdwg.mxu0
    %v1482 = vsel %vm1206, %v1434, 0
    %v1485 = vsel %vm1234, %v1330, 0
    %1487 = vmatprep.subr.bf16.mxu0 0
    %1488 = vmatpush1.bf16.msra.mxu0 0
    %1489 = vmatprep.subr.bf16.mxu0 0
    %1490 = vmatpush1.bf16.msra.mxu0 0
    %1491 = vmatprep.subr.bf16.mxu0 0
    %1492 = vmatpush1.bf16.msra.mxu0 0
    %1493 = vmatprep.subr.bf16.mxu0 0
    %1494 = vmatpush1.bf16.msra.mxu0 0
    %1495 = vmatprep.subr.bf16.mxu0 0
    %1496 = vmatpush1.bf16.msra.mxu0 0
    %1497 = vmatprep.subr.bf16.mxu0 0
    %1498 = vmatpush1.bf16.msra.mxu0 0
    %1499 = vmatprep.subr.bf16.mxu0 0
    %1500 = vmatpush1.bf16.msra.mxu0 0
    %1501 = vmatprep.subr.bf16.mxu0 0
    %1502 = vmatpush1.bf16.msra.mxu0 %v1485
    %1503 = vmatprep.subr.bf16.mxu0 0
    %1504 = vmatpush2.bf16.msra.mxu0 0
    %1505 = vmatprep.subr.bf16.mxu0 0
    %1506 = vmatpush2.bf16.msra.mxu0 0
    %1507 = vmatprep.subr.bf16.mxu0 0
    %1508 = vmatpush2.bf16.msra.mxu0 0
    %1509 = vmatprep.subr.bf16.mxu0 0
    %1510 = vmatpush2.bf16.msra.mxu0 0
    %1511 = vmatprep.subr.bf16.mxu0 0
    %1512 = vmatpush2.bf16.msra.mxu0 0
    %1513 = vmatprep.subr.bf16.mxu0 0
    %1514 = vmatpush2.bf16.msra.mxu0 0
    %1515 = vmatprep.subr.bf16.mxu0 0
    %1516 = vmatpush2.bf16.msra.mxu0 0
    %1517 = vmatprep.subr.bf16.mxu0 0
    %1518 = vmatpush2.bf16.msra.mxu0 0
    %1519 = vmatprep.mubr.bf16.mxu0 0
    %1520 = vmatmul.mubr.bf16.gmra.mxu0 %v1482
    %v1521 = vpop.f32.mrf.mxu0
    %v1522 = vadd.f32 0.0, %v1521
    %v1523 = vpop.f32.mrf.mxu0
    %v1524 = vpop.f32.mrf.mxu0
    %v1525 = vpop.f32.mrf.mxu0
    %1526 = vdwg.mxu0
    %v1527 = vpack.c.bf16 %v1522, %v1476
    %v1544 = vunpack.c.l.b16 %v1092
    %v1545 = vunpack.c.h.b16 %v1092
    %v1546 = vunpack.c.l.b16 %v1093
    %v1547 = vunpack.c.h.b16 %v1093
    %v1548 = vunpack.c.l.b16 %v1094
    %v1549 = vunpack.c.h.b16 %v1094
    %v1550 = vunpack.c.l.b16 %v1095
    %v1551 = vunpack.c.h.b16 %v1095
    %v1552 = vunpack.c.l.b16 %v1096
    %v1553 = vunpack.c.h.b16 %v1096
    %v1554 = vunpack.c.l.b16 %v1097
    %v1555 = vunpack.c.h.b16 %v1097
    %v1556 = vunpack.c.l.b16 %v1098
    %v1557 = vunpack.c.h.b16 %v1098
    %v1558 = vunpack.c.l.b16 %v1099
    %v1559 = vunpack.c.h.b16 %v1099
    %v1560 = vunpack.c.l.b16 %v1100
    %v1561 = vunpack.c.h.b16 %v1100
    %v1562 = vunpack.c.l.b16 %v1101
    %v1563 = vunpack.c.h.b16 %v1101
    %v1564 = vunpack.c.l.b16 %v1102
    %v1565 = vunpack.c.h.b16 %v1102
    %v1566 = vunpack.c.l.b16 %v1103
    %v1567 = vunpack.c.h.b16 %v1103
    %v1568 = vunpack.c.l.b16 %v1104
    %v1569 = vunpack.c.h.b16 %v1104
    %v1570 = vunpack.c.l.b16 %v1105
    %v1571 = vunpack.c.h.b16 %v1105
    %v1572 = vunpack.c.l.b16 %v1106
    %v1573 = vunpack.c.h.b16 %v1106
    %v1574 = vunpack.c.l.b16 %v1107
    %v1575 = vunpack.c.h.b16 %v1107
    %v1576 = vpack.c.b16 %v1546, %v1544
    %v1577 = vpack.c.b16 %v1547, %v1545
    %v1578 = vpack.c.b16 %v1550, %v1548
    %v1579 = vpack.c.b16 %v1551, %v1549
    %v1580 = vpack.c.b16 %v1554, %v1552
    %v1581 = vpack.c.b16 %v1555, %v1553
    %v1582 = vpack.c.b16 %v1558, %v1556
    %v1583 = vpack.c.b16 %v1559, %v1557
    %v1584 = vpack.c.b16 %v1562, %v1560
    %v1585 = vpack.c.b16 %v1563, %v1561
    %v1586 = vpack.c.b16 %v1566, %v1564
    %v1587 = vpack.c.b16 %v1567, %v1565
    %v1588 = vpack.c.b16 %v1570, %v1568
    %v1589 = vpack.c.b16 %v1571, %v1569
    %v1590 = vpack.c.b16 %v1574, %v1572
    %v1591 = vpack.c.b16 %v1575, %v1573
    %1608 = vmatprep.subr.bf16.mxu0 %v1591
    %1609 = vmatpush1.bf16.msra.mxu0 %v1590
    %1610 = vmatprep.subr.bf16.mxu0 %v1589
    %1611 = vmatpush1.bf16.msra.mxu0 %v1588
    %1612 = vmatprep.subr.bf16.mxu0 %v1587
    %1613 = vmatpush1.bf16.msra.mxu0 %v1586
    %1614 = vmatprep.subr.bf16.mxu0 %v1585
    %1615 = vmatpush1.bf16.msra.mxu0 %v1584
    %1616 = vmatprep.subr.bf16.mxu0 %v1583
    %1617 = vmatpush1.bf16.msra.mxu0 %v1582
    %1618 = vmatprep.subr.bf16.mxu0 %v1581
    %1619 = vmatpush1.bf16.msra.mxu0 %v1580
    %1620 = vmatprep.subr.bf16.mxu0 %v1579
    %1621 = vmatpush1.bf16.msra.mxu0 %v1578
    %1622 = vmatprep.subr.bf16.mxu0 %v1577
    %1623 = vmatpush1.bf16.msra.mxu0 %v1576
    %1624 = vmatprep.subr.bf16.mxu0 0
    %1625 = vmatpush2.bf16.msra.mxu0 0
    %1626 = vmatprep.subr.bf16.mxu0 0
    %1627 = vmatpush2.bf16.msra.mxu0 0
    %1628 = vmatprep.subr.bf16.mxu0 0
    %1629 = vmatpush2.bf16.msra.mxu0 0
    %1630 = vmatprep.subr.bf16.mxu0 0
    %1631 = vmatpush2.bf16.msra.mxu0 0
    %1632 = vmatprep.subr.bf16.mxu0 0
    %1633 = vmatpush2.bf16.msra.mxu0 0
    %1634 = vmatprep.subr.bf16.mxu0 0
    %1635 = vmatpush2.bf16.msra.mxu0 0
    %1636 = vmatprep.subr.bf16.mxu0 0
    %1637 = vmatpush2.bf16.msra.mxu0 0
    %1638 = vmatprep.subr.bf16.mxu0 0
    %1639 = vmatpush2.bf16.msra.mxu0 0
    %1640 = vmatprep.mubr.bf16.mxu0 0
    %1641 = vmatmul.mubr.bf16.gmra.mxu0 %v1527
    %v1642 = vpop.f32.mrf.mxu0
    %v1643 = vadd.f32 0.0, %v1642
    %v1644 = vpop.f32.mrf.mxu0
    %v1645 = vadd.f32 0.0, %v1644
    %v1646 = vpop.f32.mrf.mxu0
    %v1647 = vadd.f32 0.0, %v1646
    %v1648 = vpop.f32.mrf.mxu0
    %v1649 = vadd.f32 0.0, %v1648
    %1650 = vdwg.mxu0
    %v1667 = vunpack.c.l.b16 %v1076
    %v1668 = vunpack.c.h.b16 %v1076
    %v1669 = vunpack.c.l.b16 %v1077
    %v1670 = vunpack.c.h.b16 %v1077
    %v1671 = vunpack.c.l.b16 %v1078
    %v1672 = vunpack.c.h.b16 %v1078
    %v1673 = vunpack.c.l.b16 %v1079
    %v1674 = vunpack.c.h.b16 %v1079
    %v1675 = vunpack.c.l.b16 %v1080
    %v1676 = vunpack.c.h.b16 %v1080
    %v1677 = vunpack.c.l.b16 %v1081
    %v1678 = vunpack.c.h.b16 %v1081
    %v1679 = vunpack.c.l.b16 %v1082
    %v1680 = vunpack.c.h.b16 %v1082
    %v1681 = vunpack.c.l.b16 %v1083
    %v1682 = vunpack.c.h.b16 %v1083
    %v1683 = vunpack.c.l.b16 %v1084
    %v1684 = vunpack.c.h.b16 %v1084
    %v1685 = vunpack.c.l.b16 %v1085
    %v1686 = vunpack.c.h.b16 %v1085
    %v1687 = vunpack.c.l.b16 %v1086
    %v1688 = vunpack.c.h.b16 %v1086
    %v1689 = vunpack.c.l.b16 %v1087
    %v1690 = vunpack.c.h.b16 %v1087
    %v1691 = vunpack.c.l.b16 %v1088
    %v1692 = vunpack.c.h.b16 %v1088
    %v1693 = vunpack.c.l.b16 %v1089
    %v1694 = vunpack.c.h.b16 %v1089
    %v1695 = vunpack.c.l.b16 %v1090
    %v1696 = vunpack.c.h.b16 %v1090
    %v1697 = vunpack.c.l.b16 %v1091
    %v1698 = vunpack.c.h.b16 %v1091
    %v1699 = vpack.c.b16 %v1669, %v1667
    %v1700 = vpack.c.b16 %v1670, %v1668
    %v1701 = vpack.c.b16 %v1673, %v1671
    %v1702 = vpack.c.b16 %v1674, %v1672
    %v1703 = vpack.c.b16 %v1677, %v1675
    %v1704 = vpack.c.b16 %v1678, %v1676
    %v1705 = vpack.c.b16 %v1681, %v1679
    %v1706 = vpack.c.b16 %v1682, %v1680
    %v1707 = vpack.c.b16 %v1685, %v1683
    %v1708 = vpack.c.b16 %v1686, %v1684
    %v1709 = vpack.c.b16 %v1689, %v1687
    %v1710 = vpack.c.b16 %v1690, %v1688
    %v1711 = vpack.c.b16 %v1693, %v1691
    %v1712 = vpack.c.b16 %v1694, %v1692
    %v1713 = vpack.c.b16 %v1697, %v1695
    %v1714 = vpack.c.b16 %v1698, %v1696
    %1731 = vmatprep.subr.bf16.mxu0 %v1714
    %1732 = vmatpush1.bf16.msra.mxu0 %v1713
    %1733 = vmatprep.subr.bf16.mxu0 %v1712
    %1734 = vmatpush1.bf16.msra.mxu0 %v1711
    %1735 = vmatprep.subr.bf16.mxu0 %v1710
    %1736 = vmatpush1.bf16.msra.mxu0 %v1709
    %1737 = vmatprep.subr.bf16.mxu0 %v1708
    %1738 = vmatpush1.bf16.msra.mxu0 %v1707
    %1739 = vmatprep.subr.bf16.mxu0 %v1706
    %1740 = vmatpush1.bf16.msra.mxu0 %v1705
    %1741 = vmatprep.subr.bf16.mxu0 %v1704
    %1742 = vmatpush1.bf16.msra.mxu0 %v1703
    %1743 = vmatprep.subr.bf16.mxu0 %v1702
    %1744 = vmatpush1.bf16.msra.mxu0 %v1701
    %1745 = vmatprep.subr.bf16.mxu0 %v1700
    %1746 = vmatpush1.bf16.msra.mxu0 %v1699
    %1747 = vmatprep.subr.bf16.mxu0 0
    %1748 = vmatpush2.bf16.msra.mxu0 0
    %1749 = vmatprep.subr.bf16.mxu0 0
    %1750 = vmatpush2.bf16.msra.mxu0 0
    %1751 = vmatprep.subr.bf16.mxu0 0
    %1752 = vmatpush2.bf16.msra.mxu0 0
    %1753 = vmatprep.subr.bf16.mxu0 0
    %1754 = vmatpush2.bf16.msra.mxu0 0
    %1755 = vmatprep.subr.bf16.mxu0 0
    %1756 = vmatpush2.bf16.msra.mxu0 0
    %1757 = vmatprep.subr.bf16.mxu0 0
    %1758 = vmatpush2.bf16.msra.mxu0 0
    %1759 = vmatprep.subr.bf16.mxu0 0
    %1760 = vmatpush2.bf16.msra.mxu0 0
    %1761 = vmatprep.subr.bf16.mxu0 0
    %1762 = vmatpush2.bf16.msra.mxu0 0
    %1763 = vmatprep.mubr.bf16.mxu0 0
    %1764 = vmatmul.mubr.bf16.gmra.mxu0 %v1324
    %v1765 = vpop.f32.mrf.mxu0
    %v1766 = vadd.f32 %v1643, %v1765
    %v1767 = vpop.f32.mrf.mxu0
    %v1768 = vadd.f32 %v1645, %v1767
    %v1769 = vpop.f32.mrf.mxu0
    %v1770 = vadd.f32 %v1647, %v1769
    %v1771 = vpop.f32.mrf.mxu0
    %v1772 = vadd.f32 %v1649, %v1771
    %1773 = vdwg.mxu0
    %v1774 = vadd.f32 %v331, %v1766
    %v1775 = vadd.f32 %v332, %v1768
    %v1776 = vadd.f32 %v333, %v1770
    %v1777 = vadd.f32 %v334, %v1772
    %v1778 = vld [vmem:[%s7] sm:$0x3]
    %v1780 = vlaneseq
    %v1781 = vshrl.u32 %v1780, 7
    %v1782 = vsub.s32 0, %v1781
    %v1783 = vrot.slane %v1778, %v1782
    %v1784 = vlaneseq
    %v1785 = vshrl.u32 %v1784, 7
    %v1786 = vsub.s32 1, %v1785
    %v1787 = vrot.slane %v1778, %v1786
    %v1790 = vadd.f32 %v1774, %v1783
    %v1791 = vadd.f32 %v1775, %v1787
    %v1792 = vadd.f32 %v1776, %v1783
    %v1793 = vadd.f32 %v1777, %v1787
    %v1794 = vld [vmem:[#allocation14] sm:$0x3]
    %v1795 = vld [vmem:[#allocation16] sm:$0x3]
    %v1796 = vadd.f32 %v1790, %v1791
    %1797 = vadd.xlane.f32.xlu0 %v1796
    %v1798 = vpop.xlane.xlu0 %1797
    %v1799 = vadd.f32 %v1792, %v1793
    %1800 = vadd.xlane.f32.xlu0 %v1799
    %v1801 = vpop.xlane.xlu0 %1800
    %v1802 = vmul.f32 %v1798, %v278
    %v1803 = vmul.f32 %v1801, %v278
    %v1804 = vsub.f32 %v1790, %v1802
    %v1805 = vsub.f32 %v1791, %v1802
    %v1806 = vsub.f32 %v1792, %v1803
    %v1807 = vsub.f32 %v1793, %v1803
    %v1808 = vmul.f32 %v1804, %v1804
    %v1809 = vmul.f32 %v1805, %v1805
    %v1810 = vmul.f32 %v1806, %v1806
    %v1811 = vmul.f32 %v1807, %v1807
    %v1812 = vadd.f32 %v1808, %v1809
    %1813 = vadd.xlane.f32.xlu0 %v1812
    %v1814 = vpop.xlane.xlu0 %1813
    %v1815 = vadd.f32 %v1810, %v1811
    %1816 = vadd.xlane.f32.xlu0 %v1815
    %v1817 = vpop.xlane.xlu0 %1816
    %v1818 = vmul.f32 %v1814, %v278
    %v1819 = vmul.f32 %v1817, %v278
    %v1820 = vadd.f32 %v1818, 1e-12
    %v1821 = vadd.f32 %v1819, 1e-12
    %v1822 = vrsqrt.pop %v1820
    %v1823 = vrsqrt.pop %v1821
    %v1824 = vmul.f32 %v1804, %v1822
    %v1825 = vmul.f32 %v1805, %v1822
    %v1826 = vmul.f32 %v1806, %v1823
    %v1827 = vmul.f32 %v1807, %v1823
    %v1829 = vlaneseq
    %v1830 = vshrl.u32 %v1829, 7
    %v1831 = vsub.s32 0, %v1830
    %v1832 = vrot.slane %v1794, %v1831
    %v1833 = vlaneseq
    %v1834 = vshrl.u32 %v1833, 7
    %v1835 = vsub.s32 1, %v1834
    %v1836 = vrot.slane %v1794, %v1835
    %v1839 = vmul.f32 %v1824, %v1832
    %v1840 = vmul.f32 %v1825, %v1836
    %v1841 = vmul.f32 %v1826, %v1832
    %v1842 = vmul.f32 %v1827, %v1836
    %v1844 = vlaneseq
    %v1845 = vshrl.u32 %v1844, 7
    %v1846 = vsub.s32 0, %v1845
    %v1847 = vrot.slane %v1795, %v1846
    %v1848 = vlaneseq
    %v1849 = vshrl.u32 %v1848, 7
    %v1850 = vsub.s32 1, %v1849
    %v1851 = vrot.slane %v1795, %v1850
    %v1854 = vadd.f32 %v1839, %v1847
    %v1855 = vadd.f32 %v1840, %v1851
    %v1856 = vadd.f32 %v1841, %v1847
    %v1857 = vadd.f32 %v1842, %v1851
    %v1858 = vpack.c.bf16 %v1856, %v1854
    %v1859 = vpack.c.bf16 %v1857, %v1855
    %v1860 = vld [vmem:[#allocation17] sm:$0xff]
    %v1861 = vld [vmem:[#allocation17 + $0x8] sm:$0xff]
    %v1862 = vld [vmem:[#allocation17 + $0x10] sm:$0xff]
    %v1863 = vld [vmem:[#allocation17 + $0x18] sm:$0xff]
    %v1864 = vld [vmem:[#allocation17 + $0x20] sm:$0xff]
    %v1865 = vld [vmem:[#allocation17 + $0x28] sm:$0xff]
    %v1866 = vld [vmem:[#allocation17 + $0x30] sm:$0xff]
    %v1867 = vld [vmem:[#allocation17 + $0x38] sm:$0xff]
    %v1868 = vld [vmem:[#allocation17 + $0x40] sm:$0xff]
    %v1869 = vld [vmem:[#allocation17 + $0x48] sm:$0xff]
    %v1870 = vld [vmem:[#allocation17 + $0x50] sm:$0xff]
    %v1871 = vld [vmem:[#allocation17 + $0x58] sm:$0xff]
    %v1872 = vld [vmem:[#allocation17 + $0x60] sm:$0xff]
    %v1873 = vld [vmem:[#allocation17 + $0x68] sm:$0xff]
    %v1874 = vld [vmem:[#allocation17 + $0x70] sm:$0xff]
    %v1875 = vld [vmem:[#allocation17 + $0x78] sm:$0xff]
    %v1876 = vld [vmem:[#allocation17 + $0x80] sm:$0xff]
    %v1877 = vld [vmem:[#allocation17 + $0x88] sm:$0xff]
    %v1878 = vld [vmem:[#allocation17 + $0x90] sm:$0xff]
    %v1879 = vld [vmem:[#allocation17 + $0x98] sm:$0xff]
    %v1880 = vld [vmem:[#allocation17 + $0xa0] sm:$0xff]
    %v1881 = vld [vmem:[#allocation17 + $0xa8] sm:$0xff]
    %v1882 = vld [vmem:[#allocation17 + $0xb0] sm:$0xff]
    %v1883 = vld [vmem:[#allocation17 + $0xb8] sm:$0xff]
    %v1884 = vld [vmem:[#allocation17 + $0xc0] sm:$0xff]
    %v1885 = vld [vmem:[#allocation17 + $0xc8] sm:$0xff]
    %v1886 = vld [vmem:[#allocation17 + $0xd0] sm:$0xff]
    %v1887 = vld [vmem:[#allocation17 + $0xd8] sm:$0xff]
    %v1888 = vld [vmem:[#allocation17 + $0xe0] sm:$0xff]
    %v1889 = vld [vmem:[#allocation17 + $0xe8] sm:$0xff]
    %v1890 = vld [vmem:[#allocation17 + $0xf0] sm:$0xff]
    %v1891 = vld [vmem:[#allocation17 + $0xf8] sm:$0xff]
    %v1892 = vld [vmem:[#allocation17 + $0x100] sm:$0xff]
    %v1893 = vld [vmem:[#allocation17 + $0x108] sm:$0xff]
    %v1894 = vld [vmem:[#allocation17 + $0x110] sm:$0xff]
    %v1895 = vld [vmem:[#allocation17 + $0x118] sm:$0xff]
    %v1896 = vld [vmem:[#allocation17 + $0x120] sm:$0xff]
    %v1897 = vld [vmem:[#allocation17 + $0x128] sm:$0xff]
    %v1898 = vld [vmem:[#allocation17 + $0x130] sm:$0xff]
    %v1899 = vld [vmem:[#allocation17 + $0x138] sm:$0xff]
    %v1900 = vld [vmem:[#allocation17 + $0x140] sm:$0xff]
    %v1901 = vld [vmem:[#allocation17 + $0x148] sm:$0xff]
    %v1902 = vld [vmem:[#allocation17 + $0x150] sm:$0xff]
    %v1903 = vld [vmem:[#allocation17 + $0x158] sm:$0xff]
    %v1904 = vld [vmem:[#allocation17 + $0x160] sm:$0xff]
    %v1905 = vld [vmem:[#allocation17 + $0x168] sm:$0xff]
    %v1906 = vld [vmem:[#allocation17 + $0x170] sm:$0xff]
    %v1907 = vld [vmem:[#allocation17 + $0x178] sm:$0xff]
    %v1908 = vld [vmem:[#allocation17 + $0x180] sm:$0xff]
    %v1909 = vld [vmem:[#allocation17 + $0x188] sm:$0xff]
    %v1910 = vld [vmem:[#allocation17 + $0x190] sm:$0xff]
    %v1911 = vld [vmem:[#allocation17 + $0x198] sm:$0xff]
    %v1912 = vld [vmem:[#allocation17 + $0x1a0] sm:$0xff]
    %v1913 = vld [vmem:[#allocation17 + $0x1a8] sm:$0xff]
    %v1914 = vld [vmem:[#allocation17 + $0x1b0] sm:$0xff]
    %v1915 = vld [vmem:[#allocation17 + $0x1b8] sm:$0xff]
    %v1916 = vld [vmem:[#allocation17 + $0x1c0] sm:$0xff]
    %v1917 = vld [vmem:[#allocation17 + $0x1c8] sm:$0xff]
    %v1918 = vld [vmem:[#allocation17 + $0x1d0] sm:$0xff]
    %v1919 = vld [vmem:[#allocation17 + $0x1d8] sm:$0xff]
    %v1920 = vld [vmem:[#allocation17 + $0x1e0] sm:$0xff]
    %v1921 = vld [vmem:[#allocation17 + $0x1e8] sm:$0xff]
    %v1922 = vld [vmem:[#allocation17 + $0x1f0] sm:$0xff]
    %v1923 = vld [vmem:[#allocation17 + $0x1f8] sm:$0xff]
    %v1924 = vld [vmem:[#allocation17 + $0x200] sm:$0xff]
    %v1925 = vld [vmem:[#allocation17 + $0x208] sm:$0xff]
    %v1926 = vld [vmem:[#allocation17 + $0x210] sm:$0xff]
    %v1927 = vld [vmem:[#allocation17 + $0x218] sm:$0xff]
    %v1928 = vld [vmem:[#allocation17 + $0x220] sm:$0xff]
    %v1929 = vld [vmem:[#allocation17 + $0x228] sm:$0xff]
    %v1930 = vld [vmem:[#allocation17 + $0x230] sm:$0xff]
    %v1931 = vld [vmem:[#allocation17 + $0x238] sm:$0xff]
    %v1932 = vld [vmem:[#allocation17 + $0x240] sm:$0xff]
    %v1933 = vld [vmem:[#allocation17 + $0x248] sm:$0xff]
    %v1934 = vld [vmem:[#allocation17 + $0x250] sm:$0xff]
    %v1935 = vld [vmem:[#allocation17 + $0x258] sm:$0xff]
    %v1936 = vld [vmem:[#allocation17 + $0x260] sm:$0xff]
    %v1937 = vld [vmem:[#allocation17 + $0x268] sm:$0xff]
    %v1938 = vld [vmem:[#allocation17 + $0x270] sm:$0xff]
    %v1939 = vld [vmem:[#allocation17 + $0x278] sm:$0xff]
    %v1940 = vld [vmem:[#allocation17 + $0x280] sm:$0xff]
    %v1941 = vld [vmem:[#allocation17 + $0x288] sm:$0xff]
    %v1942 = vld [vmem:[#allocation17 + $0x290] sm:$0xff]
    %v1943 = vld [vmem:[#allocation17 + $0x298] sm:$0xff]
    %v1944 = vld [vmem:[#allocation17 + $0x2a0] sm:$0xff]
    %v1945 = vld [vmem:[#allocation17 + $0x2a8] sm:$0xff]
    %v1946 = vld [vmem:[#allocation17 + $0x2b0] sm:$0xff]
    %v1947 = vld [vmem:[#allocation17 + $0x2b8] sm:$0xff]
    %v1948 = vld [vmem:[#allocation17 + $0x2c0] sm:$0xff]
    %v1949 = vld [vmem:[#allocation17 + $0x2c8] sm:$0xff]
    %v1950 = vld [vmem:[#allocation17 + $0x2d0] sm:$0xff]
    %v1951 = vld [vmem:[#allocation17 + $0x2d8] sm:$0xff]
    %v1952 = vld [vmem:[#allocation17 + $0x2e0] sm:$0xff]
    %v1953 = vld [vmem:[#allocation17 + $0x2e8] sm:$0xff]
    %v1954 = vld [vmem:[#allocation17 + $0x2f0] sm:$0xff]
    %v1955 = vld [vmem:[#allocation17 + $0x2f8] sm:$0xff]
    %v1956 = vld [vmem:[#allocation17 + $0x300] sm:$0xff]
    %v1957 = vld [vmem:[#allocation17 + $0x308] sm:$0xff]
    %v1958 = vld [vmem:[#allocation17 + $0x310] sm:$0xff]
    %v1959 = vld [vmem:[#allocation17 + $0x318] sm:$0xff]
    %v1960 = vld [vmem:[#allocation17 + $0x320] sm:$0xff]
    %v1961 = vld [vmem:[#allocation17 + $0x328] sm:$0xff]
    %v1962 = vld [vmem:[#allocation17 + $0x330] sm:$0xff]
    %v1963 = vld [vmem:[#allocation17 + $0x338] sm:$0xff]
    %v1964 = vld [vmem:[#allocation17 + $0x340] sm:$0xff]
    %v1965 = vld [vmem:[#allocation17 + $0x348] sm:$0xff]
    %v1966 = vld [vmem:[#allocation17 + $0x350] sm:$0xff]
    %v1967 = vld [vmem:[#allocation17 + $0x358] sm:$0xff]
    %v1968 = vld [vmem:[#allocation17 + $0x360] sm:$0xff]
    %v1969 = vld [vmem:[#allocation17 + $0x368] sm:$0xff]
    %v1970 = vld [vmem:[#allocation17 + $0x370] sm:$0xff]
    %v1971 = vld [vmem:[#allocation17 + $0x378] sm:$0xff]
    %v1972 = vld [vmem:[#allocation17 + $0x380] sm:$0xff]
    %v1973 = vld [vmem:[#allocation17 + $0x388] sm:$0xff]
    %v1974 = vld [vmem:[#allocation17 + $0x390] sm:$0xff]
    %v1975 = vld [vmem:[#allocation17 + $0x398] sm:$0xff]
    %v1976 = vld [vmem:[#allocation17 + $0x3a0] sm:$0xff]
    %v1977 = vld [vmem:[#allocation17 + $0x3a8] sm:$0xff]
    %v1978 = vld [vmem:[#allocation17 + $0x3b0] sm:$0xff]
    %v1979 = vld [vmem:[#allocation17 + $0x3b8] sm:$0xff]
    %v1980 = vld [vmem:[#allocation17 + $0x3c0] sm:$0xff]
    %v1981 = vld [vmem:[#allocation17 + $0x3c8] sm:$0xff]
    %v1982 = vld [vmem:[#allocation17 + $0x3d0] sm:$0xff]
    %v1983 = vld [vmem:[#allocation17 + $0x3d8] sm:$0xff]
    %v1984 = vld [vmem:[#allocation17 + $0x3e0] sm:$0xff]
    %v1985 = vld [vmem:[#allocation17 + $0x3e8] sm:$0xff]
    %v1986 = vld [vmem:[#allocation17 + $0x3f0] sm:$0xff]
    %v1987 = vld [vmem:[#allocation17 + $0x3f8] sm:$0xff]
    %v1988 = vld [vmem:[%s11] sm:$0xff]
    %v1990 = vlaneseq
    %v1991 = vshrl.u32 %v1990, 7
    %v1992 = vsub.s32 0, %v1991
    %v1993 = vrot.slane %v1988, %v1992
    %v1994 = vlaneseq
    %v1995 = vshrl.u32 %v1994, 7
    %v1996 = vsub.s32 1, %v1995
    %v1997 = vrot.slane %v1988, %v1996
    %v1998 = vlaneseq
    %v1999 = vshrl.u32 %v1998, 7
    %v2000 = vsub.s32 2, %v1999
    %v2001 = vrot.slane %v1988, %v2000
    %v2002 = vlaneseq
    %v2003 = vshrl.u32 %v2002, 7
    %v2004 = vsub.s32 3, %v2003
    %v2005 = vrot.slane %v1988, %v2004
    %v2006 = vlaneseq
    %v2007 = vshrl.u32 %v2006, 7
    %v2008 = vsub.s32 4, %v2007
    %v2009 = vrot.slane %v1988, %v2008
    %v2010 = vlaneseq
    %v2011 = vshrl.u32 %v2010, 7
    %v2012 = vsub.s32 5, %v2011
    %v2013 = vrot.slane %v1988, %v2012
    %v2014 = vlaneseq
    %v2015 = vshrl.u32 %v2014, 7
    %v2016 = vsub.s32 6, %v2015
    %v2017 = vrot.slane %v1988, %v2016
    %v2018 = vlaneseq
    %v2019 = vshrl.u32 %v2018, 7
    %v2020 = vsub.s32 7, %v2019
    %v2021 = vrot.slane %v1988, %v2020
    %v2158 = vunpack.c.l.b16 %v1860
    %v2159 = vunpack.c.h.b16 %v1860
    %v2160 = vunpack.c.l.b16 %v1861
    %v2161 = vunpack.c.h.b16 %v1861
    %v2162 = vunpack.c.l.b16 %v1862
    %v2163 = vunpack.c.h.b16 %v1862
    %v2164 = vunpack.c.l.b16 %v1863
    %v2165 = vunpack.c.h.b16 %v1863
    %v2166 = vunpack.c.l.b16 %v1864
    %v2167 = vunpack.c.h.b16 %v1864
    %v2168 = vunpack.c.l.b16 %v1865
    %v2169 = vunpack.c.h.b16 %v1865
    %v2170 = vunpack.c.l.b16 %v1866
    %v2171 = vunpack.c.h.b16 %v1866
    %v2172 = vunpack.c.l.b16 %v1867
    %v2173 = vunpack.c.h.b16 %v1867
    %v2174 = vunpack.c.l.b16 %v1868
    %v2175 = vunpack.c.h.b16 %v1868
    %v2176 = vunpack.c.l.b16 %v1869
    %v2177 = vunpack.c.h.b16 %v1869
    %v2178 = vunpack.c.l.b16 %v1870
    %v2179 = vunpack.c.h.b16 %v1870
    %v2180 = vunpack.c.l.b16 %v1871
    %v2181 = vunpack.c.h.b16 %v1871
    %v2182 = vunpack.c.l.b16 %v1872
    %v2183 = vunpack.c.h.b16 %v1872
    %v2184 = vunpack.c.l.b16 %v1873
    %v2185 = vunpack.c.h.b16 %v1873
    %v2186 = vunpack.c.l.b16 %v1874
    %v2187 = vunpack.c.h.b16 %v1874
    %v2188 = vunpack.c.l.b16 %v1875
    %v2189 = vunpack.c.h.b16 %v1875
    %v2190 = vunpack.c.l.b16 %v1876
    %v2191 = vunpack.c.h.b16 %v1876
    %v2192 = vunpack.c.l.b16 %v1877
    %v2193 = vunpack.c.h.b16 %v1877
    %v2194 = vunpack.c.l.b16 %v1878
    %v2195 = vunpack.c.h.b16 %v1878
    %v2196 = vunpack.c.l.b16 %v1879
    %v2197 = vunpack.c.h.b16 %v1879
    %v2198 = vunpack.c.l.b16 %v1880
    %v2199 = vunpack.c.h.b16 %v1880
    %v2200 = vunpack.c.l.b16 %v1881
    %v2201 = vunpack.c.h.b16 %v1881
    %v2202 = vunpack.c.l.b16 %v1882
    %v2203 = vunpack.c.h.b16 %v1882
    %v2204 = vunpack.c.l.b16 %v1883
    %v2205 = vunpack.c.h.b16 %v1883
    %v2206 = vunpack.c.l.b16 %v1884
    %v2207 = vunpack.c.h.b16 %v1884
    %v2208 = vunpack.c.l.b16 %v1885
    %v2209 = vunpack.c.h.b16 %v1885
    %v2210 = vunpack.c.l.b16 %v1886
    %v2211 = vunpack.c.h.b16 %v1886
    %v2212 = vunpack.c.l.b16 %v1887
    %v2213 = vunpack.c.h.b16 %v1887
    %v2214 = vunpack.c.l.b16 %v1888
    %v2215 = vunpack.c.h.b16 %v1888
    %v2216 = vunpack.c.l.b16 %v1889
    %v2217 = vunpack.c.h.b16 %v1889
    %v2218 = vunpack.c.l.b16 %v1890
    %v2219 = vunpack.c.h.b16 %v1890
    %v2220 = vunpack.c.l.b16 %v1891
    %v2221 = vunpack.c.h.b16 %v1891
    %v2222 = vunpack.c.l.b16 %v1892
    %v2223 = vunpack.c.h.b16 %v1892
    %v2224 = vunpack.c.l.b16 %v1893
    %v2225 = vunpack.c.h.b16 %v1893
    %v2226 = vunpack.c.l.b16 %v1894
    %v2227 = vunpack.c.h.b16 %v1894
    %v2228 = vunpack.c.l.b16 %v1895
    %v2229 = vunpack.c.h.b16 %v1895
    %v2230 = vunpack.c.l.b16 %v1896
    %v2231 = vunpack.c.h.b16 %v1896
    %v2232 = vunpack.c.l.b16 %v1897
    %v2233 = vunpack.c.h.b16 %v1897
    %v2234 = vunpack.c.l.b16 %v1898
    %v2235 = vunpack.c.h.b16 %v1898
    %v2236 = vunpack.c.l.b16 %v1899
    %v2237 = vunpack.c.h.b16 %v1899
    %v2238 = vunpack.c.l.b16 %v1900
    %v2239 = vunpack.c.h.b16 %v1900
    %v2240 = vunpack.c.l.b16 %v1901
    %v2241 = vunpack.c.h.b16 %v1901
    %v2242 = vunpack.c.l.b16 %v1902
    %v2243 = vunpack.c.h.b16 %v1902
    %v2244 = vunpack.c.l.b16 %v1903
    %v2245 = vunpack.c.h.b16 %v1903
    %v2246 = vunpack.c.l.b16 %v1904
    %v2247 = vunpack.c.h.b16 %v1904
    %v2248 = vunpack.c.l.b16 %v1905
    %v2249 = vunpack.c.h.b16 %v1905
    %v2250 = vunpack.c.l.b16 %v1906
    %v2251 = vunpack.c.h.b16 %v1906
    %v2252 = vunpack.c.l.b16 %v1907
    %v2253 = vunpack.c.h.b16 %v1907
    %v2254 = vunpack.c.l.b16 %v1908
    %v2255 = vunpack.c.h.b16 %v1908
    %v2256 = vunpack.c.l.b16 %v1909
    %v2257 = vunpack.c.h.b16 %v1909
    %v2258 = vunpack.c.l.b16 %v1910
    %v2259 = vunpack.c.h.b16 %v1910
    %v2260 = vunpack.c.l.b16 %v1911
    %v2261 = vunpack.c.h.b16 %v1911
    %v2262 = vunpack.c.l.b16 %v1912
    %v2263 = vunpack.c.h.b16 %v1912
    %v2264 = vunpack.c.l.b16 %v1913
    %v2265 = vunpack.c.h.b16 %v1913
    %v2266 = vunpack.c.l.b16 %v1914
    %v2267 = vunpack.c.h.b16 %v1914
    %v2268 = vunpack.c.l.b16 %v1915
    %v2269 = vunpack.c.h.b16 %v1915
    %v2270 = vunpack.c.l.b16 %v1916
    %v2271 = vunpack.c.h.b16 %v1916
    %v2272 = vunpack.c.l.b16 %v1917
    %v2273 = vunpack.c.h.b16 %v1917
    %v2274 = vunpack.c.l.b16 %v1918
    %v2275 = vunpack.c.h.b16 %v1918
    %v2276 = vunpack.c.l.b16 %v1919
    %v2277 = vunpack.c.h.b16 %v1919
    %v2278 = vunpack.c.l.b16 %v1920
    %v2279 = vunpack.c.h.b16 %v1920
    %v2280 = vunpack.c.l.b16 %v1921
    %v2281 = vunpack.c.h.b16 %v1921
    %v2282 = vunpack.c.l.b16 %v1922
    %v2283 = vunpack.c.h.b16 %v1922
    %v2284 = vunpack.c.l.b16 %v1923
    %v2285 = vunpack.c.h.b16 %v1923
    %v2286 = vunpack.c.l.b16 %v1924
    %v2287 = vunpack.c.h.b16 %v1924
    %v2288 = vunpack.c.l.b16 %v1925
    %v2289 = vunpack.c.h.b16 %v1925
    %v2290 = vunpack.c.l.b16 %v1926
    %v2291 = vunpack.c.h.b16 %v1926
    %v2292 = vunpack.c.l.b16 %v1927
    %v2293 = vunpack.c.h.b16 %v1927
    %v2294 = vunpack.c.l.b16 %v1928
    %v2295 = vunpack.c.h.b16 %v1928
    %v2296 = vunpack.c.l.b16 %v1929
    %v2297 = vunpack.c.h.b16 %v1929
    %v2298 = vunpack.c.l.b16 %v1930
    %v2299 = vunpack.c.h.b16 %v1930
    %v2300 = vunpack.c.l.b16 %v1931
    %v2301 = vunpack.c.h.b16 %v1931
    %v2302 = vunpack.c.l.b16 %v1932
    %v2303 = vunpack.c.h.b16 %v1932
    %v2304 = vunpack.c.l.b16 %v1933
    %v2305 = vunpack.c.h.b16 %v1933
    %v2306 = vunpack.c.l.b16 %v1934
    %v2307 = vunpack.c.h.b16 %v1934
    %v2308 = vunpack.c.l.b16 %v1935
    %v2309 = vunpack.c.h.b16 %v1935
    %v2310 = vunpack.c.l.b16 %v1936
    %v2311 = vunpack.c.h.b16 %v1936
    %v2312 = vunpack.c.l.b16 %v1937
    %v2313 = vunpack.c.h.b16 %v1937
    %v2314 = vunpack.c.l.b16 %v1938
    %v2315 = vunpack.c.h.b16 %v1938
    %v2316 = vunpack.c.l.b16 %v1939
    %v2317 = vunpack.c.h.b16 %v1939
    %v2318 = vunpack.c.l.b16 %v1940
    %v2319 = vunpack.c.h.b16 %v1940
    %v2320 = vunpack.c.l.b16 %v1941
    %v2321 = vunpack.c.h.b16 %v1941
    %v2322 = vunpack.c.l.b16 %v1942
    %v2323 = vunpack.c.h.b16 %v1942
    %v2324 = vunpack.c.l.b16 %v1943
    %v2325 = vunpack.c.h.b16 %v1943
    %v2326 = vunpack.c.l.b16 %v1944
    %v2327 = vunpack.c.h.b16 %v1944
    %v2328 = vunpack.c.l.b16 %v1945
    %v2329 = vunpack.c.h.b16 %v1945
    %v2330 = vunpack.c.l.b16 %v1946
    %v2331 = vunpack.c.h.b16 %v1946
    %v2332 = vunpack.c.l.b16 %v1947
    %v2333 = vunpack.c.h.b16 %v1947
    %v2334 = vunpack.c.l.b16 %v1948
    %v2335 = vunpack.c.h.b16 %v1948
    %v2336 = vunpack.c.l.b16 %v1949
    %v2337 = vunpack.c.h.b16 %v1949
    %v2338 = vunpack.c.l.b16 %v1950
    %v2339 = vunpack.c.h.b16 %v1950
    %v2340 = vunpack.c.l.b16 %v1951
    %v2341 = vunpack.c.h.b16 %v1951
    %v2342 = vunpack.c.l.b16 %v1952
    %v2343 = vunpack.c.h.b16 %v1952
    %v2344 = vunpack.c.l.b16 %v1953
    %v2345 = vunpack.c.h.b16 %v1953
    %v2346 = vunpack.c.l.b16 %v1954
    %v2347 = vunpack.c.h.b16 %v1954
    %v2348 = vunpack.c.l.b16 %v1955
    %v2349 = vunpack.c.h.b16 %v1955
    %v2350 = vunpack.c.l.b16 %v1956
    %v2351 = vunpack.c.h.b16 %v1956
    %v2352 = vunpack.c.l.b16 %v1957
    %v2353 = vunpack.c.h.b16 %v1957
    %v2354 = vunpack.c.l.b16 %v1958
    %v2355 = vunpack.c.h.b16 %v1958
    %v2356 = vunpack.c.l.b16 %v1959
    %v2357 = vunpack.c.h.b16 %v1959
    %v2358 = vunpack.c.l.b16 %v1960
    %v2359 = vunpack.c.h.b16 %v1960
    %v2360 = vunpack.c.l.b16 %v1961
    %v2361 = vunpack.c.h.b16 %v1961
    %v2362 = vunpack.c.l.b16 %v1962
    %v2363 = vunpack.c.h.b16 %v1962
    %v2364 = vunpack.c.l.b16 %v1963
    %v2365 = vunpack.c.h.b16 %v1963
    %v2366 = vunpack.c.l.b16 %v1964
    %v2367 = vunpack.c.h.b16 %v1964
    %v2368 = vunpack.c.l.b16 %v1965
    %v2369 = vunpack.c.h.b16 %v1965
    %v2370 = vunpack.c.l.b16 %v1966
    %v2371 = vunpack.c.h.b16 %v1966
    %v2372 = vunpack.c.l.b16 %v1967
    %v2373 = vunpack.c.h.b16 %v1967
    %v2374 = vunpack.c.l.b16 %v1968
    %v2375 = vunpack.c.h.b16 %v1968
    %v2376 = vunpack.c.l.b16 %v1969
    %v2377 = vunpack.c.h.b16 %v1969
    %v2378 = vunpack.c.l.b16 %v1970
    %v2379 = vunpack.c.h.b16 %v1970
    %v2380 = vunpack.c.l.b16 %v1971
    %v2381 = vunpack.c.h.b16 %v1971
    %v2382 = vunpack.c.l.b16 %v1972
    %v2383 = vunpack.c.h.b16 %v1972
    %v2384 = vunpack.c.l.b16 %v1973
    %v2385 = vunpack.c.h.b16 %v1973
    %v2386 = vunpack.c.l.b16 %v1974
    %v2387 = vunpack.c.h.b16 %v1974
    %v2388 = vunpack.c.l.b16 %v1975
    %v2389 = vunpack.c.h.b16 %v1975
    %v2390 = vunpack.c.l.b16 %v1976
    %v2391 = vunpack.c.h.b16 %v1976
    %v2392 = vunpack.c.l.b16 %v1977
    %v2393 = vunpack.c.h.b16 %v1977
    %v2394 = vunpack.c.l.b16 %v1978
    %v2395 = vunpack.c.h.b16 %v1978
    %v2396 = vunpack.c.l.b16 %v1979
    %v2397 = vunpack.c.h.b16 %v1979
    %v2398 = vunpack.c.l.b16 %v1980
    %v2399 = vunpack.c.h.b16 %v1980
    %v2400 = vunpack.c.l.b16 %v1981
    %v2401 = vunpack.c.h.b16 %v1981
    %v2402 = vunpack.c.l.b16 %v1982
    %v2403 = vunpack.c.h.b16 %v1982
    %v2404 = vunpack.c.l.b16 %v1983
    %v2405 = vunpack.c.h.b16 %v1983
    %v2406 = vunpack.c.l.b16 %v1984
    %v2407 = vunpack.c.h.b16 %v1984
    %v2408 = vunpack.c.l.b16 %v1985
    %v2409 = vunpack.c.h.b16 %v1985
    %v2410 = vunpack.c.l.b16 %v1986
    %v2411 = vunpack.c.h.b16 %v1986
    %v2412 = vunpack.c.l.b16 %v1987
    %v2413 = vunpack.c.h.b16 %v1987
    %v2414 = vpack.c.b16 %v2166, %v2158
    %v2415 = vpack.c.b16 %v2167, %v2159
    %v2416 = vpack.c.b16 %v2168, %v2160
    %v2417 = vpack.c.b16 %v2169, %v2161
    %v2418 = vpack.c.b16 %v2170, %v2162
    %v2419 = vpack.c.b16 %v2171, %v2163
    %v2420 = vpack.c.b16 %v2172, %v2164
    %v2421 = vpack.c.b16 %v2173, %v2165
    %v2422 = vpack.c.b16 %v2182, %v2174
    %v2423 = vpack.c.b16 %v2183, %v2175
    %v2424 = vpack.c.b16 %v2184, %v2176
    %v2425 = vpack.c.b16 %v2185, %v2177
    %v2426 = vpack.c.b16 %v2186, %v2178
    %v2427 = vpack.c.b16 %v2187, %v2179
    %v2428 = vpack.c.b16 %v2188, %v2180
    %v2429 = vpack.c.b16 %v2189, %v2181
    %v2430 = vpack.c.b16 %v2198, %v2190
    %v2431 = vpack.c.b16 %v2199, %v2191
    %v2432 = vpack.c.b16 %v2200, %v2192
    %v2433 = vpack.c.b16 %v2201, %v2193
    %v2434 = vpack.c.b16 %v2202, %v2194
    %v2435 = vpack.c.b16 %v2203, %v2195
    %v2436 = vpack.c.b16 %v2204, %v2196
    %v2437 = vpack.c.b16 %v2205, %v2197
    %v2438 = vpack.c.b16 %v2214, %v2206
    %v2439 = vpack.c.b16 %v2215, %v2207
    %v2440 = vpack.c.b16 %v2216, %v2208
    %v2441 = vpack.c.b16 %v2217, %v2209
    %v2442 = vpack.c.b16 %v2218, %v2210
    %v2443 = vpack.c.b16 %v2219, %v2211
    %v2444 = vpack.c.b16 %v2220, %v2212
    %v2445 = vpack.c.b16 %v2221, %v2213
    %v2446 = vpack.c.b16 %v2230, %v2222
    %v2447 = vpack.c.b16 %v2231, %v2223
    %v2448 = vpack.c.b16 %v2232, %v2224
    %v2449 = vpack.c.b16 %v2233, %v2225
    %v2450 = vpack.c.b16 %v2234, %v2226
    %v2451 = vpack.c.b16 %v2235, %v2227
    %v2452 = vpack.c.b16 %v2236, %v2228
    %v2453 = vpack.c.b16 %v2237, %v2229
    %v2454 = vpack.c.b16 %v2246, %v2238
    %v2455 = vpack.c.b16 %v2247, %v2239
    %v2456 = vpack.c.b16 %v2248, %v2240
    %v2457 = vpack.c.b16 %v2249, %v2241
    %v2458 = vpack.c.b16 %v2250, %v2242
    %v2459 = vpack.c.b16 %v2251, %v2243
    %v2460 = vpack.c.b16 %v2252, %v2244
    %v2461 = vpack.c.b16 %v2253, %v2245
    %v2462 = vpack.c.b16 %v2262, %v2254
    %v2463 = vpack.c.b16 %v2263, %v2255
    %v2464 = vpack.c.b16 %v2264, %v2256
    %v2465 = vpack.c.b16 %v2265, %v2257
    %v2466 = vpack.c.b16 %v2266, %v2258
    %v2467 = vpack.c.b16 %v2267, %v2259
    %v2468 = vpack.c.b16 %v2268, %v2260
    %v2469 = vpack.c.b16 %v2269, %v2261
    %v2470 = vpack.c.b16 %v2278, %v2270
    %v2471 = vpack.c.b16 %v2279, %v2271
    %v2472 = vpack.c.b16 %v2280, %v2272
    %v2473 = vpack.c.b16 %v2281, %v2273
    %v2474 = vpack.c.b16 %v2282, %v2274
    %v2475 = vpack.c.b16 %v2283, %v2275
    %v2476 = vpack.c.b16 %v2284, %v2276
    %v2477 = vpack.c.b16 %v2285, %v2277
    %v2478 = vpack.c.b16 %v2294, %v2286
    %v2479 = vpack.c.b16 %v2295, %v2287
    %v2480 = vpack.c.b16 %v2296, %v2288
    %v2481 = vpack.c.b16 %v2297, %v2289
    %v2482 = vpack.c.b16 %v2298, %v2290
    %v2483 = vpack.c.b16 %v2299, %v2291
    %v2484 = vpack.c.b16 %v2300, %v2292
    %v2485 = vpack.c.b16 %v2301, %v2293
    %v2486 = vpack.c.b16 %v2310, %v2302
    %v2487 = vpack.c.b16 %v2311, %v2303
    %v2488 = vpack.c.b16 %v2312, %v2304
    %v2489 = vpack.c.b16 %v2313, %v2305
    %v2490 = vpack.c.b16 %v2314, %v2306
    %v2491 = vpack.c.b16 %v2315, %v2307
    %v2492 = vpack.c.b16 %v2316, %v2308
    %v2493 = vpack.c.b16 %v2317, %v2309
    %v2494 = vpack.c.b16 %v2326, %v2318
    %v2495 = vpack.c.b16 %v2327, %v2319
    %v2496 = vpack.c.b16 %v2328, %v2320
    %v2497 = vpack.c.b16 %v2329, %v2321
    %v2498 = vpack.c.b16 %v2330, %v2322
    %v2499 = vpack.c.b16 %v2331, %v2323
    %v2500 = vpack.c.b16 %v2332, %v2324
    %v2501 = vpack.c.b16 %v2333, %v2325
    %v2502 = vpack.c.b16 %v2342, %v2334
    %v2503 = vpack.c.b16 %v2343, %v2335
    %v2504 = vpack.c.b16 %v2344, %v2336
    %v2505 = vpack.c.b16 %v2345, %v2337
    %v2506 = vpack.c.b16 %v2346, %v2338
    %v2507 = vpack.c.b16 %v2347, %v2339
    %v2508 = vpack.c.b16 %v2348, %v2340
    %v2509 = vpack.c.b16 %v2349, %v2341
    %v2510 = vpack.c.b16 %v2358, %v2350
    %v2511 = vpack.c.b16 %v2359, %v2351
    %v2512 = vpack.c.b16 %v2360, %v2352
    %v2513 = vpack.c.b16 %v2361, %v2353
    %v2514 = vpack.c.b16 %v2362, %v2354
    %v2515 = vpack.c.b16 %v2363, %v2355
    %v2516 = vpack.c.b16 %v2364, %v2356
    %v2517 = vpack.c.b16 %v2365, %v2357
    %v2518 = vpack.c.b16 %v2374, %v2366
    %v2519 = vpack.c.b16 %v2375, %v2367
    %v2520 = vpack.c.b16 %v2376, %v2368
    %v2521 = vpack.c.b16 %v2377, %v2369
    %v2522 = vpack.c.b16 %v2378, %v2370
    %v2523 = vpack.c.b16 %v2379, %v2371
    %v2524 = vpack.c.b16 %v2380, %v2372
    %v2525 = vpack.c.b16 %v2381, %v2373
    %v2526 = vpack.c.b16 %v2390, %v2382
    %v2527 = vpack.c.b16 %v2391, %v2383
    %v2528 = vpack.c.b16 %v2392, %v2384
    %v2529 = vpack.c.b16 %v2393, %v2385
    %v2530 = vpack.c.b16 %v2394, %v2386
    %v2531 = vpack.c.b16 %v2395, %v2387
    %v2532 = vpack.c.b16 %v2396, %v2388
    %v2533 = vpack.c.b16 %v2397, %v2389
    %v2534 = vpack.c.b16 %v2406, %v2398
    %v2535 = vpack.c.b16 %v2407, %v2399
    %v2536 = vpack.c.b16 %v2408, %v2400
    %v2537 = vpack.c.b16 %v2409, %v2401
    %v2538 = vpack.c.b16 %v2410, %v2402
    %v2539 = vpack.c.b16 %v2411, %v2403
    %v2540 = vpack.c.b16 %v2412, %v2404
    %v2541 = vpack.c.b16 %v2413, %v2405
    %2670 = vmatprep.subr.bf16.mxu0 %v2471
    %2671 = vmatpush1.bf16.msra.mxu0 %v2470
    %2672 = vmatprep.subr.bf16.mxu0 %v2463
    %2673 = vmatpush1.bf16.msra.mxu0 %v2462
    %2674 = vmatprep.subr.bf16.mxu0 %v2455
    %2675 = vmatpush1.bf16.msra.mxu0 %v2454
    %2676 = vmatprep.subr.bf16.mxu0 %v2447
    %2677 = vmatpush1.bf16.msra.mxu0 %v2446
    %2678 = vmatprep.subr.bf16.mxu0 %v2439
    %2679 = vmatpush1.bf16.msra.mxu0 %v2438
    %2680 = vmatprep.subr.bf16.mxu0 %v2431
    %2681 = vmatpush1.bf16.msra.mxu0 %v2430
    %2682 = vmatprep.subr.bf16.mxu0 %v2423
    %2683 = vmatpush1.bf16.msra.mxu0 %v2422
    %2684 = vmatprep.subr.bf16.mxu0 %v2415
    %2685 = vmatpush1.bf16.msra.mxu0 %v2414
    %2686 = vmatprep.subr.bf16.mxu0 %v2535
    %2687 = vmatpush2.bf16.msra.mxu0 %v2534
    %2688 = vmatprep.subr.bf16.mxu0 %v2527
    %2689 = vmatpush2.bf16.msra.mxu0 %v2526
    %2690 = vmatprep.subr.bf16.mxu0 %v2519
    %2691 = vmatpush2.bf16.msra.mxu0 %v2518
    %2692 = vmatprep.subr.bf16.mxu0 %v2511
    %2693 = vmatpush2.bf16.msra.mxu0 %v2510
    %2694 = vmatprep.subr.bf16.mxu0 %v2503
    %2695 = vmatpush2.bf16.msra.mxu0 %v2502
    %2696 = vmatprep.subr.bf16.mxu0 %v2495
    %2697 = vmatpush2.bf16.msra.mxu0 %v2494
    %2698 = vmatprep.subr.bf16.mxu0 %v2487
    %2699 = vmatpush2.bf16.msra.mxu0 %v2486
    %2700 = vmatprep.subr.bf16.mxu0 %v2479
    %2701 = vmatpush2.bf16.msra.mxu0 %v2478
    %2702 = vmatprep.mubr.bf16.mxu0 %v1859
    %2703 = vmatmul.mubr.bf16.gmra.mxu0 %v1858
    %v2704 = vpop.f32.mrf.mxu0
    %v2705 = vadd.f32 %v1993, %v2704
    %v2706 = vpop.f32.mrf.mxu0
    %v2707 = vadd.f32 %v1997, %v2706
    %v2708 = vpop.f32.mrf.mxu0
    %v2709 = vadd.f32 %v1993, %v2708
    %v2710 = vpop.f32.mrf.mxu0
    %v2711 = vadd.f32 %v1997, %v2710
    %2712 = vdwg.mxu0
    %2713 = vmatprep.subr.bf16.mxu0 %v2473
    %2714 = vmatpush1.bf16.msra.mxu0 %v2472
    %2715 = vmatprep.subr.bf16.mxu0 %v2465
    %2716 = vmatpush1.bf16.msra.mxu0 %v2464
    %2717 = vmatprep.subr.bf16.mxu0 %v2457
    %2718 = vmatpush1.bf16.msra.mxu0 %v2456
    %2719 = vmatprep.subr.bf16.mxu0 %v2449
    %2720 = vmatpush1.bf16.msra.mxu0 %v2448
    %2721 = vmatprep.subr.bf16.mxu0 %v2441
    %2722 = vmatpush1.bf16.msra.mxu0 %v2440
    %2723 = vmatprep.subr.bf16.mxu0 %v2433
    %2724 = vmatpush1.bf16.msra.mxu0 %v2432
    %2725 = vmatprep.subr.bf16.mxu0 %v2425
    %2726 = vmatpush1.bf16.msra.mxu0 %v2424
    %2727 = vmatprep.subr.bf16.mxu0 %v2417
    %2728 = vmatpush1.bf16.msra.mxu0 %v2416
    %2729 = vmatprep.subr.bf16.mxu0 %v2537
    %2730 = vmatpush2.bf16.msra.mxu0 %v2536
    %2731 = vmatprep.subr.bf16.mxu0 %v2529
    %2732 = vmatpush2.bf16.msra.mxu0 %v2528
    %2733 = vmatprep.subr.bf16.mxu0 %v2521
    %2734 = vmatpush2.bf16.msra.mxu0 %v2520
    %2735 = vmatprep.subr.bf16.mxu0 %v2513
    %2736 = vmatpush2.bf16.msra.mxu0 %v2512
    %2737 = vmatprep.subr.bf16.mxu0 %v2505
    %2738 = vmatpush2.bf16.msra.mxu0 %v2504
    %2739 = vmatprep.subr.bf16.mxu0 %v2497
    %2740 = vmatpush2.bf16.msra.mxu0 %v2496
    %2741 = vmatprep.subr.bf16.mxu0 %v2489
    %2742 = vmatpush2.bf16.msra.mxu0 %v2488
    %2743 = vmatprep.subr.bf16.mxu0 %v2481
    %2744 = vmatpush2.bf16.msra.mxu0 %v2480
    %2745 = vmatprep.mubr.bf16.mxu0 %v1859
    %2746 = vmatmul.mubr.bf16.gmra.mxu0 %v1858
    %v2747 = vpop.f32.mrf.mxu0
    %v2748 = vadd.f32 %v2001, %v2747
    %v2749 = vpop.f32.mrf.mxu0
    %v2750 = vadd.f32 %v2005, %v2749
    %v2751 = vpop.f32.mrf.mxu0
    %v2752 = vadd.f32 %v2001, %v2751
    %v2753 = vpop.f32.mrf.mxu0
    %v2754 = vadd.f32 %v2005, %v2753
    %2755 = vdwg.mxu0
    %2756 = vmatprep.subr.bf16.mxu0 %v2475
    %2757 = vmatpush1.bf16.msra.mxu0 %v2474
    %2758 = vmatprep.subr.bf16.mxu0 %v2467
    %2759 = vmatpush1.bf16.msra.mxu0 %v2466
    %2760 = vmatprep.subr.bf16.mxu0 %v2459
    %2761 = vmatpush1.bf16.msra.mxu0 %v2458
    %2762 = vmatprep.subr.bf16.mxu0 %v2451
    %2763 = vmatpush1.bf16.msra.mxu0 %v2450
    %2764 = vmatprep.subr.bf16.mxu0 %v2443
    %2765 = vmatpush1.bf16.msra.mxu0 %v2442
    %2766 = vmatprep.subr.bf16.mxu0 %v2435
    %2767 = vmatpush1.bf16.msra.mxu0 %v2434
    %2768 = vmatprep.subr.bf16.mxu0 %v2427
    %2769 = vmatpush1.bf16.msra.mxu0 %v2426
    %2770 = vmatprep.subr.bf16.mxu0 %v2419
    %2771 = vmatpush1.bf16.msra.mxu0 %v2418
    %2772 = vmatprep.subr.bf16.mxu0 %v2539
    %2773 = vmatpush2.bf16.msra.mxu0 %v2538
    %2774 = vmatprep.subr.bf16.mxu0 %v2531
    %2775 = vmatpush2.bf16.msra.mxu0 %v2530
    %2776 = vmatprep.subr.bf16.mxu0 %v2523
    %2777 = vmatpush2.bf16.msra.mxu0 %v2522
    %2778 = vmatprep.subr.bf16.mxu0 %v2515
    %2779 = vmatpush2.bf16.msra.mxu0 %v2514
    %2780 = vmatprep.subr.bf16.mxu0 %v2507
    %2781 = vmatpush2.bf16.msra.mxu0 %v2506
    %2782 = vmatprep.subr.bf16.mxu0 %v2499
    %2783 = vmatpush2.bf16.msra.mxu0 %v2498
    %2784 = vmatprep.subr.bf16.mxu0 %v2491
    %2785 = vmatpush2.bf16.msra.mxu0 %v2490
    %2786 = vmatprep.subr.bf16.mxu0 %v2483
    %2787 = vmatpush2.bf16.msra.mxu0 %v2482
    %2788 = vmatprep.mubr.bf16.mxu0 %v1859
    %2789 = vmatmul.mubr.bf16.gmra.mxu0 %v1858
    %v2790 = vpop.f32.mrf.mxu0
    %v2791 = vadd.f32 %v2009, %v2790
    %v2792 = vpop.f32.mrf.mxu0
    %v2793 = vadd.f32 %v2013, %v2792
    %v2794 = vpop.f32.mrf.mxu0
    %v2795 = vadd.f32 %v2009, %v2794
    %v2796 = vpop.f32.mrf.mxu0
    %v2797 = vadd.f32 %v2013, %v2796
    %2798 = vdwg.mxu0
    %2799 = vmatprep.subr.bf16.mxu0 %v2477
    %2800 = vmatpush1.bf16.msra.mxu0 %v2476
    %2801 = vmatprep.subr.bf16.mxu0 %v2469
    %2802 = vmatpush1.bf16.msra.mxu0 %v2468
    %2803 = vmatprep.subr.bf16.mxu0 %v2461
    %2804 = vmatpush1.bf16.msra.mxu0 %v2460
    %2805 = vmatprep.subr.bf16.mxu0 %v2453
    %2806 = vmatpush1.bf16.msra.mxu0 %v2452
    %2807 = vmatprep.subr.bf16.mxu0 %v2445
    %2808 = vmatpush1.bf16.msra.mxu0 %v2444
    %2809 = vmatprep.subr.bf16.mxu0 %v2437
    %2810 = vmatpush1.bf16.msra.mxu0 %v2436
    %2811 = vmatprep.subr.bf16.mxu0 %v2429
    %2812 = vmatpush1.bf16.msra.mxu0 %v2428
    %2813 = vmatprep.subr.bf16.mxu0 %v2421
    %2814 = vmatpush1.bf16.msra.mxu0 %v2420
    %2815 = vmatprep.subr.bf16.mxu0 %v2541
    %2816 = vmatpush2.bf16.msra.mxu0 %v2540
    %2817 = vmatprep.subr.bf16.mxu0 %v2533
    %2818 = vmatpush2.bf16.msra.mxu0 %v2532
    %2819 = vmatprep.subr.bf16.mxu0 %v2525
    %2820 = vmatpush2.bf16.msra.mxu0 %v2524
    %2821 = vmatprep.subr.bf16.mxu0 %v2517
    %2822 = vmatpush2.bf16.msra.mxu0 %v2516
    %2823 = vmatprep.subr.bf16.mxu0 %v2509
    %2824 = vmatpush2.bf16.msra.mxu0 %v2508
    %2825 = vmatprep.subr.bf16.mxu0 %v2501
    %2826 = vmatpush2.bf16.msra.mxu0 %v2500
    %2827 = vmatprep.subr.bf16.mxu0 %v2493
    %2828 = vmatpush2.bf16.msra.mxu0 %v2492
    %2829 = vmatprep.subr.bf16.mxu0 %v2485
    %2830 = vmatpush2.bf16.msra.mxu0 %v2484
    %2831 = vmatprep.mubr.bf16.mxu0 %v1859
    %2832 = vmatmul.mubr.bf16.gmra.mxu0 %v1858
    %v2833 = vpop.f32.mrf.mxu0
    %v2834 = vadd.f32 %v2017, %v2833
    %v2835 = vpop.f32.mrf.mxu0
    %v2836 = vadd.f32 %v2021, %v2835
    %v2837 = vpop.f32.mrf.mxu0
    %v2838 = vadd.f32 %v2017, %v2837
    %v2839 = vpop.f32.mrf.mxu0
    %v2840 = vadd.f32 %v2021, %v2839
    %2841 = vdwg.mxu0
    %v2842 = vmul.f32 %v2705, 0.5
    %v2843 = vmul.f32 %v2707, 0.5
    %v2844 = vmul.f32 %v2748, 0.5
    %v2845 = vmul.f32 %v2750, 0.5
    %v2846 = vmul.f32 %v2791, 0.5
    %v2847 = vmul.f32 %v2793, 0.5
    %v2848 = vmul.f32 %v2834, 0.5
    %v2849 = vmul.f32 %v2836, 0.5
    %v2850 = vmul.f32 %v2709, 0.5
    %v2851 = vmul.f32 %v2711, 0.5
    %v2852 = vmul.f32 %v2752, 0.5
    %v2853 = vmul.f32 %v2754, 0.5
    %v2854 = vmul.f32 %v2795, 0.5
    %v2855 = vmul.f32 %v2797, 0.5
    %v2856 = vmul.f32 %v2838, 0.5
    %v2857 = vmul.f32 %v2840, 0.5
    %v2858 = vmul.f32 %v2705, 0.044715
    %v2859 = vmul.f32 %v2707, 0.044715
    %v2860 = vmul.f32 %v2748, 0.044715
    %v2861 = vmul.f32 %v2750, 0.044715
    %v2862 = vmul.f32 %v2791, 0.044715
    %v2863 = vmul.f32 %v2793, 0.044715
    %v2864 = vmul.f32 %v2834, 0.044715
    %v2865 = vmul.f32 %v2836, 0.044715
    %v2866 = vmul.f32 %v2709, 0.044715
    %v2867 = vmul.f32 %v2711, 0.044715
    %v2868 = vmul.f32 %v2752, 0.044715
    %v2869 = vmul.f32 %v2754, 0.044715
    %v2870 = vmul.f32 %v2795, 0.044715
    %v2871 = vmul.f32 %v2797, 0.044715
    %v2872 = vmul.f32 %v2838, 0.044715
    %v2873 = vmul.f32 %v2840, 0.044715
    %v2874 = vmul.f32 %v2858, %v2705
    %v2875 = vmul.f32 %v2859, %v2707
    %v2876 = vmul.f32 %v2860, %v2748
    %v2877 = vmul.f32 %v2861, %v2750
    %v2878 = vmul.f32 %v2862, %v2791
    %v2879 = vmul.f32 %v2863, %v2793
    %v2880 = vmul.f32 %v2864, %v2834
    %v2881 = vmul.f32 %v2865, %v2836
    %v2882 = vmul.f32 %v2866, %v2709
    %v2883 = vmul.f32 %v2867, %v2711
    %v2884 = vmul.f32 %v2868, %v2752
    %v2885 = vmul.f32 %v2869, %v2754
    %v2886 = vmul.f32 %v2870, %v2795
    %v2887 = vmul.f32 %v2871, %v2797
    %v2888 = vmul.f32 %v2872, %v2838
    %v2889 = vmul.f32 %v2873, %v2840
    %v2890 = vmul.f32 %v2874, %v2705
    %v2891 = vmul.f32 %v2875, %v2707
    %v2892 = vmul.f32 %v2876, %v2748
    %v2893 = vmul.f32 %v2877, %v2750
    %v2894 = vmul.f32 %v2878, %v2791
    %v2895 = vmul.f32 %v2879, %v2793
    %v2896 = vmul.f32 %v2880, %v2834
    %v2897 = vmul.f32 %v2881, %v2836
    %v2898 = vmul.f32 %v2882, %v2709
    %v2899 = vmul.f32 %v2883, %v2711
    %v2900 = vmul.f32 %v2884, %v2752
    %v2901 = vmul.f32 %v2885, %v2754
    %v2902 = vmul.f32 %v2886, %v2795
    %v2903 = vmul.f32 %v2887, %v2797
    %v2904 = vmul.f32 %v2888, %v2838
    %v2905 = vmul.f32 %v2889, %v2840
    %v2906 = vadd.f32 %v2705, %v2890
    %v2907 = vadd.f32 %v2707, %v2891
    %v2908 = vadd.f32 %v2748, %v2892
    %v2909 = vadd.f32 %v2750, %v2893
    %v2910 = vadd.f32 %v2791, %v2894
    %v2911 = vadd.f32 %v2793, %v2895
    %v2912 = vadd.f32 %v2834, %v2896
    %v2913 = vadd.f32 %v2836, %v2897
    %v2914 = vadd.f32 %v2709, %v2898
    %v2915 = vadd.f32 %v2711, %v2899
    %v2916 = vadd.f32 %v2752, %v2900
    %v2917 = vadd.f32 %v2754, %v2901
    %v2918 = vadd.f32 %v2795, %v2902
    %v2919 = vadd.f32 %v2797, %v2903
    %v2920 = vadd.f32 %v2838, %v2904
    %v2921 = vadd.f32 %v2840, %v2905
    %v2922 = vmul.f32 %v2906, 0.7978846
    %v2923 = vmul.f32 %v2907, 0.7978846
    %v2924 = vmul.f32 %v2908, 0.7978846
    %v2925 = vmul.f32 %v2909, 0.7978846
    %v2926 = vmul.f32 %v2910, 0.7978846
    %v2927 = vmul.f32 %v2911, 0.7978846
    %v2928 = vmul.f32 %v2912, 0.7978846
    %v2929 = vmul.f32 %v2913, 0.7978846
    %v2930 = vmul.f32 %v2914, 0.7978846
    %v2931 = vmul.f32 %v2915, 0.7978846
    %v2932 = vmul.f32 %v2916, 0.7978846
    %v2933 = vmul.f32 %v2917, 0.7978846
    %v2934 = vmul.f32 %v2918, 0.7978846
    %v2935 = vmul.f32 %v2919, 0.7978846
    %v2936 = vmul.f32 %v2920, 0.7978846
    %v2937 = vmul.f32 %v2921, 0.7978846
    %v2938 = vtanh.pop %v2922
    %v2939 = vtanh.pop %v2923
    %v2940 = vtanh.pop %v2924
    %v2941 = vtanh.pop %v2925
    %v2942 = vtanh.pop %v2926
    %v2943 = vtanh.pop %v2927
    %v2944 = vtanh.pop %v2928
    %v2945 = vtanh.pop %v2929
    %v2946 = vtanh.pop %v2930
    %v2947 = vtanh.pop %v2931
    %v2948 = vtanh.pop %v2932
    %v2949 = vtanh.pop %v2933
    %v2950 = vtanh.pop %v2934
    %v2951 = vtanh.pop %v2935
    %v2952 = vtanh.pop %v2936
    %v2953 = vtanh.pop %v2937
    %v2954 = vadd.f32 %v2938, 1.0
    %v2955 = vadd.f32 %v2939, 1.0
    %v2956 = vadd.f32 %v2940, 1.0
    %v2957 = vadd.f32 %v2941, 1.0
    %v2958 = vadd.f32 %v2942, 1.0
    %v2959 = vadd.f32 %v2943, 1.0
    %v2960 = vadd.f32 %v2944, 1.0
    %v2961 = vadd.f32 %v2945, 1.0
    %v2962 = vadd.f32 %v2946, 1.0
    %v2963 = vadd.f32 %v2947, 1.0
    %v2964 = vadd.f32 %v2948, 1.0
    %v2965 = vadd.f32 %v2949, 1.0
    %v2966 = vadd.f32 %v2950, 1.0
    %v2967 = vadd.f32 %v2951, 1.0
    %v2968 = vadd.f32 %v2952, 1.0
    %v2969 = vadd.f32 %v2953, 1.0
    %v2970 = vmul.f32 %v2842, %v2954
    %v2971 = vmul.f32 %v2843, %v2955
    %v2972 = vmul.f32 %v2844, %v2956
    %v2973 = vmul.f32 %v2845, %v2957
    %v2974 = vmul.f32 %v2846, %v2958
    %v2975 = vmul.f32 %v2847, %v2959
    %v2976 = vmul.f32 %v2848, %v2960
    %v2977 = vmul.f32 %v2849, %v2961
    %v2978 = vmul.f32 %v2850, %v2962
    %v2979 = vmul.f32 %v2851, %v2963
    %v2980 = vmul.f32 %v2852, %v2964
    %v2981 = vmul.f32 %v2853, %v2965
    %v2982 = vmul.f32 %v2854, %v2966
    %v2983 = vmul.f32 %v2855, %v2967
    %v2984 = vmul.f32 %v2856, %v2968
    %v2985 = vmul.f32 %v2857, %v2969
    %v2986 = vpack.c.bf16 %v2978, %v2970
    %v2987 = vpack.c.bf16 %v2979, %v2971
    %v2988 = vpack.c.bf16 %v2980, %v2972
    %v2989 = vpack.c.bf16 %v2981, %v2973
    %v2990 = vpack.c.bf16 %v2982, %v2974
    %v2991 = vpack.c.bf16 %v2983, %v2975
    %v2992 = vpack.c.bf16 %v2984, %v2976
    %v2993 = vpack.c.bf16 %v2985, %v2977
    %v2994 = vld [vmem:[#allocation19] sm:$0xff]
    %v2995 = vld [vmem:[#allocation19 + $0x8] sm:$0xff]
    %v2996 = vld [vmem:[#allocation19 + $0x10] sm:$0xff]
    %v2997 = vld [vmem:[#allocation19 + $0x18] sm:$0xff]
    %v2998 = vld [vmem:[#allocation19 + $0x20] sm:$0xff]
    %v2999 = vld [vmem:[#allocation19 + $0x28] sm:$0xff]
    %v3000 = vld [vmem:[#allocation19 + $0x30] sm:$0xff]
    %v3001 = vld [vmem:[#allocation19 + $0x38] sm:$0xff]
    %v3002 = vld [vmem:[#allocation19 + $0x40] sm:$0xff]
    %v3003 = vld [vmem:[#allocation19 + $0x48] sm:$0xff]
    %v3004 = vld [vmem:[#allocation19 + $0x50] sm:$0xff]
    %v3005 = vld [vmem:[#allocation19 + $0x58] sm:$0xff]
    %v3006 = vld [vmem:[#allocation19 + $0x60] sm:$0xff]
    %v3007 = vld [vmem:[#allocation19 + $0x68] sm:$0xff]
    %v3008 = vld [vmem:[#allocation19 + $0x70] sm:$0xff]
    %v3009 = vld [vmem:[#allocation19 + $0x78] sm:$0xff]
    %v3010 = vld [vmem:[#allocation19 + $0x80] sm:$0xff]
    %v3011 = vld [vmem:[#allocation19 + $0x88] sm:$0xff]
    %v3012 = vld [vmem:[#allocation19 + $0x90] sm:$0xff]
    %v3013 = vld [vmem:[#allocation19 + $0x98] sm:$0xff]
    %v3014 = vld [vmem:[#allocation19 + $0xa0] sm:$0xff]
    %v3015 = vld [vmem:[#allocation19 + $0xa8] sm:$0xff]
    %v3016 = vld [vmem:[#allocation19 + $0xb0] sm:$0xff]
    %v3017 = vld [vmem:[#allocation19 + $0xb8] sm:$0xff]
    %v3018 = vld [vmem:[#allocation19 + $0xc0] sm:$0xff]
    %v3019 = vld [vmem:[#allocation19 + $0xc8] sm:$0xff]
    %v3020 = vld [vmem:[#allocation19 + $0xd0] sm:$0xff]
    %v3021 = vld [vmem:[#allocation19 + $0xd8] sm:$0xff]
    %v3022 = vld [vmem:[#allocation19 + $0xe0] sm:$0xff]
    %v3023 = vld [vmem:[#allocation19 + $0xe8] sm:$0xff]
    %v3024 = vld [vmem:[#allocation19 + $0xf0] sm:$0xff]
    %v3025 = vld [vmem:[#allocation19 + $0xf8] sm:$0xff]
    %v3026 = vld [vmem:[#allocation19 + $0x100] sm:$0xff]
    %v3027 = vld [vmem:[#allocation19 + $0x108] sm:$0xff]
    %v3028 = vld [vmem:[#allocation19 + $0x110] sm:$0xff]
    %v3029 = vld [vmem:[#allocation19 + $0x118] sm:$0xff]
    %v3030 = vld [vmem:[#allocation19 + $0x120] sm:$0xff]
    %v3031 = vld [vmem:[#allocation19 + $0x128] sm:$0xff]
    %v3032 = vld [vmem:[#allocation19 + $0x130] sm:$0xff]
    %v3033 = vld [vmem:[#allocation19 + $0x138] sm:$0xff]
    %v3034 = vld [vmem:[#allocation19 + $0x140] sm:$0xff]
    %v3035 = vld [vmem:[#allocation19 + $0x148] sm:$0xff]
    %v3036 = vld [vmem:[#allocation19 + $0x150] sm:$0xff]
    %v3037 = vld [vmem:[#allocation19 + $0x158] sm:$0xff]
    %v3038 = vld [vmem:[#allocation19 + $0x160] sm:$0xff]
    %v3039 = vld [vmem:[#allocation19 + $0x168] sm:$0xff]
    %v3040 = vld [vmem:[#allocation19 + $0x170] sm:$0xff]
    %v3041 = vld [vmem:[#allocation19 + $0x178] sm:$0xff]
    %v3042 = vld [vmem:[#allocation19 + $0x180] sm:$0xff]
    %v3043 = vld [vmem:[#allocation19 + $0x188] sm:$0xff]
    %v3044 = vld [vmem:[#allocation19 + $0x190] sm:$0xff]
    %v3045 = vld [vmem:[#allocation19 + $0x198] sm:$0xff]
    %v3046 = vld [vmem:[#allocation19 + $0x1a0] sm:$0xff]
    %v3047 = vld [vmem:[#allocation19 + $0x1a8] sm:$0xff]
    %v3048 = vld [vmem:[#allocation19 + $0x1b0] sm:$0xff]
    %v3049 = vld [vmem:[#allocation19 + $0x1b8] sm:$0xff]
    %v3050 = vld [vmem:[#allocation19 + $0x1c0] sm:$0xff]
    %v3051 = vld [vmem:[#allocation19 + $0x1c8] sm:$0xff]
    %v3052 = vld [vmem:[#allocation19 + $0x1d0] sm:$0xff]
    %v3053 = vld [vmem:[#allocation19 + $0x1d8] sm:$0xff]
    %v3054 = vld [vmem:[#allocation19 + $0x1e0] sm:$0xff]
    %v3055 = vld [vmem:[#allocation19 + $0x1e8] sm:$0xff]
    %v3056 = vld [vmem:[#allocation19 + $0x1f0] sm:$0xff]
    %v3057 = vld [vmem:[#allocation19 + $0x1f8] sm:$0xff]
    %v3058 = vld [vmem:[#allocation19 + $0x200] sm:$0xff]
    %v3059 = vld [vmem:[#allocation19 + $0x208] sm:$0xff]
    %v3060 = vld [vmem:[#allocation19 + $0x210] sm:$0xff]
    %v3061 = vld [vmem:[#allocation19 + $0x218] sm:$0xff]
    %v3062 = vld [vmem:[#allocation19 + $0x220] sm:$0xff]
    %v3063 = vld [vmem:[#allocation19 + $0x228] sm:$0xff]
    %v3064 = vld [vmem:[#allocation19 + $0x230] sm:$0xff]
    %v3065 = vld [vmem:[#allocation19 + $0x238] sm:$0xff]
    %v3066 = vld [vmem:[#allocation19 + $0x240] sm:$0xff]
    %v3067 = vld [vmem:[#allocation19 + $0x248] sm:$0xff]
    %v3068 = vld [vmem:[#allocation19 + $0x250] sm:$0xff]
    %v3069 = vld [vmem:[#allocation19 + $0x258] sm:$0xff]
    %v3070 = vld [vmem:[#allocation19 + $0x260] sm:$0xff]
    %v3071 = vld [vmem:[#allocation19 + $0x268] sm:$0xff]
    %v3072 = vld [vmem:[#allocation19 + $0x270] sm:$0xff]
    %v3073 = vld [vmem:[#allocation19 + $0x278] sm:$0xff]
    %v3074 = vld [vmem:[#allocation19 + $0x280] sm:$0xff]
    %v3075 = vld [vmem:[#allocation19 + $0x288] sm:$0xff]
    %v3076 = vld [vmem:[#allocation19 + $0x290] sm:$0xff]
    %v3077 = vld [vmem:[#allocation19 + $0x298] sm:$0xff]
    %v3078 = vld [vmem:[#allocation19 + $0x2a0] sm:$0xff]
    %v3079 = vld [vmem:[#allocation19 + $0x2a8] sm:$0xff]
    %v3080 = vld [vmem:[#allocation19 + $0x2b0] sm:$0xff]
    %v3081 = vld [vmem:[#allocation19 + $0x2b8] sm:$0xff]
    %v3082 = vld [vmem:[#allocation19 + $0x2c0] sm:$0xff]
    %v3083 = vld [vmem:[#allocation19 + $0x2c8] sm:$0xff]
    %v3084 = vld [vmem:[#allocation19 + $0x2d0] sm:$0xff]
    %v3085 = vld [vmem:[#allocation19 + $0x2d8] sm:$0xff]
    %v3086 = vld [vmem:[#allocation19 + $0x2e0] sm:$0xff]
    %v3087 = vld [vmem:[#allocation19 + $0x2e8] sm:$0xff]
    %v3088 = vld [vmem:[#allocation19 + $0x2f0] sm:$0xff]
    %v3089 = vld [vmem:[#allocation19 + $0x2f8] sm:$0xff]
    %v3090 = vld [vmem:[#allocation19 + $0x300] sm:$0xff]
    %v3091 = vld [vmem:[#allocation19 + $0x308] sm:$0xff]
    %v3092 = vld [vmem:[#allocation19 + $0x310] sm:$0xff]
    %v3093 = vld [vmem:[#allocation19 + $0x318] sm:$0xff]
    %v3094 = vld [vmem:[#allocation19 + $0x320] sm:$0xff]
    %v3095 = vld [vmem:[#allocation19 + $0x328] sm:$0xff]
    %v3096 = vld [vmem:[#allocation19 + $0x330] sm:$0xff]
    %v3097 = vld [vmem:[#allocation19 + $0x338] sm:$0xff]
    %v3098 = vld [vmem:[#allocation19 + $0x340] sm:$0xff]
    %v3099 = vld [vmem:[#allocation19 + $0x348] sm:$0xff]
    %v3100 = vld [vmem:[#allocation19 + $0x350] sm:$0xff]
    %v3101 = vld [vmem:[#allocation19 + $0x358] sm:$0xff]
    %v3102 = vld [vmem:[#allocation19 + $0x360] sm:$0xff]
    %v3103 = vld [vmem:[#allocation19 + $0x368] sm:$0xff]
    %v3104 = vld [vmem:[#allocation19 + $0x370] sm:$0xff]
    %v3105 = vld [vmem:[#allocation19 + $0x378] sm:$0xff]
    %v3106 = vld [vmem:[#allocation19 + $0x380] sm:$0xff]
    %v3107 = vld [vmem:[#allocation19 + $0x388] sm:$0xff]
    %v3108 = vld [vmem:[#allocation19 + $0x390] sm:$0xff]
    %v3109 = vld [vmem:[#allocation19 + $0x398] sm:$0xff]
    %v3110 = vld [vmem:[#allocation19 + $0x3a0] sm:$0xff]
    %v3111 = vld [vmem:[#allocation19 + $0x3a8] sm:$0xff]
    %v3112 = vld [vmem:[#allocation19 + $0x3b0] sm:$0xff]
    %v3113 = vld [vmem:[#allocation19 + $0x3b8] sm:$0xff]
    %v3114 = vld [vmem:[#allocation19 + $0x3c0] sm:$0xff]
    %v3115 = vld [vmem:[#allocation19 + $0x3c8] sm:$0xff]
    %v3116 = vld [vmem:[#allocation19 + $0x3d0] sm:$0xff]
    %v3117 = vld [vmem:[#allocation19 + $0x3d8] sm:$0xff]
    %v3118 = vld [vmem:[#allocation19 + $0x3e0] sm:$0xff]
    %v3119 = vld [vmem:[#allocation19 + $0x3e8] sm:$0xff]
    %v3120 = vld [vmem:[#allocation19 + $0x3f0] sm:$0xff]
    %v3121 = vld [vmem:[#allocation19 + $0x3f8] sm:$0xff]
    %v3122 = vld [vmem:[#allocation20] sm:$0x3]
    %v3124 = vlaneseq
    %v3125 = vshrl.u32 %v3124, 7
    %v3126 = vsub.s32 0, %v3125
    %v3127 = vrot.slane %v3122, %v3126
    %v3128 = vlaneseq
    %v3129 = vshrl.u32 %v3128, 7
    %v3130 = vsub.s32 1, %v3129
    %v3131 = vrot.slane %v3122, %v3130
    %v3262 = vunpack.c.l.b16 %v2994
    %v3263 = vunpack.c.h.b16 %v2994
    %v3264 = vunpack.c.l.b16 %v2995
    %v3265 = vunpack.c.h.b16 %v2995
    %v3266 = vunpack.c.l.b16 %v2996
    %v3267 = vunpack.c.h.b16 %v2996
    %v3268 = vunpack.c.l.b16 %v2997
    %v3269 = vunpack.c.h.b16 %v2997
    %v3270 = vunpack.c.l.b16 %v2998
    %v3271 = vunpack.c.h.b16 %v2998
    %v3272 = vunpack.c.l.b16 %v2999
    %v3273 = vunpack.c.h.b16 %v2999
    %v3274 = vunpack.c.l.b16 %v3000
    %v3275 = vunpack.c.h.b16 %v3000
    %v3276 = vunpack.c.l.b16 %v3001
    %v3277 = vunpack.c.h.b16 %v3001
    %v3278 = vunpack.c.l.b16 %v3002
    %v3279 = vunpack.c.h.b16 %v3002
    %v3280 = vunpack.c.l.b16 %v3003
    %v3281 = vunpack.c.h.b16 %v3003
    %v3282 = vunpack.c.l.b16 %v3004
    %v3283 = vunpack.c.h.b16 %v3004
    %v3284 = vunpack.c.l.b16 %v3005
    %v3285 = vunpack.c.h.b16 %v3005
    %v3286 = vunpack.c.l.b16 %v3006
    %v3287 = vunpack.c.h.b16 %v3006
    %v3288 = vunpack.c.l.b16 %v3007
    %v3289 = vunpack.c.h.b16 %v3007
    %v3290 = vunpack.c.l.b16 %v3008
    %v3291 = vunpack.c.h.b16 %v3008
    %v3292 = vunpack.c.l.b16 %v3009
    %v3293 = vunpack.c.h.b16 %v3009
    %v3294 = vunpack.c.l.b16 %v3010
    %v3295 = vunpack.c.h.b16 %v3010
    %v3296 = vunpack.c.l.b16 %v3011
    %v3297 = vunpack.c.h.b16 %v3011
    %v3298 = vunpack.c.l.b16 %v3012
    %v3299 = vunpack.c.h.b16 %v3012
    %v3300 = vunpack.c.l.b16 %v3013
    %v3301 = vunpack.c.h.b16 %v3013
    %v3302 = vunpack.c.l.b16 %v3014
    %v3303 = vunpack.c.h.b16 %v3014
    %v3304 = vunpack.c.l.b16 %v3015
    %v3305 = vunpack.c.h.b16 %v3015
    %v3306 = vunpack.c.l.b16 %v3016
    %v3307 = vunpack.c.h.b16 %v3016
    %v3308 = vunpack.c.l.b16 %v3017
    %v3309 = vunpack.c.h.b16 %v3017
    %v3310 = vunpack.c.l.b16 %v3018
    %v3311 = vunpack.c.h.b16 %v3018
    %v3312 = vunpack.c.l.b16 %v3019
    %v3313 = vunpack.c.h.b16 %v3019
    %v3314 = vunpack.c.l.b16 %v3020
    %v3315 = vunpack.c.h.b16 %v3020
    %v3316 = vunpack.c.l.b16 %v3021
    %v3317 = vunpack.c.h.b16 %v3021
    %v3318 = vunpack.c.l.b16 %v3022
    %v3319 = vunpack.c.h.b16 %v3022
    %v3320 = vunpack.c.l.b16 %v3023
    %v3321 = vunpack.c.h.b16 %v3023
    %v3322 = vunpack.c.l.b16 %v3024
    %v3323 = vunpack.c.h.b16 %v3024
    %v3324 = vunpack.c.l.b16 %v3025
    %v3325 = vunpack.c.h.b16 %v3025
    %v3326 = vunpack.c.l.b16 %v3026
    %v3327 = vunpack.c.h.b16 %v3026
    %v3328 = vunpack.c.l.b16 %v3027
    %v3329 = vunpack.c.h.b16 %v3027
    %v3330 = vunpack.c.l.b16 %v3028
    %v3331 = vunpack.c.h.b16 %v3028
    %v3332 = vunpack.c.l.b16 %v3029
    %v3333 = vunpack.c.h.b16 %v3029
    %v3334 = vunpack.c.l.b16 %v3030
    %v3335 = vunpack.c.h.b16 %v3030
    %v3336 = vunpack.c.l.b16 %v3031
    %v3337 = vunpack.c.h.b16 %v3031
    %v3338 = vunpack.c.l.b16 %v3032
    %v3339 = vunpack.c.h.b16 %v3032
    %v3340 = vunpack.c.l.b16 %v3033
    %v3341 = vunpack.c.h.b16 %v3033
    %v3342 = vunpack.c.l.b16 %v3034
    %v3343 = vunpack.c.h.b16 %v3034
    %v3344 = vunpack.c.l.b16 %v3035
    %v3345 = vunpack.c.h.b16 %v3035
    %v3346 = vunpack.c.l.b16 %v3036
    %v3347 = vunpack.c.h.b16 %v3036
    %v3348 = vunpack.c.l.b16 %v3037
    %v3349 = vunpack.c.h.b16 %v3037
    %v3350 = vunpack.c.l.b16 %v3038
    %v3351 = vunpack.c.h.b16 %v3038
    %v3352 = vunpack.c.l.b16 %v3039
    %v3353 = vunpack.c.h.b16 %v3039
    %v3354 = vunpack.c.l.b16 %v3040
    %v3355 = vunpack.c.h.b16 %v3040
    %v3356 = vunpack.c.l.b16 %v3041
    %v3357 = vunpack.c.h.b16 %v3041
    %v3358 = vunpack.c.l.b16 %v3042
    %v3359 = vunpack.c.h.b16 %v3042
    %v3360 = vunpack.c.l.b16 %v3043
    %v3361 = vunpack.c.h.b16 %v3043
    %v3362 = vunpack.c.l.b16 %v3044
    %v3363 = vunpack.c.h.b16 %v3044
    %v3364 = vunpack.c.l.b16 %v3045
    %v3365 = vunpack.c.h.b16 %v3045
    %v3366 = vunpack.c.l.b16 %v3046
    %v3367 = vunpack.c.h.b16 %v3046
    %v3368 = vunpack.c.l.b16 %v3047
    %v3369 = vunpack.c.h.b16 %v3047
    %v3370 = vunpack.c.l.b16 %v3048
    %v3371 = vunpack.c.h.b16 %v3048
    %v3372 = vunpack.c.l.b16 %v3049
    %v3373 = vunpack.c.h.b16 %v3049
    %v3374 = vunpack.c.l.b16 %v3050
    %v3375 = vunpack.c.h.b16 %v3050
    %v3376 = vunpack.c.l.b16 %v3051
    %v3377 = vunpack.c.h.b16 %v3051
    %v3378 = vunpack.c.l.b16 %v3052
    %v3379 = vunpack.c.h.b16 %v3052
    %v3380 = vunpack.c.l.b16 %v3053
    %v3381 = vunpack.c.h.b16 %v3053
    %v3382 = vunpack.c.l.b16 %v3054
    %v3383 = vunpack.c.h.b16 %v3054
    %v3384 = vunpack.c.l.b16 %v3055
    %v3385 = vunpack.c.h.b16 %v3055
    %v3386 = vunpack.c.l.b16 %v3056
    %v3387 = vunpack.c.h.b16 %v3056
    %v3388 = vunpack.c.l.b16 %v3057
    %v3389 = vunpack.c.h.b16 %v3057
    %v3390 = vunpack.c.l.b16 %v3058
    %v3391 = vunpack.c.h.b16 %v3058
    %v3392 = vunpack.c.l.b16 %v3059
    %v3393 = vunpack.c.h.b16 %v3059
    %v3394 = vunpack.c.l.b16 %v3060
    %v3395 = vunpack.c.h.b16 %v3060
    %v3396 = vunpack.c.l.b16 %v3061
    %v3397 = vunpack.c.h.b16 %v3061
    %v3398 = vunpack.c.l.b16 %v3062
    %v3399 = vunpack.c.h.b16 %v3062
    %v3400 = vunpack.c.l.b16 %v3063
    %v3401 = vunpack.c.h.b16 %v3063
    %v3402 = vunpack.c.l.b16 %v3064
    %v3403 = vunpack.c.h.b16 %v3064
    %v3404 = vunpack.c.l.b16 %v3065
    %v3405 = vunpack.c.h.b16 %v3065
    %v3406 = vunpack.c.l.b16 %v3066
    %v3407 = vunpack.c.h.b16 %v3066
    %v3408 = vunpack.c.l.b16 %v3067
    %v3409 = vunpack.c.h.b16 %v3067
    %v3410 = vunpack.c.l.b16 %v3068
    %v3411 = vunpack.c.h.b16 %v3068
    %v3412 = vunpack.c.l.b16 %v3069
    %v3413 = vunpack.c.h.b16 %v3069
    %v3414 = vunpack.c.l.b16 %v3070
    %v3415 = vunpack.c.h.b16 %v3070
    %v3416 = vunpack.c.l.b16 %v3071
    %v3417 = vunpack.c.h.b16 %v3071
    %v3418 = vunpack.c.l.b16 %v3072
    %v3419 = vunpack.c.h.b16 %v3072
    %v3420 = vunpack.c.l.b16 %v3073
    %v3421 = vunpack.c.h.b16 %v3073
    %v3422 = vunpack.c.l.b16 %v3074
    %v3423 = vunpack.c.h.b16 %v3074
    %v3424 = vunpack.c.l.b16 %v3075
    %v3425 = vunpack.c.h.b16 %v3075
    %v3426 = vunpack.c.l.b16 %v3076
    %v3427 = vunpack.c.h.b16 %v3076
    %v3428 = vunpack.c.l.b16 %v3077
    %v3429 = vunpack.c.h.b16 %v3077
    %v3430 = vunpack.c.l.b16 %v3078
    %v3431 = vunpack.c.h.b16 %v3078
    %v3432 = vunpack.c.l.b16 %v3079
    %v3433 = vunpack.c.h.b16 %v3079
    %v3434 = vunpack.c.l.b16 %v3080
    %v3435 = vunpack.c.h.b16 %v3080
    %v3436 = vunpack.c.l.b16 %v3081
    %v3437 = vunpack.c.h.b16 %v3081
    %v3438 = vunpack.c.l.b16 %v3082
    %v3439 = vunpack.c.h.b16 %v3082
    %v3440 = vunpack.c.l.b16 %v3083
    %v3441 = vunpack.c.h.b16 %v3083
    %v3442 = vunpack.c.l.b16 %v3084
    %v3443 = vunpack.c.h.b16 %v3084
    %v3444 = vunpack.c.l.b16 %v3085
    %v3445 = vunpack.c.h.b16 %v3085
    %v3446 = vunpack.c.l.b16 %v3086
    %v3447 = vunpack.c.h.b16 %v3086
    %v3448 = vunpack.c.l.b16 %v3087
    %v3449 = vunpack.c.h.b16 %v3087
    %v3450 = vunpack.c.l.b16 %v3088
    %v3451 = vunpack.c.h.b16 %v3088
    %v3452 = vunpack.c.l.b16 %v3089
    %v3453 = vunpack.c.h.b16 %v3089
    %v3454 = vunpack.c.l.b16 %v3090
    %v3455 = vunpack.c.h.b16 %v3090
    %v3456 = vunpack.c.l.b16 %v3091
    %v3457 = vunpack.c.h.b16 %v3091
    %v3458 = vunpack.c.l.b16 %v3092
    %v3459 = vunpack.c.h.b16 %v3092
    %v3460 = vunpack.c.l.b16 %v3093
    %v3461 = vunpack.c.h.b16 %v3093
    %v3462 = vunpack.c.l.b16 %v3094
    %v3463 = vunpack.c.h.b16 %v3094
    %v3464 = vunpack.c.l.b16 %v3095
    %v3465 = vunpack.c.h.b16 %v3095
    %v3466 = vunpack.c.l.b16 %v3096
    %v3467 = vunpack.c.h.b16 %v3096
    %v3468 = vunpack.c.l.b16 %v3097
    %v3469 = vunpack.c.h.b16 %v3097
    %v3470 = vunpack.c.l.b16 %v3098
    %v3471 = vunpack.c.h.b16 %v3098
    %v3472 = vunpack.c.l.b16 %v3099
    %v3473 = vunpack.c.h.b16 %v3099
    %v3474 = vunpack.c.l.b16 %v3100
    %v3475 = vunpack.c.h.b16 %v3100
    %v3476 = vunpack.c.l.b16 %v3101
    %v3477 = vunpack.c.h.b16 %v3101
    %v3478 = vunpack.c.l.b16 %v3102
    %v3479 = vunpack.c.h.b16 %v3102
    %v3480 = vunpack.c.l.b16 %v3103
    %v3481 = vunpack.c.h.b16 %v3103
    %v3482 = vunpack.c.l.b16 %v3104
    %v3483 = vunpack.c.h.b16 %v3104
    %v3484 = vunpack.c.l.b16 %v3105
    %v3485 = vunpack.c.h.b16 %v3105
    %v3486 = vunpack.c.l.b16 %v3106
    %v3487 = vunpack.c.h.b16 %v3106
    %v3488 = vunpack.c.l.b16 %v3107
    %v3489 = vunpack.c.h.b16 %v3107
    %v3490 = vunpack.c.l.b16 %v3108
    %v3491 = vunpack.c.h.b16 %v3108
    %v3492 = vunpack.c.l.b16 %v3109
    %v3493 = vunpack.c.h.b16 %v3109
    %v3494 = vunpack.c.l.b16 %v3110
    %v3495 = vunpack.c.h.b16 %v3110
    %v3496 = vunpack.c.l.b16 %v3111
    %v3497 = vunpack.c.h.b16 %v3111
    %v3498 = vunpack.c.l.b16 %v3112
    %v3499 = vunpack.c.h.b16 %v3112
    %v3500 = vunpack.c.l.b16 %v3113
    %v3501 = vunpack.c.h.b16 %v3113
    %v3502 = vunpack.c.l.b16 %v3114
    %v3503 = vunpack.c.h.b16 %v3114
    %v3504 = vunpack.c.l.b16 %v3115
    %v3505 = vunpack.c.h.b16 %v3115
    %v3506 = vunpack.c.l.b16 %v3116
    %v3507 = vunpack.c.h.b16 %v3116
    %v3508 = vunpack.c.l.b16 %v3117
    %v3509 = vunpack.c.h.b16 %v3117
    %v3510 = vunpack.c.l.b16 %v3118
    %v3511 = vunpack.c.h.b16 %v3118
    %v3512 = vunpack.c.l.b16 %v3119
    %v3513 = vunpack.c.h.b16 %v3119
    %v3514 = vunpack.c.l.b16 %v3120
    %v3515 = vunpack.c.h.b16 %v3120
    %v3516 = vunpack.c.l.b16 %v3121
    %v3517 = vunpack.c.h.b16 %v3121
    %v3518 = vpack.c.b16 %v3264, %v3262
    %v3519 = vpack.c.b16 %v3265, %v3263
    %v3520 = vpack.c.b16 %v3268, %v3266
    %v3521 = vpack.c.b16 %v3269, %v3267
    %v3522 = vpack.c.b16 %v3272, %v3270
    %v3523 = vpack.c.b16 %v3273, %v3271
    %v3524 = vpack.c.b16 %v3276, %v3274
    %v3525 = vpack.c.b16 %v3277, %v3275
    %v3526 = vpack.c.b16 %v3280, %v3278
    %v3527 = vpack.c.b16 %v3281, %v3279
    %v3528 = vpack.c.b16 %v3284, %v3282
    %v3529 = vpack.c.b16 %v3285, %v3283
    %v3530 = vpack.c.b16 %v3288, %v3286
    %v3531 = vpack.c.b16 %v3289, %v3287
    %v3532 = vpack.c.b16 %v3292, %v3290
    %v3533 = vpack.c.b16 %v3293, %v3291
    %v3534 = vpack.c.b16 %v3296, %v3294
    %v3535 = vpack.c.b16 %v3297, %v3295
    %v3536 = vpack.c.b16 %v3300, %v3298
    %v3537 = vpack.c.b16 %v3301, %v3299
    %v3538 = vpack.c.b16 %v3304, %v3302
    %v3539 = vpack.c.b16 %v3305, %v3303
    %v3540 = vpack.c.b16 %v3308, %v3306
    %v3541 = vpack.c.b16 %v3309, %v3307
    %v3542 = vpack.c.b16 %v3312, %v3310
    %v3543 = vpack.c.b16 %v3313, %v3311
    %v3544 = vpack.c.b16 %v3316, %v3314
    %v3545 = vpack.c.b16 %v3317, %v3315
    %v3546 = vpack.c.b16 %v3320, %v3318
    %v3547 = vpack.c.b16 %v3321, %v3319
    %v3548 = vpack.c.b16 %v3324, %v3322
    %v3549 = vpack.c.b16 %v3325, %v3323
    %v3550 = vpack.c.b16 %v3328, %v3326
    %v3551 = vpack.c.b16 %v3329, %v3327
    %v3552 = vpack.c.b16 %v3332, %v3330
    %v3553 = vpack.c.b16 %v3333, %v3331
    %v3554 = vpack.c.b16 %v3336, %v3334
    %v3555 = vpack.c.b16 %v3337, %v3335
    %v3556 = vpack.c.b16 %v3340, %v3338
    %v3557 = vpack.c.b16 %v3341, %v3339
    %v3558 = vpack.c.b16 %v3344, %v3342
    %v3559 = vpack.c.b16 %v3345, %v3343
    %v3560 = vpack.c.b16 %v3348, %v3346
    %v3561 = vpack.c.b16 %v3349, %v3347
    %v3562 = vpack.c.b16 %v3352, %v3350
    %v3563 = vpack.c.b16 %v3353, %v3351
    %v3564 = vpack.c.b16 %v3356, %v3354
    %v3565 = vpack.c.b16 %v3357, %v3355
    %v3566 = vpack.c.b16 %v3360, %v3358
    %v3567 = vpack.c.b16 %v3361, %v3359
    %v3568 = vpack.c.b16 %v3364, %v3362
    %v3569 = vpack.c.b16 %v3365, %v3363
    %v3570 = vpack.c.b16 %v3368, %v3366
    %v3571 = vpack.c.b16 %v3369, %v3367
    %v3572 = vpack.c.b16 %v3372, %v3370
    %v3573 = vpack.c.b16 %v3373, %v3371
    %v3574 = vpack.c.b16 %v3376, %v3374
    %v3575 = vpack.c.b16 %v3377, %v3375
    %v3576 = vpack.c.b16 %v3380, %v3378
    %v3577 = vpack.c.b16 %v3381, %v3379
    %v3578 = vpack.c.b16 %v3384, %v3382
    %v3579 = vpack.c.b16 %v3385, %v3383
    %v3580 = vpack.c.b16 %v3388, %v3386
    %v3581 = vpack.c.b16 %v3389, %v3387
    %v3582 = vpack.c.b16 %v3392, %v3390
    %v3583 = vpack.c.b16 %v3393, %v3391
    %v3584 = vpack.c.b16 %v3396, %v3394
    %v3585 = vpack.c.b16 %v3397, %v3395
    %v3586 = vpack.c.b16 %v3400, %v3398
    %v3587 = vpack.c.b16 %v3401, %v3399
    %v3588 = vpack.c.b16 %v3404, %v3402
    %v3589 = vpack.c.b16 %v3405, %v3403
    %v3590 = vpack.c.b16 %v3408, %v3406
    %v3591 = vpack.c.b16 %v3409, %v3407
    %v3592 = vpack.c.b16 %v3412, %v3410
    %v3593 = vpack.c.b16 %v3413, %v3411
    %v3594 = vpack.c.b16 %v3416, %v3414
    %v3595 = vpack.c.b16 %v3417, %v3415
    %v3596 = vpack.c.b16 %v3420, %v3418
    %v3597 = vpack.c.b16 %v3421, %v3419
    %v3598 = vpack.c.b16 %v3424, %v3422
    %v3599 = vpack.c.b16 %v3425, %v3423
    %v3600 = vpack.c.b16 %v3428, %v3426
    %v3601 = vpack.c.b16 %v3429, %v3427
    %v3602 = vpack.c.b16 %v3432, %v3430
    %v3603 = vpack.c.b16 %v3433, %v3431
    %v3604 = vpack.c.b16 %v3436, %v3434
    %v3605 = vpack.c.b16 %v3437, %v3435
    %v3606 = vpack.c.b16 %v3440, %v3438
    %v3607 = vpack.c.b16 %v3441, %v3439
    %v3608 = vpack.c.b16 %v3444, %v3442
    %v3609 = vpack.c.b16 %v3445, %v3443
    %v3610 = vpack.c.b16 %v3448, %v3446
    %v3611 = vpack.c.b16 %v3449, %v3447
    %v3612 = vpack.c.b16 %v3452, %v3450
    %v3613 = vpack.c.b16 %v3453, %v3451
    %v3614 = vpack.c.b16 %v3456, %v3454
    %v3615 = vpack.c.b16 %v3457, %v3455
    %v3616 = vpack.c.b16 %v3460, %v3458
    %v3617 = vpack.c.b16 %v3461, %v3459
    %v3618 = vpack.c.b16 %v3464, %v3462
    %v3619 = vpack.c.b16 %v3465, %v3463
    %v3620 = vpack.c.b16 %v3468, %v3466
    %v3621 = vpack.c.b16 %v3469, %v3467
    %v3622 = vpack.c.b16 %v3472, %v3470
    %v3623 = vpack.c.b16 %v3473, %v3471
    %v3624 = vpack.c.b16 %v3476, %v3474
    %v3625 = vpack.c.b16 %v3477, %v3475
    %v3626 = vpack.c.b16 %v3480, %v3478
    %v3627 = vpack.c.b16 %v3481, %v3479
    %v3628 = vpack.c.b16 %v3484, %v3482
    %v3629 = vpack.c.b16 %v3485, %v3483
    %v3630 = vpack.c.b16 %v3488, %v3486
    %v3631 = vpack.c.b16 %v3489, %v3487
    %v3632 = vpack.c.b16 %v3492, %v3490
    %v3633 = vpack.c.b16 %v3493, %v3491
    %v3634 = vpack.c.b16 %v3496, %v3494
    %v3635 = vpack.c.b16 %v3497, %v3495
    %v3636 = vpack.c.b16 %v3500, %v3498
    %v3637 = vpack.c.b16 %v3501, %v3499
    %v3638 = vpack.c.b16 %v3504, %v3502
    %v3639 = vpack.c.b16 %v3505, %v3503
    %v3640 = vpack.c.b16 %v3508, %v3506
    %v3641 = vpack.c.b16 %v3509, %v3507
    %v3642 = vpack.c.b16 %v3512, %v3510
    %v3643 = vpack.c.b16 %v3513, %v3511
    %v3644 = vpack.c.b16 %v3516, %v3514
    %v3645 = vpack.c.b16 %v3517, %v3515
    %3774 = vmatprep.subr.bf16.mxu0 %v3533
    %3775 = vmatpush1.bf16.msra.mxu0 %v3532
    %3776 = vmatprep.subr.bf16.mxu0 %v3531
    %3777 = vmatpush1.bf16.msra.mxu0 %v3530
    %3778 = vmatprep.subr.bf16.mxu0 %v3529
    %3779 = vmatpush1.bf16.msra.mxu0 %v3528
    %3780 = vmatprep.subr.bf16.mxu0 %v3527
    %3781 = vmatpush1.bf16.msra.mxu0 %v3526
    %3782 = vmatprep.subr.bf16.mxu0 %v3525
    %3783 = vmatpush1.bf16.msra.mxu0 %v3524
    %3784 = vmatprep.subr.bf16.mxu0 %v3523
    %3785 = vmatpush1.bf16.msra.mxu0 %v3522
    %3786 = vmatprep.subr.bf16.mxu0 %v3521
    %3787 = vmatpush1.bf16.msra.mxu0 %v3520
    %3788 = vmatprep.subr.bf16.mxu0 %v3519
    %3789 = vmatpush1.bf16.msra.mxu0 %v3518
    %3790 = vmatprep.subr.bf16.mxu0 %v3549
    %3791 = vmatpush2.bf16.msra.mxu0 %v3548
    %3792 = vmatprep.subr.bf16.mxu0 %v3547
    %3793 = vmatpush2.bf16.msra.mxu0 %v3546
    %3794 = vmatprep.subr.bf16.mxu0 %v3545
    %3795 = vmatpush2.bf16.msra.mxu0 %v3544
    %3796 = vmatprep.subr.bf16.mxu0 %v3543
    %3797 = vmatpush2.bf16.msra.mxu0 %v3542
    %3798 = vmatprep.subr.bf16.mxu0 %v3541
    %3799 = vmatpush2.bf16.msra.mxu0 %v3540
    %3800 = vmatprep.subr.bf16.mxu0 %v3539
    %3801 = vmatpush2.bf16.msra.mxu0 %v3538
    %3802 = vmatprep.subr.bf16.mxu0 %v3537
    %3803 = vmatpush2.bf16.msra.mxu0 %v3536
    %3804 = vmatprep.subr.bf16.mxu0 %v3535
    %3805 = vmatpush2.bf16.msra.mxu0 %v3534
    %3806 = vmatprep.mubr.bf16.mxu0 %v2987
    %3807 = vmatmul.mubr.bf16.gmra.mxu0 %v2986
    %v3808 = vpop.f32.mrf.mxu0
    %v3809 = vadd.f32 %v3127, %v3808
    %v3810 = vpop.f32.mrf.mxu0
    %v3811 = vadd.f32 %v3131, %v3810
    %v3812 = vpop.f32.mrf.mxu0
    %v3813 = vadd.f32 %v3127, %v3812
    %v3814 = vpop.f32.mrf.mxu0
    %v3815 = vadd.f32 %v3131, %v3814
    %3816 = vdwg.mxu0
    %3817 = vmatprep.subr.bf16.mxu0 %v3565
    %3818 = vmatpush1.bf16.msra.mxu0 %v3564
    %3819 = vmatprep.subr.bf16.mxu0 %v3563
    %3820 = vmatpush1.bf16.msra.mxu0 %v3562
    %3821 = vmatprep.subr.bf16.mxu0 %v3561
    %3822 = vmatpush1.bf16.msra.mxu0 %v3560
    %3823 = vmatprep.subr.bf16.mxu0 %v3559
    %3824 = vmatpush1.bf16.msra.mxu0 %v3558
    %3825 = vmatprep.subr.bf16.mxu0 %v3557
    %3826 = vmatpush1.bf16.msra.mxu0 %v3556
    %3827 = vmatprep.subr.bf16.mxu0 %v3555
    %3828 = vmatpush1.bf16.msra.mxu0 %v3554
    %3829 = vmatprep.subr.bf16.mxu0 %v3553
    %3830 = vmatpush1.bf16.msra.mxu0 %v3552
    %3831 = vmatprep.subr.bf16.mxu0 %v3551
    %3832 = vmatpush1.bf16.msra.mxu0 %v3550
    %3833 = vmatprep.subr.bf16.mxu0 %v3581
    %3834 = vmatpush2.bf16.msra.mxu0 %v3580
    %3835 = vmatprep.subr.bf16.mxu0 %v3579
    %3836 = vmatpush2.bf16.msra.mxu0 %v3578
    %3837 = vmatprep.subr.bf16.mxu0 %v3577
    %3838 = vmatpush2.bf16.msra.mxu0 %v3576
    %3839 = vmatprep.subr.bf16.mxu0 %v3575
    %3840 = vmatpush2.bf16.msra.mxu0 %v3574
    %3841 = vmatprep.subr.bf16.mxu0 %v3573
    %3842 = vmatpush2.bf16.msra.mxu0 %v3572
    %3843 = vmatprep.subr.bf16.mxu0 %v3571
    %3844 = vmatpush2.bf16.msra.mxu0 %v3570
    %3845 = vmatprep.subr.bf16.mxu0 %v3569
    %3846 = vmatpush2.bf16.msra.mxu0 %v3568
    %3847 = vmatprep.subr.bf16.mxu0 %v3567
    %3848 = vmatpush2.bf16.msra.mxu0 %v3566
    %3849 = vmatprep.mubr.bf16.mxu0 %v2989
    %3850 = vmatmul.mubr.bf16.gmra.mxu0 %v2988
    %v3851 = vpop.f32.mrf.mxu0
    %v3852 = vadd.f32 %v3809, %v3851
    %v3853 = vpop.f32.mrf.mxu0
    %v3854 = vadd.f32 %v3811, %v3853
    %v3855 = vpop.f32.mrf.mxu0
    %v3856 = vadd.f32 %v3813, %v3855
    %v3857 = vpop.f32.mrf.mxu0
    %v3858 = vadd.f32 %v3815, %v3857
    %3859 = vdwg.mxu0
    %3860 = vmatprep.subr.bf16.mxu0 %v3597
    %3861 = vmatpush1.bf16.msra.mxu0 %v3596
    %3862 = vmatprep.subr.bf16.mxu0 %v3595
    %3863 = vmatpush1.bf16.msra.mxu0 %v3594
    %3864 = vmatprep.subr.bf16.mxu0 %v3593
    %3865 = vmatpush1.bf16.msra.mxu0 %v3592
    %3866 = vmatprep.subr.bf16.mxu0 %v3591
    %3867 = vmatpush1.bf16.msra.mxu0 %v3590
    %3868 = vmatprep.subr.bf16.mxu0 %v3589
    %3869 = vmatpush1.bf16.msra.mxu0 %v3588
    %3870 = vmatprep.subr.bf16.mxu0 %v3587
    %3871 = vmatpush1.bf16.msra.mxu0 %v3586
    %3872 = vmatprep.subr.bf16.mxu0 %v3585
    %3873 = vmatpush1.bf16.msra.mxu0 %v3584
    %3874 = vmatprep.subr.bf16.mxu0 %v3583
    %3875 = vmatpush1.bf16.msra.mxu0 %v3582
    %3876 = vmatprep.subr.bf16.mxu0 %v3613
    %3877 = vmatpush2.bf16.msra.mxu0 %v3612
    %3878 = vmatprep.subr.bf16.mxu0 %v3611
    %3879 = vmatpush2.bf16.msra.mxu0 %v3610
    %3880 = vmatprep.subr.bf16.mxu0 %v3609
    %3881 = vmatpush2.bf16.msra.mxu0 %v3608
    %3882 = vmatprep.subr.bf16.mxu0 %v3607
    %3883 = vmatpush2.bf16.msra.mxu0 %v3606
    %3884 = vmatprep.subr.bf16.mxu0 %v3605
    %3885 = vmatpush2.bf16.msra.mxu0 %v3604
    %3886 = vmatprep.subr.bf16.mxu0 %v3603
    %3887 = vmatpush2.bf16.msra.mxu0 %v3602
    %3888 = vmatprep.subr.bf16.mxu0 %v3601
    %3889 = vmatpush2.bf16.msra.mxu0 %v3600
    %3890 = vmatprep.subr.bf16.mxu0 %v3599
    %3891 = vmatpush2.bf16.msra.mxu0 %v3598
    %3892 = vmatprep.mubr.bf16.mxu0 %v2991
    %3893 = vmatmul.mubr.bf16.gmra.mxu0 %v2990
    %v3894 = vpop.f32.mrf.mxu0
    %v3895 = vadd.f32 %v3852, %v3894
    %v3896 = vpop.f32.mrf.mxu0
    %v3897 = vadd.f32 %v3854, %v3896
    %v3898 = vpop.f32.mrf.mxu0
    %v3899 = vadd.f32 %v3856, %v3898
    %v3900 = vpop.f32.mrf.mxu0
    %v3901 = vadd.f32 %v3858, %v3900
    %3902 = vdwg.mxu0
    %3903 = vmatprep.subr.bf16.mxu0 %v3629
    %3904 = vmatpush1.bf16.msra.mxu0 %v3628
    %3905 = vmatprep.subr.bf16.mxu0 %v3627
    %3906 = vmatpush1.bf16.msra.mxu0 %v3626
    %3907 = vmatprep.subr.bf16.mxu0 %v3625
    %3908 = vmatpush1.bf16.msra.mxu0 %v3624
    %3909 = vmatprep.subr.bf16.mxu0 %v3623
    %3910 = vmatpush1.bf16.msra.mxu0 %v3622
    %3911 = vmatprep.subr.bf16.mxu0 %v3621
    %3912 = vmatpush1.bf16.msra.mxu0 %v3620
    %3913 = vmatprep.subr.bf16.mxu0 %v3619
    %3914 = vmatpush1.bf16.msra.mxu0 %v3618
    %3915 = vmatprep.subr.bf16.mxu0 %v3617
    %3916 = vmatpush1.bf16.msra.mxu0 %v3616
    %3917 = vmatprep.subr.bf16.mxu0 %v3615
    %3918 = vmatpush1.bf16.msra.mxu0 %v3614
    %3919 = vmatprep.subr.bf16.mxu0 %v3645
    %3920 = vmatpush2.bf16.msra.mxu0 %v3644
    %3921 = vmatprep.subr.bf16.mxu0 %v3643
    %3922 = vmatpush2.bf16.msra.mxu0 %v3642
    %3923 = vmatprep.subr.bf16.mxu0 %v3641
    %3924 = vmatpush2.bf16.msra.mxu0 %v3640
    %3925 = vmatprep.subr.bf16.mxu0 %v3639
    %3926 = vmatpush2.bf16.msra.mxu0 %v3638
    %3927 = vmatprep.subr.bf16.mxu0 %v3637
    %3928 = vmatpush2.bf16.msra.mxu0 %v3636
    %3929 = vmatprep.subr.bf16.mxu0 %v3635
    %3930 = vmatpush2.bf16.msra.mxu0 %v3634
    %3931 = vmatprep.subr.bf16.mxu0 %v3633
    %3932 = vmatpush2.bf16.msra.mxu0 %v3632
    %3933 = vmatprep.subr.bf16.mxu0 %v3631
    %3934 = vmatpush2.bf16.msra.mxu0 %v3630
    %3935 = vmatprep.mubr.bf16.mxu0 %v2993
    %3936 = vmatmul.mubr.bf16.gmra.mxu0 %v2992
    %v3937 = vpop.f32.mrf.mxu0
    %v3938 = vadd.f32 %v3895, %v3937
    %v3939 = vpop.f32.mrf.mxu0
    %v3940 = vadd.f32 %v3897, %v3939
    %v3941 = vpop.f32.mrf.mxu0
    %v3942 = vadd.f32 %v3899, %v3941
    %v3943 = vpop.f32.mrf.mxu0
    %v3944 = vadd.f32 %v3901, %v3943
    %3945 = vdwg.mxu0
    %v3946 = vadd.f32 %v1854, %v3938
    %v3947 = vadd.f32 %v1855, %v3940
    %v3948 = vadd.f32 %v1856, %v3942
    %v3949 = vadd.f32 %v1857, %v3944
    %v3950 = vld [vmem:[%s14] sm:$0x3]
    %v3951 = vld [vmem:[#allocation22] sm:$0x3]
    %v3952 = vadd.f32 %v3946, %v3947
    %3953 = vadd.xlane.f32.xlu0 %v3952
    %v3954 = vpop.xlane.xlu0 %3953
    %v3955 = vadd.f32 %v3948, %v3949
    %3956 = vadd.xlane.f32.xlu0 %v3955
    %v3957 = vpop.xlane.xlu0 %3956
    %v3958 = vmul.f32 %v3954, %v278
    %v3959 = vmul.f32 %v3957, %v278
    %v3960 = vsub.f32 %v3946, %v3958
    %v3961 = vsub.f32 %v3947, %v3958
    %v3962 = vsub.f32 %v3948, %v3959
    %v3963 = vsub.f32 %v3949, %v3959
    %v3964 = vmul.f32 %v3960, %v3960
    %v3965 = vmul.f32 %v3961, %v3961
    %v3966 = vmul.f32 %v3962, %v3962
    %v3967 = vmul.f32 %v3963, %v3963
    %v3968 = vadd.f32 %v3964, %v3965
    %3969 = vadd.xlane.f32.xlu0 %v3968
    %v3970 = vpop.xlane.xlu0 %3969
    %v3971 = vadd.f32 %v3966, %v3967
    %3972 = vadd.xlane.f32.xlu0 %v3971
    %v3973 = vpop.xlane.xlu0 %3972
    %v3974 = vmul.f32 %v3970, %v278
    %v3975 = vmul.f32 %v3973, %v278
    %v3976 = vadd.f32 %v3974, 1e-12
    %v3977 = vadd.f32 %v3975, 1e-12
    %v3978 = vrsqrt.pop %v3976
    %v3979 = vrsqrt.pop %v3977
    %v3980 = vmul.f32 %v3960, %v3978
    %v3981 = vmul.f32 %v3961, %v3978
    %v3982 = vmul.f32 %v3962, %v3979
    %v3983 = vmul.f32 %v3963, %v3979
    %v3985 = vlaneseq
    %v3986 = vshrl.u32 %v3985, 7
    %v3987 = vsub.s32 0, %v3986
    %v3988 = vrot.slane %v3950, %v3987
    %v3989 = vlaneseq
    %v3990 = vshrl.u32 %v3989, 7
    %v3991 = vsub.s32 1, %v3990
    %v3992 = vrot.slane %v3950, %v3991
    %v3995 = vmul.f32 %v3980, %v3988
    %v3996 = vmul.f32 %v3981, %v3992
    %v3997 = vmul.f32 %v3982, %v3988
    %v3998 = vmul.f32 %v3983, %v3992
    %v4000 = vlaneseq
    %v4001 = vshrl.u32 %v4000, 7
    %v4002 = vsub.s32 0, %v4001
    %v4003 = vrot.slane %v3951, %v4002
    %v4004 = vlaneseq
    %v4005 = vshrl.u32 %v4004, 7
    %v4006 = vsub.s32 1, %v4005
    %v4007 = vrot.slane %v3951, %v4006
    %v4010 = vadd.f32 %v3995, %v4003
    %v4011 = vadd.f32 %v3996, %v4007
    %v4012 = vadd.f32 %v3997, %v4003
    %v4013 = vadd.f32 %v3998, %v4007
    %v4014 = vpack.c.bf16 %v4012, %v4010
    %v4015 = vpack.c.bf16 %v4013, %v4011
    %s4016 = scalar_lea.vmem [#allocation10], 768
    %v4017 = vld [vmem:[%s4016] sm:$0xff]
    %v4018 = vld [vmem:[%s4016 + $0x8] sm:$0xff]
    %v4019 = vld [vmem:[%s4016 + $0x10] sm:$0xff]
    %v4020 = vld [vmem:[%s4016 + $0x18] sm:$0xff]
    %v4021 = vld [vmem:[%s4016 + $0x20] sm:$0xff]
    %v4022 = vld [vmem:[%s4016 + $0x28] sm:$0xff]
    %v4023 = vld [vmem:[%s4016 + $0x30] sm:$0xff]
    %v4024 = vld [vmem:[%s4016 + $0x38] sm:$0xff]
    %v4025 = vld [vmem:[%s4016 + $0x40] sm:$0xff]
    %v4026 = vld [vmem:[%s4016 + $0x48] sm:$0xff]
    %v4027 = vld [vmem:[%s4016 + $0x50] sm:$0xff]
    %v4028 = vld [vmem:[%s4016 + $0x58] sm:$0xff]
    %v4029 = vld [vmem:[%s4016 + $0x60] sm:$0xff]
    %v4030 = vld [vmem:[%s4016 + $0x68] sm:$0xff]
    %v4031 = vld [vmem:[%s4016 + $0x70] sm:$0xff]
    %v4032 = vld [vmem:[%s4016 + $0x78] sm:$0xff]
    %v4033 = vld [vmem:[%s4016 + $0x80] sm:$0xff]
    %v4034 = vld [vmem:[%s4016 + $0x88] sm:$0xff]
    %v4035 = vld [vmem:[%s4016 + $0x90] sm:$0xff]
    %v4036 = vld [vmem:[%s4016 + $0x98] sm:$0xff]
    %v4037 = vld [vmem:[%s4016 + $0xa0] sm:$0xff]
    %v4038 = vld [vmem:[%s4016 + $0xa8] sm:$0xff]
    %v4039 = vld [vmem:[%s4016 + $0xb0] sm:$0xff]
    %v4040 = vld [vmem:[%s4016 + $0xb8] sm:$0xff]
    %v4041 = vld [vmem:[%s4016 + $0xc0] sm:$0xff]
    %v4042 = vld [vmem:[%s4016 + $0xc8] sm:$0xff]
    %v4043 = vld [vmem:[%s4016 + $0xd0] sm:$0xff]
    %v4044 = vld [vmem:[%s4016 + $0xd8] sm:$0xff]
    %v4045 = vld [vmem:[%s4016 + $0xe0] sm:$0xff]
    %v4046 = vld [vmem:[%s4016 + $0xe8] sm:$0xff]
    %v4047 = vld [vmem:[%s4016 + $0xf0] sm:$0xff]
    %v4048 = vld [vmem:[%s4016 + $0xf8] sm:$0xff]
    %v4049 = vld [vmem:[%s4016 + $0x100] sm:$0xff]
    %v4050 = vld [vmem:[%s4016 + $0x108] sm:$0xff]
    %v4051 = vld [vmem:[%s4016 + $0x110] sm:$0xff]
    %v4052 = vld [vmem:[%s4016 + $0x118] sm:$0xff]
    %v4053 = vld [vmem:[%s4016 + $0x120] sm:$0xff]
    %v4054 = vld [vmem:[%s4016 + $0x128] sm:$0xff]
    %v4055 = vld [vmem:[%s4016 + $0x130] sm:$0xff]
    %v4056 = vld [vmem:[%s4016 + $0x138] sm:$0xff]
    %v4057 = vld [vmem:[%s4016 + $0x140] sm:$0xff]
    %v4058 = vld [vmem:[%s4016 + $0x148] sm:$0xff]
    %v4059 = vld [vmem:[%s4016 + $0x150] sm:$0xff]
    %v4060 = vld [vmem:[%s4016 + $0x158] sm:$0xff]
    %v4061 = vld [vmem:[%s4016 + $0x160] sm:$0xff]
    %v4062 = vld [vmem:[%s4016 + $0x168] sm:$0xff]
    %v4063 = vld [vmem:[%s4016 + $0x170] sm:$0xff]
    %v4064 = vld [vmem:[%s4016 + $0x178] sm:$0xff]
    %v4065 = vld [vmem:[%s4016 + $0x180] sm:$0xff]
    %v4066 = vld [vmem:[%s4016 + $0x188] sm:$0xff]
    %v4067 = vld [vmem:[%s4016 + $0x190] sm:$0xff]
    %v4068 = vld [vmem:[%s4016 + $0x198] sm:$0xff]
    %v4069 = vld [vmem:[%s4016 + $0x1a0] sm:$0xff]
    %v4070 = vld [vmem:[%s4016 + $0x1a8] sm:$0xff]
    %v4071 = vld [vmem:[%s4016 + $0x1b0] sm:$0xff]
    %v4072 = vld [vmem:[%s4016 + $0x1b8] sm:$0xff]
    %v4073 = vld [vmem:[%s4016 + $0x1c0] sm:$0xff]
    %v4074 = vld [vmem:[%s4016 + $0x1c8] sm:$0xff]
    %v4075 = vld [vmem:[%s4016 + $0x1d0] sm:$0xff]
    %v4076 = vld [vmem:[%s4016 + $0x1d8] sm:$0xff]
    %v4077 = vld [vmem:[%s4016 + $0x1e0] sm:$0xff]
    %v4078 = vld [vmem:[%s4016 + $0x1e8] sm:$0xff]
    %v4079 = vld [vmem:[%s4016 + $0x1f0] sm:$0xff]
    %v4080 = vld [vmem:[%s4016 + $0x1f8] sm:$0xff]
    %v4081 = vld [vmem:[%s4016 + $0x200] sm:$0xff]
    %v4082 = vld [vmem:[%s4016 + $0x208] sm:$0xff]
    %v4083 = vld [vmem:[%s4016 + $0x210] sm:$0xff]
    %v4084 = vld [vmem:[%s4016 + $0x218] sm:$0xff]
    %v4085 = vld [vmem:[%s4016 + $0x220] sm:$0xff]
    %v4086 = vld [vmem:[%s4016 + $0x228] sm:$0xff]
    %v4087 = vld [vmem:[%s4016 + $0x230] sm:$0xff]
    %v4088 = vld [vmem:[%s4016 + $0x238] sm:$0xff]
    %v4089 = vld [vmem:[%s4016 + $0x240] sm:$0xff]
    %v4090 = vld [vmem:[%s4016 + $0x248] sm:$0xff]
    %v4091 = vld [vmem:[%s4016 + $0x250] sm:$0xff]
    %v4092 = vld [vmem:[%s4016 + $0x258] sm:$0xff]
    %v4093 = vld [vmem:[%s4016 + $0x260] sm:$0xff]
    %v4094 = vld [vmem:[%s4016 + $0x268] sm:$0xff]
    %v4095 = vld [vmem:[%s4016 + $0x270] sm:$0xff]
    %v4096 = vld [vmem:[%s4016 + $0x278] sm:$0xff]
    %v4097 = vld [vmem:[%s4016 + $0x280] sm:$0xff]
    %v4098 = vld [vmem:[%s4016 + $0x288] sm:$0xff]
    %v4099 = vld [vmem:[%s4016 + $0x290] sm:$0xff]
    %v4100 = vld [vmem:[%s4016 + $0x298] sm:$0xff]
    %v4101 = vld [vmem:[%s4016 + $0x2a0] sm:$0xff]
    %v4102 = vld [vmem:[%s4016 + $0x2a8] sm:$0xff]
    %v4103 = vld [vmem:[%s4016 + $0x2b0] sm:$0xff]
    %v4104 = vld [vmem:[%s4016 + $0x2b8] sm:$0xff]
    %v4105 = vld [vmem:[%s4016 + $0x2c0] sm:$0xff]
    %v4106 = vld [vmem:[%s4016 + $0x2c8] sm:$0xff]
    %v4107 = vld [vmem:[%s4016 + $0x2d0] sm:$0xff]
    %v4108 = vld [vmem:[%s4016 + $0x2d8] sm:$0xff]
    %v4109 = vld [vmem:[%s4016 + $0x2e0] sm:$0xff]
    %v4110 = vld [vmem:[%s4016 + $0x2e8] sm:$0xff]
    %v4111 = vld [vmem:[%s4016 + $0x2f0] sm:$0xff]
    %v4112 = vld [vmem:[%s4016 + $0x2f8] sm:$0xff]
    %s4113 = scalar_lea.vmem [#allocation11], 6
    %v4114 = vld [vmem:[%s4113] sm:$0x3f]
    %v4116 = vlaneseq
    %v4117 = vshrl.u32 %v4116, 7
    %v4118 = vsub.s32 0, %v4117
    %v4119 = vrot.slane %v4114, %v4118
    %v4120 = vlaneseq
    %v4121 = vshrl.u32 %v4120, 7
    %v4122 = vsub.s32 1, %v4121
    %v4123 = vrot.slane %v4114, %v4122
    %v4124 = vlaneseq
    %v4125 = vshrl.u32 %v4124, 7
    %v4126 = vsub.s32 2, %v4125
    %v4127 = vrot.slane %v4114, %v4126
    %v4128 = vlaneseq
    %v4129 = vshrl.u32 %v4128, 7
    %v4130 = vsub.s32 3, %v4129
    %v4131 = vrot.slane %v4114, %v4130
    %v4132 = vlaneseq
    %v4133 = vshrl.u32 %v4132, 7
    %v4134 = vsub.s32 4, %v4133
    %v4135 = vrot.slane %v4114, %v4134
    %v4136 = vlaneseq
    %v4137 = vshrl.u32 %v4136, 7
    %v4138 = vsub.s32 5, %v4137
    %v4139 = vrot.slane %v4114, %v4138
    %v4242 = vunpack.c.l.b16 %v4017
    %v4243 = vunpack.c.h.b16 %v4017
    %v4244 = vunpack.c.l.b16 %v4018
    %v4245 = vunpack.c.h.b16 %v4018
    %v4246 = vunpack.c.l.b16 %v4019
    %v4247 = vunpack.c.h.b16 %v4019
    %v4248 = vunpack.c.l.b16 %v4020
    %v4249 = vunpack.c.h.b16 %v4020
    %v4250 = vunpack.c.l.b16 %v4021
    %v4251 = vunpack.c.h.b16 %v4021
    %v4252 = vunpack.c.l.b16 %v4022
    %v4253 = vunpack.c.h.b16 %v4022
    %v4254 = vunpack.c.l.b16 %v4023
    %v4255 = vunpack.c.h.b16 %v4023
    %v4256 = vunpack.c.l.b16 %v4024
    %v4257 = vunpack.c.h.b16 %v4024
    %v4258 = vunpack.c.l.b16 %v4025
    %v4259 = vunpack.c.h.b16 %v4025
    %v4260 = vunpack.c.l.b16 %v4026
    %v4261 = vunpack.c.h.b16 %v4026
    %v4262 = vunpack.c.l.b16 %v4027
    %v4263 = vunpack.c.h.b16 %v4027
    %v4264 = vunpack.c.l.b16 %v4028
    %v4265 = vunpack.c.h.b16 %v4028
    %v4266 = vunpack.c.l.b16 %v4029
    %v4267 = vunpack.c.h.b16 %v4029
    %v4268 = vunpack.c.l.b16 %v4030
    %v4269 = vunpack.c.h.b16 %v4030
    %v4270 = vunpack.c.l.b16 %v4031
    %v4271 = vunpack.c.h.b16 %v4031
    %v4272 = vunpack.c.l.b16 %v4032
    %v4273 = vunpack.c.h.b16 %v4032
    %v4274 = vunpack.c.l.b16 %v4033
    %v4275 = vunpack.c.h.b16 %v4033
    %v4276 = vunpack.c.l.b16 %v4034
    %v4277 = vunpack.c.h.b16 %v4034
    %v4278 = vunpack.c.l.b16 %v4035
    %v4279 = vunpack.c.h.b16 %v4035
    %v4280 = vunpack.c.l.b16 %v4036
    %v4281 = vunpack.c.h.b16 %v4036
    %v4282 = vunpack.c.l.b16 %v4037
    %v4283 = vunpack.c.h.b16 %v4037
    %v4284 = vunpack.c.l.b16 %v4038
    %v4285 = vunpack.c.h.b16 %v4038
    %v4286 = vunpack.c.l.b16 %v4039
    %v4287 = vunpack.c.h.b16 %v4039
    %v4288 = vunpack.c.l.b16 %v4040
    %v4289 = vunpack.c.h.b16 %v4040
    %v4290 = vunpack.c.l.b16 %v4041
    %v4291 = vunpack.c.h.b16 %v4041
    %v4292 = vunpack.c.l.b16 %v4042
    %v4293 = vunpack.c.h.b16 %v4042
    %v4294 = vunpack.c.l.b16 %v4043
    %v4295 = vunpack.c.h.b16 %v4043
    %v4296 = vunpack.c.l.b16 %v4044
    %v4297 = vunpack.c.h.b16 %v4044
    %v4298 = vunpack.c.l.b16 %v4045
    %v4299 = vunpack.c.h.b16 %v4045
    %v4300 = vunpack.c.l.b16 %v4046
    %v4301 = vunpack.c.h.b16 %v4046
    %v4302 = vunpack.c.l.b16 %v4047
    %v4303 = vunpack.c.h.b16 %v4047
    %v4304 = vunpack.c.l.b16 %v4048
    %v4305 = vunpack.c.h.b16 %v4048
    %v4306 = vunpack.c.l.b16 %v4049
    %v4307 = vunpack.c.h.b16 %v4049
    %v4308 = vunpack.c.l.b16 %v4050
    %v4309 = vunpack.c.h.b16 %v4050
    %v4310 = vunpack.c.l.b16 %v4051
    %v4311 = vunpack.c.h.b16 %v4051
    %v4312 = vunpack.c.l.b16 %v4052
    %v4313 = vunpack.c.h.b16 %v4052
    %v4314 = vunpack.c.l.b16 %v4053
    %v4315 = vunpack.c.h.b16 %v4053
    %v4316 = vunpack.c.l.b16 %v4054
    %v4317 = vunpack.c.h.b16 %v4054
    %v4318 = vunpack.c.l.b16 %v4055
    %v4319 = vunpack.c.h.b16 %v4055
    %v4320 = vunpack.c.l.b16 %v4056
    %v4321 = vunpack.c.h.b16 %v4056
    %v4322 = vunpack.c.l.b16 %v4057
    %v4323 = vunpack.c.h.b16 %v4057
    %v4324 = vunpack.c.l.b16 %v4058
    %v4325 = vunpack.c.h.b16 %v4058
    %v4326 = vunpack.c.l.b16 %v4059
    %v4327 = vunpack.c.h.b16 %v4059
    %v4328 = vunpack.c.l.b16 %v4060
    %v4329 = vunpack.c.h.b16 %v4060
    %v4330 = vunpack.c.l.b16 %v4061
    %v4331 = vunpack.c.h.b16 %v4061
    %v4332 = vunpack.c.l.b16 %v4062
    %v4333 = vunpack.c.h.b16 %v4062
    %v4334 = vunpack.c.l.b16 %v4063
    %v4335 = vunpack.c.h.b16 %v4063
    %v4336 = vunpack.c.l.b16 %v4064
    %v4337 = vunpack.c.h.b16 %v4064
    %v4338 = vunpack.c.l.b16 %v4065
    %v4339 = vunpack.c.h.b16 %v4065
    %v4340 = vunpack.c.l.b16 %v4066
    %v4341 = vunpack.c.h.b16 %v4066
    %v4342 = vunpack.c.l.b16 %v4067
    %v4343 = vunpack.c.h.b16 %v4067
    %v4344 = vunpack.c.l.b16 %v4068
    %v4345 = vunpack.c.h.b16 %v4068
    %v4346 = vunpack.c.l.b16 %v4069
    %v4347 = vunpack.c.h.b16 %v4069
    %v4348 = vunpack.c.l.b16 %v4070
    %v4349 = vunpack.c.h.b16 %v4070
    %v4350 = vunpack.c.l.b16 %v4071
    %v4351 = vunpack.c.h.b16 %v4071
    %v4352 = vunpack.c.l.b16 %v4072
    %v4353 = vunpack.c.h.b16 %v4072
    %v4354 = vunpack.c.l.b16 %v4073
    %v4355 = vunpack.c.h.b16 %v4073
    %v4356 = vunpack.c.l.b16 %v4074
    %v4357 = vunpack.c.h.b16 %v4074
    %v4358 = vunpack.c.l.b16 %v4075
    %v4359 = vunpack.c.h.b16 %v4075
    %v4360 = vunpack.c.l.b16 %v4076
    %v4361 = vunpack.c.h.b16 %v4076
    %v4362 = vunpack.c.l.b16 %v4077
    %v4363 = vunpack.c.h.b16 %v4077
    %v4364 = vunpack.c.l.b16 %v4078
    %v4365 = vunpack.c.h.b16 %v4078
    %v4366 = vunpack.c.l.b16 %v4079
    %v4367 = vunpack.c.h.b16 %v4079
    %v4368 = vunpack.c.l.b16 %v4080
    %v4369 = vunpack.c.h.b16 %v4080
    %v4370 = vunpack.c.l.b16 %v4081
    %v4371 = vunpack.c.h.b16 %v4081
    %v4372 = vunpack.c.l.b16 %v4082
    %v4373 = vunpack.c.h.b16 %v4082
    %v4374 = vunpack.c.l.b16 %v4083
    %v4375 = vunpack.c.h.b16 %v4083
    %v4376 = vunpack.c.l.b16 %v4084
    %v4377 = vunpack.c.h.b16 %v4084
    %v4378 = vunpack.c.l.b16 %v4085
    %v4379 = vunpack.c.h.b16 %v4085
    %v4380 = vunpack.c.l.b16 %v4086
    %v4381 = vunpack.c.h.b16 %v4086
    %v4382 = vunpack.c.l.b16 %v4087
    %v4383 = vunpack.c.h.b16 %v4087
    %v4384 = vunpack.c.l.b16 %v4088
    %v4385 = vunpack.c.h.b16 %v4088
    %v4386 = vunpack.c.l.b16 %v4089
    %v4387 = vunpack.c.h.b16 %v4089
    %v4388 = vunpack.c.l.b16 %v4090
    %v4389 = vunpack.c.h.b16 %v4090
    %v4390 = vunpack.c.l.b16 %v4091
    %v4391 = vunpack.c.h.b16 %v4091
    %v4392 = vunpack.c.l.b16 %v4092
    %v4393 = vunpack.c.h.b16 %v4092
    %v4394 = vunpack.c.l.b16 %v4093
    %v4395 = vunpack.c.h.b16 %v4093
    %v4396 = vunpack.c.l.b16 %v4094
    %v4397 = vunpack.c.h.b16 %v4094
    %v4398 = vunpack.c.l.b16 %v4095
    %v4399 = vunpack.c.h.b16 %v4095
    %v4400 = vunpack.c.l.b16 %v4096
    %v4401 = vunpack.c.h.b16 %v4096
    %v4402 = vunpack.c.l.b16 %v4097
    %v4403 = vunpack.c.h.b16 %v4097
    %v4404 = vunpack.c.l.b16 %v4098
    %v4405 = vunpack.c.h.b16 %v4098
    %v4406 = vunpack.c.l.b16 %v4099
    %v4407 = vunpack.c.h.b16 %v4099
    %v4408 = vunpack.c.l.b16 %v4100
    %v4409 = vunpack.c.h.b16 %v4100
    %v4410 = vunpack.c.l.b16 %v4101
    %v4411 = vunpack.c.h.b16 %v4101
    %v4412 = vunpack.c.l.b16 %v4102
    %v4413 = vunpack.c.h.b16 %v4102
    %v4414 = vunpack.c.l.b16 %v4103
    %v4415 = vunpack.c.h.b16 %v4103
    %v4416 = vunpack.c.l.b16 %v4104
    %v4417 = vunpack.c.h.b16 %v4104
    %v4418 = vunpack.c.l.b16 %v4105
    %v4419 = vunpack.c.h.b16 %v4105
    %v4420 = vunpack.c.l.b16 %v4106
    %v4421 = vunpack.c.h.b16 %v4106
    %v4422 = vunpack.c.l.b16 %v4107
    %v4423 = vunpack.c.h.b16 %v4107
    %v4424 = vunpack.c.l.b16 %v4108
    %v4425 = vunpack.c.h.b16 %v4108
    %v4426 = vunpack.c.l.b16 %v4109
    %v4427 = vunpack.c.h.b16 %v4109
    %v4428 = vunpack.c.l.b16 %v4110
    %v4429 = vunpack.c.h.b16 %v4110
    %v4430 = vunpack.c.l.b16 %v4111
    %v4431 = vunpack.c.h.b16 %v4111
    %v4432 = vunpack.c.l.b16 %v4112
    %v4433 = vunpack.c.h.b16 %v4112
    %v4434 = vpack.c.b16 %v4248, %v4242
    %v4435 = vpack.c.b16 %v4249, %v4243
    %v4436 = vpack.c.b16 %v4250, %v4244
    %v4437 = vpack.c.b16 %v4251, %v4245
    %v4438 = vpack.c.b16 %v4252, %v4246
    %v4439 = vpack.c.b16 %v4253, %v4247
    %v4440 = vpack.c.b16 %v4260, %v4254
    %v4441 = vpack.c.b16 %v4261, %v4255
    %v4442 = vpack.c.b16 %v4262, %v4256
    %v4443 = vpack.c.b16 %v4263, %v4257
    %v4444 = vpack.c.b16 %v4264, %v4258
    %v4445 = vpack.c.b16 %v4265, %v4259
    %v4446 = vpack.c.b16 %v4272, %v4266
    %v4447 = vpack.c.b16 %v4273, %v4267
    %v4448 = vpack.c.b16 %v4274, %v4268
    %v4449 = vpack.c.b16 %v4275, %v4269
    %v4450 = vpack.c.b16 %v4276, %v4270
    %v4451 = vpack.c.b16 %v4277, %v4271
    %v4452 = vpack.c.b16 %v4284, %v4278
    %v4453 = vpack.c.b16 %v4285, %v4279
    %v4454 = vpack.c.b16 %v4286, %v4280
    %v4455 = vpack.c.b16 %v4287, %v4281
    %v4456 = vpack.c.b16 %v4288, %v4282
    %v4457 = vpack.c.b16 %v4289, %v4283
    %v4458 = vpack.c.b16 %v4296, %v4290
    %v4459 = vpack.c.b16 %v4297, %v4291
    %v4460 = vpack.c.b16 %v4298, %v4292
    %v4461 = vpack.c.b16 %v4299, %v4293
    %v4462 = vpack.c.b16 %v4300, %v4294
    %v4463 = vpack.c.b16 %v4301, %v4295
    %v4464 = vpack.c.b16 %v4308, %v4302
    %v4465 = vpack.c.b16 %v4309, %v4303
    %v4466 = vpack.c.b16 %v4310, %v4304
    %v4467 = vpack.c.b16 %v4311, %v4305
    %v4468 = vpack.c.b16 %v4312, %v4306
    %v4469 = vpack.c.b16 %v4313, %v4307
    %v4470 = vpack.c.b16 %v4320, %v4314
    %v4471 = vpack.c.b16 %v4321, %v4315
    %v4472 = vpack.c.b16 %v4322, %v4316
    %v4473 = vpack.c.b16 %v4323, %v4317
    %v4474 = vpack.c.b16 %v4324, %v4318
    %v4475 = vpack.c.b16 %v4325, %v4319
    %v4476 = vpack.c.b16 %v4332, %v4326
    %v4477 = vpack.c.b16 %v4333, %v4327
    %v4478 = vpack.c.b16 %v4334, %v4328
    %v4479 = vpack.c.b16 %v4335, %v4329
    %v4480 = vpack.c.b16 %v4336, %v4330
    %v4481 = vpack.c.b16 %v4337, %v4331
    %v4482 = vpack.c.b16 %v4344, %v4338
    %v4483 = vpack.c.b16 %v4345, %v4339
    %v4484 = vpack.c.b16 %v4346, %v4340
    %v4485 = vpack.c.b16 %v4347, %v4341
    %v4486 = vpack.c.b16 %v4348, %v4342
    %v4487 = vpack.c.b16 %v4349, %v4343
    %v4488 = vpack.c.b16 %v4356, %v4350
    %v4489 = vpack.c.b16 %v4357, %v4351
    %v4490 = vpack.c.b16 %v4358, %v4352
    %v4491 = vpack.c.b16 %v4359, %v4353
    %v4492 = vpack.c.b16 %v4360, %v4354
    %v4493 = vpack.c.b16 %v4361, %v4355
    %v4494 = vpack.c.b16 %v4368, %v4362
    %v4495 = vpack.c.b16 %v4369, %v4363
    %v4496 = vpack.c.b16 %v4370, %v4364
    %v4497 = vpack.c.b16 %v4371, %v4365
    %v4498 = vpack.c.b16 %v4372, %v4366
    %v4499 = vpack.c.b16 %v4373, %v4367
    %v4500 = vpack.c.b16 %v4380, %v4374
    %v4501 = vpack.c.b16 %v4381, %v4375
    %v4502 = vpack.c.b16 %v4382, %v4376
    %v4503 = vpack.c.b16 %v4383, %v4377
    %v4504 = vpack.c.b16 %v4384, %v4378
    %v4505 = vpack.c.b16 %v4385, %v4379
    %v4506 = vpack.c.b16 %v4392, %v4386
    %v4507 = vpack.c.b16 %v4393, %v4387
    %v4508 = vpack.c.b16 %v4394, %v4388
    %v4509 = vpack.c.b16 %v4395, %v4389
    %v4510 = vpack.c.b16 %v4396, %v4390
    %v4511 = vpack.c.b16 %v4397, %v4391
    %v4512 = vpack.c.b16 %v4404, %v4398
    %v4513 = vpack.c.b16 %v4405, %v4399
    %v4514 = vpack.c.b16 %v4406, %v4400
    %v4515 = vpack.c.b16 %v4407, %v4401
    %v4516 = vpack.c.b16 %v4408, %v4402
    %v4517 = vpack.c.b16 %v4409, %v4403
    %v4518 = vpack.c.b16 %v4416, %v4410
    %v4519 = vpack.c.b16 %v4417, %v4411
    %v4520 = vpack.c.b16 %v4418, %v4412
    %v4521 = vpack.c.b16 %v4419, %v4413
    %v4522 = vpack.c.b16 %v4420, %v4414
    %v4523 = vpack.c.b16 %v4421, %v4415
    %v4524 = vpack.c.b16 %v4428, %v4422
    %v4525 = vpack.c.b16 %v4429, %v4423
    %v4526 = vpack.c.b16 %v4430, %v4424
    %v4527 = vpack.c.b16 %v4431, %v4425
    %v4528 = vpack.c.b16 %v4432, %v4426
    %v4529 = vpack.c.b16 %v4433, %v4427
    %4626 = vmatprep.subr.bf16.mxu0 %v4477
    %4627 = vmatpush1.bf16.msra.mxu0 %v4476
    %4628 = vmatprep.subr.bf16.mxu0 %v4471
    %4629 = vmatpush1.bf16.msra.mxu0 %v4470
    %4630 = vmatprep.subr.bf16.mxu0 %v4465
    %4631 = vmatpush1.bf16.msra.mxu0 %v4464
    %4632 = vmatprep.subr.bf16.mxu0 %v4459
    %4633 = vmatpush1.bf16.msra.mxu0 %v4458
    %4634 = vmatprep.subr.bf16.mxu0 %v4453
    %4635 = vmatpush1.bf16.msra.mxu0 %v4452
    %4636 = vmatprep.subr.bf16.mxu0 %v4447
    %4637 = vmatpush1.bf16.msra.mxu0 %v4446
    %4638 = vmatprep.subr.bf16.mxu0 %v4441
    %4639 = vmatpush1.bf16.msra.mxu0 %v4440
    %4640 = vmatprep.subr.bf16.mxu0 %v4435
    %4641 = vmatpush1.bf16.msra.mxu0 %v4434
    %4642 = vmatprep.subr.bf16.mxu0 %v4525
    %4643 = vmatpush2.bf16.msra.mxu0 %v4524
    %4644 = vmatprep.subr.bf16.mxu0 %v4519
    %4645 = vmatpush2.bf16.msra.mxu0 %v4518
    %4646 = vmatprep.subr.bf16.mxu0 %v4513
    %4647 = vmatpush2.bf16.msra.mxu0 %v4512
    %4648 = vmatprep.subr.bf16.mxu0 %v4507
    %4649 = vmatpush2.bf16.msra.mxu0 %v4506
    %4650 = vmatprep.subr.bf16.mxu0 %v4501
    %4651 = vmatpush2.bf16.msra.mxu0 %v4500
    %4652 = vmatprep.subr.bf16.mxu0 %v4495
    %4653 = vmatpush2.bf16.msra.mxu0 %v4494
    %4654 = vmatprep.subr.bf16.mxu0 %v4489
    %4655 = vmatpush2.bf16.msra.mxu0 %v4488
    %4656 = vmatprep.subr.bf16.mxu0 %v4483
    %4657 = vmatpush2.bf16.msra.mxu0 %v4482
    %4658 = vmatprep.mubr.bf16.mxu0 %v4015
    %4659 = vmatmul.mubr.bf16.gmra.mxu0 %v4014
    %v4660 = vpop.f32.mrf.mxu0
    %v4661 = vadd.f32 %v4119, %v4660
    %v4662 = vpop.f32.mrf.mxu0
    %v4663 = vadd.f32 %v4123, %v4662
    %v4664 = vpop.f32.mrf.mxu0
    %v4665 = vadd.f32 %v4119, %v4664
    %v4666 = vpop.f32.mrf.mxu0
    %v4667 = vadd.f32 %v4123, %v4666
    %4668 = vdwg.mxu0
    %4669 = vmatprep.subr.bf16.mxu0 %v4479
    %4670 = vmatpush1.bf16.msra.mxu0 %v4478
    %4671 = vmatprep.subr.bf16.mxu0 %v4473
    %4672 = vmatpush1.bf16.msra.mxu0 %v4472
    %4673 = vmatprep.subr.bf16.mxu0 %v4467
    %4674 = vmatpush1.bf16.msra.mxu0 %v4466
    %4675 = vmatprep.subr.bf16.mxu0 %v4461
    %4676 = vmatpush1.bf16.msra.mxu0 %v4460
    %4677 = vmatprep.subr.bf16.mxu0 %v4455
    %4678 = vmatpush1.bf16.msra.mxu0 %v4454
    %4679 = vmatprep.subr.bf16.mxu0 %v4449
    %4680 = vmatpush1.bf16.msra.mxu0 %v4448
    %4681 = vmatprep.subr.bf16.mxu0 %v4443
    %4682 = vmatpush1.bf16.msra.mxu0 %v4442
    %4683 = vmatprep.subr.bf16.mxu0 %v4437
    %4684 = vmatpush1.bf16.msra.mxu0 %v4436
    %4685 = vmatprep.subr.bf16.mxu0 %v4527
    %4686 = vmatpush2.bf16.msra.mxu0 %v4526
    %4687 = vmatprep.subr.bf16.mxu0 %v4521
    %4688 = vmatpush2.bf16.msra.mxu0 %v4520
    %4689 = vmatprep.subr.bf16.mxu0 %v4515
    %4690 = vmatpush2.bf16.msra.mxu0 %v4514
    %4691 = vmatprep.subr.bf16.mxu0 %v4509
    %4692 = vmatpush2.bf16.msra.mxu0 %v4508
    %4693 = vmatprep.subr.bf16.mxu0 %v4503
    %4694 = vmatpush2.bf16.msra.mxu0 %v4502
    %4695 = vmatprep.subr.bf16.mxu0 %v4497
    %4696 = vmatpush2.bf16.msra.mxu0 %v4496
    %4697 = vmatprep.subr.bf16.mxu0 %v4491
    %4698 = vmatpush2.bf16.msra.mxu0 %v4490
    %4699 = vmatprep.subr.bf16.mxu0 %v4485
    %4700 = vmatpush2.bf16.msra.mxu0 %v4484
    %4701 = vmatprep.mubr.bf16.mxu0 %v4015
    %4702 = vmatmul.mubr.bf16.gmra.mxu0 %v4014
    %v4703 = vpop.f32.mrf.mxu0
    %v4704 = vadd.f32 %v4127, %v4703
    %v4705 = vpop.f32.mrf.mxu0
    %v4706 = vadd.f32 %v4131, %v4705
    %v4707 = vpop.f32.mrf.mxu0
    %v4708 = vadd.f32 %v4127, %v4707
    %v4709 = vpop.f32.mrf.mxu0
    %v4710 = vadd.f32 %v4131, %v4709
    %4711 = vdwg.mxu0
    %4712 = vmatprep.subr.bf16.mxu0 %v4481
    %4713 = vmatpush1.bf16.msra.mxu0 %v4480
    %4714 = vmatprep.subr.bf16.mxu0 %v4475
    %4715 = vmatpush1.bf16.msra.mxu0 %v4474
    %4716 = vmatprep.subr.bf16.mxu0 %v4469
    %4717 = vmatpush1.bf16.msra.mxu0 %v4468
    %4718 = vmatprep.subr.bf16.mxu0 %v4463
    %4719 = vmatpush1.bf16.msra.mxu0 %v4462
    %4720 = vmatprep.subr.bf16.mxu0 %v4457
    %4721 = vmatpush1.bf16.msra.mxu0 %v4456
    %4722 = vmatprep.subr.bf16.mxu0 %v4451
    %4723 = vmatpush1.bf16.msra.mxu0 %v4450
    %4724 = vmatprep.subr.bf16.mxu0 %v4445
    %4725 = vmatpush1.bf16.msra.mxu0 %v4444
    %4726 = vmatprep.subr.bf16.mxu0 %v4439
    %4727 = vmatpush1.bf16.msra.mxu0 %v4438
    %4728 = vmatprep.subr.bf16.mxu0 %v4529
    %4729 = vmatpush2.bf16.msra.mxu0 %v4528
    %4730 = vmatprep.subr.bf16.mxu0 %v4523
    %4731 = vmatpush2.bf16.msra.mxu0 %v4522
    %4732 = vmatprep.subr.bf16.mxu0 %v4517
    %4733 = vmatpush2.bf16.msra.mxu0 %v4516
    %4734 = vmatprep.subr.bf16.mxu0 %v4511
    %4735 = vmatpush2.bf16.msra.mxu0 %v4510
    %4736 = vmatprep.subr.bf16.mxu0 %v4505
    %4737 = vmatpush2.bf16.msra.mxu0 %v4504
    %4738 = vmatprep.subr.bf16.mxu0 %v4499
    %4739 = vmatpush2.bf16.msra.mxu0 %v4498
    %4740 = vmatprep.subr.bf16.mxu0 %v4493
    %4741 = vmatpush2.bf16.msra.mxu0 %v4492
    %4742 = vmatprep.subr.bf16.mxu0 %v4487
    %4743 = vmatpush2.bf16.msra.mxu0 %v4486
    %4744 = vmatprep.mubr.bf16.mxu0 %v4015
    %4745 = vmatmul.mubr.bf16.gmra.mxu0 %v4014
    %v4746 = vpop.f32.mrf.mxu0
    %v4747 = vadd.f32 %v4135, %v4746
    %v4748 = vpop.f32.mrf.mxu0
    %v4749 = vadd.f32 %v4139, %v4748
    %v4750 = vpop.f32.mrf.mxu0
    %v4751 = vadd.f32 %v4135, %v4750
    %v4752 = vpop.f32.mrf.mxu0
    %v4753 = vadd.f32 %v4139, %v4752
    %4754 = vdwg.mxu0
    %s4755 = scalar_lea.vmem [#allocation13], 256
    %v4756 = vld [vmem:[%s4755] sm:$0xff]
    %v4757 = vld [vmem:[%s4755 + $0x8] sm:$0xff]
    %v4758 = vld [vmem:[%s4755 + $0x10] sm:$0xff]
    %v4759 = vld [vmem:[%s4755 + $0x18] sm:$0xff]
    %v4760 = vld [vmem:[%s4755 + $0x20] sm:$0xff]
    %v4761 = vld [vmem:[%s4755 + $0x28] sm:$0xff]
    %v4762 = vld [vmem:[%s4755 + $0x30] sm:$0xff]
    %v4763 = vld [vmem:[%s4755 + $0x38] sm:$0xff]
    %v4764 = vld [vmem:[%s4755 + $0x40] sm:$0xff]
    %v4765 = vld [vmem:[%s4755 + $0x48] sm:$0xff]
    %v4766 = vld [vmem:[%s4755 + $0x50] sm:$0xff]
    %v4767 = vld [vmem:[%s4755 + $0x58] sm:$0xff]
    %v4768 = vld [vmem:[%s4755 + $0x60] sm:$0xff]
    %v4769 = vld [vmem:[%s4755 + $0x68] sm:$0xff]
    %v4770 = vld [vmem:[%s4755 + $0x70] sm:$0xff]
    %v4771 = vld [vmem:[%s4755 + $0x78] sm:$0xff]
    %v4772 = vld [vmem:[%s4755 + $0x80] sm:$0xff]
    %v4773 = vld [vmem:[%s4755 + $0x88] sm:$0xff]
    %v4774 = vld [vmem:[%s4755 + $0x90] sm:$0xff]
    %v4775 = vld [vmem:[%s4755 + $0x98] sm:$0xff]
    %v4776 = vld [vmem:[%s4755 + $0xa0] sm:$0xff]
    %v4777 = vld [vmem:[%s4755 + $0xa8] sm:$0xff]
    %v4778 = vld [vmem:[%s4755 + $0xb0] sm:$0xff]
    %v4779 = vld [vmem:[%s4755 + $0xb8] sm:$0xff]
    %v4780 = vld [vmem:[%s4755 + $0xc0] sm:$0xff]
    %v4781 = vld [vmem:[%s4755 + $0xc8] sm:$0xff]
    %v4782 = vld [vmem:[%s4755 + $0xd0] sm:$0xff]
    %v4783 = vld [vmem:[%s4755 + $0xd8] sm:$0xff]
    %v4784 = vld [vmem:[%s4755 + $0xe0] sm:$0xff]
    %v4785 = vld [vmem:[%s4755 + $0xe8] sm:$0xff]
    %v4786 = vld [vmem:[%s4755 + $0xf0] sm:$0xff]
    %v4787 = vld [vmem:[%s4755 + $0xf8] sm:$0xff]
    %v4788 = vpack.c.bf16 %v4661, %v4661
    %v4789 = vpack.c.bf16 %v4665, %v4665
    %v4790 = vpack.c.bf16 %v4704, %v4704
    %v4791 = vpack.c.bf16 %v4708, %v4708
    %v4792 = vpack.c.bf16 %v4747, %v4747
    %v4793 = vpack.c.bf16 %v4751, %v4751
    %4794 = vmatprep.subr.bf16.mxu0 0
    %4795 = vmatpush1.bf16.xpose.msra.mxu0 0
    %4796 = vmatprep.subr.bf16.mxu0 0
    %4797 = vmatpush1.bf16.xpose.msra.mxu0 0
    %4798 = vmatprep.subr.bf16.mxu0 0
    %4799 = vmatpush1.bf16.xpose.msra.mxu0 0
    %4800 = vmatprep.subr.bf16.mxu0 0
    %4801 = vmatpush1.bf16.xpose.msra.mxu0 0
    %4802 = vmatprep.subr.bf16.mxu0 0
    %4803 = vmatpush1.bf16.xpose.msra.mxu0 0
    %4804 = vmatprep.subr.bf16.mxu0 0
    %4805 = vmatpush1.bf16.xpose.msra.mxu0 0
    %4806 = vmatprep.subr.bf16.mxu0 0
    %4807 = vmatpush1.bf16.xpose.msra.mxu0 0
    %4808 = vmatprep.subr.bf16.mxu0 0
    %4809 = vmatpush1.bf16.xpose.msra.mxu0 %v4790
    %4810 = vmatprep.subr.bf16.mxu0 0
    %4811 = vmatpush2.bf16.xpose.msra.mxu0 0
    %4812 = vmatprep.subr.bf16.mxu0 0
    %4813 = vmatpush2.bf16.xpose.msra.mxu0 0
    %4814 = vmatprep.subr.bf16.mxu0 0
    %4815 = vmatpush2.bf16.xpose.msra.mxu0 0
    %4816 = vmatprep.subr.bf16.mxu0 0
    %4817 = vmatpush2.bf16.xpose.msra.mxu0 0
    %4818 = vmatprep.subr.bf16.mxu0 0
    %4819 = vmatpush2.bf16.xpose.msra.mxu0 0
    %4820 = vmatprep.subr.bf16.mxu0 0
    %4821 = vmatpush2.bf16.xpose.msra.mxu0 0
    %4822 = vmatprep.subr.bf16.mxu0 0
    %4823 = vmatpush2.bf16.xpose.msra.mxu0 0
    %4824 = vmatprep.subr.bf16.mxu0 0
    %4825 = vmatpush2.bf16.xpose.msra.mxu0 0
    %4826 = vmatprep.mubr.bf16.mxu0 0
    %4827 = vmatmul.mubr.bf16.gmra.mxu0 %v4788
    %v4828 = vpop.f32.mrf.mxu0
    %v4829 = vadd.f32 %v1119, %v4828
    %v4830 = vpop.f32.mrf.mxu0
    %v4831 = vpop.f32.mrf.mxu0
    %v4832 = vpop.f32.mrf.mxu0
    %4833 = vdwg.mxu0
    %4834 = vmatprep.subr.bf16.mxu0 0
    %4835 = vmatpush1.bf16.xpose.msra.mxu0 0
    %4836 = vmatprep.subr.bf16.mxu0 0
    %4837 = vmatpush1.bf16.xpose.msra.mxu0 0
    %4838 = vmatprep.subr.bf16.mxu0 0
    %4839 = vmatpush1.bf16.xpose.msra.mxu0 0
    %4840 = vmatprep.subr.bf16.mxu0 0
    %4841 = vmatpush1.bf16.xpose.msra.mxu0 0
    %4842 = vmatprep.subr.bf16.mxu0 0
    %4843 = vmatpush1.bf16.xpose.msra.mxu0 0
    %4844 = vmatprep.subr.bf16.mxu0 0
    %4845 = vmatpush1.bf16.xpose.msra.mxu0 0
    %4846 = vmatprep.subr.bf16.mxu0 0
    %4847 = vmatpush1.bf16.xpose.msra.mxu0 0
    %4848 = vmatprep.subr.bf16.mxu0 0
    %4849 = vmatpush1.bf16.xpose.msra.mxu0 %v4791
    %4850 = vmatprep.subr.bf16.mxu0 0
    %4851 = vmatpush2.bf16.xpose.msra.mxu0 0
    %4852 = vmatprep.subr.bf16.mxu0 0
    %4853 = vmatpush2.bf16.xpose.msra.mxu0 0
    %4854 = vmatprep.subr.bf16.mxu0 0
    %4855 = vmatpush2.bf16.xpose.msra.mxu0 0
    %4856 = vmatprep.subr.bf16.mxu0 0
    %4857 = vmatpush2.bf16.xpose.msra.mxu0 0
    %4858 = vmatprep.subr.bf16.mxu0 0
    %4859 = vmatpush2.bf16.xpose.msra.mxu0 0
    %4860 = vmatprep.subr.bf16.mxu0 0
    %4861 = vmatpush2.bf16.xpose.msra.mxu0 0
    %4862 = vmatprep.subr.bf16.mxu0 0
    %4863 = vmatpush2.bf16.xpose.msra.mxu0 0
    %4864 = vmatprep.subr.bf16.mxu0 0
    %4865 = vmatpush2.bf16.xpose.msra.mxu0 0
    %4866 = vmatprep.mubr.bf16.mxu0 0
    %4867 = vmatmul.mubr.bf16.gmra.mxu0 %v4789
    %v4868 = vpop.f32.mrf.mxu0
    %v4869 = vadd.f32 %v1123, %v4868
    %v4870 = vpop.f32.mrf.mxu0
    %v4871 = vpop.f32.mrf.mxu0
    %v4872 = vpop.f32.mrf.mxu0
    %4873 = vdwg.mxu0
    %v4874 = vsel %vm1206, %v4829, -inf
    %4875 = vmax.xlane.f32.xlu0 %v4874
    %v4876 = vpop.xlane.xlu0 %4875
    %v4877 = vsel %vm1206, %v4869, -inf
    %4878 = vmax.xlane.f32.xlu0 %v4877
    %v4879 = vpop.xlane.xlu0 %4878
    %v4880 = vsub.f32 %v4829, %v4876
    %v4881 = vsub.f32 %v4869, %v4879
    %v4882 = vmul.f32 %v4880, 1.442695
    %v4883 = vpow.pop %v4882
    %v4884 = vmul.f32 %v4881, 1.442695
    %v4885 = vpow.pop %v4884
    %v4886 = vsel %vm1206, %v4883, 0.0
    %4887 = vadd.xlane.f32.xlu0 %v4886
    %v4888 = vpop.xlane.xlu0 %4887
    %v4889 = vsel %vm1206, %v4885, 0.0
    %4890 = vadd.xlane.f32.xlu0 %v4889
    %v4891 = vpop.xlane.xlu0 %4890
    %v4892 = vrcp.pop %v4888
    %v4893 = vrcp.pop %v4891
    %v4894 = vmul.f32 %v4883, %v4892
    %v4895 = vmul.f32 %v4885, %v4893
    %v4896 = vpack.c.bf16 %v4894, %v4894
    %v4897 = vpack.c.bf16 %v4895, %v4895
    %v4899 = vsel %vm1206, %v4896, 0
    %v4902 = vsel %vm1234, %v4792, 0
    %4904 = vmatprep.subr.bf16.mxu0 0
    %4905 = vmatpush1.bf16.msra.mxu0 0
    %4906 = vmatprep.subr.bf16.mxu0 0
    %4907 = vmatpush1.bf16.msra.mxu0 0
    %4908 = vmatprep.subr.bf16.mxu0 0
    %4909 = vmatpush1.bf16.msra.mxu0 0
    %4910 = vmatprep.subr.bf16.mxu0 0
    %4911 = vmatpush1.bf16.msra.mxu0 0
    %4912 = vmatprep.subr.bf16.mxu0 0
    %4913 = vmatpush1.bf16.msra.mxu0 0
    %4914 = vmatprep.subr.bf16.mxu0 0
    %4915 = vmatpush1.bf16.msra.mxu0 0
    %4916 = vmatprep.subr.bf16.mxu0 0
    %4917 = vmatpush1.bf16.msra.mxu0 0
    %4918 = vmatprep.subr.bf16.mxu0 0
    %4919 = vmatpush1.bf16.msra.mxu0 %v4902
    %4920 = vmatprep.subr.bf16.mxu0 0
    %4921 = vmatpush2.bf16.msra.mxu0 0
    %4922 = vmatprep.subr.bf16.mxu0 0
    %4923 = vmatpush2.bf16.msra.mxu0 0
    %4924 = vmatprep.subr.bf16.mxu0 0
    %4925 = vmatpush2.bf16.msra.mxu0 0
    %4926 = vmatprep.subr.bf16.mxu0 0
    %4927 = vmatpush2.bf16.msra.mxu0 0
    %4928 = vmatprep.subr.bf16.mxu0 0
    %4929 = vmatpush2.bf16.msra.mxu0 0
    %4930 = vmatprep.subr.bf16.mxu0 0
    %4931 = vmatpush2.bf16.msra.mxu0 0
    %4932 = vmatprep.subr.bf16.mxu0 0
    %4933 = vmatpush2.bf16.msra.mxu0 0
    %4934 = vmatprep.subr.bf16.mxu0 0
    %4935 = vmatpush2.bf16.msra.mxu0 0
    %4936 = vmatprep.mubr.bf16.mxu0 0
    %4937 = vmatmul.mubr.bf16.gmra.mxu0 %v4899
    %v4938 = vpop.f32.mrf.mxu0
    %v4939 = vadd.f32 0.0, %v4938
    %v4940 = vpop.f32.mrf.mxu0
    %v4941 = vpop.f32.mrf.mxu0
    %v4942 = vpop.f32.mrf.mxu0
    %4943 = vdwg.mxu0
    %v4945 = vsel %vm1206, %v4897, 0
    %v4948 = vsel %vm1234, %v4793, 0
    %4950 = vmatprep.subr.bf16.mxu0 0
    %4951 = vmatpush1.bf16.msra.mxu0 0
    %4952 = vmatprep.subr.bf16.mxu0 0
    %4953 = vmatpush1.bf16.msra.mxu0 0
    %4954 = vmatprep.subr.bf16.mxu0 0
    %4955 = vmatpush1.bf16.msra.mxu0 0
    %4956 = vmatprep.subr.bf16.mxu0 0
    %4957 = vmatpush1.bf16.msra.mxu0 0
    %4958 = vmatprep.subr.bf16.mxu0 0
    %4959 = vmatpush1.bf16.msra.mxu0 0
    %4960 = vmatprep.subr.bf16.mxu0 0
    %4961 = vmatpush1.bf16.msra.mxu0 0
    %4962 = vmatprep.subr.bf16.mxu0 0
    %4963 = vmatpush1.bf16.msra.mxu0 0
    %4964 = vmatprep.subr.bf16.mxu0 0
    %4965 = vmatpush1.bf16.msra.mxu0 %v4948
    %4966 = vmatprep.subr.bf16.mxu0 0
    %4967 = vmatpush2.bf16.msra.mxu0 0
    %4968 = vmatprep.subr.bf16.mxu0 0
    %4969 = vmatpush2.bf16.msra.mxu0 0
    %4970 = vmatprep.subr.bf16.mxu0 0
    %4971 = vmatpush2.bf16.msra.mxu0 0
    %4972 = vmatprep.subr.bf16.mxu0 0
    %4973 = vmatpush2.bf16.msra.mxu0 0
    %4974 = vmatprep.subr.bf16.mxu0 0
    %4975 = vmatpush2.bf16.msra.mxu0 0
    %4976 = vmatprep.subr.bf16.mxu0 0
    %4977 = vmatpush2.bf16.msra.mxu0 0
    %4978 = vmatprep.subr.bf16.mxu0 0
    %4979 = vmatpush2.bf16.msra.mxu0 0
    %4980 = vmatprep.subr.bf16.mxu0 0
    %4981 = vmatpush2.bf16.msra.mxu0 0
    %4982 = vmatprep.mubr.bf16.mxu0 0
    %4983 = vmatmul.mubr.bf16.gmra.mxu0 %v4945
    %v4984 = vpop.f32.mrf.mxu0
    %v4985 = vadd.f32 0.0, %v4984
    %v4986 = vpop.f32.mrf.mxu0
    %v4987 = vpop.f32.mrf.mxu0
    %v4988 = vpop.f32.mrf.mxu0
    %4989 = vdwg.mxu0
    %v4990 = vpack.c.bf16 %v4985, %v4939
    %v4991 = vpack.c.bf16 %v4663, %v4663
    %v4992 = vpack.c.bf16 %v4667, %v4667
    %v4993 = vpack.c.bf16 %v4706, %v4706
    %v4994 = vpack.c.bf16 %v4710, %v4710
    %v4995 = vpack.c.bf16 %v4749, %v4749
    %v4996 = vpack.c.bf16 %v4753, %v4753
    %4997 = vmatprep.subr.bf16.mxu0 0
    %4998 = vmatpush1.bf16.xpose.msra.mxu0 0
    %4999 = vmatprep.subr.bf16.mxu0 0
    %5000 = vmatpush1.bf16.xpose.msra.mxu0 0
    %5001 = vmatprep.subr.bf16.mxu0 0
    %5002 = vmatpush1.bf16.xpose.msra.mxu0 0
    %5003 = vmatprep.subr.bf16.mxu0 0
    %5004 = vmatpush1.bf16.xpose.msra.mxu0 0
    %5005 = vmatprep.subr.bf16.mxu0 0
    %5006 = vmatpush1.bf16.xpose.msra.mxu0 0
    %5007 = vmatprep.subr.bf16.mxu0 0
    %5008 = vmatpush1.bf16.xpose.msra.mxu0 0
    %5009 = vmatprep.subr.bf16.mxu0 0
    %5010 = vmatpush1.bf16.xpose.msra.mxu0 0
    %5011 = vmatprep.subr.bf16.mxu0 0
    %5012 = vmatpush1.bf16.xpose.msra.mxu0 %v4993
    %5013 = vmatprep.subr.bf16.mxu0 0
    %5014 = vmatpush2.bf16.xpose.msra.mxu0 0
    %5015 = vmatprep.subr.bf16.mxu0 0
    %5016 = vmatpush2.bf16.xpose.msra.mxu0 0
    %5017 = vmatprep.subr.bf16.mxu0 0
    %5018 = vmatpush2.bf16.xpose.msra.mxu0 0
    %5019 = vmatprep.subr.bf16.mxu0 0
    %5020 = vmatpush2.bf16.xpose.msra.mxu0 0
    %5021 = vmatprep.subr.bf16.mxu0 0
    %5022 = vmatpush2.bf16.xpose.msra.mxu0 0
    %5023 = vmatprep.subr.bf16.mxu0 0
    %5024 = vmatpush2.bf16.xpose.msra.mxu0 0
    %5025 = vmatprep.subr.bf16.mxu0 0
    %5026 = vmatpush2.bf16.xpose.msra.mxu0 0
    %5027 = vmatprep.subr.bf16.mxu0 0
    %5028 = vmatpush2.bf16.xpose.msra.mxu0 0
    %5029 = vmatprep.mubr.bf16.mxu0 0
    %5030 = vmatmul.mubr.bf16.gmra.mxu0 %v4991
    %v5031 = vpop.f32.mrf.mxu0
    %v5032 = vadd.f32 %v1119, %v5031
    %v5033 = vpop.f32.mrf.mxu0
    %v5034 = vpop.f32.mrf.mxu0
    %v5035 = vpop.f32.mrf.mxu0
    %5036 = vdwg.mxu0
    %5037 = vmatprep.subr.bf16.mxu0 0
    %5038 = vmatpush1.bf16.xpose.msra.mxu0 0
    %5039 = vmatprep.subr.bf16.mxu0 0
    %5040 = vmatpush1.bf16.xpose.msra.mxu0 0
    %5041 = vmatprep.subr.bf16.mxu0 0
    %5042 = vmatpush1.bf16.xpose.msra.mxu0 0
    %5043 = vmatprep.subr.bf16.mxu0 0
    %5044 = vmatpush1.bf16.xpose.msra.mxu0 0
    %5045 = vmatprep.subr.bf16.mxu0 0
    %5046 = vmatpush1.bf16.xpose.msra.mxu0 0
    %5047 = vmatprep.subr.bf16.mxu0 0
    %5048 = vmatpush1.bf16.xpose.msra.mxu0 0
    %5049 = vmatprep.subr.bf16.mxu0 0
    %5050 = vmatpush1.bf16.xpose.msra.mxu0 0
    %5051 = vmatprep.subr.bf16.mxu0 0
    %5052 = vmatpush1.bf16.xpose.msra.mxu0 %v4994
    %5053 = vmatprep.subr.bf16.mxu0 0
    %5054 = vmatpush2.bf16.xpose.msra.mxu0 0
    %5055 = vmatprep.subr.bf16.mxu0 0
    %5056 = vmatpush2.bf16.xpose.msra.mxu0 0
    %5057 = vmatprep.subr.bf16.mxu0 0
    %5058 = vmatpush2.bf16.xpose.msra.mxu0 0
    %5059 = vmatprep.subr.bf16.mxu0 0
    %5060 = vmatpush2.bf16.xpose.msra.mxu0 0
    %5061 = vmatprep.subr.bf16.mxu0 0
    %5062 = vmatpush2.bf16.xpose.msra.mxu0 0
    %5063 = vmatprep.subr.bf16.mxu0 0
    %5064 = vmatpush2.bf16.xpose.msra.mxu0 0
    %5065 = vmatprep.subr.bf16.mxu0 0
    %5066 = vmatpush2.bf16.xpose.msra.mxu0 0
    %5067 = vmatprep.subr.bf16.mxu0 0
    %5068 = vmatpush2.bf16.xpose.msra.mxu0 0
    %5069 = vmatprep.mubr.bf16.mxu0 0
    %5070 = vmatmul.mubr.bf16.gmra.mxu0 %v4992
    %v5071 = vpop.f32.mrf.mxu0
    %v5072 = vadd.f32 %v1123, %v5071
    %v5073 = vpop.f32.mrf.mxu0
    %v5074 = vpop.f32.mrf.mxu0
    %v5075 = vpop.f32.mrf.mxu0
    %5076 = vdwg.mxu0
    %v5077 = vsel %vm1206, %v5032, -inf
    %5078 = vmax.xlane.f32.xlu0 %v5077
    %v5079 = vpop.xlane.xlu0 %5078
    %v5080 = vsel %vm1206, %v5072, -inf
    %5081 = vmax.xlane.f32.xlu0 %v5080
    %v5082 = vpop.xlane.xlu0 %5081
    %v5083 = vsub.f32 %v5032, %v5079
    %v5084 = vsub.f32 %v5072, %v5082
    %v5085 = vmul.f32 %v5083, 1.442695
    %v5086 = vpow.pop %v5085
    %v5087 = vmul.f32 %v5084, 1.442695
    %v5088 = vpow.pop %v5087
    %v5089 = vsel %vm1206, %v5086, 0.0
    %5090 = vadd.xlane.f32.xlu0 %v5089
    %v5091 = vpop.xlane.xlu0 %5090
    %v5092 = vsel %vm1206, %v5088, 0.0
    %5093 = vadd.xlane.f32.xlu0 %v5092
    %v5094 = vpop.xlane.xlu0 %5093
    %v5095 = vrcp.pop %v5091
    %v5096 = vrcp.pop %v5094
    %v5097 = vmul.f32 %v5086, %v5095
    %v5098 = vmul.f32 %v5088, %v5096
    %v5099 = vpack.c.bf16 %v5097, %v5097
    %v5100 = vpack.c.bf16 %v5098, %v5098
    %v5102 = vsel %vm1206, %v5099, 0
    %v5105 = vsel %vm1234, %v4995, 0
    %5107 = vmatprep.subr.bf16.mxu0 0
    %5108 = vmatpush1.bf16.msra.mxu0 0
    %5109 = vmatprep.subr.bf16.mxu0 0
    %5110 = vmatpush1.bf16.msra.mxu0 0
    %5111 = vmatprep.subr.bf16.mxu0 0
    %5112 = vmatpush1.bf16.msra.mxu0 0
    %5113 = vmatprep.subr.bf16.mxu0 0
    %5114 = vmatpush1.bf16.msra.mxu0 0
    %5115 = vmatprep.subr.bf16.mxu0 0
    %5116 = vmatpush1.bf16.msra.mxu0 0
    %5117 = vmatprep.subr.bf16.mxu0 0
    %5118 = vmatpush1.bf16.msra.mxu0 0
    %5119 = vmatprep.subr.bf16.mxu0 0
    %5120 = vmatpush1.bf16.msra.mxu0 0
    %5121 = vmatprep.subr.bf16.mxu0 0
    %5122 = vmatpush1.bf16.msra.mxu0 %v5105
    %5123 = vmatprep.subr.bf16.mxu0 0
    %5124 = vmatpush2.bf16.msra.mxu0 0
    %5125 = vmatprep.subr.bf16.mxu0 0
    %5126 = vmatpush2.bf16.msra.mxu0 0
    %5127 = vmatprep.subr.bf16.mxu0 0
    %5128 = vmatpush2.bf16.msra.mxu0 0
    %5129 = vmatprep.subr.bf16.mxu0 0
    %5130 = vmatpush2.bf16.msra.mxu0 0
    %5131 = vmatprep.subr.bf16.mxu0 0
    %5132 = vmatpush2.bf16.msra.mxu0 0
    %5133 = vmatprep.subr.bf16.mxu0 0
    %5134 = vmatpush2.bf16.msra.mxu0 0
    %5135 = vmatprep.subr.bf16.mxu0 0
    %5136 = vmatpush2.bf16.msra.mxu0 0
    %5137 = vmatprep.subr.bf16.mxu0 0
    %5138 = vmatpush2.bf16.msra.mxu0 0
    %5139 = vmatprep.mubr.bf16.mxu0 0
    %5140 = vmatmul.mubr.bf16.gmra.mxu0 %v5102
    %v5141 = vpop.f32.mrf.mxu0
    %v5142 = vadd.f32 0.0, %v5141
    %v5143 = vpop.f32.mrf.mxu0
    %v5144 = vpop.f32.mrf.mxu0
    %v5145 = vpop.f32.mrf.mxu0
    %5146 = vdwg.mxu0
    %v5148 = vsel %vm1206, %v5100, 0
    %v5151 = vsel %vm1234, %v4996, 0
    %5153 = vmatprep.subr.bf16.mxu0 0
    %5154 = vmatpush1.bf16.msra.mxu0 0
    %5155 = vmatprep.subr.bf16.mxu0 0
    %5156 = vmatpush1.bf16.msra.mxu0 0
    %5157 = vmatprep.subr.bf16.mxu0 0
    %5158 = vmatpush1.bf16.msra.mxu0 0
    %5159 = vmatprep.subr.bf16.mxu0 0
    %5160 = vmatpush1.bf16.msra.mxu0 0
    %5161 = vmatprep.subr.bf16.mxu0 0
    %5162 = vmatpush1.bf16.msra.mxu0 0
    %5163 = vmatprep.subr.bf16.mxu0 0
    %5164 = vmatpush1.bf16.msra.mxu0 0
    %5165 = vmatprep.subr.bf16.mxu0 0
    %5166 = vmatpush1.bf16.msra.mxu0 0
    %5167 = vmatprep.subr.bf16.mxu0 0
    %5168 = vmatpush1.bf16.msra.mxu0 %v5151
    %5169 = vmatprep.subr.bf16.mxu0 0
    %5170 = vmatpush2.bf16.msra.mxu0 0
    %5171 = vmatprep.subr.bf16.mxu0 0
    %5172 = vmatpush2.bf16.msra.mxu0 0
    %5173 = vmatprep.subr.bf16.mxu0 0
    %5174 = vmatpush2.bf16.msra.mxu0 0
    %5175 = vmatprep.subr.bf16.mxu0 0
    %5176 = vmatpush2.bf16.msra.mxu0 0
    %5177 = vmatprep.subr.bf16.mxu0 0
    %5178 = vmatpush2.bf16.msra.mxu0 0
    %5179 = vmatprep.subr.bf16.mxu0 0
    %5180 = vmatpush2.bf16.msra.mxu0 0
    %5181 = vmatprep.subr.bf16.mxu0 0
    %5182 = vmatpush2.bf16.msra.mxu0 0
    %5183 = vmatprep.subr.bf16.mxu0 0
    %5184 = vmatpush2.bf16.msra.mxu0 0
    %5185 = vmatprep.mubr.bf16.mxu0 0
    %5186 = vmatmul.mubr.bf16.gmra.mxu0 %v5148
    %v5187 = vpop.f32.mrf.mxu0
    %v5188 = vadd.f32 0.0, %v5187
    %v5189 = vpop.f32.mrf.mxu0
    %v5190 = vpop.f32.mrf.mxu0
    %v5191 = vpop.f32.mrf.mxu0
    %5192 = vdwg.mxu0
    %v5193 = vpack.c.bf16 %v5188, %v5142
    %v5210 = vunpack.c.l.b16 %v4772
    %v5211 = vunpack.c.h.b16 %v4772
    %v5212 = vunpack.c.l.b16 %v4773
    %v5213 = vunpack.c.h.b16 %v4773
    %v5214 = vunpack.c.l.b16 %v4774
    %v5215 = vunpack.c.h.b16 %v4774
    %v5216 = vunpack.c.l.b16 %v4775
    %v5217 = vunpack.c.h.b16 %v4775
    %v5218 = vunpack.c.l.b16 %v4776
    %v5219 = vunpack.c.h.b16 %v4776
    %v5220 = vunpack.c.l.b16 %v4777
    %v5221 = vunpack.c.h.b16 %v4777
    %v5222 = vunpack.c.l.b16 %v4778
    %v5223 = vunpack.c.h.b16 %v4778
    %v5224 = vunpack.c.l.b16 %v4779
    %v5225 = vunpack.c.h.b16 %v4779
    %v5226 = vunpack.c.l.b16 %v4780
    %v5227 = vunpack.c.h.b16 %v4780
    %v5228 = vunpack.c.l.b16 %v4781
    %v5229 = vunpack.c.h.b16 %v4781
    %v5230 = vunpack.c.l.b16 %v4782
    %v5231 = vunpack.c.h.b16 %v4782
    %v5232 = vunpack.c.l.b16 %v4783
    %v5233 = vunpack.c.h.b16 %v4783
    %v5234 = vunpack.c.l.b16 %v4784
    %v5235 = vunpack.c.h.b16 %v4784
    %v5236 = vunpack.c.l.b16 %v4785
    %v5237 = vunpack.c.h.b16 %v4785
    %v5238 = vunpack.c.l.b16 %v4786
    %v5239 = vunpack.c.h.b16 %v4786
    %v5240 = vunpack.c.l.b16 %v4787
    %v5241 = vunpack.c.h.b16 %v4787
    %v5242 = vpack.c.b16 %v5212, %v5210
    %v5243 = vpack.c.b16 %v5213, %v5211
    %v5244 = vpack.c.b16 %v5216, %v5214
    %v5245 = vpack.c.b16 %v5217, %v5215
    %v5246 = vpack.c.b16 %v5220, %v5218
    %v5247 = vpack.c.b16 %v5221, %v5219
    %v5248 = vpack.c.b16 %v5224, %v5222
    %v5249 = vpack.c.b16 %v5225, %v5223
    %v5250 = vpack.c.b16 %v5228, %v5226
    %v5251 = vpack.c.b16 %v5229, %v5227
    %v5252 = vpack.c.b16 %v5232, %v5230
    %v5253 = vpack.c.b16 %v5233, %v5231
    %v5254 = vpack.c.b16 %v5236, %v5234
    %v5255 = vpack.c.b16 %v5237, %v5235
    %v5256 = vpack.c.b16 %v5240, %v5238
    %v5257 = vpack.c.b16 %v5241, %v5239
    %5274 = vmatprep.subr.bf16.mxu0 %v5257
    %5275 = vmatpush1.bf16.msra.mxu0 %v5256
    %5276 = vmatprep.subr.bf16.mxu0 %v5255
    %5277 = vmatpush1.bf16.msra.mxu0 %v5254
    %5278 = vmatprep.subr.bf16.mxu0 %v5253
    %5279 = vmatpush1.bf16.msra.mxu0 %v5252
    %5280 = vmatprep.subr.bf16.mxu0 %v5251
    %5281 = vmatpush1.bf16.msra.mxu0 %v5250
    %5282 = vmatprep.subr.bf16.mxu0 %v5249
    %5283 = vmatpush1.bf16.msra.mxu0 %v5248
    %5284 = vmatprep.subr.bf16.mxu0 %v5247
    %5285 = vmatpush1.bf16.msra.mxu0 %v5246
    %5286 = vmatprep.subr.bf16.mxu0 %v5245
    %5287 = vmatpush1.bf16.msra.mxu0 %v5244
    %5288 = vmatprep.subr.bf16.mxu0 %v5243
    %5289 = vmatpush1.bf16.msra.mxu0 %v5242
    %5290 = vmatprep.subr.bf16.mxu0 0
    %5291 = vmatpush2.bf16.msra.mxu0 0
    %5292 = vmatprep.subr.bf16.mxu0 0
    %5293 = vmatpush2.bf16.msra.mxu0 0
    %5294 = vmatprep.subr.bf16.mxu0 0
    %5295 = vmatpush2.bf16.msra.mxu0 0
    %5296 = vmatprep.subr.bf16.mxu0 0
    %5297 = vmatpush2.bf16.msra.mxu0 0
    %5298 = vmatprep.subr.bf16.mxu0 0
    %5299 = vmatpush2.bf16.msra.mxu0 0
    %5300 = vmatprep.subr.bf16.mxu0 0
    %5301 = vmatpush2.bf16.msra.mxu0 0
    %5302 = vmatprep.subr.bf16.mxu0 0
    %5303 = vmatpush2.bf16.msra.mxu0 0
    %5304 = vmatprep.subr.bf16.mxu0 0
    %5305 = vmatpush2.bf16.msra.mxu0 0
    %5306 = vmatprep.mubr.bf16.mxu0 0
    %5307 = vmatmul.mubr.bf16.gmra.mxu0 %v5193
    %v5308 = vpop.f32.mrf.mxu0
    %v5309 = vadd.f32 0.0, %v5308
    %v5310 = vpop.f32.mrf.mxu0
    %v5311 = vadd.f32 0.0, %v5310
    %v5312 = vpop.f32.mrf.mxu0
    %v5313 = vadd.f32 0.0, %v5312
    %v5314 = vpop.f32.mrf.mxu0
    %v5315 = vadd.f32 0.0, %v5314
    %5316 = vdwg.mxu0
    %v5333 = vunpack.c.l.b16 %v4756
    %v5334 = vunpack.c.h.b16 %v4756
    %v5335 = vunpack.c.l.b16 %v4757
    %v5336 = vunpack.c.h.b16 %v4757
    %v5337 = vunpack.c.l.b16 %v4758
    %v5338 = vunpack.c.h.b16 %v4758
    %v5339 = vunpack.c.l.b16 %v4759
    %v5340 = vunpack.c.h.b16 %v4759
    %v5341 = vunpack.c.l.b16 %v4760
    %v5342 = vunpack.c.h.b16 %v4760
    %v5343 = vunpack.c.l.b16 %v4761
    %v5344 = vunpack.c.h.b16 %v4761
    %v5345 = vunpack.c.l.b16 %v4762
    %v5346 = vunpack.c.h.b16 %v4762
    %v5347 = vunpack.c.l.b16 %v4763
    %v5348 = vunpack.c.h.b16 %v4763
    %v5349 = vunpack.c.l.b16 %v4764
    %v5350 = vunpack.c.h.b16 %v4764
    %v5351 = vunpack.c.l.b16 %v4765
    %v5352 = vunpack.c.h.b16 %v4765
    %v5353 = vunpack.c.l.b16 %v4766
    %v5354 = vunpack.c.h.b16 %v4766
    %v5355 = vunpack.c.l.b16 %v4767
    %v5356 = vunpack.c.h.b16 %v4767
    %v5357 = vunpack.c.l.b16 %v4768
    %v5358 = vunpack.c.h.b16 %v4768
    %v5359 = vunpack.c.l.b16 %v4769
    %v5360 = vunpack.c.h.b16 %v4769
    %v5361 = vunpack.c.l.b16 %v4770
    %v5362 = vunpack.c.h.b16 %v4770
    %v5363 = vunpack.c.l.b16 %v4771
    %v5364 = vunpack.c.h.b16 %v4771
    %v5365 = vpack.c.b16 %v5335, %v5333
    %v5366 = vpack.c.b16 %v5336, %v5334
    %v5367 = vpack.c.b16 %v5339, %v5337
    %v5368 = vpack.c.b16 %v5340, %v5338
    %v5369 = vpack.c.b16 %v5343, %v5341
    %v5370 = vpack.c.b16 %v5344, %v5342
    %v5371 = vpack.c.b16 %v5347, %v5345
    %v5372 = vpack.c.b16 %v5348, %v5346
    %v5373 = vpack.c.b16 %v5351, %v5349
    %v5374 = vpack.c.b16 %v5352, %v5350
    %v5375 = vpack.c.b16 %v5355, %v5353
    %v5376 = vpack.c.b16 %v5356, %v5354
    %v5377 = vpack.c.b16 %v5359, %v5357
    %v5378 = vpack.c.b16 %v5360, %v5358
    %v5379 = vpack.c.b16 %v5363, %v5361
    %v5380 = vpack.c.b16 %v5364, %v5362
    %5397 = vmatprep.subr.bf16.mxu0 %v5380
    %5398 = vmatpush1.bf16.msra.mxu0 %v5379
    %5399 = vmatprep.subr.bf16.mxu0 %v5378
    %5400 = vmatpush1.bf16.msra.mxu0 %v5377
    %5401 = vmatprep.subr.bf16.mxu0 %v5376
    %5402 = vmatpush1.bf16.msra.mxu0 %v5375
    %5403 = vmatprep.subr.bf16.mxu0 %v5374
    %5404 = vmatpush1.bf16.msra.mxu0 %v5373
    %5405 = vmatprep.subr.bf16.mxu0 %v5372
    %5406 = vmatpush1.bf16.msra.mxu0 %v5371
    %5407 = vmatprep.subr.bf16.mxu0 %v5370
    %5408 = vmatpush1.bf16.msra.mxu0 %v5369
    %5409 = vmatprep.subr.bf16.mxu0 %v5368
    %5410 = vmatpush1.bf16.msra.mxu0 %v5367
    %5411 = vmatprep.subr.bf16.mxu0 %v5366
    %5412 = vmatpush1.bf16.msra.mxu0 %v5365
    %5413 = vmatprep.subr.bf16.mxu0 0
    %5414 = vmatpush2.bf16.msra.mxu0 0
    %5415 = vmatprep.subr.bf16.mxu0 0
    %5416 = vmatpush2.bf16.msra.mxu0 0
    %5417 = vmatprep.subr.bf16.mxu0 0
    %5418 = vmatpush2.bf16.msra.mxu0 0
    %5419 = vmatprep.subr.bf16.mxu0 0
    %5420 = vmatpush2.bf16.msra.mxu0 0
    %5421 = vmatprep.subr.bf16.mxu0 0
    %5422 = vmatpush2.bf16.msra.mxu0 0
    %5423 = vmatprep.subr.bf16.mxu0 0
    %5424 = vmatpush2.bf16.msra.mxu0 0
    %5425 = vmatprep.subr.bf16.mxu0 0
    %5426 = vmatpush2.bf16.msra.mxu0 0
    %5427 = vmatprep.subr.bf16.mxu0 0
    %5428 = vmatpush2.bf16.msra.mxu0 0
    %5429 = vmatprep.mubr.bf16.mxu0 0
    %5430 = vmatmul.mubr.bf16.gmra.mxu0 %v4990
    %v5431 = vpop.f32.mrf.mxu0
    %v5432 = vadd.f32 %v5309, %v5431
    %v5433 = vpop.f32.mrf.mxu0
    %v5434 = vadd.f32 %v5311, %v5433
    %v5435 = vpop.f32.mrf.mxu0
    %v5436 = vadd.f32 %v5313, %v5435
    %v5437 = vpop.f32.mrf.mxu0
    %v5438 = vadd.f32 %v5315, %v5437
    %5439 = vdwg.mxu0
    %v5440 = vadd.f32 %v4010, %v5432
    %v5441 = vadd.f32 %v4011, %v5434
    %v5442 = vadd.f32 %v4012, %v5436
    %v5443 = vadd.f32 %v4013, %v5438
    %s5444 = scalar_lea.vmem %s7, 2
    %v5445 = vld [vmem:[%s5444] sm:$0x3]
    %v5447 = vlaneseq
    %v5448 = vshrl.u32 %v5447, 7
    %v5449 = vsub.s32 0, %v5448
    %v5450 = vrot.slane %v5445, %v5449
    %v5451 = vlaneseq
    %v5452 = vshrl.u32 %v5451, 7
    %v5453 = vsub.s32 1, %v5452
    %v5454 = vrot.slane %v5445, %v5453
    %v5457 = vadd.f32 %v5440, %v5450
    %v5458 = vadd.f32 %v5441, %v5454
    %v5459 = vadd.f32 %v5442, %v5450
    %v5460 = vadd.f32 %v5443, %v5454
    %s5461 = scalar_lea.vmem [#allocation14], 2
    %v5462 = vld [vmem:[%s5461] sm:$0x3]
    %s5463 = scalar_lea.vmem [#allocation16], 2
    %v5464 = vld [vmem:[%s5463] sm:$0x3]
    %v5465 = vadd.f32 %v5457, %v5458
    %5466 = vadd.xlane.f32.xlu0 %v5465
    %v5467 = vpop.xlane.xlu0 %5466
    %v5468 = vadd.f32 %v5459, %v5460
    %5469 = vadd.xlane.f32.xlu0 %v5468
    %v5470 = vpop.xlane.xlu0 %5469
    %v5471 = vmul.f32 %v5467, %v278
    %v5472 = vmul.f32 %v5470, %v278
    %v5473 = vsub.f32 %v5457, %v5471
    %v5474 = vsub.f32 %v5458, %v5471
    %v5475 = vsub.f32 %v5459, %v5472
    %v5476 = vsub.f32 %v5460, %v5472
    %v5477 = vmul.f32 %v5473, %v5473
    %v5478 = vmul.f32 %v5474, %v5474
    %v5479 = vmul.f32 %v5475, %v5475
    %v5480 = vmul.f32 %v5476, %v5476
    %v5481 = vadd.f32 %v5477, %v5478
    %5482 = vadd.xlane.f32.xlu0 %v5481
    %v5483 = vpop.xlane.xlu0 %5482
    %v5484 = vadd.f32 %v5479, %v5480
    %5485 = vadd.xlane.f32.xlu0 %v5484
    %v5486 = vpop.xlane.xlu0 %5485
    %v5487 = vmul.f32 %v5483, %v278
    %v5488 = vmul.f32 %v5486, %v278
    %v5489 = vadd.f32 %v5487, 1e-12
    %v5490 = vadd.f32 %v5488, 1e-12
    %v5491 = vrsqrt.pop %v5489
    %v5492 = vrsqrt.pop %v5490
    %v5493 = vmul.f32 %v5473, %v5491
    %v5494 = vmul.f32 %v5474, %v5491
    %v5495 = vmul.f32 %v5475, %v5492
    %v5496 = vmul.f32 %v5476, %v5492
    %v5498 = vlaneseq
    %v5499 = vshrl.u32 %v5498, 7
    %v5500 = vsub.s32 0, %v5499
    %v5501 = vrot.slane %v5462, %v5500
    %v5502 = vlaneseq
    %v5503 = vshrl.u32 %v5502, 7
    %v5504 = vsub.s32 1, %v5503
    %v5505 = vrot.slane %v5462, %v5504
    %v5508 = vmul.f32 %v5493, %v5501
    %v5509 = vmul.f32 %v5494, %v5505
    %v5510 = vmul.f32 %v5495, %v5501
    %v5511 = vmul.f32 %v5496, %v5505
    %v5513 = vlaneseq
    %v5514 = vshrl.u32 %v5513, 7
    %v5515 = vsub.s32 0, %v5514
    %v5516 = vrot.slane %v5464, %v5515
    %v5517 = vlaneseq
    %v5518 = vshrl.u32 %v5517, 7
    %v5519 = vsub.s32 1, %v5518
    %v5520 = vrot.slane %v5464, %v5519
    %v5523 = vadd.f32 %v5508, %v5516
    %v5524 = vadd.f32 %v5509, %v5520
    %v5525 = vadd.f32 %v5510, %v5516
    %v5526 = vadd.f32 %v5511, %v5520
    %v5527 = vpack.c.bf16 %v5525, %v5523
    %v5528 = vpack.c.bf16 %v5526, %v5524
    %s5529 = scalar_lea.vmem [#allocation17], 1024
    %v5530 = vld [vmem:[%s5529] sm:$0xff]
    %v5531 = vld [vmem:[%s5529 + $0x8] sm:$0xff]
    %v5532 = vld [vmem:[%s5529 + $0x10] sm:$0xff]
    %v5533 = vld [vmem:[%s5529 + $0x18] sm:$0xff]
    %v5534 = vld [vmem:[%s5529 + $0x20] sm:$0xff]
    %v5535 = vld [vmem:[%s5529 + $0x28] sm:$0xff]
    %v5536 = vld [vmem:[%s5529 + $0x30] sm:$0xff]
    %v5537 = vld [vmem:[%s5529 + $0x38] sm:$0xff]
    %v5538 = vld [vmem:[%s5529 + $0x40] sm:$0xff]
    %v5539 = vld [vmem:[%s5529 + $0x48] sm:$0xff]
    %v5540 = vld [vmem:[%s5529 + $0x50] sm:$0xff]
    %v5541 = vld [vmem:[%s5529 + $0x58] sm:$0xff]
    %v5542 = vld [vmem:[%s5529 + $0x60] sm:$0xff]
    %v5543 = vld [vmem:[%s5529 + $0x68] sm:$0xff]
    %v5544 = vld [vmem:[%s5529 + $0x70] sm:$0xff]
    %v5545 = vld [vmem:[%s5529 + $0x78] sm:$0xff]
    %v5546 = vld [vmem:[%s5529 + $0x80] sm:$0xff]
    %v5547 = vld [vmem:[%s5529 + $0x88] sm:$0xff]
    %v5548 = vld [vmem:[%s5529 + $0x90] sm:$0xff]
    %v5549 = vld [vmem:[%s5529 + $0x98] sm:$0xff]
    %v5550 = vld [vmem:[%s5529 + $0xa0] sm:$0xff]
    %v5551 = vld [vmem:[%s5529 + $0xa8] sm:$0xff]
    %v5552 = vld [vmem:[%s5529 + $0xb0] sm:$0xff]
    %v5553 = vld [vmem:[%s5529 + $0xb8] sm:$0xff]
    %v5554 = vld [vmem:[%s5529 + $0xc0] sm:$0xff]
    %v5555 = vld [vmem:[%s5529 + $0xc8] sm:$0xff]
    %v5556 = vld [vmem:[%s5529 + $0xd0] sm:$0xff]
    %v5557 = vld [vmem:[%s5529 + $0xd8] sm:$0xff]
    %v5558 = vld [vmem:[%s5529 + $0xe0] sm:$0xff]
    %v5559 = vld [vmem:[%s5529 + $0xe8] sm:$0xff]
    %v5560 = vld [vmem:[%s5529 + $0xf0] sm:$0xff]
    %v5561 = vld [vmem:[%s5529 + $0xf8] sm:$0xff]
    %v5562 = vld [vmem:[%s5529 + $0x100] sm:$0xff]
    %v5563 = vld [vmem:[%s5529 + $0x108] sm:$0xff]
    %v5564 = vld [vmem:[%s5529 + $0x110] sm:$0xff]
    %v5565 = vld [vmem:[%s5529 + $0x118] sm:$0xff]
    %v5566 = vld [vmem:[%s5529 + $0x120] sm:$0xff]
    %v5567 = vld [vmem:[%s5529 + $0x128] sm:$0xff]
    %v5568 = vld [vmem:[%s5529 + $0x130] sm:$0xff]
    %v5569 = vld [vmem:[%s5529 + $0x138] sm:$0xff]
    %v5570 = vld [vmem:[%s5529 + $0x140] sm:$0xff]
    %v5571 = vld [vmem:[%s5529 + $0x148] sm:$0xff]
    %v5572 = vld [vmem:[%s5529 + $0x150] sm:$0xff]
    %v5573 = vld [vmem:[%s5529 + $0x158] sm:$0xff]
    %v5574 = vld [vmem:[%s5529 + $0x160] sm:$0xff]
    %v5575 = vld [vmem:[%s5529 + $0x168] sm:$0xff]
    %v5576 = vld [vmem:[%s5529 + $0x170] sm:$0xff]
    %v5577 = vld [vmem:[%s5529 + $0x178] sm:$0xff]
    %v5578 = vld [vmem:[%s5529 + $0x180] sm:$0xff]
    %v5579 = vld [vmem:[%s5529 + $0x188] sm:$0xff]
    %v5580 = vld [vmem:[%s5529 + $0x190] sm:$0xff]
    %v5581 = vld [vmem:[%s5529 + $0x198] sm:$0xff]
    %v5582 = vld [vmem:[%s5529 + $0x1a0] sm:$0xff]
    %v5583 = vld [vmem:[%s5529 + $0x1a8] sm:$0xff]
    %v5584 = vld [vmem:[%s5529 + $0x1b0] sm:$0xff]
    %v5585 = vld [vmem:[%s5529 + $0x1b8] sm:$0xff]
    %v5586 = vld [vmem:[%s5529 + $0x1c0] sm:$0xff]
    %v5587 = vld [vmem:[%s5529 + $0x1c8] sm:$0xff]
    %v5588 = vld [vmem:[%s5529 + $0x1d0] sm:$0xff]
    %v5589 = vld [vmem:[%s5529 + $0x1d8] sm:$0xff]
    %v5590 = vld [vmem:[%s5529 + $0x1e0] sm:$0xff]
    %v5591 = vld [vmem:[%s5529 + $0x1e8] sm:$0xff]
    %v5592 = vld [vmem:[%s5529 + $0x1f0] sm:$0xff]
    %v5593 = vld [vmem:[%s5529 + $0x1f8] sm:$0xff]
    %v5594 = vld [vmem:[%s5529 + $0x200] sm:$0xff]
    %v5595 = vld [vmem:[%s5529 + $0x208] sm:$0xff]
    %v5596 = vld [vmem:[%s5529 + $0x210] sm:$0xff]
    %v5597 = vld [vmem:[%s5529 + $0x218] sm:$0xff]
    %v5598 = vld [vmem:[%s5529 + $0x220] sm:$0xff]
    %v5599 = vld [vmem:[%s5529 + $0x228] sm:$0xff]
    %v5600 = vld [vmem:[%s5529 + $0x230] sm:$0xff]
    %v5601 = vld [vmem:[%s5529 + $0x238] sm:$0xff]
    %v5602 = vld [vmem:[%s5529 + $0x240] sm:$0xff]
    %v5603 = vld [vmem:[%s5529 + $0x248] sm:$0xff]
    %v5604 = vld [vmem:[%s5529 + $0x250] sm:$0xff]
    %v5605 = vld [vmem:[%s5529 + $0x258] sm:$0xff]
    %v5606 = vld [vmem:[%s5529 + $0x260] sm:$0xff]
    %v5607 = vld [vmem:[%s5529 + $0x268] sm:$0xff]
    %v5608 = vld [vmem:[%s5529 + $0x270] sm:$0xff]
    %v5609 = vld [vmem:[%s5529 + $0x278] sm:$0xff]
    %v5610 = vld [vmem:[%s5529 + $0x280] sm:$0xff]
    %v5611 = vld [vmem:[%s5529 + $0x288] sm:$0xff]
    %v5612 = vld [vmem:[%s5529 + $0x290] sm:$0xff]
    %v5613 = vld [vmem:[%s5529 + $0x298] sm:$0xff]
    %v5614 = vld [vmem:[%s5529 + $0x2a0] sm:$0xff]
    %v5615 = vld [vmem:[%s5529 + $0x2a8] sm:$0xff]
    %v5616 = vld [vmem:[%s5529 + $0x2b0] sm:$0xff]
    %v5617 = vld [vmem:[%s5529 + $0x2b8] sm:$0xff]
    %v5618 = vld [vmem:[%s5529 + $0x2c0] sm:$0xff]
    %v5619 = vld [vmem:[%s5529 + $0x2c8] sm:$0xff]
    %v5620 = vld [vmem:[%s5529 + $0x2d0] sm:$0xff]
    %v5621 = vld [vmem:[%s5529 + $0x2d8] sm:$0xff]
    %v5622 = vld [vmem:[%s5529 + $0x2e0] sm:$0xff]
    %v5623 = vld [vmem:[%s5529 + $0x2e8] sm:$0xff]
    %v5624 = vld [vmem:[%s5529 + $0x2f0] sm:$0xff]
    %v5625 = vld [vmem:[%s5529 + $0x2f8] sm:$0xff]
    %v5626 = vld [vmem:[%s5529 + $0x300] sm:$0xff]
    %v5627 = vld [vmem:[%s5529 + $0x308] sm:$0xff]
    %v5628 = vld [vmem:[%s5529 + $0x310] sm:$0xff]
    %v5629 = vld [vmem:[%s5529 + $0x318] sm:$0xff]
    %v5630 = vld [vmem:[%s5529 + $0x320] sm:$0xff]
    %v5631 = vld [vmem:[%s5529 + $0x328] sm:$0xff]
    %v5632 = vld [vmem:[%s5529 + $0x330] sm:$0xff]
    %v5633 = vld [vmem:[%s5529 + $0x338] sm:$0xff]
    %v5634 = vld [vmem:[%s5529 + $0x340] sm:$0xff]
    %v5635 = vld [vmem:[%s5529 + $0x348] sm:$0xff]
    %v5636 = vld [vmem:[%s5529 + $0x350] sm:$0xff]
    %v5637 = vld [vmem:[%s5529 + $0x358] sm:$0xff]
    %v5638 = vld [vmem:[%s5529 + $0x360] sm:$0xff]
    %v5639 = vld [vmem:[%s5529 + $0x368] sm:$0xff]
    %v5640 = vld [vmem:[%s5529 + $0x370] sm:$0xff]
    %v5641 = vld [vmem:[%s5529 + $0x378] sm:$0xff]
    %v5642 = vld [vmem:[%s5529 + $0x380] sm:$0xff]
    %v5643 = vld [vmem:[%s5529 + $0x388] sm:$0xff]
    %v5644 = vld [vmem:[%s5529 + $0x390] sm:$0xff]
    %v5645 = vld [vmem:[%s5529 + $0x398] sm:$0xff]
    %v5646 = vld [vmem:[%s5529 + $0x3a0] sm:$0xff]
    %v5647 = vld [vmem:[%s5529 + $0x3a8] sm:$0xff]
    %v5648 = vld [vmem:[%s5529 + $0x3b0] sm:$0xff]
    %v5649 = vld [vmem:[%s5529 + $0x3b8] sm:$0xff]
    %v5650 = vld [vmem:[%s5529 + $0x3c0] sm:$0xff]
    %v5651 = vld [vmem:[%s5529 + $0x3c8] sm:$0xff]
    %v5652 = vld [vmem:[%s5529 + $0x3d0] sm:$0xff]
    %v5653 = vld [vmem:[%s5529 + $0x3d8] sm:$0xff]
    %v5654 = vld [vmem:[%s5529 + $0x3e0] sm:$0xff]
    %v5655 = vld [vmem:[%s5529 + $0x3e8] sm:$0xff]
    %v5656 = vld [vmem:[%s5529 + $0x3f0] sm:$0xff]
    %v5657 = vld [vmem:[%s5529 + $0x3f8] sm:$0xff]
    %s5658 = scalar_lea.vmem %s11, 8
    %v5659 = vld [vmem:[%s5658] sm:$0xff]
    %v5661 = vlaneseq
    %v5662 = vshrl.u32 %v5661, 7
    %v5663 = vsub.s32 0, %v5662
    %v5664 = vrot.slane %v5659, %v5663
    %v5665 = vlaneseq
    %v5666 = vshrl.u32 %v5665, 7
    %v5667 = vsub.s32 1, %v5666
    %v5668 = vrot.slane %v5659, %v5667
    %v5669 = vlaneseq
    %v5670 = vshrl.u32 %v5669, 7
    %v5671 = vsub.s32 2, %v5670
    %v5672 = vrot.slane %v5659, %v5671
    %v5673 = vlaneseq
    %v5674 = vshrl.u32 %v5673, 7
    %v5675 = vsub.s32 3, %v5674
    %v5676 = vrot.slane %v5659, %v5675
    %v5677 = vlaneseq
    %v5678 = vshrl.u32 %v5677, 7
    %v5679 = vsub.s32 4, %v5678
    %v5680 = vrot.slane %v5659, %v5679
    %v5681 = vlaneseq
    %v5682 = vshrl.u32 %v5681, 7
    %v5683 = vsub.s32 5, %v5682
    %v5684 = vrot.slane %v5659, %v5683
    %v5685 = vlaneseq
    %v5686 = vshrl.u32 %v5685, 7
    %v5687 = vsub.s32 6, %v5686
    %v5688 = vrot.slane %v5659, %v5687
    %v5689 = vlaneseq
    %v5690 = vshrl.u32 %v5689, 7
    %v5691 = vsub.s32 7, %v5690
    %v5692 = vrot.slane %v5659, %v5691
    %v5829 = vunpack.c.l.b16 %v5530
    %v5830 = vunpack.c.h.b16 %v5530
    %v5831 = vunpack.c.l.b16 %v5531
    %v5832 = vunpack.c.h.b16 %v5531
    %v5833 = vunpack.c.l.b16 %v5532
    %v5834 = vunpack.c.h.b16 %v5532
    %v5835 = vunpack.c.l.b16 %v5533
    %v5836 = vunpack.c.h.b16 %v5533
    %v5837 = vunpack.c.l.b16 %v5534
    %v5838 = vunpack.c.h.b16 %v5534
    %v5839 = vunpack.c.l.b16 %v5535
    %v5840 = vunpack.c.h.b16 %v5535
    %v5841 = vunpack.c.l.b16 %v5536
    %v5842 = vunpack.c.h.b16 %v5536
    %v5843 = vunpack.c.l.b16 %v5537
    %v5844 = vunpack.c.h.b16 %v5537
    %v5845 = vunpack.c.l.b16 %v5538
    %v5846 = vunpack.c.h.b16 %v5538
    %v5847 = vunpack.c.l.b16 %v5539
    %v5848 = vunpack.c.h.b16 %v5539
    %v5849 = vunpack.c.l.b16 %v5540
    %v5850 = vunpack.c.h.b16 %v5540
    %v5851 = vunpack.c.l.b16 %v5541
    %v5852 = vunpack.c.h.b16 %v5541
    %v5853 = vunpack.c.l.b16 %v5542
    %v5854 = vunpack.c.h.b16 %v5542
    %v5855 = vunpack.c.l.b16 %v5543
    %v5856 = vunpack.c.h.b16 %v5543
    %v5857 = vunpack.c.l.b16 %v5544
    %v5858 = vunpack.c.h.b16 %v5544
    %v5859 = vunpack.c.l.b16 %v5545
    %v5860 = vunpack.c.h.b16 %v5545
    %v5861 = vunpack.c.l.b16 %v5546
    %v5862 = vunpack.c.h.b16 %v5546
    %v5863 = vunpack.c.l.b16 %v5547
    %v5864 = vunpack.c.h.b16 %v5547
    %v5865 = vunpack.c.l.b16 %v5548
    %v5866 = vunpack.c.h.b16 %v5548
    %v5867 = vunpack.c.l.b16 %v5549
    %v5868 = vunpack.c.h.b16 %v5549
    %v5869 = vunpack.c.l.b16 %v5550
    %v5870 = vunpack.c.h.b16 %v5550
    %v5871 = vunpack.c.l.b16 %v5551
    %v5872 = vunpack.c.h.b16 %v5551
    %v5873 = vunpack.c.l.b16 %v5552
    %v5874 = vunpack.c.h.b16 %v5552
    %v5875 = vunpack.c.l.b16 %v5553
    %v5876 = vunpack.c.h.b16 %v5553
    %v5877 = vunpack.c.l.b16 %v5554
    %v5878 = vunpack.c.h.b16 %v5554
    %v5879 = vunpack.c.l.b16 %v5555
    %v5880 = vunpack.c.h.b16 %v5555
    %v5881 = vunpack.c.l.b16 %v5556
    %v5882 = vunpack.c.h.b16 %v5556
    %v5883 = vunpack.c.l.b16 %v5557
    %v5884 = vunpack.c.h.b16 %v5557
    %v5885 = vunpack.c.l.b16 %v5558
    %v5886 = vunpack.c.h.b16 %v5558
    %v5887 = vunpack.c.l.b16 %v5559
    %v5888 = vunpack.c.h.b16 %v5559
    %v5889 = vunpack.c.l.b16 %v5560
    %v5890 = vunpack.c.h.b16 %v5560
    %v5891 = vunpack.c.l.b16 %v5561
    %v5892 = vunpack.c.h.b16 %v5561
    %v5893 = vunpack.c.l.b16 %v5562
    %v5894 = vunpack.c.h.b16 %v5562
    %v5895 = vunpack.c.l.b16 %v5563
    %v5896 = vunpack.c.h.b16 %v5563
    %v5897 = vunpack.c.l.b16 %v5564
    %v5898 = vunpack.c.h.b16 %v5564
    %v5899 = vunpack.c.l.b16 %v5565
    %v5900 = vunpack.c.h.b16 %v5565
    %v5901 = vunpack.c.l.b16 %v5566
    %v5902 = vunpack.c.h.b16 %v5566
    %v5903 = vunpack.c.l.b16 %v5567
    %v5904 = vunpack.c.h.b16 %v5567
    %v5905 = vunpack.c.l.b16 %v5568
    %v5906 = vunpack.c.h.b16 %v5568
    %v5907 = vunpack.c.l.b16 %v5569
    %v5908 = vunpack.c.h.b16 %v5569
    %v5909 = vunpack.c.l.b16 %v5570
    %v5910 = vunpack.c.h.b16 %v5570
    %v5911 = vunpack.c.l.b16 %v5571
    %v5912 = vunpack.c.h.b16 %v5571
    %v5913 = vunpack.c.l.b16 %v5572
    %v5914 = vunpack.c.h.b16 %v5572
    %v5915 = vunpack.c.l.b16 %v5573
    %v5916 = vunpack.c.h.b16 %v5573
    %v5917 = vunpack.c.l.b16 %v5574
    %v5918 = vunpack.c.h.b16 %v5574
    %v5919 = vunpack.c.l.b16 %v5575
    %v5920 = vunpack.c.h.b16 %v5575
    %v5921 = vunpack.c.l.b16 %v5576
    %v5922 = vunpack.c.h.b16 %v5576
    %v5923 = vunpack.c.l.b16 %v5577
    %v5924 = vunpack.c.h.b16 %v5577
    %v5925 = vunpack.c.l.b16 %v5578
    %v5926 = vunpack.c.h.b16 %v5578
    %v5927 = vunpack.c.l.b16 %v5579
    %v5928 = vunpack.c.h.b16 %v5579
    %v5929 = vunpack.c.l.b16 %v5580
    %v5930 = vunpack.c.h.b16 %v5580
    %v5931 = vunpack.c.l.b16 %v5581
    %v5932 = vunpack.c.h.b16 %v5581
    %v5933 = vunpack.c.l.b16 %v5582
    %v5934 = vunpack.c.h.b16 %v5582
    %v5935 = vunpack.c.l.b16 %v5583
    %v5936 = vunpack.c.h.b16 %v5583
    %v5937 = vunpack.c.l.b16 %v5584
    %v5938 = vunpack.c.h.b16 %v5584
    %v5939 = vunpack.c.l.b16 %v5585
    %v5940 = vunpack.c.h.b16 %v5585
    %v5941 = vunpack.c.l.b16 %v5586
    %v5942 = vunpack.c.h.b16 %v5586
    %v5943 = vunpack.c.l.b16 %v5587
    %v5944 = vunpack.c.h.b16 %v5587
    %v5945 = vunpack.c.l.b16 %v5588
    %v5946 = vunpack.c.h.b16 %v5588
    %v5947 = vunpack.c.l.b16 %v5589
    %v5948 = vunpack.c.h.b16 %v5589
    %v5949 = vunpack.c.l.b16 %v5590
    %v5950 = vunpack.c.h.b16 %v5590
    %v5951 = vunpack.c.l.b16 %v5591
    %v5952 = vunpack.c.h.b16 %v5591
    %v5953 = vunpack.c.l.b16 %v5592
    %v5954 = vunpack.c.h.b16 %v5592
    %v5955 = vunpack.c.l.b16 %v5593
    %v5956 = vunpack.c.h.b16 %v5593
    %v5957 = vunpack.c.l.b16 %v5594
    %v5958 = vunpack.c.h.b16 %v5594
    %v5959 = vunpack.c.l.b16 %v5595
    %v5960 = vunpack.c.h.b16 %v5595
    %v5961 = vunpack.c.l.b16 %v5596
    %v5962 = vunpack.c.h.b16 %v5596
    %v5963 = vunpack.c.l.b16 %v5597
    %v5964 = vunpack.c.h.b16 %v5597
    %v5965 = vunpack.c.l.b16 %v5598
    %v5966 = vunpack.c.h.b16 %v5598
    %v5967 = vunpack.c.l.b16 %v5599
    %v5968 = vunpack.c.h.b16 %v5599
    %v5969 = vunpack.c.l.b16 %v5600
    %v5970 = vunpack.c.h.b16 %v5600
    %v5971 = vunpack.c.l.b16 %v5601
    %v5972 = vunpack.c.h.b16 %v5601
    %v5973 = vunpack.c.l.b16 %v5602
    %v5974 = vunpack.c.h.b16 %v5602
    %v5975 = vunpack.c.l.b16 %v5603
    %v5976 = vunpack.c.h.b16 %v5603
    %v5977 = vunpack.c.l.b16 %v5604
    %v5978 = vunpack.c.h.b16 %v5604
    %v5979 = vunpack.c.l.b16 %v5605
    %v5980 = vunpack.c.h.b16 %v5605
    %v5981 = vunpack.c.l.b16 %v5606
    %v5982 = vunpack.c.h.b16 %v5606
    %v5983 = vunpack.c.l.b16 %v5607
    %v5984 = vunpack.c.h.b16 %v5607
    %v5985 = vunpack.c.l.b16 %v5608
    %v5986 = vunpack.c.h.b16 %v5608
    %v5987 = vunpack.c.l.b16 %v5609
    %v5988 = vunpack.c.h.b16 %v5609
    %v5989 = vunpack.c.l.b16 %v5610
    %v5990 = vunpack.c.h.b16 %v5610
    %v5991 = vunpack.c.l.b16 %v5611
    %v5992 = vunpack.c.h.b16 %v5611
    %v5993 = vunpack.c.l.b16 %v5612
    %v5994 = vunpack.c.h.b16 %v5612
    %v5995 = vunpack.c.l.b16 %v5613
    %v5996 = vunpack.c.h.b16 %v5613
    %v5997 = vunpack.c.l.b16 %v5614
    %v5998 = vunpack.c.h.b16 %v5614
    %v5999 = vunpack.c.l.b16 %v5615
    %v6000 = vunpack.c.h.b16 %v5615
    %v6001 = vunpack.c.l.b16 %v5616
    %v6002 = vunpack.c.h.b16 %v5616
    %v6003 = vunpack.c.l.b16 %v5617
    %v6004 = vunpack.c.h.b16 %v5617
    %v6005 = vunpack.c.l.b16 %v5618
    %v6006 = vunpack.c.h.b16 %v5618
    %v6007 = vunpack.c.l.b16 %v5619
    %v6008 = vunpack.c.h.b16 %v5619
    %v6009 = vunpack.c.l.b16 %v5620
    %v6010 = vunpack.c.h.b16 %v5620
    %v6011 = vunpack.c.l.b16 %v5621
    %v6012 = vunpack.c.h.b16 %v5621
    %v6013 = vunpack.c.l.b16 %v5622
    %v6014 = vunpack.c.h.b16 %v5622
    %v6015 = vunpack.c.l.b16 %v5623
    %v6016 = vunpack.c.h.b16 %v5623
    %v6017 = vunpack.c.l.b16 %v5624
    %v6018 = vunpack.c.h.b16 %v5624
    %v6019 = vunpack.c.l.b16 %v5625
    %v6020 = vunpack.c.h.b16 %v5625
    %v6021 = vunpack.c.l.b16 %v5626
    %v6022 = vunpack.c.h.b16 %v5626
    %v6023 = vunpack.c.l.b16 %v5627
    %v6024 = vunpack.c.h.b16 %v5627
    %v6025 = vunpack.c.l.b16 %v5628
    %v6026 = vunpack.c.h.b16 %v5628
    %v6027 = vunpack.c.l.b16 %v5629
    %v6028 = vunpack.c.h.b16 %v5629
    %v6029 = vunpack.c.l.b16 %v5630
    %v6030 = vunpack.c.h.b16 %v5630
    %v6031 = vunpack.c.l.b16 %v5631
    %v6032 = vunpack.c.h.b16 %v5631
    %v6033 = vunpack.c.l.b16 %v5632
    %v6034 = vunpack.c.h.b16 %v5632
    %v6035 = vunpack.c.l.b16 %v5633
    %v6036 = vunpack.c.h.b16 %v5633
    %v6037 = vunpack.c.l.b16 %v5634
    %v6038 = vunpack.c.h.b16 %v5634
    %v6039 = vunpack.c.l.b16 %v5635
    %v6040 = vunpack.c.h.b16 %v5635
    %v6041 = vunpack.c.l.b16 %v5636
    %v6042 = vunpack.c.h.b16 %v5636
    %v6043 = vunpack.c.l.b16 %v5637
    %v6044 = vunpack.c.h.b16 %v5637
    %v6045 = vunpack.c.l.b16 %v5638
    %v6046 = vunpack.c.h.b16 %v5638
    %v6047 = vunpack.c.l.b16 %v5639
    %v6048 = vunpack.c.h.b16 %v5639
    %v6049 = vunpack.c.l.b16 %v5640
    %v6050 = vunpack.c.h.b16 %v5640
    %v6051 = vunpack.c.l.b16 %v5641
    %v6052 = vunpack.c.h.b16 %v5641
    %v6053 = vunpack.c.l.b16 %v5642
    %v6054 = vunpack.c.h.b16 %v5642
    %v6055 = vunpack.c.l.b16 %v5643
    %v6056 = vunpack.c.h.b16 %v5643
    %v6057 = vunpack.c.l.b16 %v5644
    %v6058 = vunpack.c.h.b16 %v5644
    %v6059 = vunpack.c.l.b16 %v5645
    %v6060 = vunpack.c.h.b16 %v5645
    %v6061 = vunpack.c.l.b16 %v5646
    %v6062 = vunpack.c.h.b16 %v5646
    %v6063 = vunpack.c.l.b16 %v5647
    %v6064 = vunpack.c.h.b16 %v5647
    %v6065 = vunpack.c.l.b16 %v5648
    %v6066 = vunpack.c.h.b16 %v5648
    %v6067 = vunpack.c.l.b16 %v5649
    %v6068 = vunpack.c.h.b16 %v5649
    %v6069 = vunpack.c.l.b16 %v5650
    %v6070 = vunpack.c.h.b16 %v5650
    %v6071 = vunpack.c.l.b16 %v5651
    %v6072 = vunpack.c.h.b16 %v5651
    %v6073 = vunpack.c.l.b16 %v5652
    %v6074 = vunpack.c.h.b16 %v5652
    %v6075 = vunpack.c.l.b16 %v5653
    %v6076 = vunpack.c.h.b16 %v5653
    %v6077 = vunpack.c.l.b16 %v5654
    %v6078 = vunpack.c.h.b16 %v5654
    %v6079 = vunpack.c.l.b16 %v5655
    %v6080 = vunpack.c.h.b16 %v5655
    %v6081 = vunpack.c.l.b16 %v5656
    %v6082 = vunpack.c.h.b16 %v5656
    %v6083 = vunpack.c.l.b16 %v5657
    %v6084 = vunpack.c.h.b16 %v5657
    %v6085 = vpack.c.b16 %v5837, %v5829
    %v6086 = vpack.c.b16 %v5838, %v5830
    %v6087 = vpack.c.b16 %v5839, %v5831
    %v6088 = vpack.c.b16 %v5840, %v5832
    %v6089 = vpack.c.b16 %v5841, %v5833
    %v6090 = vpack.c.b16 %v5842, %v5834
    %v6091 = vpack.c.b16 %v5843, %v5835
    %v6092 = vpack.c.b16 %v5844, %v5836
    %v6093 = vpack.c.b16 %v5853, %v5845
    %v6094 = vpack.c.b16 %v5854, %v5846
    %v6095 = vpack.c.b16 %v5855, %v5847
    %v6096 = vpack.c.b16 %v5856, %v5848
    %v6097 = vpack.c.b16 %v5857, %v5849
    %v6098 = vpack.c.b16 %v5858, %v5850
    %v6099 = vpack.c.b16 %v5859, %v5851
    %v6100 = vpack.c.b16 %v5860, %v5852
    %v6101 = vpack.c.b16 %v5869, %v5861
    %v6102 = vpack.c.b16 %v5870, %v5862
    %v6103 = vpack.c.b16 %v5871, %v5863
    %v6104 = vpack.c.b16 %v5872, %v5864
    %v6105 = vpack.c.b16 %v5873, %v5865
    %v6106 = vpack.c.b16 %v5874, %v5866
    %v6107 = vpack.c.b16 %v5875, %v5867
    %v6108 = vpack.c.b16 %v5876, %v5868
    %v6109 = vpack.c.b16 %v5885, %v5877
    %v6110 = vpack.c.b16 %v5886, %v5878
    %v6111 = vpack.c.b16 %v5887, %v5879
    %v6112 = vpack.c.b16 %v5888, %v5880
    %v6113 = vpack.c.b16 %v5889, %v5881
    %v6114 = vpack.c.b16 %v5890, %v5882
    %v6115 = vpack.c.b16 %v5891, %v5883
    %v6116 = vpack.c.b16 %v5892, %v5884
    %v6117 = vpack.c.b16 %v5901, %v5893
    %v6118 = vpack.c.b16 %v5902, %v5894
    %v6119 = vpack.c.b16 %v5903, %v5895
    %v6120 = vpack.c.b16 %v5904, %v5896
    %v6121 = vpack.c.b16 %v5905, %v5897
    %v6122 = vpack.c.b16 %v5906, %v5898
    %v6123 = vpack.c.b16 %v5907, %v5899
    %v6124 = vpack.c.b16 %v5908, %v5900
    %v6125 = vpack.c.b16 %v5917, %v5909
    %v6126 = vpack.c.b16 %v5918, %v5910
    %v6127 = vpack.c.b16 %v5919, %v5911
    %v6128 = vpack.c.b16 %v5920, %v5912
    %v6129 = vpack.c.b16 %v5921, %v5913
    %v6130 = vpack.c.b16 %v5922, %v5914
    %v6131 = vpack.c.b16 %v5923, %v5915
    %v6132 = vpack.c.b16 %v5924, %v5916
    %v6133 = vpack.c.b16 %v5933, %v5925
    %v6134 = vpack.c.b16 %v5934, %v5926
    %v6135 = vpack.c.b16 %v5935, %v5927
    %v6136 = vpack.c.b16 %v5936, %v5928
    %v6137 = vpack.c.b16 %v5937, %v5929
    %v6138 = vpack.c.b16 %v5938, %v5930
    %v6139 = vpack.c.b16 %v5939, %v5931
    %v6140 = vpack.c.b16 %v5940, %v5932
    %v6141 = vpack.c.b16 %v5949, %v5941
    %v6142 = vpack.c.b16 %v5950, %v5942
    %v6143 = vpack.c.b16 %v5951, %v5943
    %v6144 = vpack.c.b16 %v5952, %v5944
    %v6145 = vpack.c.b16 %v5953, %v5945
    %v6146 = vpack.c.b16 %v5954, %v5946
    %v6147 = vpack.c.b16 %v5955, %v5947
    %v6148 = vpack.c.b16 %v5956, %v5948
    %v6149 = vpack.c.b16 %v5965, %v5957
    %v6150 = vpack.c.b16 %v5966, %v5958
    %v6151 = vpack.c.b16 %v5967, %v5959
    %v6152 = vpack.c.b16 %v5968, %v5960
    %v6153 = vpack.c.b16 %v5969, %v5961
    %v6154 = vpack.c.b16 %v5970, %v5962
    %v6155 = vpack.c.b16 %v5971, %v5963
    %v6156 = vpack.c.b16 %v5972, %v5964
    %v6157 = vpack.c.b16 %v5981, %v5973
    %v6158 = vpack.c.b16 %v5982, %v5974
    %v6159 = vpack.c.b16 %v5983, %v5975
    %v6160 = vpack.c.b16 %v5984, %v5976
    %v6161 = vpack.c.b16 %v5985, %v5977
    %v6162 = vpack.c.b16 %v5986, %v5978
    %v6163 = vpack.c.b16 %v5987, %v5979
    %v6164 = vpack.c.b16 %v5988, %v5980
    %v6165 = vpack.c.b16 %v5997, %v5989
    %v6166 = vpack.c.b16 %v5998, %v5990
    %v6167 = vpack.c.b16 %v5999, %v5991
    %v6168 = vpack.c.b16 %v6000, %v5992
    %v6169 = vpack.c.b16 %v6001, %v5993
    %v6170 = vpack.c.b16 %v6002, %v5994
    %v6171 = vpack.c.b16 %v6003, %v5995
    %v6172 = vpack.c.b16 %v6004, %v5996
    %v6173 = vpack.c.b16 %v6013, %v6005
    %v6174 = vpack.c.b16 %v6014, %v6006
    %v6175 = vpack.c.b16 %v6015, %v6007
    %v6176 = vpack.c.b16 %v6016, %v6008
    %v6177 = vpack.c.b16 %v6017, %v6009
    %v6178 = vpack.c.b16 %v6018, %v6010
    %v6179 = vpack.c.b16 %v6019, %v6011
    %v6180 = vpack.c.b16 %v6020, %v6012
    %v6181 = vpack.c.b16 %v6029, %v6021
    %v6182 = vpack.c.b16 %v6030, %v6022
    %v6183 = vpack.c.b16 %v6031, %v6023
    %v6184 = vpack.c.b16 %v6032, %v6024
    %v6185 = vpack.c.b16 %v6033, %v6025
    %v6186 = vpack.c.b16 %v6034, %v6026
    %v6187 = vpack.c.b16 %v6035, %v6027
    %v6188 = vpack.c.b16 %v6036, %v6028
    %v6189 = vpack.c.b16 %v6045, %v6037
    %v6190 = vpack.c.b16 %v6046, %v6038
    %v6191 = vpack.c.b16 %v6047, %v6039
    %v6192 = vpack.c.b16 %v6048, %v6040
    %v6193 = vpack.c.b16 %v6049, %v6041
    %v6194 = vpack.c.b16 %v6050, %v6042
    %v6195 = vpack.c.b16 %v6051, %v6043
    %v6196 = vpack.c.b16 %v6052, %v6044
    %v6197 = vpack.c.b16 %v6061, %v6053
    %v6198 = vpack.c.b16 %v6062, %v6054
    %v6199 = vpack.c.b16 %v6063, %v6055
    %v6200 = vpack.c.b16 %v6064, %v6056
    %v6201 = vpack.c.b16 %v6065, %v6057
    %v6202 = vpack.c.b16 %v6066, %v6058
    %v6203 = vpack.c.b16 %v6067, %v6059
    %v6204 = vpack.c.b16 %v6068, %v6060
    %v6205 = vpack.c.b16 %v6077, %v6069
    %v6206 = vpack.c.b16 %v6078, %v6070
    %v6207 = vpack.c.b16 %v6079, %v6071
    %v6208 = vpack.c.b16 %v6080, %v6072
    %v6209 = vpack.c.b16 %v6081, %v6073
    %v6210 = vpack.c.b16 %v6082, %v6074
    %v6211 = vpack.c.b16 %v6083, %v6075
    %v6212 = vpack.c.b16 %v6084, %v6076
    %6341 = vmatprep.subr.bf16.mxu0 %v6142
    %6342 = vmatpush1.bf16.msra.mxu0 %v6141
    %6343 = vmatprep.subr.bf16.mxu0 %v6134
    %6344 = vmatpush1.bf16.msra.mxu0 %v6133
    %6345 = vmatprep.subr.bf16.mxu0 %v6126
    %6346 = vmatpush1.bf16.msra.mxu0 %v6125
    %6347 = vmatprep.subr.bf16.mxu0 %v6118
    %6348 = vmatpush1.bf16.msra.mxu0 %v6117
    %6349 = vmatprep.subr.bf16.mxu0 %v6110
    %6350 = vmatpush1.bf16.msra.mxu0 %v6109
    %6351 = vmatprep.subr.bf16.mxu0 %v6102
    %6352 = vmatpush1.bf16.msra.mxu0 %v6101
    %6353 = vmatprep.subr.bf16.mxu0 %v6094
    %6354 = vmatpush1.bf16.msra.mxu0 %v6093
    %6355 = vmatprep.subr.bf16.mxu0 %v6086
    %6356 = vmatpush1.bf16.msra.mxu0 %v6085
    %6357 = vmatprep.subr.bf16.mxu0 %v6206
    %6358 = vmatpush2.bf16.msra.mxu0 %v6205
    %6359 = vmatprep.subr.bf16.mxu0 %v6198
    %6360 = vmatpush2.bf16.msra.mxu0 %v6197
    %6361 = vmatprep.subr.bf16.mxu0 %v6190
    %6362 = vmatpush2.bf16.msra.mxu0 %v6189
    %6363 = vmatprep.subr.bf16.mxu0 %v6182
    %6364 = vmatpush2.bf16.msra.mxu0 %v6181
    %6365 = vmatprep.subr.bf16.mxu0 %v6174
    %6366 = vmatpush2.bf16.msra.mxu0 %v6173
    %6367 = vmatprep.subr.bf16.mxu0 %v6166
    %6368 = vmatpush2.bf16.msra.mxu0 %v6165
    %6369 = vmatprep.subr.bf16.mxu0 %v6158
    %6370 = vmatpush2.bf16.msra.mxu0 %v6157
    %6371 = vmatprep.subr.bf16.mxu0 %v6150
    %6372 = vmatpush2.bf16.msra.mxu0 %v6149
    %6373 = vmatprep.mubr.bf16.mxu0 %v5528
    %6374 = vmatmul.mubr.bf16.gmra.mxu0 %v5527
    %v6375 = vpop.f32.mrf.mxu0
    %v6376 = vadd.f32 %v5664, %v6375
    %v6377 = vpop.f32.mrf.mxu0
    %v6378 = vadd.f32 %v5668, %v6377
    %v6379 = vpop.f32.mrf.mxu0
    %v6380 = vadd.f32 %v5664, %v6379
    %v6381 = vpop.f32.mrf.mxu0
    %v6382 = vadd.f32 %v5668, %v6381
    %6383 = vdwg.mxu0
    %6384 = vmatprep.subr.bf16.mxu0 %v6144
    %6385 = vmatpush1.bf16.msra.mxu0 %v6143
    %6386 = vmatprep.subr.bf16.mxu0 %v6136
    %6387 = vmatpush1.bf16.msra.mxu0 %v6135
    %6388 = vmatprep.subr.bf16.mxu0 %v6128
    %6389 = vmatpush1.bf16.msra.mxu0 %v6127
    %6390 = vmatprep.subr.bf16.mxu0 %v6120
    %6391 = vmatpush1.bf16.msra.mxu0 %v6119
    %6392 = vmatprep.subr.bf16.mxu0 %v6112
    %6393 = vmatpush1.bf16.msra.mxu0 %v6111
    %6394 = vmatprep.subr.bf16.mxu0 %v6104
    %6395 = vmatpush1.bf16.msra.mxu0 %v6103
    %6396 = vmatprep.subr.bf16.mxu0 %v6096
    %6397 = vmatpush1.bf16.msra.mxu0 %v6095
    %6398 = vmatprep.subr.bf16.mxu0 %v6088
    %6399 = vmatpush1.bf16.msra.mxu0 %v6087
    %6400 = vmatprep.subr.bf16.mxu0 %v6208
    %6401 = vmatpush2.bf16.msra.mxu0 %v6207
    %6402 = vmatprep.subr.bf16.mxu0 %v6200
    %6403 = vmatpush2.bf16.msra.mxu0 %v6199
    %6404 = vmatprep.subr.bf16.mxu0 %v6192
    %6405 = vmatpush2.bf16.msra.mxu0 %v6191
    %6406 = vmatprep.subr.bf16.mxu0 %v6184
    %6407 = vmatpush2.bf16.msra.mxu0 %v6183
    %6408 = vmatprep.subr.bf16.mxu0 %v6176
    %6409 = vmatpush2.bf16.msra.mxu0 %v6175
    %6410 = vmatprep.subr.bf16.mxu0 %v6168
    %6411 = vmatpush2.bf16.msra.mxu0 %v6167
    %6412 = vmatprep.subr.bf16.mxu0 %v6160
    %6413 = vmatpush2.bf16.msra.mxu0 %v6159
    %6414 = vmatprep.subr.bf16.mxu0 %v6152
    %6415 = vmatpush2.bf16.msra.mxu0 %v6151
    %6416 = vmatprep.mubr.bf16.mxu0 %v5528
    %6417 = vmatmul.mubr.bf16.gmra.mxu0 %v5527
    %v6418 = vpop.f32.mrf.mxu0
    %v6419 = vadd.f32 %v5672, %v6418
    %v6420 = vpop.f32.mrf.mxu0
    %v6421 = vadd.f32 %v5676, %v6420
    %v6422 = vpop.f32.mrf.mxu0
    %v6423 = vadd.f32 %v5672, %v6422
    %v6424 = vpop.f32.mrf.mxu0
    %v6425 = vadd.f32 %v5676, %v6424
    %6426 = vdwg.mxu0
    %6427 = vmatprep.subr.bf16.mxu0 %v6146
    %6428 = vmatpush1.bf16.msra.mxu0 %v6145
    %6429 = vmatprep.subr.bf16.mxu0 %v6138
    %6430 = vmatpush1.bf16.msra.mxu0 %v6137
    %6431 = vmatprep.subr.bf16.mxu0 %v6130
    %6432 = vmatpush1.bf16.msra.mxu0 %v6129
    %6433 = vmatprep.subr.bf16.mxu0 %v6122
    %6434 = vmatpush1.bf16.msra.mxu0 %v6121
    %6435 = vmatprep.subr.bf16.mxu0 %v6114
    %6436 = vmatpush1.bf16.msra.mxu0 %v6113
    %6437 = vmatprep.subr.bf16.mxu0 %v6106
    %6438 = vmatpush1.bf16.msra.mxu0 %v6105
    %6439 = vmatprep.subr.bf16.mxu0 %v6098
    %6440 = vmatpush1.bf16.msra.mxu0 %v6097
    %6441 = vmatprep.subr.bf16.mxu0 %v6090
    %6442 = vmatpush1.bf16.msra.mxu0 %v6089
    %6443 = vmatprep.subr.bf16.mxu0 %v6210
    %6444 = vmatpush2.bf16.msra.mxu0 %v6209
    %6445 = vmatprep.subr.bf16.mxu0 %v6202
    %6446 = vmatpush2.bf16.msra.mxu0 %v6201
    %6447 = vmatprep.subr.bf16.mxu0 %v6194
    %6448 = vmatpush2.bf16.msra.mxu0 %v6193
    %6449 = vmatprep.subr.bf16.mxu0 %v6186
    %6450 = vmatpush2.bf16.msra.mxu0 %v6185
    %6451 = vmatprep.subr.bf16.mxu0 %v6178
    %6452 = vmatpush2.bf16.msra.mxu0 %v6177
    %6453 = vmatprep.subr.bf16.mxu0 %v6170
    %6454 = vmatpush2.bf16.msra.mxu0 %v6169
    %6455 = vmatprep.subr.bf16.mxu0 %v6162
    %6456 = vmatpush2.bf16.msra.mxu0 %v6161
    %6457 = vmatprep.subr.bf16.mxu0 %v6154
    %6458 = vmatpush2.bf16.msra.mxu0 %v6153
    %6459 = vmatprep.mubr.bf16.mxu0 %v5528
    %6460 = vmatmul.mubr.bf16.gmra.mxu0 %v5527
    %v6461 = vpop.f32.mrf.mxu0
    %v6462 = vadd.f32 %v5680, %v6461
    %v6463 = vpop.f32.mrf.mxu0
    %v6464 = vadd.f32 %v5684, %v6463
    %v6465 = vpop.f32.mrf.mxu0
    %v6466 = vadd.f32 %v5680, %v6465
    %v6467 = vpop.f32.mrf.mxu0
    %v6468 = vadd.f32 %v5684, %v6467
    %6469 = vdwg.mxu0
    %6470 = vmatprep.subr.bf16.mxu0 %v6148
    %6471 = vmatpush1.bf16.msra.mxu0 %v6147
    %6472 = vmatprep.subr.bf16.mxu0 %v6140
    %6473 = vmatpush1.bf16.msra.mxu0 %v6139
    %6474 = vmatprep.subr.bf16.mxu0 %v6132
    %6475 = vmatpush1.bf16.msra.mxu0 %v6131
    %6476 = vmatprep.subr.bf16.mxu0 %v6124
    %6477 = vmatpush1.bf16.msra.mxu0 %v6123
    %6478 = vmatprep.subr.bf16.mxu0 %v6116
    %6479 = vmatpush1.bf16.msra.mxu0 %v6115
    %6480 = vmatprep.subr.bf16.mxu0 %v6108
    %6481 = vmatpush1.bf16.msra.mxu0 %v6107
    %6482 = vmatprep.subr.bf16.mxu0 %v6100
    %6483 = vmatpush1.bf16.msra.mxu0 %v6099
    %6484 = vmatprep.subr.bf16.mxu0 %v6092
    %6485 = vmatpush1.bf16.msra.mxu0 %v6091
    %6486 = vmatprep.subr.bf16.mxu0 %v6212
    %6487 = vmatpush2.bf16.msra.mxu0 %v6211
    %6488 = vmatprep.subr.bf16.mxu0 %v6204
    %6489 = vmatpush2.bf16.msra.mxu0 %v6203
    %6490 = vmatprep.subr.bf16.mxu0 %v6196
    %6491 = vmatpush2.bf16.msra.mxu0 %v6195
    %6492 = vmatprep.subr.bf16.mxu0 %v6188
    %6493 = vmatpush2.bf16.msra.mxu0 %v6187
    %6494 = vmatprep.subr.bf16.mxu0 %v6180
    %6495 = vmatpush2.bf16.msra.mxu0 %v6179
    %6496 = vmatprep.subr.bf16.mxu0 %v6172
    %6497 = vmatpush2.bf16.msra.mxu0 %v6171
    %6498 = vmatprep.subr.bf16.mxu0 %v6164
    %6499 = vmatpush2.bf16.msra.mxu0 %v6163
    %6500 = vmatprep.subr.bf16.mxu0 %v6156
    %6501 = vmatpush2.bf16.msra.mxu0 %v6155
    %6502 = vmatprep.mubr.bf16.mxu0 %v5528
    %6503 = vmatmul.mubr.bf16.gmra.mxu0 %v5527
    %v6504 = vpop.f32.mrf.mxu0
    %v6505 = vadd.f32 %v5688, %v6504
    %v6506 = vpop.f32.mrf.mxu0
    %v6507 = vadd.f32 %v5692, %v6506
    %v6508 = vpop.f32.mrf.mxu0
    %v6509 = vadd.f32 %v5688, %v6508
    %v6510 = vpop.f32.mrf.mxu0
    %v6511 = vadd.f32 %v5692, %v6510
    %6512 = vdwg.mxu0
    %v6513 = vmul.f32 %v6376, 0.5
    %v6514 = vmul.f32 %v6378, 0.5
    %v6515 = vmul.f32 %v6419, 0.5
    %v6516 = vmul.f32 %v6421, 0.5
    %v6517 = vmul.f32 %v6462, 0.5
    %v6518 = vmul.f32 %v6464, 0.5
    %v6519 = vmul.f32 %v6505, 0.5
    %v6520 = vmul.f32 %v6507, 0.5
    %v6521 = vmul.f32 %v6380, 0.5
    %v6522 = vmul.f32 %v6382, 0.5
    %v6523 = vmul.f32 %v6423, 0.5
    %v6524 = vmul.f32 %v6425, 0.5
    %v6525 = vmul.f32 %v6466, 0.5
    %v6526 = vmul.f32 %v6468, 0.5
    %v6527 = vmul.f32 %v6509, 0.5
    %v6528 = vmul.f32 %v6511, 0.5
    %v6529 = vmul.f32 %v6376, 0.044715
    %v6530 = vmul.f32 %v6378, 0.044715
    %v6531 = vmul.f32 %v6419, 0.044715
    %v6532 = vmul.f32 %v6421, 0.044715
    %v6533 = vmul.f32 %v6462, 0.044715
    %v6534 = vmul.f32 %v6464, 0.044715
    %v6535 = vmul.f32 %v6505, 0.044715
    %v6536 = vmul.f32 %v6507, 0.044715
    %v6537 = vmul.f32 %v6380, 0.044715
    %v6538 = vmul.f32 %v6382, 0.044715
    %v6539 = vmul.f32 %v6423, 0.044715
    %v6540 = vmul.f32 %v6425, 0.044715
    %v6541 = vmul.f32 %v6466, 0.044715
    %v6542 = vmul.f32 %v6468, 0.044715
    %v6543 = vmul.f32 %v6509, 0.044715
    %v6544 = vmul.f32 %v6511, 0.044715
    %v6545 = vmul.f32 %v6529, %v6376
    %v6546 = vmul.f32 %v6530, %v6378
    %v6547 = vmul.f32 %v6531, %v6419
    %v6548 = vmul.f32 %v6532, %v6421
    %v6549 = vmul.f32 %v6533, %v6462
    %v6550 = vmul.f32 %v6534, %v6464
    %v6551 = vmul.f32 %v6535, %v6505
    %v6552 = vmul.f32 %v6536, %v6507
    %v6553 = vmul.f32 %v6537, %v6380
    %v6554 = vmul.f32 %v6538, %v6382
    %v6555 = vmul.f32 %v6539, %v6423
    %v6556 = vmul.f32 %v6540, %v6425
    %v6557 = vmul.f32 %v6541, %v6466
    %v6558 = vmul.f32 %v6542, %v6468
    %v6559 = vmul.f32 %v6543, %v6509
    %v6560 = vmul.f32 %v6544, %v6511
    %v6561 = vmul.f32 %v6545, %v6376
    %v6562 = vmul.f32 %v6546, %v6378
    %v6563 = vmul.f32 %v6547, %v6419
    %v6564 = vmul.f32 %v6548, %v6421
    %v6565 = vmul.f32 %v6549, %v6462
    %v6566 = vmul.f32 %v6550, %v6464
    %v6567 = vmul.f32 %v6551, %v6505
    %v6568 = vmul.f32 %v6552, %v6507
    %v6569 = vmul.f32 %v6553, %v6380
    %v6570 = vmul.f32 %v6554, %v6382
    %v6571 = vmul.f32 %v6555, %v6423
    %v6572 = vmul.f32 %v6556, %v6425
    %v6573 = vmul.f32 %v6557, %v6466
    %v6574 = vmul.f32 %v6558, %v6468
    %v6575 = vmul.f32 %v6559, %v6509
    %v6576 = vmul.f32 %v6560, %v6511
    %v6577 = vadd.f32 %v6376, %v6561
    %v6578 = vadd.f32 %v6378, %v6562
    %v6579 = vadd.f32 %v6419, %v6563
    %v6580 = vadd.f32 %v6421, %v6564
    %v6581 = vadd.f32 %v6462, %v6565
    %v6582 = vadd.f32 %v6464, %v6566
    %v6583 = vadd.f32 %v6505, %v6567
    %v6584 = vadd.f32 %v6507, %v6568
    %v6585 = vadd.f32 %v6380, %v6569
    %v6586 = vadd.f32 %v6382, %v6570
    %v6587 = vadd.f32 %v6423, %v6571
    %v6588 = vadd.f32 %v6425, %v6572
    %v6589 = vadd.f32 %v6466, %v6573
    %v6590 = vadd.f32 %v6468, %v6574
    %v6591 = vadd.f32 %v6509, %v6575
    %v6592 = vadd.f32 %v6511, %v6576
    %v6593 = vmul.f32 %v6577, 0.7978846
    %v6594 = vmul.f32 %v6578, 0.7978846
    %v6595 = vmul.f32 %v6579, 0.7978846
    %v6596 = vmul.f32 %v6580, 0.7978846
    %v6597 = vmul.f32 %v6581, 0.7978846
    %v6598 = vmul.f32 %v6582, 0.7978846
    %v6599 = vmul.f32 %v6583, 0.7978846
    %v6600 = vmul.f32 %v6584, 0.7978846
    %v6601 = vmul.f32 %v6585, 0.7978846
    %v6602 = vmul.f32 %v6586, 0.7978846
    %v6603 = vmul.f32 %v6587, 0.7978846
    %v6604 = vmul.f32 %v6588, 0.7978846
    %v6605 = vmul.f32 %v6589, 0.7978846
    %v6606 = vmul.f32 %v6590, 0.7978846
    %v6607 = vmul.f32 %v6591, 0.7978846
    %v6608 = vmul.f32 %v6592, 0.7978846
    %v6609 = vtanh.pop %v6593
    %v6610 = vtanh.pop %v6594
    %v6611 = vtanh.pop %v6595
    %v6612 = vtanh.pop %v6596
    %v6613 = vtanh.pop %v6597
    %v6614 = vtanh.pop %v6598
    %v6615 = vtanh.pop %v6599
    %v6616 = vtanh.pop %v6600
    %v6617 = vtanh.pop %v6601
    %v6618 = vtanh.pop %v6602
    %v6619 = vtanh.pop %v6603
    %v6620 = vtanh.pop %v6604
    %v6621 = vtanh.pop %v6605
    %v6622 = vtanh.pop %v6606
    %v6623 = vtanh.pop %v6607
    %v6624 = vtanh.pop %v6608
    %v6625 = vadd.f32 %v6609, 1.0
    %v6626 = vadd.f32 %v6610, 1.0
    %v6627 = vadd.f32 %v6611, 1.0
    %v6628 = vadd.f32 %v6612, 1.0
    %v6629 = vadd.f32 %v6613, 1.0
    %v6630 = vadd.f32 %v6614, 1.0
    %v6631 = vadd.f32 %v6615, 1.0
    %v6632 = vadd.f32 %v6616, 1.0
    %v6633 = vadd.f32 %v6617, 1.0
    %v6634 = vadd.f32 %v6618, 1.0
    %v6635 = vadd.f32 %v6619, 1.0
    %v6636 = vadd.f32 %v6620, 1.0
    %v6637 = vadd.f32 %v6621, 1.0
    %v6638 = vadd.f32 %v6622, 1.0
    %v6639 = vadd.f32 %v6623, 1.0
    %v6640 = vadd.f32 %v6624, 1.0
    %v6641 = vmul.f32 %v6513, %v6625
    %v6642 = vmul.f32 %v6514, %v6626
    %v6643 = vmul.f32 %v6515, %v6627
    %v6644 = vmul.f32 %v6516, %v6628
    %v6645 = vmul.f32 %v6517, %v6629
    %v6646 = vmul.f32 %v6518, %v6630
    %v6647 = vmul.f32 %v6519, %v6631
    %v6648 = vmul.f32 %v6520, %v6632
    %v6649 = vmul.f32 %v6521, %v6633
    %v6650 = vmul.f32 %v6522, %v6634
    %v6651 = vmul.f32 %v6523, %v6635
    %v6652 = vmul.f32 %v6524, %v6636
    %v6653 = vmul.f32 %v6525, %v6637
    %v6654 = vmul.f32 %v6526, %v6638
    %v6655 = vmul.f32 %v6527, %v6639
    %v6656 = vmul.f32 %v6528, %v6640
    %v6657 = vpack.c.bf16 %v6649, %v6641
    %v6658 = vpack.c.bf16 %v6650, %v6642
    %v6659 = vpack.c.bf16 %v6651, %v6643
    %v6660 = vpack.c.bf16 %v6652, %v6644
    %v6661 = vpack.c.bf16 %v6653, %v6645
    %v6662 = vpack.c.bf16 %v6654, %v6646
    %v6663 = vpack.c.bf16 %v6655, %v6647
    %v6664 = vpack.c.bf16 %v6656, %v6648
    %s6665 = scalar_lea.vmem [#allocation19], 1024
    %v6666 = vld [vmem:[%s6665] sm:$0xff]
    %v6667 = vld [vmem:[%s6665 + $0x8] sm:$0xff]
    %v6668 = vld [vmem:[%s6665 + $0x10] sm:$0xff]
    %v6669 = vld [vmem:[%s6665 + $0x18] sm:$0xff]
    %v6670 = vld [vmem:[%s6665 + $0x20] sm:$0xff]
    %v6671 = vld [vmem:[%s6665 + $0x28] sm:$0xff]
    %v6672 = vld [vmem:[%s6665 + $0x30] sm:$0xff]
    %v6673 = vld [vmem:[%s6665 + $0x38] sm:$0xff]
    %v6674 = vld [vmem:[%s6665 + $0x40] sm:$0xff]
    %v6675 = vld [vmem:[%s6665 + $0x48] sm:$0xff]
    %v6676 = vld [vmem:[%s6665 + $0x50] sm:$0xff]
    %v6677 = vld [vmem:[%s6665 + $0x58] sm:$0xff]
    %v6678 = vld [vmem:[%s6665 + $0x60] sm:$0xff]
    %v6679 = vld [vmem:[%s6665 + $0x68] sm:$0xff]
    %v6680 = vld [vmem:[%s6665 + $0x70] sm:$0xff]
    %v6681 = vld [vmem:[%s6665 + $0x78] sm:$0xff]
    %v6682 = vld [vmem:[%s6665 + $0x80] sm:$0xff]
    %v6683 = vld [vmem:[%s6665 + $0x88] sm:$0xff]
    %v6684 = vld [vmem:[%s6665 + $0x90] sm:$0xff]
    %v6685 = vld [vmem:[%s6665 + $0x98] sm:$0xff]
    %v6686 = vld [vmem:[%s6665 + $0xa0] sm:$0xff]
    %v6687 = vld [vmem:[%s6665 + $0xa8] sm:$0xff]
    %v6688 = vld [vmem:[%s6665 + $0xb0] sm:$0xff]
    %v6689 = vld [vmem:[%s6665 + $0xb8] sm:$0xff]
    %v6690 = vld [vmem:[%s6665 + $0xc0] sm:$0xff]
    %v6691 = vld [vmem:[%s6665 + $0xc8] sm:$0xff]
    %v6692 = vld [vmem:[%s6665 + $0xd0] sm:$0xff]
    %v6693 = vld [vmem:[%s6665 + $0xd8] sm:$0xff]
    %v6694 = vld [vmem:[%s6665 + $0xe0] sm:$0xff]
    %v6695 = vld [vmem:[%s6665 + $0xe8] sm:$0xff]
    %v6696 = vld [vmem:[%s6665 + $0xf0] sm:$0xff]
    %v6697 = vld [vmem:[%s6665 + $0xf8] sm:$0xff]
    %v6698 = vld [vmem:[%s6665 + $0x100] sm:$0xff]
    %v6699 = vld [vmem:[%s6665 + $0x108] sm:$0xff]
    %v6700 = vld [vmem:[%s6665 + $0x110] sm:$0xff]
    %v6701 = vld [vmem:[%s6665 + $0x118] sm:$0xff]
    %v6702 = vld [vmem:[%s6665 + $0x120] sm:$0xff]
    %v6703 = vld [vmem:[%s6665 + $0x128] sm:$0xff]
    %v6704 = vld [vmem:[%s6665 + $0x130] sm:$0xff]
    %v6705 = vld [vmem:[%s6665 + $0x138] sm:$0xff]
    %v6706 = vld [vmem:[%s6665 + $0x140] sm:$0xff]
    %v6707 = vld [vmem:[%s6665 + $0x148] sm:$0xff]
    %v6708 = vld [vmem:[%s6665 + $0x150] sm:$0xff]
    %v6709 = vld [vmem:[%s6665 + $0x158] sm:$0xff]
    %v6710 = vld [vmem:[%s6665 + $0x160] sm:$0xff]
    %v6711 = vld [vmem:[%s6665 + $0x168] sm:$0xff]
    %v6712 = vld [vmem:[%s6665 + $0x170] sm:$0xff]
    %v6713 = vld [vmem:[%s6665 + $0x178] sm:$0xff]
    %v6714 = vld [vmem:[%s6665 + $0x180] sm:$0xff]
    %v6715 = vld [vmem:[%s6665 + $0x188] sm:$0xff]
    %v6716 = vld [vmem:[%s6665 + $0x190] sm:$0xff]
    %v6717 = vld [vmem:[%s6665 + $0x198] sm:$0xff]
    %v6718 = vld [vmem:[%s6665 + $0x1a0] sm:$0xff]
    %v6719 = vld [vmem:[%s6665 + $0x1a8] sm:$0xff]
    %v6720 = vld [vmem:[%s6665 + $0x1b0] sm:$0xff]
    %v6721 = vld [vmem:[%s6665 + $0x1b8] sm:$0xff]
    %v6722 = vld [vmem:[%s6665 + $0x1c0] sm:$0xff]
    %v6723 = vld [vmem:[%s6665 + $0x1c8] sm:$0xff]
    %v6724 = vld [vmem:[%s6665 + $0x1d0] sm:$0xff]
    %v6725 = vld [vmem:[%s6665 + $0x1d8] sm:$0xff]
    %v6726 = vld [vmem:[%s6665 + $0x1e0] sm:$0xff]
    %v6727 = vld [vmem:[%s6665 + $0x1e8] sm:$0xff]
    %v6728 = vld [vmem:[%s6665 + $0x1f0] sm:$0xff]
    %v6729 = vld [vmem:[%s6665 + $0x1f8] sm:$0xff]
    %v6730 = vld [vmem:[%s6665 + $0x200] sm:$0xff]
    %v6731 = vld [vmem:[%s6665 + $0x208] sm:$0xff]
    %v6732 = vld [vmem:[%s6665 + $0x210] sm:$0xff]
    %v6733 = vld [vmem:[%s6665 + $0x218] sm:$0xff]
    %v6734 = vld [vmem:[%s6665 + $0x220] sm:$0xff]
    %v6735 = vld [vmem:[%s6665 + $0x228] sm:$0xff]
    %v6736 = vld [vmem:[%s6665 + $0x230] sm:$0xff]
    %v6737 = vld [vmem:[%s6665 + $0x238] sm:$0xff]
    %v6738 = vld [vmem:[%s6665 + $0x240] sm:$0xff]
    %v6739 = vld [vmem:[%s6665 + $0x248] sm:$0xff]
    %v6740 = vld [vmem:[%s6665 + $0x250] sm:$0xff]
    %v6741 = vld [vmem:[%s6665 + $0x258] sm:$0xff]
    %v6742 = vld [vmem:[%s6665 + $0x260] sm:$0xff]
    %v6743 = vld [vmem:[%s6665 + $0x268] sm:$0xff]
    %v6744 = vld [vmem:[%s6665 + $0x270] sm:$0xff]
    %v6745 = vld [vmem:[%s6665 + $0x278] sm:$0xff]
    %v6746 = vld [vmem:[%s6665 + $0x280] sm:$0xff]
    %v6747 = vld [vmem:[%s6665 + $0x288] sm:$0xff]
    %v6748 = vld [vmem:[%s6665 + $0x290] sm:$0xff]
    %v6749 = vld [vmem:[%s6665 + $0x298] sm:$0xff]
    %v6750 = vld [vmem:[%s6665 + $0x2a0] sm:$0xff]
    %v6751 = vld [vmem:[%s6665 + $0x2a8] sm:$0xff]
    %v6752 = vld [vmem:[%s6665 + $0x2b0] sm:$0xff]
    %v6753 = vld [vmem:[%s6665 + $0x2b8] sm:$0xff]
    %v6754 = vld [vmem:[%s6665 + $0x2c0] sm:$0xff]
    %v6755 = vld [vmem:[%s6665 + $0x2c8] sm:$0xff]
    %v6756 = vld [vmem:[%s6665 + $0x2d0] sm:$0xff]
    %v6757 = vld [vmem:[%s6665 + $0x2d8] sm:$0xff]
    %v6758 = vld [vmem:[%s6665 + $0x2e0] sm:$0xff]
    %v6759 = vld [vmem:[%s6665 + $0x2e8] sm:$0xff]
    %v6760 = vld [vmem:[%s6665 + $0x2f0] sm:$0xff]
    %v6761 = vld [vmem:[%s6665 + $0x2f8] sm:$0xff]
    %v6762 = vld [vmem:[%s6665 + $0x300] sm:$0xff]
    %v6763 = vld [vmem:[%s6665 + $0x308] sm:$0xff]
    %v6764 = vld [vmem:[%s6665 + $0x310] sm:$0xff]
    %v6765 = vld [vmem:[%s6665 + $0x318] sm:$0xff]
    %v6766 = vld [vmem:[%s6665 + $0x320] sm:$0xff]
    %v6767 = vld [vmem:[%s6665 + $0x328] sm:$0xff]
    %v6768 = vld [vmem:[%s6665 + $0x330] sm:$0xff]
    %v6769 = vld [vmem:[%s6665 + $0x338] sm:$0xff]
    %v6770 = vld [vmem:[%s6665 + $0x340] sm:$0xff]
    %v6771 = vld [vmem:[%s6665 + $0x348] sm:$0xff]
    %v6772 = vld [vmem:[%s6665 + $0x350] sm:$0xff]
    %v6773 = vld [vmem:[%s6665 + $0x358] sm:$0xff]
    %v6774 = vld [vmem:[%s6665 + $0x360] sm:$0xff]
    %v6775 = vld [vmem:[%s6665 + $0x368] sm:$0xff]
    %v6776 = vld [vmem:[%s6665 + $0x370] sm:$0xff]
    %v6777 = vld [vmem:[%s6665 + $0x378] sm:$0xff]
    %v6778 = vld [vmem:[%s6665 + $0x380] sm:$0xff]
    %v6779 = vld [vmem:[%s6665 + $0x388] sm:$0xff]
    %v6780 = vld [vmem:[%s6665 + $0x390] sm:$0xff]
    %v6781 = vld [vmem:[%s6665 + $0x398] sm:$0xff]
    %v6782 = vld [vmem:[%s6665 + $0x3a0] sm:$0xff]
    %v6783 = vld [vmem:[%s6665 + $0x3a8] sm:$0xff]
    %v6784 = vld [vmem:[%s6665 + $0x3b0] sm:$0xff]
    %v6785 = vld [vmem:[%s6665 + $0x3b8] sm:$0xff]
    %v6786 = vld [vmem:[%s6665 + $0x3c0] sm:$0xff]
    %v6787 = vld [vmem:[%s6665 + $0x3c8] sm:$0xff]
    %v6788 = vld [vmem:[%s6665 + $0x3d0] sm:$0xff]
    %v6789 = vld [vmem:[%s6665 + $0x3d8] sm:$0xff]
    %v6790 = vld [vmem:[%s6665 + $0x3e0] sm:$0xff]
    %v6791 = vld [vmem:[%s6665 + $0x3e8] sm:$0xff]
    %v6792 = vld [vmem:[%s6665 + $0x3f0] sm:$0xff]
    %v6793 = vld [vmem:[%s6665 + $0x3f8] sm:$0xff]
    %s6794 = scalar_lea.vmem [#allocation20], 2
    %v6795 = vld [vmem:[%s6794] sm:$0x3]
    %v6797 = vlaneseq
    %v6798 = vshrl.u32 %v6797, 7
    %v6799 = vsub.s32 0, %v6798
    %v6800 = vrot.slane %v6795, %v6799
    %v6801 = vlaneseq
    %v6802 = vshrl.u32 %v6801, 7
    %v6803 = vsub.s32 1, %v6802
    %v6804 = vrot.slane %v6795, %v6803
    %v6935 = vunpack.c.l.b16 %v6666
    %v6936 = vunpack.c.h.b16 %v6666
    %v6937 = vunpack.c.l.b16 %v6667
    %v6938 = vunpack.c.h.b16 %v6667
    %v6939 = vunpack.c.l.b16 %v6668
    %v6940 = vunpack.c.h.b16 %v6668
    %v6941 = vunpack.c.l.b16 %v6669
    %v6942 = vunpack.c.h.b16 %v6669
    %v6943 = vunpack.c.l.b16 %v6670
    %v6944 = vunpack.c.h.b16 %v6670
    %v6945 = vunpack.c.l.b16 %v6671
    %v6946 = vunpack.c.h.b16 %v6671
    %v6947 = vunpack.c.l.b16 %v6672
    %v6948 = vunpack.c.h.b16 %v6672
    %v6949 = vunpack.c.l.b16 %v6673
    %v6950 = vunpack.c.h.b16 %v6673
    %v6951 = vunpack.c.l.b16 %v6674
    %v6952 = vunpack.c.h.b16 %v6674
    %v6953 = vunpack.c.l.b16 %v6675
    %v6954 = vunpack.c.h.b16 %v6675
    %v6955 = vunpack.c.l.b16 %v6676
    %v6956 = vunpack.c.h.b16 %v6676
    %v6957 = vunpack.c.l.b16 %v6677
    %v6958 = vunpack.c.h.b16 %v6677
    %v6959 = vunpack.c.l.b16 %v6678
    %v6960 = vunpack.c.h.b16 %v6678
    %v6961 = vunpack.c.l.b16 %v6679
    %v6962 = vunpack.c.h.b16 %v6679
    %v6963 = vunpack.c.l.b16 %v6680
    %v6964 = vunpack.c.h.b16 %v6680
    %v6965 = vunpack.c.l.b16 %v6681
    %v6966 = vunpack.c.h.b16 %v6681
    %v6967 = vunpack.c.l.b16 %v6682
    %v6968 = vunpack.c.h.b16 %v6682
    %v6969 = vunpack.c.l.b16 %v6683
    %v6970 = vunpack.c.h.b16 %v6683
    %v6971 = vunpack.c.l.b16 %v6684
    %v6972 = vunpack.c.h.b16 %v6684
    %v6973 = vunpack.c.l.b16 %v6685
    %v6974 = vunpack.c.h.b16 %v6685
    %v6975 = vunpack.c.l.b16 %v6686
    %v6976 = vunpack.c.h.b16 %v6686
    %v6977 = vunpack.c.l.b16 %v6687
    %v6978 = vunpack.c.h.b16 %v6687
    %v6979 = vunpack.c.l.b16 %v6688
    %v6980 = vunpack.c.h.b16 %v6688
    %v6981 = vunpack.c.l.b16 %v6689
    %v6982 = vunpack.c.h.b16 %v6689
    %v6983 = vunpack.c.l.b16 %v6690
    %v6984 = vunpack.c.h.b16 %v6690
    %v6985 = vunpack.c.l.b16 %v6691
    %v6986 = vunpack.c.h.b16 %v6691
    %v6987 = vunpack.c.l.b16 %v6692
    %v6988 = vunpack.c.h.b16 %v6692
    %v6989 = vunpack.c.l.b16 %v6693
    %v6990 = vunpack.c.h.b16 %v6693
    %v6991 = vunpack.c.l.b16 %v6694
    %v6992 = vunpack.c.h.b16 %v6694
    %v6993 = vunpack.c.l.b16 %v6695
    %v6994 = vunpack.c.h.b16 %v6695
    %v6995 = vunpack.c.l.b16 %v6696
    %v6996 = vunpack.c.h.b16 %v6696
    %v6997 = vunpack.c.l.b16 %v6697
    %v6998 = vunpack.c.h.b16 %v6697
    %v6999 = vunpack.c.l.b16 %v6698
    %v7000 = vunpack.c.h.b16 %v6698
    %v7001 = vunpack.c.l.b16 %v6699
    %v7002 = vunpack.c.h.b16 %v6699
    %v7003 = vunpack.c.l.b16 %v6700
    %v7004 = vunpack.c.h.b16 %v6700
    %v7005 = vunpack.c.l.b16 %v6701
    %v7006 = vunpack.c.h.b16 %v6701
    %v7007 = vunpack.c.l.b16 %v6702
    %v7008 = vunpack.c.h.b16 %v6702
    %v7009 = vunpack.c.l.b16 %v6703
    %v7010 = vunpack.c.h.b16 %v6703
    %v7011 = vunpack.c.l.b16 %v6704
    %v7012 = vunpack.c.h.b16 %v6704
    %v7013 = vunpack.c.l.b16 %v6705
    %v7014 = vunpack.c.h.b16 %v6705
    %v7015 = vunpack.c.l.b16 %v6706
    %v7016 = vunpack.c.h.b16 %v6706
    %v7017 = vunpack.c.l.b16 %v6707
    %v7018 = vunpack.c.h.b16 %v6707
    %v7019 = vunpack.c.l.b16 %v6708
    %v7020 = vunpack.c.h.b16 %v6708
    %v7021 = vunpack.c.l.b16 %v6709
    %v7022 = vunpack.c.h.b16 %v6709
    %v7023 = vunpack.c.l.b16 %v6710
    %v7024 = vunpack.c.h.b16 %v6710
    %v7025 = vunpack.c.l.b16 %v6711
    %v7026 = vunpack.c.h.b16 %v6711
    %v7027 = vunpack.c.l.b16 %v6712
    %v7028 = vunpack.c.h.b16 %v6712
    %v7029 = vunpack.c.l.b16 %v6713
    %v7030 = vunpack.c.h.b16 %v6713
    %v7031 = vunpack.c.l.b16 %v6714
    %v7032 = vunpack.c.h.b16 %v6714
    %v7033 = vunpack.c.l.b16 %v6715
    %v7034 = vunpack.c.h.b16 %v6715
    %v7035 = vunpack.c.l.b16 %v6716
    %v7036 = vunpack.c.h.b16 %v6716
    %v7037 = vunpack.c.l.b16 %v6717
    %v7038 = vunpack.c.h.b16 %v6717
    %v7039 = vunpack.c.l.b16 %v6718
    %v7040 = vunpack.c.h.b16 %v6718
    %v7041 = vunpack.c.l.b16 %v6719
    %v7042 = vunpack.c.h.b16 %v6719
    %v7043 = vunpack.c.l.b16 %v6720
    %v7044 = vunpack.c.h.b16 %v6720
    %v7045 = vunpack.c.l.b16 %v6721
    %v7046 = vunpack.c.h.b16 %v6721
    %v7047 = vunpack.c.l.b16 %v6722
    %v7048 = vunpack.c.h.b16 %v6722
    %v7049 = vunpack.c.l.b16 %v6723
    %v7050 = vunpack.c.h.b16 %v6723
    %v7051 = vunpack.c.l.b16 %v6724
    %v7052 = vunpack.c.h.b16 %v6724
    %v7053 = vunpack.c.l.b16 %v6725
    %v7054 = vunpack.c.h.b16 %v6725
    %v7055 = vunpack.c.l.b16 %v6726
    %v7056 = vunpack.c.h.b16 %v6726
    %v7057 = vunpack.c.l.b16 %v6727
    %v7058 = vunpack.c.h.b16 %v6727
    %v7059 = vunpack.c.l.b16 %v6728
    %v7060 = vunpack.c.h.b16 %v6728
    %v7061 = vunpack.c.l.b16 %v6729
    %v7062 = vunpack.c.h.b16 %v6729
    %v7063 = vunpack.c.l.b16 %v6730
    %v7064 = vunpack.c.h.b16 %v6730
    %v7065 = vunpack.c.l.b16 %v6731
    %v7066 = vunpack.c.h.b16 %v6731
    %v7067 = vunpack.c.l.b16 %v6732
    %v7068 = vunpack.c.h.b16 %v6732
    %v7069 = vunpack.c.l.b16 %v6733
    %v7070 = vunpack.c.h.b16 %v6733
    %v7071 = vunpack.c.l.b16 %v6734
    %v7072 = vunpack.c.h.b16 %v6734
    %v7073 = vunpack.c.l.b16 %v6735
    %v7074 = vunpack.c.h.b16 %v6735
    %v7075 = vunpack.c.l.b16 %v6736
    %v7076 = vunpack.c.h.b16 %v6736
    %v7077 = vunpack.c.l.b16 %v6737
    %v7078 = vunpack.c.h.b16 %v6737
    %v7079 = vunpack.c.l.b16 %v6738
    %v7080 = vunpack.c.h.b16 %v6738
    %v7081 = vunpack.c.l.b16 %v6739
    %v7082 = vunpack.c.h.b16 %v6739
    %v7083 = vunpack.c.l.b16 %v6740
    %v7084 = vunpack.c.h.b16 %v6740
    %v7085 = vunpack.c.l.b16 %v6741
    %v7086 = vunpack.c.h.b16 %v6741
    %v7087 = vunpack.c.l.b16 %v6742
    %v7088 = vunpack.c.h.b16 %v6742
    %v7089 = vunpack.c.l.b16 %v6743
    %v7090 = vunpack.c.h.b16 %v6743
    %v7091 = vunpack.c.l.b16 %v6744
    %v7092 = vunpack.c.h.b16 %v6744
    %v7093 = vunpack.c.l.b16 %v6745
    %v7094 = vunpack.c.h.b16 %v6745
    %v7095 = vunpack.c.l.b16 %v6746
    %v7096 = vunpack.c.h.b16 %v6746
    %v7097 = vunpack.c.l.b16 %v6747
    %v7098 = vunpack.c.h.b16 %v6747
    %v7099 = vunpack.c.l.b16 %v6748
    %v7100 = vunpack.c.h.b16 %v6748
    %v7101 = vunpack.c.l.b16 %v6749
    %v7102 = vunpack.c.h.b16 %v6749
    %v7103 = vunpack.c.l.b16 %v6750
    %v7104 = vunpack.c.h.b16 %v6750
    %v7105 = vunpack.c.l.b16 %v6751
    %v7106 = vunpack.c.h.b16 %v6751
    %v7107 = vunpack.c.l.b16 %v6752
    %v7108 = vunpack.c.h.b16 %v6752
    %v7109 = vunpack.c.l.b16 %v6753
    %v7110 = vunpack.c.h.b16 %v6753
    %v7111 = vunpack.c.l.b16 %v6754
    %v7112 = vunpack.c.h.b16 %v6754
    %v7113 = vunpack.c.l.b16 %v6755
    %v7114 = vunpack.c.h.b16 %v6755
    %v7115 = vunpack.c.l.b16 %v6756
    %v7116 = vunpack.c.h.b16 %v6756
    %v7117 = vunpack.c.l.b16 %v6757
    %v7118 = vunpack.c.h.b16 %v6757
    %v7119 = vunpack.c.l.b16 %v6758
    %v7120 = vunpack.c.h.b16 %v6758
    %v7121 = vunpack.c.l.b16 %v6759
    %v7122 = vunpack.c.h.b16 %v6759
    %v7123 = vunpack.c.l.b16 %v6760
    %v7124 = vunpack.c.h.b16 %v6760
    %v7125 = vunpack.c.l.b16 %v6761
    %v7126 = vunpack.c.h.b16 %v6761
    %v7127 = vunpack.c.l.b16 %v6762
    %v7128 = vunpack.c.h.b16 %v6762
    %v7129 = vunpack.c.l.b16 %v6763
    %v7130 = vunpack.c.h.b16 %v6763
    %v7131 = vunpack.c.l.b16 %v6764
    %v7132 = vunpack.c.h.b16 %v6764
    %v7133 = vunpack.c.l.b16 %v6765
    %v7134 = vunpack.c.h.b16 %v6765
    %v7135 = vunpack.c.l.b16 %v6766
    %v7136 = vunpack.c.h.b16 %v6766
    %v7137 = vunpack.c.l.b16 %v6767
    %v7138 = vunpack.c.h.b16 %v6767
    %v7139 = vunpack.c.l.b16 %v6768
    %v7140 = vunpack.c.h.b16 %v6768
    %v7141 = vunpack.c.l.b16 %v6769
    %v7142 = vunpack.c.h.b16 %v6769
    %v7143 = vunpack.c.l.b16 %v6770
    %v7144 = vunpack.c.h.b16 %v6770
    %v7145 = vunpack.c.l.b16 %v6771
    %v7146 = vunpack.c.h.b16 %v6771
    %v7147 = vunpack.c.l.b16 %v6772
    %v7148 = vunpack.c.h.b16 %v6772
    %v7149 = vunpack.c.l.b16 %v6773
    %v7150 = vunpack.c.h.b16 %v6773
    %v7151 = vunpack.c.l.b16 %v6774
    %v7152 = vunpack.c.h.b16 %v6774
    %v7153 = vunpack.c.l.b16 %v6775
    %v7154 = vunpack.c.h.b16 %v6775
    %v7155 = vunpack.c.l.b16 %v6776
    %v7156 = vunpack.c.h.b16 %v6776
    %v7157 = vunpack.c.l.b16 %v6777
    %v7158 = vunpack.c.h.b16 %v6777
    %v7159 = vunpack.c.l.b16 %v6778
    %v7160 = vunpack.c.h.b16 %v6778
    %v7161 = vunpack.c.l.b16 %v6779
    %v7162 = vunpack.c.h.b16 %v6779
    %v7163 = vunpack.c.l.b16 %v6780
    %v7164 = vunpack.c.h.b16 %v6780
    %v7165 = vunpack.c.l.b16 %v6781
    %v7166 = vunpack.c.h.b16 %v6781
    %v7167 = vunpack.c.l.b16 %v6782
    %v7168 = vunpack.c.h.b16 %v6782
    %v7169 = vunpack.c.l.b16 %v6783
    %v7170 = vunpack.c.h.b16 %v6783
    %v7171 = vunpack.c.l.b16 %v6784
    %v7172 = vunpack.c.h.b16 %v6784
    %v7173 = vunpack.c.l.b16 %v6785
    %v7174 = vunpack.c.h.b16 %v6785
    %v7175 = vunpack.c.l.b16 %v6786
    %v7176 = vunpack.c.h.b16 %v6786
    %v7177 = vunpack.c.l.b16 %v6787
    %v7178 = vunpack.c.h.b16 %v6787
    %v7179 = vunpack.c.l.b16 %v6788
    %v7180 = vunpack.c.h.b16 %v6788
    %v7181 = vunpack.c.l.b16 %v6789
    %v7182 = vunpack.c.h.b16 %v6789
    %v7183 = vunpack.c.l.b16 %v6790
    %v7184 = vunpack.c.h.b16 %v6790
    %v7185 = vunpack.c.l.b16 %v6791
    %v7186 = vunpack.c.h.b16 %v6791
    %v7187 = vunpack.c.l.b16 %v6792
    %v7188 = vunpack.c.h.b16 %v6792
    %v7189 = vunpack.c.l.b16 %v6793
    %v7190 = vunpack.c.h.b16 %v6793
    %v7191 = vpack.c.b16 %v6937, %v6935
    %v7192 = vpack.c.b16 %v6938, %v6936
    %v7193 = vpack.c.b16 %v6941, %v6939
    %v7194 = vpack.c.b16 %v6942, %v6940
    %v7195 = vpack.c.b16 %v6945, %v6943
    %v7196 = vpack.c.b16 %v6946, %v6944
    %v7197 = vpack.c.b16 %v6949, %v6947
    %v7198 = vpack.c.b16 %v6950, %v6948
    %v7199 = vpack.c.b16 %v6953, %v6951
    %v7200 = vpack.c.b16 %v6954, %v6952
    %v7201 = vpack.c.b16 %v6957, %v6955
    %v7202 = vpack.c.b16 %v6958, %v6956
    %v7203 = vpack.c.b16 %v6961, %v6959
    %v7204 = vpack.c.b16 %v6962, %v6960
    %v7205 = vpack.c.b16 %v6965, %v6963
    %v7206 = vpack.c.b16 %v6966, %v6964
    %v7207 = vpack.c.b16 %v6969, %v6967
    %v7208 = vpack.c.b16 %v6970, %v6968
    %v7209 = vpack.c.b16 %v6973, %v6971
    %v7210 = vpack.c.b16 %v6974, %v6972
    %v7211 = vpack.c.b16 %v6977, %v6975
    %v7212 = vpack.c.b16 %v6978, %v6976
    %v7213 = vpack.c.b16 %v6981, %v6979
    %v7214 = vpack.c.b16 %v6982, %v6980
    %v7215 = vpack.c.b16 %v6985, %v6983
    %v7216 = vpack.c.b16 %v6986, %v6984
    %v7217 = vpack.c.b16 %v6989, %v6987
    %v7218 = vpack.c.b16 %v6990, %v6988
    %v7219 = vpack.c.b16 %v6993, %v6991
    %v7220 = vpack.c.b16 %v6994, %v6992
    %v7221 = vpack.c.b16 %v6997, %v6995
    %v7222 = vpack.c.b16 %v6998, %v6996
    %v7223 = vpack.c.b16 %v7001, %v6999
    %v7224 = vpack.c.b16 %v7002, %v7000
    %v7225 = vpack.c.b16 %v7005, %v7003
    %v7226 = vpack.c.b16 %v7006, %v7004
    %v7227 = vpack.c.b16 %v7009, %v7007
    %v7228 = vpack.c.b16 %v7010, %v7008
    %v7229 = vpack.c.b16 %v7013, %v7011
    %v7230 = vpack.c.b16 %v7014, %v7012
    %v7231 = vpack.c.b16 %v7017, %v7015
    %v7232 = vpack.c.b16 %v7018, %v7016
    %v7233 = vpack.c.b16 %v7021, %v7019
    %v7234 = vpack.c.b16 %v7022, %v7020
    %v7235 = vpack.c.b16 %v7025, %v7023
    %v7236 = vpack.c.b16 %v7026, %v7024
    %v7237 = vpack.c.b16 %v7029, %v7027
    %v7238 = vpack.c.b16 %v7030, %v7028
    %v7239 = vpack.c.b16 %v7033, %v7031
    %v7240 = vpack.c.b16 %v7034, %v7032
    %v7241 = vpack.c.b16 %v7037, %v7035
    %v7242 = vpack.c.b16 %v7038, %v7036
    %v7243 = vpack.c.b16 %v7041, %v7039
    %v7244 = vpack.c.b16 %v7042, %v7040
    %v7245 = vpack.c.b16 %v7045, %v7043
    %v7246 = vpack.c.b16 %v7046, %v7044
    %v7247 = vpack.c.b16 %v7049, %v7047
    %v7248 = vpack.c.b16 %v7050, %v7048
    %v7249 = vpack.c.b16 %v7053, %v7051
    %v7250 = vpack.c.b16 %v7054, %v7052
    %v7251 = vpack.c.b16 %v7057, %v7055
    %v7252 = vpack.c.b16 %v7058, %v7056
    %v7253 = vpack.c.b16 %v7061, %v7059
    %v7254 = vpack.c.b16 %v7062, %v7060
    %v7255 = vpack.c.b16 %v7065, %v7063
    %v7256 = vpack.c.b16 %v7066, %v7064
    %v7257 = vpack.c.b16 %v7069, %v7067
    %v7258 = vpack.c.b16 %v7070, %v7068
    %v7259 = vpack.c.b16 %v7073, %v7071
    %v7260 = vpack.c.b16 %v7074, %v7072
    %v7261 = vpack.c.b16 %v7077, %v7075
    %v7262 = vpack.c.b16 %v7078, %v7076
    %v7263 = vpack.c.b16 %v7081, %v7079
    %v7264 = vpack.c.b16 %v7082, %v7080
    %v7265 = vpack.c.b16 %v7085, %v7083
    %v7266 = vpack.c.b16 %v7086, %v7084
    %v7267 = vpack.c.b16 %v7089, %v7087
    %v7268 = vpack.c.b16 %v7090, %v7088
    %v7269 = vpack.c.b16 %v7093, %v7091
    %v7270 = vpack.c.b16 %v7094, %v7092
    %v7271 = vpack.c.b16 %v7097, %v7095
    %v7272 = vpack.c.b16 %v7098, %v7096
    %v7273 = vpack.c.b16 %v7101, %v7099
    %v7274 = vpack.c.b16 %v7102, %v7100
    %v7275 = vpack.c.b16 %v7105, %v7103
    %v7276 = vpack.c.b16 %v7106, %v7104
    %v7277 = vpack.c.b16 %v7109, %v7107
    %v7278 = vpack.c.b16 %v7110, %v7108
    %v7279 = vpack.c.b16 %v7113, %v7111
    %v7280 = vpack.c.b16 %v7114, %v7112
    %v7281 = vpack.c.b16 %v7117, %v7115
    %v7282 = vpack.c.b16 %v7118, %v7116
    %v7283 = vpack.c.b16 %v7121, %v7119
    %v7284 = vpack.c.b16 %v7122, %v7120
    %v7285 = vpack.c.b16 %v7125, %v7123
    %v7286 = vpack.c.b16 %v7126, %v7124
    %v7287 = vpack.c.b16 %v7129, %v7127
    %v7288 = vpack.c.b16 %v7130, %v7128
    %v7289 = vpack.c.b16 %v7133, %v7131
    %v7290 = vpack.c.b16 %v7134, %v7132
    %v7291 = vpack.c.b16 %v7137, %v7135
    %v7292 = vpack.c.b16 %v7138, %v7136
    %v7293 = vpack.c.b16 %v7141, %v7139
    %v7294 = vpack.c.b16 %v7142, %v7140
    %v7295 = vpack.c.b16 %v7145, %v7143
    %v7296 = vpack.c.b16 %v7146, %v7144
    %v7297 = vpack.c.b16 %v7149, %v7147
    %v7298 = vpack.c.b16 %v7150, %v7148
    %v7299 = vpack.c.b16 %v7153, %v7151
    %v7300 = vpack.c.b16 %v7154, %v7152
    %v7301 = vpack.c.b16 %v7157, %v7155
    %v7302 = vpack.c.b16 %v7158, %v7156
    %v7303 = vpack.c.b16 %v7161, %v7159
    %v7304 = vpack.c.b16 %v7162, %v7160
    %v7305 = vpack.c.b16 %v7165, %v7163
    %v7306 = vpack.c.b16 %v7166, %v7164
    %v7307 = vpack.c.b16 %v7169, %v7167
    %v7308 = vpack.c.b16 %v7170, %v7168
    %v7309 = vpack.c.b16 %v7173, %v7171
    %v7310 = vpack.c.b16 %v7174, %v7172
    %v7311 = vpack.c.b16 %v7177, %v7175
    %v7312 = vpack.c.b16 %v7178, %v7176
    %v7313 = vpack.c.b16 %v7181, %v7179
    %v7314 = vpack.c.b16 %v7182, %v7180
    %v7315 = vpack.c.b16 %v7185, %v7183
    %v7316 = vpack.c.b16 %v7186, %v7184
    %v7317 = vpack.c.b16 %v7189, %v7187
    %v7318 = vpack.c.b16 %v7190, %v7188
    %7447 = vmatprep.subr.bf16.mxu0 %v7206
    %7448 = vmatpush1.bf16.msra.mxu0 %v7205
    %7449 = vmatprep.subr.bf16.mxu0 %v7204
    %7450 = vmatpush1.bf16.msra.mxu0 %v7203
    %7451 = vmatprep.subr.bf16.mxu0 %v7202
    %7452 = vmatpush1.bf16.msra.mxu0 %v7201
    %7453 = vmatprep.subr.bf16.mxu0 %v7200
    %7454 = vmatpush1.bf16.msra.mxu0 %v7199
    %7455 = vmatprep.subr.bf16.mxu0 %v7198
    %7456 = vmatpush1.bf16.msra.mxu0 %v7197
    %7457 = vmatprep.subr.bf16.mxu0 %v7196
    %7458 = vmatpush1.bf16.msra.mxu0 %v7195
    %7459 = vmatprep.subr.bf16.mxu0 %v7194
    %7460 = vmatpush1.bf16.msra.mxu0 %v7193
    %7461 = vmatprep.subr.bf16.mxu0 %v7192
    %7462 = vmatpush1.bf16.msra.mxu0 %v7191
    %7463 = vmatprep.subr.bf16.mxu0 %v7222
    %7464 = vmatpush2.bf16.msra.mxu0 %v7221
    %7465 = vmatprep.subr.bf16.mxu0 %v7220
    %7466 = vmatpush2.bf16.msra.mxu0 %v7219
    %7467 = vmatprep.subr.bf16.mxu0 %v7218
    %7468 = vmatpush2.bf16.msra.mxu0 %v7217
    %7469 = vmatprep.subr.bf16.mxu0 %v7216
    %7470 = vmatpush2.bf16.msra.mxu0 %v7215
    %7471 = vmatprep.subr.bf16.mxu0 %v7214
    %7472 = vmatpush2.bf16.msra.mxu0 %v7213
    %7473 = vmatprep.subr.bf16.mxu0 %v7212
    %7474 = vmatpush2.bf16.msra.mxu0 %v7211
    %7475 = vmatprep.subr.bf16.mxu0 %v7210
    %7476 = vmatpush2.bf16.msra.mxu0 %v7209
    %7477 = vmatprep.subr.bf16.mxu0 %v7208
    %7478 = vmatpush2.bf16.msra.mxu0 %v7207
    %7479 = vmatprep.mubr.bf16.mxu0 %v6658
    %7480 = vmatmul.mubr.bf16.gmra.mxu0 %v6657
    %v7481 = vpop.f32.mrf.mxu0
    %v7482 = vadd.f32 %v6800, %v7481
    %v7483 = vpop.f32.mrf.mxu0
    %v7484 = vadd.f32 %v6804, %v7483
    %v7485 = vpop.f32.mrf.mxu0
    %v7486 = vadd.f32 %v6800, %v7485
    %v7487 = vpop.f32.mrf.mxu0
    %v7488 = vadd.f32 %v6804, %v7487
    %7489 = vdwg.mxu0
    %7490 = vmatprep.subr.bf16.mxu0 %v7238
    %7491 = vmatpush1.bf16.msra.mxu0 %v7237
    %7492 = vmatprep.subr.bf16.mxu0 %v7236
    %7493 = vmatpush1.bf16.msra.mxu0 %v7235
    %7494 = vmatprep.subr.bf16.mxu0 %v7234
    %7495 = vmatpush1.bf16.msra.mxu0 %v7233
    %7496 = vmatprep.subr.bf16.mxu0 %v7232
    %7497 = vmatpush1.bf16.msra.mxu0 %v7231
    %7498 = vmatprep.subr.bf16.mxu0 %v7230
    %7499 = vmatpush1.bf16.msra.mxu0 %v7229
    %7500 = vmatprep.subr.bf16.mxu0 %v7228
    %7501 = vmatpush1.bf16.msra.mxu0 %v7227
    %7502 = vmatprep.subr.bf16.mxu0 %v7226
    %7503 = vmatpush1.bf16.msra.mxu0 %v7225
    %7504 = vmatprep.subr.bf16.mxu0 %v7224
    %7505 = vmatpush1.bf16.msra.mxu0 %v7223
    %7506 = vmatprep.subr.bf16.mxu0 %v7254
    %7507 = vmatpush2.bf16.msra.mxu0 %v7253
    %7508 = vmatprep.subr.bf16.mxu0 %v7252
    %7509 = vmatpush2.bf16.msra.mxu0 %v7251
    %7510 = vmatprep.subr.bf16.mxu0 %v7250
    %7511 = vmatpush2.bf16.msra.mxu0 %v7249
    %7512 = vmatprep.subr.bf16.mxu0 %v7248
    %7513 = vmatpush2.bf16.msra.mxu0 %v7247
    %7514 = vmatprep.subr.bf16.mxu0 %v7246
    %7515 = vmatpush2.bf16.msra.mxu0 %v7245
    %7516 = vmatprep.subr.bf16.mxu0 %v7244
    %7517 = vmatpush2.bf16.msra.mxu0 %v7243
    %7518 = vmatprep.subr.bf16.mxu0 %v7242
    %7519 = vmatpush2.bf16.msra.mxu0 %v7241
    %7520 = vmatprep.subr.bf16.mxu0 %v7240
    %7521 = vmatpush2.bf16.msra.mxu0 %v7239
    %7522 = vmatprep.mubr.bf16.mxu0 %v6660
    %7523 = vmatmul.mubr.bf16.gmra.mxu0 %v6659
    %v7524 = vpop.f32.mrf.mxu0
    %v7525 = vadd.f32 %v7482, %v7524
    %v7526 = vpop.f32.mrf.mxu0
    %v7527 = vadd.f32 %v7484, %v7526
    %v7528 = vpop.f32.mrf.mxu0
    %v7529 = vadd.f32 %v7486, %v7528
    %v7530 = vpop.f32.mrf.mxu0
    %v7531 = vadd.f32 %v7488, %v7530
    %7532 = vdwg.mxu0
    %7533 = vmatprep.subr.bf16.mxu0 %v7270
    %7534 = vmatpush1.bf16.msra.mxu0 %v7269
    %7535 = vmatprep.subr.bf16.mxu0 %v7268
    %7536 = vmatpush1.bf16.msra.mxu0 %v7267
    %7537 = vmatprep.subr.bf16.mxu0 %v7266
    %7538 = vmatpush1.bf16.msra.mxu0 %v7265
    %7539 = vmatprep.subr.bf16.mxu0 %v7264
    %7540 = vmatpush1.bf16.msra.mxu0 %v7263
    %7541 = vmatprep.subr.bf16.mxu0 %v7262
    %7542 = vmatpush1.bf16.msra.mxu0 %v7261
    %7543 = vmatprep.subr.bf16.mxu0 %v7260
    %7544 = vmatpush1.bf16.msra.mxu0 %v7259
    %7545 = vmatprep.subr.bf16.mxu0 %v7258
    %7546 = vmatpush1.bf16.msra.mxu0 %v7257
    %7547 = vmatprep.subr.bf16.mxu0 %v7256
    %7548 = vmatpush1.bf16.msra.mxu0 %v7255
    %7549 = vmatprep.subr.bf16.mxu0 %v7286
    %7550 = vmatpush2.bf16.msra.mxu0 %v7285
    %7551 = vmatprep.subr.bf16.mxu0 %v7284
    %7552 = vmatpush2.bf16.msra.mxu0 %v7283
    %7553 = vmatprep.subr.bf16.mxu0 %v7282
    %7554 = vmatpush2.bf16.msra.mxu0 %v7281
    %7555 = vmatprep.subr.bf16.mxu0 %v7280
    %7556 = vmatpush2.bf16.msra.mxu0 %v7279
    %7557 = vmatprep.subr.bf16.mxu0 %v7278
    %7558 = vmatpush2.bf16.msra.mxu0 %v7277
    %7559 = vmatprep.subr.bf16.mxu0 %v7276
    %7560 = vmatpush2.bf16.msra.mxu0 %v7275
    %7561 = vmatprep.subr.bf16.mxu0 %v7274
    %7562 = vmatpush2.bf16.msra.mxu0 %v7273
    %7563 = vmatprep.subr.bf16.mxu0 %v7272
    %7564 = vmatpush2.bf16.msra.mxu0 %v7271
    %7565 = vmatprep.mubr.bf16.mxu0 %v6662
    %7566 = vmatmul.mubr.bf16.gmra.mxu0 %v6661
    %v7567 = vpop.f32.mrf.mxu0
    %v7568 = vadd.f32 %v7525, %v7567
    %v7569 = vpop.f32.mrf.mxu0
    %v7570 = vadd.f32 %v7527, %v7569
    %v7571 = vpop.f32.mrf.mxu0
    %v7572 = vadd.f32 %v7529, %v7571
    %v7573 = vpop.f32.mrf.mxu0
    %v7574 = vadd.f32 %v7531, %v7573
    %7575 = vdwg.mxu0
    %7576 = vmatprep.subr.bf16.mxu0 %v7302
    %7577 = vmatpush1.bf16.msra.mxu0 %v7301
    %7578 = vmatprep.subr.bf16.mxu0 %v7300
    %7579 = vmatpush1.bf16.msra.mxu0 %v7299
    %7580 = vmatprep.subr.bf16.mxu0 %v7298
    %7581 = vmatpush1.bf16.msra.mxu0 %v7297
    %7582 = vmatprep.subr.bf16.mxu0 %v7296
    %7583 = vmatpush1.bf16.msra.mxu0 %v7295
    %7584 = vmatprep.subr.bf16.mxu0 %v7294
    %7585 = vmatpush1.bf16.msra.mxu0 %v7293
    %7586 = vmatprep.subr.bf16.mxu0 %v7292
    %7587 = vmatpush1.bf16.msra.mxu0 %v7291
    %7588 = vmatprep.subr.bf16.mxu0 %v7290
    %7589 = vmatpush1.bf16.msra.mxu0 %v7289
    %7590 = vmatprep.subr.bf16.mxu0 %v7288
    %7591 = vmatpush1.bf16.msra.mxu0 %v7287
    %7592 = vmatprep.subr.bf16.mxu0 %v7318
    %7593 = vmatpush2.bf16.msra.mxu0 %v7317
    %7594 = vmatprep.subr.bf16.mxu0 %v7316
    %7595 = vmatpush2.bf16.msra.mxu0 %v7315
    %7596 = vmatprep.subr.bf16.mxu0 %v7314
    %7597 = vmatpush2.bf16.msra.mxu0 %v7313
    %7598 = vmatprep.subr.bf16.mxu0 %v7312
    %7599 = vmatpush2.bf16.msra.mxu0 %v7311
    %7600 = vmatprep.subr.bf16.mxu0 %v7310
    %7601 = vmatpush2.bf16.msra.mxu0 %v7309
    %7602 = vmatprep.subr.bf16.mxu0 %v7308
    %7603 = vmatpush2.bf16.msra.mxu0 %v7307
    %7604 = vmatprep.subr.bf16.mxu0 %v7306
    %7605 = vmatpush2.bf16.msra.mxu0 %v7305
    %7606 = vmatprep.subr.bf16.mxu0 %v7304
    %7607 = vmatpush2.bf16.msra.mxu0 %v7303
    %7608 = vmatprep.mubr.bf16.mxu0 %v6664
    %7609 = vmatmul.mubr.bf16.gmra.mxu0 %v6663
    %v7610 = vpop.f32.mrf.mxu0
    %v7611 = vadd.f32 %v7568, %v7610
    %v7612 = vpop.f32.mrf.mxu0
    %v7613 = vadd.f32 %v7570, %v7612
    %v7614 = vpop.f32.mrf.mxu0
    %v7615 = vadd.f32 %v7572, %v7614
    %v7616 = vpop.f32.mrf.mxu0
    %v7617 = vadd.f32 %v7574, %v7616
    %7618 = vdwg.mxu0
    %v7619 = vadd.f32 %v5523, %v7611
    %v7620 = vadd.f32 %v5524, %v7613
    %v7621 = vadd.f32 %v5525, %v7615
    %v7622 = vadd.f32 %v5526, %v7617
    %s7623 = scalar_lea.vmem %s14, 2
    %v7624 = vld [vmem:[%s7623] sm:$0x3]
    %s7625 = scalar_lea.vmem [#allocation22], 2
    %v7626 = vld [vmem:[%s7625] sm:$0x3]
    %v7627 = vadd.f32 %v7619, %v7620
    %7628 = vadd.xlane.f32.xlu0 %v7627
    %v7629 = vpop.xlane.xlu0 %7628
    %v7630 = vadd.f32 %v7621, %v7622
    %7631 = vadd.xlane.f32.xlu0 %v7630
    %v7632 = vpop.xlane.xlu0 %7631
    %v7633 = vmul.f32 %v7629, %v278
    %v7634 = vmul.f32 %v7632, %v278
    %v7635 = vsub.f32 %v7619, %v7633
    %v7636 = vsub.f32 %v7620, %v7633
    %v7637 = vsub.f32 %v7621, %v7634
    %v7638 = vsub.f32 %v7622, %v7634
    %v7639 = vmul.f32 %v7635, %v7635
    %v7640 = vmul.f32 %v7636, %v7636
    %v7641 = vmul.f32 %v7637, %v7637
    %v7642 = vmul.f32 %v7638, %v7638
    %v7643 = vadd.f32 %v7639, %v7640
    %7644 = vadd.xlane.f32.xlu0 %v7643
    %v7645 = vpop.xlane.xlu0 %7644
    %v7646 = vadd.f32 %v7641, %v7642
    %7647 = vadd.xlane.f32.xlu0 %v7646
    %v7648 = vpop.xlane.xlu0 %7647
    %v7649 = vmul.f32 %v7645, %v278
    %v7650 = vmul.f32 %v7648, %v278
    %v7651 = vadd.f32 %v7649, 1e-12
    %v7652 = vadd.f32 %v7650, 1e-12
    %v7653 = vrsqrt.pop %v7651
    %v7654 = vrsqrt.pop %v7652
    %v7655 = vmul.f32 %v7635, %v7653
    %v7656 = vmul.f32 %v7636, %v7653
    %v7657 = vmul.f32 %v7637, %v7654
    %v7658 = vmul.f32 %v7638, %v7654
    %v7660 = vlaneseq
    %v7661 = vshrl.u32 %v7660, 7
    %v7662 = vsub.s32 0, %v7661
    %v7663 = vrot.slane %v7624, %v7662
    %v7664 = vlaneseq
    %v7665 = vshrl.u32 %v7664, 7
    %v7666 = vsub.s32 1, %v7665
    %v7667 = vrot.slane %v7624, %v7666
    %v7670 = vmul.f32 %v7655, %v7663
    %v7671 = vmul.f32 %v7656, %v7667
    %v7672 = vmul.f32 %v7657, %v7663
    %v7673 = vmul.f32 %v7658, %v7667
    %v7675 = vlaneseq
    %v7676 = vshrl.u32 %v7675, 7
    %v7677 = vsub.s32 0, %v7676
    %v7678 = vrot.slane %v7626, %v7677
    %v7679 = vlaneseq
    %v7680 = vshrl.u32 %v7679, 7
    %v7681 = vsub.s32 1, %v7680
    %v7682 = vrot.slane %v7626, %v7681
    %v7685 = vadd.f32 %v7670, %v7678
    %v7686 = vadd.f32 %v7671, %v7682
    %v7687 = vadd.f32 %v7672, %v7678
    %v7688 = vadd.f32 %v7673, %v7682
    %v7689 = vpack.c.bf16 %v7685, %v7685
    %v7690 = vpack.c.bf16 %v7686, %v7686
    %v7691 = vpack.c.bf16 %v7687, %v7687
    %v7692 = vpack.c.bf16 %v7688, %v7688
    %v7693 = vld [vmem:[#allocation23] sm:$0xff]
    %v7694 = vld [vmem:[#allocation23 + $0x8] sm:$0xff]
    %v7695 = vld [vmem:[#allocation23 + $0x10] sm:$0xff]
    %v7696 = vld [vmem:[#allocation23 + $0x18] sm:$0xff]
    %v7697 = vld [vmem:[#allocation23 + $0x20] sm:$0xff]
    %v7698 = vld [vmem:[#allocation23 + $0x28] sm:$0xff]
    %v7699 = vld [vmem:[#allocation23 + $0x30] sm:$0xff]
    %v7700 = vld [vmem:[#allocation23 + $0x38] sm:$0xff]
    %v7701 = vld [vmem:[#allocation23 + $0x40] sm:$0xff]
    %v7702 = vld [vmem:[#allocation23 + $0x48] sm:$0xff]
    %v7703 = vld [vmem:[#allocation23 + $0x50] sm:$0xff]
    %v7704 = vld [vmem:[#allocation23 + $0x58] sm:$0xff]
    %v7705 = vld [vmem:[#allocation23 + $0x60] sm:$0xff]
    %v7706 = vld [vmem:[#allocation23 + $0x68] sm:$0xff]
    %v7707 = vld [vmem:[#allocation23 + $0x70] sm:$0xff]
    %v7708 = vld [vmem:[#allocation23 + $0x78] sm:$0xff]
    %v7709 = vld [vmem:[#allocation23 + $0x80] sm:$0xff]
    %v7710 = vld [vmem:[#allocation23 + $0x88] sm:$0xff]
    %v7711 = vld [vmem:[#allocation23 + $0x90] sm:$0xff]
    %v7712 = vld [vmem:[#allocation23 + $0x98] sm:$0xff]
    %v7713 = vld [vmem:[#allocation23 + $0xa0] sm:$0xff]
    %v7714 = vld [vmem:[#allocation23 + $0xa8] sm:$0xff]
    %v7715 = vld [vmem:[#allocation23 + $0xb0] sm:$0xff]
    %v7716 = vld [vmem:[#allocation23 + $0xb8] sm:$0xff]
    %v7717 = vld [vmem:[#allocation23 + $0xc0] sm:$0xff]
    %v7718 = vld [vmem:[#allocation23 + $0xc8] sm:$0xff]
    %v7719 = vld [vmem:[#allocation23 + $0xd0] sm:$0xff]
    %v7720 = vld [vmem:[#allocation23 + $0xd8] sm:$0xff]
    %v7721 = vld [vmem:[#allocation23 + $0xe0] sm:$0xff]
    %v7722 = vld [vmem:[#allocation23 + $0xe8] sm:$0xff]
    %v7723 = vld [vmem:[#allocation23 + $0xf0] sm:$0xff]
    %v7724 = vld [vmem:[#allocation23 + $0xf8] sm:$0xff]
    %v7725 = vld [vmem:[%s17] sm:$0x3]
    %v7727 = vlaneseq
    %v7728 = vshrl.u32 %v7727, 7
    %v7729 = vsub.s32 0, %v7728
    %v7730 = vrot.slane %v7725, %v7729
    %v7731 = vlaneseq
    %v7732 = vshrl.u32 %v7731, 7
    %v7733 = vsub.s32 1, %v7732
    %v7734 = vrot.slane %v7725, %v7733
    %v7741 = vunpack.c.l.b16 %v7689
    %v7742 = vunpack.c.l.b16 %v7690
    %v7743 = vunpack.c.l.b16 %v7691
    %v7744 = vunpack.c.l.b16 %v7692
    %v7745 = vrot.slane %v7743, 7
    %vm7746 = vcmask 1041409
    %v7747 = vsel %vm7746, %v7745, %v7741
    %v7748 = vrot.slane %v7744, 7
    %v7749 = vsel %vm7746, %v7748, %v7742
    %v7750 = vpack.c.b16 %v7747, %v7747
    %v7751 = vpack.c.b16 %v7749, %v7749
    %v7786 = vunpack.c.l.b16 %v7693
    %v7787 = vunpack.c.h.b16 %v7693
    %v7788 = vunpack.c.l.b16 %v7694
    %v7789 = vunpack.c.h.b16 %v7694
    %v7790 = vunpack.c.l.b16 %v7695
    %v7791 = vunpack.c.h.b16 %v7695
    %v7792 = vunpack.c.l.b16 %v7696
    %v7793 = vunpack.c.h.b16 %v7696
    %v7794 = vunpack.c.l.b16 %v7697
    %v7795 = vunpack.c.h.b16 %v7697
    %v7796 = vunpack.c.l.b16 %v7698
    %v7797 = vunpack.c.h.b16 %v7698
    %v7798 = vunpack.c.l.b16 %v7699
    %v7799 = vunpack.c.h.b16 %v7699
    %v7800 = vunpack.c.l.b16 %v7700
    %v7801 = vunpack.c.h.b16 %v7700
    %v7802 = vunpack.c.l.b16 %v7701
    %v7803 = vunpack.c.h.b16 %v7701
    %v7804 = vunpack.c.l.b16 %v7702
    %v7805 = vunpack.c.h.b16 %v7702
    %v7806 = vunpack.c.l.b16 %v7703
    %v7807 = vunpack.c.h.b16 %v7703
    %v7808 = vunpack.c.l.b16 %v7704
    %v7809 = vunpack.c.h.b16 %v7704
    %v7810 = vunpack.c.l.b16 %v7705
    %v7811 = vunpack.c.h.b16 %v7705
    %v7812 = vunpack.c.l.b16 %v7706
    %v7813 = vunpack.c.h.b16 %v7706
    %v7814 = vunpack.c.l.b16 %v7707
    %v7815 = vunpack.c.h.b16 %v7707
    %v7816 = vunpack.c.l.b16 %v7708
    %v7817 = vunpack.c.h.b16 %v7708
    %v7818 = vunpack.c.l.b16 %v7709
    %v7819 = vunpack.c.h.b16 %v7709
    %v7820 = vunpack.c.l.b16 %v7710
    %v7821 = vunpack.c.h.b16 %v7710
    %v7822 = vunpack.c.l.b16 %v7711
    %v7823 = vunpack.c.h.b16 %v7711
    %v7824 = vunpack.c.l.b16 %v7712
    %v7825 = vunpack.c.h.b16 %v7712
    %v7826 = vunpack.c.l.b16 %v7713
    %v7827 = vunpack.c.h.b16 %v7713
    %v7828 = vunpack.c.l.b16 %v7714
    %v7829 = vunpack.c.h.b16 %v7714
    %v7830 = vunpack.c.l.b16 %v7715
    %v7831 = vunpack.c.h.b16 %v7715
    %v7832 = vunpack.c.l.b16 %v7716
    %v7833 = vunpack.c.h.b16 %v7716
    %v7834 = vunpack.c.l.b16 %v7717
    %v7835 = vunpack.c.h.b16 %v7717
    %v7836 = vunpack.c.l.b16 %v7718
    %v7837 = vunpack.c.h.b16 %v7718
    %v7838 = vunpack.c.l.b16 %v7719
    %v7839 = vunpack.c.h.b16 %v7719
    %v7840 = vunpack.c.l.b16 %v7720
    %v7841 = vunpack.c.h.b16 %v7720
    %v7842 = vunpack.c.l.b16 %v7721
    %v7843 = vunpack.c.h.b16 %v7721
    %v7844 = vunpack.c.l.b16 %v7722
    %v7845 = vunpack.c.h.b16 %v7722
    %v7846 = vunpack.c.l.b16 %v7723
    %v7847 = vunpack.c.h.b16 %v7723
    %v7848 = vunpack.c.l.b16 %v7724
    %v7849 = vunpack.c.h.b16 %v7724
    %v7850 = vpack.c.b16 %v7788, %v7786
    %v7851 = vpack.c.b16 %v7789, %v7787
    %v7852 = vpack.c.b16 %v7792, %v7790
    %v7853 = vpack.c.b16 %v7793, %v7791
    %v7854 = vpack.c.b16 %v7796, %v7794
    %v7855 = vpack.c.b16 %v7797, %v7795
    %v7856 = vpack.c.b16 %v7800, %v7798
    %v7857 = vpack.c.b16 %v7801, %v7799
    %v7858 = vpack.c.b16 %v7804, %v7802
    %v7859 = vpack.c.b16 %v7805, %v7803
    %v7860 = vpack.c.b16 %v7808, %v7806
    %v7861 = vpack.c.b16 %v7809, %v7807
    %v7862 = vpack.c.b16 %v7812, %v7810
    %v7863 = vpack.c.b16 %v7813, %v7811
    %v7864 = vpack.c.b16 %v7816, %v7814
    %v7865 = vpack.c.b16 %v7817, %v7815
    %v7866 = vpack.c.b16 %v7820, %v7818
    %v7867 = vpack.c.b16 %v7821, %v7819
    %v7868 = vpack.c.b16 %v7824, %v7822
    %v7869 = vpack.c.b16 %v7825, %v7823
    %v7870 = vpack.c.b16 %v7828, %v7826
    %v7871 = vpack.c.b16 %v7829, %v7827
    %v7872 = vpack.c.b16 %v7832, %v7830
    %v7873 = vpack.c.b16 %v7833, %v7831
    %v7874 = vpack.c.b16 %v7836, %v7834
    %v7875 = vpack.c.b16 %v7837, %v7835
    %v7876 = vpack.c.b16 %v7840, %v7838
    %v7877 = vpack.c.b16 %v7841, %v7839
    %v7878 = vpack.c.b16 %v7844, %v7842
    %v7879 = vpack.c.b16 %v7845, %v7843
    %v7880 = vpack.c.b16 %v7848, %v7846
    %v7881 = vpack.c.b16 %v7849, %v7847
    %7914 = vmatprep.subr.bf16.mxu0 %v7865
    %7915 = vmatpush1.bf16.msra.mxu0 %v7864
    %7916 = vmatprep.subr.bf16.mxu0 %v7863
    %7917 = vmatpush1.bf16.msra.mxu0 %v7862
    %7918 = vmatprep.subr.bf16.mxu0 %v7861
    %7919 = vmatpush1.bf16.msra.mxu0 %v7860
    %7920 = vmatprep.subr.bf16.mxu0 %v7859
    %7921 = vmatpush1.bf16.msra.mxu0 %v7858
    %7922 = vmatprep.subr.bf16.mxu0 %v7857
    %7923 = vmatpush1.bf16.msra.mxu0 %v7856
    %7924 = vmatprep.subr.bf16.mxu0 %v7855
    %7925 = vmatpush1.bf16.msra.mxu0 %v7854
    %7926 = vmatprep.subr.bf16.mxu0 %v7853
    %7927 = vmatpush1.bf16.msra.mxu0 %v7852
    %7928 = vmatprep.subr.bf16.mxu0 %v7851
    %7929 = vmatpush1.bf16.msra.mxu0 %v7850
    %7930 = vmatprep.subr.bf16.mxu0 %v7881
    %7931 = vmatpush2.bf16.msra.mxu0 %v7880
    %7932 = vmatprep.subr.bf16.mxu0 %v7879
    %7933 = vmatpush2.bf16.msra.mxu0 %v7878
    %7934 = vmatprep.subr.bf16.mxu0 %v7877
    %7935 = vmatpush2.bf16.msra.mxu0 %v7876
    %7936 = vmatprep.subr.bf16.mxu0 %v7875
    %7937 = vmatpush2.bf16.msra.mxu0 %v7874
    %7938 = vmatprep.subr.bf16.mxu0 %v7873
    %7939 = vmatpush2.bf16.msra.mxu0 %v7872
    %7940 = vmatprep.subr.bf16.mxu0 %v7871
    %7941 = vmatpush2.bf16.msra.mxu0 %v7870
    %7942 = vmatprep.subr.bf16.mxu0 %v7869
    %7943 = vmatpush2.bf16.msra.mxu0 %v7868
    %7944 = vmatprep.subr.bf16.mxu0 %v7867
    %7945 = vmatpush2.bf16.msra.mxu0 %v7866
    %7946 = vmatprep.mubr.bf16.mxu0 %v7751
    %7947 = vmatmul.mubr.bf16.gmra.mxu0 %v7750
    %v7948 = vpop.f32.mrf.mxu0
    %v7949 = vadd.f32 %v7730, %v7948
    %v7950 = vpop.f32.mrf.mxu0
    %v7951 = vadd.f32 %v7734, %v7950
    %v7952 = vpop.f32.mrf.mxu0
    %v7953 = vpop.f32.mrf.mxu0
    %7954 = vdwg.mxu0
    %v7955 = vtanh.pop %v7949
    %v7956 = vtanh.pop %v7951
    %v7957 = vpack.c.bf16 %v7955, %v7955
    %v7958 = vpack.c.bf16 %v7956, %v7956
    %v7959 = vld [vmem:[#allocation25] sm:$0xf]
    %v7960 = vld [vmem:[#allocation25 + $0x4] sm:$0xf]
    %v7961 = vld [vmem:[#allocation25 + $0x8] sm:$0xf]
    %v7962 = vld [vmem:[#allocation25 + $0xc] sm:$0xf]
    %v7963 = vld [vmem:[#allocation25 + $0x10] sm:$0xf]
    %v7964 = vld [vmem:[#allocation25 + $0x14] sm:$0xf]
    %v7965 = vld [vmem:[#allocation25 + $0x18] sm:$0xf]
    %v7966 = vld [vmem:[#allocation25 + $0x1c] sm:$0xf]
    %v7967 = vld [vmem:[#allocation25 + $0x20] sm:$0xf]
    %v7968 = vld [vmem:[#allocation25 + $0x24] sm:$0xf]
    %v7969 = vld [vmem:[#allocation25 + $0x28] sm:$0xf]
    %v7970 = vld [vmem:[#allocation25 + $0x2c] sm:$0xf]
    %v7971 = vld [vmem:[#allocation25 + $0x30] sm:$0xf]
    %v7972 = vld [vmem:[#allocation25 + $0x34] sm:$0xf]
    %v7973 = vld [vmem:[#allocation25 + $0x38] sm:$0xf]
    %v7974 = vld [vmem:[#allocation25 + $0x3c] sm:$0xf]
    %v7975 = vld [vmem:[#allocation25 + $0x40] sm:$0xf]
    %v7976 = vld [vmem:[#allocation25 + $0x44] sm:$0xf]
    %v7977 = vld [vmem:[#allocation25 + $0x48] sm:$0xf]
    %v7978 = vld [vmem:[#allocation25 + $0x4c] sm:$0xf]
    %v7979 = vld [vmem:[#allocation25 + $0x50] sm:$0xf]
    %v7980 = vld [vmem:[#allocation25 + $0x54] sm:$0xf]
    %v7981 = vld [vmem:[#allocation25 + $0x58] sm:$0xf]
    %v7982 = vld [vmem:[#allocation25 + $0x5c] sm:$0xf]
    %v7983 = vld [vmem:[#allocation25 + $0x60] sm:$0xf]
    %v7984 = vld [vmem:[#allocation25 + $0x64] sm:$0xf]
    %v7985 = vld [vmem:[#allocation25 + $0x68] sm:$0xf]
    %v7986 = vld [vmem:[#allocation25 + $0x6c] sm:$0xf]
    %v7987 = vld [vmem:[#allocation25 + $0x70] sm:$0xf]
    %v7988 = vld [vmem:[#allocation25 + $0x74] sm:$0xf]
    %v7989 = vld [vmem:[#allocation25 + $0x78] sm:$0xf]
    %v7990 = vld [vmem:[#allocation25 + $0x7c] sm:$0xf]
    %v7991 = vld [vmem:[%s19] sm:$0x1]
    %v7993 = vlaneseq
    %v7994 = vshrl.u32 %v7993, 7
    %v7995 = vsub.s32 0, %v7994
    %v7996 = vrot.slane %v7991, %v7995
    %v8030 = vunpack.c.l.b16 %v7959
    %v8031 = vunpack.c.l.b16 %v7960
    %v8032 = vunpack.c.l.b16 %v7961
    %v8033 = vunpack.c.l.b16 %v7962
    %v8034 = vunpack.c.l.b16 %v7963
    %v8035 = vunpack.c.l.b16 %v7964
    %v8036 = vunpack.c.l.b16 %v7965
    %v8037 = vunpack.c.l.b16 %v7966
    %v8038 = vunpack.c.l.b16 %v7967
    %v8039 = vunpack.c.l.b16 %v7968
    %v8040 = vunpack.c.l.b16 %v7969
    %v8041 = vunpack.c.l.b16 %v7970
    %v8042 = vunpack.c.l.b16 %v7971
    %v8043 = vunpack.c.l.b16 %v7972
    %v8044 = vunpack.c.l.b16 %v7973
    %v8045 = vunpack.c.l.b16 %v7974
    %v8046 = vunpack.c.l.b16 %v7975
    %v8047 = vunpack.c.l.b16 %v7976
    %v8048 = vunpack.c.l.b16 %v7977
    %v8049 = vunpack.c.l.b16 %v7978
    %v8050 = vunpack.c.l.b16 %v7979
    %v8051 = vunpack.c.l.b16 %v7980
    %v8052 = vunpack.c.l.b16 %v7981
    %v8053 = vunpack.c.l.b16 %v7982
    %v8054 = vunpack.c.l.b16 %v7983
    %v8055 = vunpack.c.l.b16 %v7984
    %v8056 = vunpack.c.l.b16 %v7985
    %v8057 = vunpack.c.l.b16 %v7986
    %v8058 = vunpack.c.l.b16 %v7987
    %v8059 = vunpack.c.l.b16 %v7988
    %v8060 = vunpack.c.l.b16 %v7989
    %v8061 = vunpack.c.l.b16 %v7990
    %v8062 = vpack.c.b16 %v8031, %v8030
    %v8063 = vpack.c.b16 %v8033, %v8032
    %v8064 = vpack.c.b16 %v8035, %v8034
    %v8065 = vpack.c.b16 %v8037, %v8036
    %v8066 = vpack.c.b16 %v8039, %v8038
    %v8067 = vpack.c.b16 %v8041, %v8040
    %v8068 = vpack.c.b16 %v8043, %v8042
    %v8069 = vpack.c.b16 %v8045, %v8044
    %v8070 = vpack.c.b16 %v8047, %v8046
    %v8071 = vpack.c.b16 %v8049, %v8048
    %v8072 = vpack.c.b16 %v8051, %v8050
    %v8073 = vpack.c.b16 %v8053, %v8052
    %v8074 = vpack.c.b16 %v8055, %v8054
    %v8075 = vpack.c.b16 %v8057, %v8056
    %v8076 = vpack.c.b16 %v8059, %v8058
    %v8077 = vpack.c.b16 %v8061, %v8060
    %8094 = vmatprep.subr.bf16.mxu0 0
    %8095 = vmatpush1.bf16.msra.mxu0 %v8069
    %8096 = vmatprep.subr.bf16.mxu0 0
    %8097 = vmatpush1.bf16.msra.mxu0 %v8068
    %8098 = vmatprep.subr.bf16.mxu0 0
    %8099 = vmatpush1.bf16.msra.mxu0 %v8067
    %8100 = vmatprep.subr.bf16.mxu0 0
    %8101 = vmatpush1.bf16.msra.mxu0 %v8066
    %8102 = vmatprep.subr.bf16.mxu0 0
    %8103 = vmatpush1.bf16.msra.mxu0 %v8065
    %8104 = vmatprep.subr.bf16.mxu0 0
    %8105 = vmatpush1.bf16.msra.mxu0 %v8064
    %8106 = vmatprep.subr.bf16.mxu0 0
    %8107 = vmatpush1.bf16.msra.mxu0 %v8063
    %8108 = vmatprep.subr.bf16.mxu0 0
    %8109 = vmatpush1.bf16.msra.mxu0 %v8062
    %8110 = vmatprep.subr.bf16.mxu0 0
    %8111 = vmatpush2.bf16.msra.mxu0 %v8077
    %8112 = vmatprep.subr.bf16.mxu0 0
    %8113 = vmatpush2.bf16.msra.mxu0 %v8076
    %8114 = vmatprep.subr.bf16.mxu0 0
    %8115 = vmatpush2.bf16.msra.mxu0 %v8075
    %8116 = vmatprep.subr.bf16.mxu0 0
    %8117 = vmatpush2.bf16.msra.mxu0 %v8074
    %8118 = vmatprep.subr.bf16.mxu0 0
    %8119 = vmatpush2.bf16.msra.mxu0 %v8073
    %8120 = vmatprep.subr.bf16.mxu0 0
    %8121 = vmatpush2.bf16.msra.mxu0 %v8072
    %8122 = vmatprep.subr.bf16.mxu0 0
    %8123 = vmatpush2.bf16.msra.mxu0 %v8071
    %8124 = vmatprep.subr.bf16.mxu0 0
    %8125 = vmatpush2.bf16.msra.mxu0 %v8070
    %8126 = vmatprep.mubr.bf16.mxu0 %v7958
    %8127 = vmatmul.mubr.bf16.gmra.mxu0 %v7957
    %v8128 = vpop.f32.mrf.mxu0
    %v8129 = vadd.f32 %v7996, %v8128
    %v8130 = vpop.f32.mrf.mxu0
    %v8131 = vpop.f32.mrf.mxu0
    %v8132 = vpop.f32.mrf.mxu0
    %8133 = vdwg.mxu0
    %8134 = vst [vmem:[#allocation26] sm:$0x3] %v8129
    // Predicated region
    $region142: #{tpu_custom_call.1} parent=1 // pred_check
      _
    $region143: #{tpu_custom_call.1} parent=1 // pred_check_branch
      %8136 = sbr.rel (0) target = $region145
    $region144: #{tpu_custom_call.1} parent=1 // pred_region
      %s8138 = ssub.s32 32, 32
      %8139 = vsyncadd [#allocation4], %s8138
      %s8141 = sshll.u32 [#allocation26], 4
      %s8142 = int_to_ptr.vmem [resolvable:$true] %s8141
      %8144 = dma.vmem_to_hbm [thread:$0]  %s8142, 32, %s20, [#allocation4]
    $region145: #{tpu_custom_call.1} parent=1 // pred_fallthru
      _
    // Predicated region
    $region146: #{tpu_custom_call.1} parent=1 // pred_check
      _
    $region147: #{tpu_custom_call.1} parent=1 // pred_check_branch
      %8146 = sbr.rel (0) target = $region149
    $region148: #{tpu_custom_call.1} parent=1 // pred_region
      %8147 = dma.done [#allocation4], 32
    $region149: #{tpu_custom_call.1} parent=1 // pred_fallthru
      _
    %8148 = vsyncpa [#allocation3], 1
    %8149 = vsyncpa [#allocation6], 1
    %8150 = vsyncpa [#allocation9], 1
    %8151 = vsyncpa [#allocation12], 1
    %8152 = vsyncpa [#allocation15], 1
    %8153 = vsyncpa [#allocation18], 1
    %8154 = vsyncpa [#allocation21], 1
    %8155 = vsyncpa [#allocation24], 1
    %8156 = vsyncpa [#allocation4], 1

</llo_original>
